<compile_context>
chip_gen: v5e
topology: v5e:2x2
jax: 0.10.0
libtpu: 0.0.40
codegen_flags: <defaults>
</compile_context>

<pallas_src>
import functools
import math

import jax
import jax.numpy as jnp
from jax import lax
from jax.experimental import pallas as pl
from jax.experimental.pallas import tpu as pltpu

F32 = jnp.float32
BF16 = jnp.bfloat16


def _vmem_limit_bytes():
    """Generation-dependent scoped-VMEM limit (~7/8 of physical capacity)."""
    try:
        cap = int(pltpu.get_tpu_info().vmem_capacity_bytes)
        cap = max(32 * 1024 * 1024, min(cap, 256 * 1024 * 1024))
    except Exception:  # pragma: no cover - conservative fallback
        cap = 64 * 1024 * 1024
    return min(int(cap * 7 // 8), cap - 8 * 1024 * 1024)


def _layer_norm(x, g, b, eps=1e-5):
    mu = jnp.mean(x, axis=-1, keepdims=True)
    var = jnp.mean((x - mu) ** 2, axis=-1, keepdims=True)
    return (x - mu) * lax.rsqrt(var + eps) * g + b


# ----------------------------------------------------------------------------
# Kernel: one StructureLayer (IPA + LN + transition + backbone update)
# grid = (batch, key/pair tile); the j axis runs an online (flash) softmax.
# ----------------------------------------------------------------------------
def structure_layer_kernel(
    # inputs
    s_ref, p_ref, rot_ref, tr_ref, mask_ref,
    wproj_ref, bproj_ref, wbT_ref, hw_ref,
    wout_ref, bout_ref, g1_ref, be1_ref,
    wt_ref, bt_ref, g2_ref, be2_ref, wbb_ref, bbb_ref,
    # output
    out_ref,
    # scratch
    qcat_ref, kcat_ref, vcat_ref, knc_ref, m_ref, l_ref, accv_ref, accp_ref,
    *, N, C_S, C_P, C_H, H, PQ, PV, L_TR, TJ, OUT_W, inf=1e5, eps=1e-8,
):
    HC, HPQ, HPV = H * C_H, H * PQ, H * PV
    W3 = 2 * HPQ + HPV            # concatenated q/k/v point block per axis

    j = pl.program_id(1)
    nj = pl.num_programs(1)
    scale_qk = math.sqrt(1.0 / (3.0 * C_H))
    scale_b = math.sqrt(1.0 / 3.0)
    wc = -0.5 * math.sqrt(1.0 / (3.0 * (PQ * 9.0 / 2.0)))

    # ------------------- once per batch tile: projections + scratch init --------
    @pl.when(j == 0)
    def _setup():
        s = s_ref[0]                                   # [N, C_S] f32
        rot = rot_ref[0]                               # [N, 9]  row-major R
        tr = tr_ref[0]                                 # [N, 3]

        # single fused, lane-dense projection for q/k/v and all point heads
        proj = jnp.dot(s.astype(BF16), wproj_ref[...],
                       preferred_element_type=F32) + bproj_ref[...]
        q = proj[:, :HC]
        k = proj[:, HC:2 * HC]
        v = proj[:, 2 * HC:3 * HC]
        base = 3 * HC
        lx = proj[:, base:base + W3]
        ly = proj[:, base + W3:base + 2 * W3]
        lz = proj[:, base + 2 * W3:base + 3 * W3]

        r00, r01, r02 = rot[:, 0:1], rot[:, 1:2], rot[:, 2:3]
        r10, r11, r12 = rot[:, 3:4], rot[:, 4:5], rot[:, 5:6]
        r20, r21, r22 = rot[:, 6:7], rot[:, 7:8], rot[:, 8:9]
        tx, ty, tz = tr[:, 0:1], tr[:, 1:2], tr[:, 2:3]

        # ONE frame application over the concatenated q|k|v point blocks:
        # every rotation/translation component is broadcast exactly once per axis.
        gx = r00 * lx + r01 * ly + r02 * lz + tx
        gy = r10 * lx + r11 * ly + r12 * lz + ty
        gz = r20 * lx + r21 * ly + r22 * lz + tz

        qgx, kgx, vgx = gx[:, :HPQ], gx[:, HPQ:2 * HPQ], gx[:, 2 * HPQ:]
        qgy, kgy, vgy = gy[:, :HPQ], gy[:, HPQ:2 * HPQ], gy[:, 2 * HPQ:]
        qgz, kgz, vgz = gz[:, :HPQ], gz[:, HPQ:2 * HPQ], gz[:, 2 * HPQ:]

        hw = jax.nn.softplus(hw_ref[...])              # [1, H]
        hw_r = wc * hw                                 # [1, H], negative
        pt_scale = (-2.0 * hw_r)[:, :, None]           # [1, H, 1]

        # fused-logit operands; scales folded into the q side.
        qcat = jnp.concatenate(
            [q.reshape(N, H, C_H) * scale_qk,
             qgx.reshape(N, H, PQ) * pt_scale,
             qgy.reshape(N, H, PQ) * pt_scale,
             qgz.reshape(N, H, PQ) * pt_scale], axis=-1)
        kcat = jnp.concatenate(
            [k.reshape(N, H, C_H),
             kgx.reshape(N, H, PQ),
             kgy.reshape(N, H, PQ),
             kgz.reshape(N, H, PQ)], axis=-1)
        vcat = jnp.concatenate(
            [v.reshape(N, H, C_H),
             vgx.reshape(N, H, PV),
             vgy.reshape(N, H, PV),
             vgz.reshape(N, H, PV)], axis=-1)
        # head-major; one relayout per batch tile, amortized over all j steps.
        qcat_ref[...] = jnp.transpose(qcat, (1, 0, 2)).astype(BF16)
        kcat_ref[...] = jnp.transpose(kcat, (1, 0, 2)).astype(BF16)
        vcat_ref[...] = jnp.transpose(vcat, (1, 0, 2)).astype(BF16)

        # hw_r * ||k_j||^2 kept in f32 (column layout so j-tiles are sublane
        # slices).  The matching hw_r * ||q_i||^2 term is constant over j and
        # therefore a no-op under softmax -> dropped exactly.
        kn = (kgx * kgx + kgy * kgy + kgz * kgz).reshape(N, H, PQ).sum(-1)  # [N, H]
        knc_ref[...] = jnp.transpose(kn * hw_r).reshape(H, N, 1)

        # online-softmax state
        m_ref[...] = jnp.full(m_ref.shape, -1e30, F32)
        l_ref[...] = jnp.zeros(l_ref.shape, F32)
        accv_ref[...] = jnp.zeros(accv_ref.shape, F32)
        accp_ref[...] = jnp.zeros(accp_ref.shape, F32)

    # ------------------- per key/pair tile: logits + online softmax -------------
    jo = pl.multiple_of(j * TJ, TJ)
    pj = p_ref[0]                                       # [N, TJ, C_P] bf16
    kj = kcat_ref[:, pl.ds(jo, TJ), :]                  # [H, TJ, DQK] bf16
    vj = vcat_ref[:, pl.ds(jo, TJ), :]                  # [H, TJ, DV]  bf16

    # scalar qk + point-distance cross term, one bf16 MXU einsum (f32 acc)
    a = jnp.einsum('hid,hjd->hij', qcat_ref[...], kj,
                   preferred_element_type=F32)
    # pair bias in its native [H, N, TJ] layout (no transposes)
    a = a + scale_b * jnp.einsum('hc,ijc->hij', wbT_ref[...], pj,
                                 preferred_element_type=F32)
    # rank-1 point-norm term (f32, VPU add)
    knj = jnp.transpose(knc_ref[:, pl.ds(jo, TJ), :], (0, 2, 1))   # [H, 1, TJ]
    a = a + knj
    # residue-pair mask (mask kept as a column vector: i-slice free, j-slice tiny)
    mi = mask_ref[0]                                    # [N, 1]
    mj = jnp.transpose(mask_ref[0, pl.ds(jo, TJ), :])   # [1, TJ]
    a = a + (inf * (mi * mj - 1.0))[None, :, :]

    m_prev = m_ref[...]
    m_new = jnp.maximum(m_prev, jnp.max(a, axis=-1, keepdims=True))
    alpha = jnp.exp(m_prev - m_new)                     # [H, N, 1]
    e = jnp.exp(a - m_new)                              # f32 [H, N, TJ]
    l_ref[...] = alpha * l_ref[...] + jnp.sum(e, axis=-1, keepdims=True)
    e16 = e.astype(BF16)                                # f32 e dies here

    # fused scalar + point values, reusing e16 already in vregs
    accv_ref[...] = alpha * accv_ref[...] + jnp.einsum(
        'hij,hjd->hid', e16, vj, preferred_element_type=F32)
    # pair-rep values in their natural [i, h, c] layout
    alpha_nh = jnp.transpose(alpha, (1, 0, 2))          # [N, H, 1]
    accp_ref[...] = alpha_nh * accp_ref[...] + jnp.einsum(
        'hij,ijc->ihc', e16, pj, preferred_element_type=F32)
    m_ref[...] = m_new

    # ------------------- finalize once per batch tile (last j step) -------------
    @pl.when(j == nj - 1)
    def _finalize():
        s = s_ref[0]
        rot = rot_ref[0]
        tr = tr_ref[0]

        inv_l = pl.reciprocal(l_ref[...], approx=True)               # [H, N, 1]
        ov = jnp.transpose(accv_ref[...] * inv_l, (1, 0, 2))          # [N, H, DV]
        o_sc = ov[:, :, :C_H].reshape(N, HC)
        ogx = ov[:, :, C_H:C_H + PV]
        ogy = ov[:, :, C_H + PV:C_H + 2 * PV]
        ogz = ov[:, :, C_H + 2 * PV:]
        opair = accp_ref[...] * jnp.transpose(inv_l, (1, 0, 2))       # [N, H, C_P]

        # invert_apply: local = R^T (global - t), in the native [N, H, PV] layout
        tx, ty, tz = tr[:, 0:1, None], tr[:, 1:2, None], tr[:, 2:3, None]
        dx, dy, dz = ogx - tx, ogy - ty, ogz - tz
        r_ = lambda c: rot[:, c:c + 1, None]
        olx = r_(0) * dx + r_(3) * dy + r_(6) * dz
        oly = r_(1) * dx + r_(4) * dy + r_(7) * dz
        olz = r_(2) * dx + r_(5) * dy + r_(8) * dz
        onorm = jnp.sqrt(olx * olx + oly * oly + olz * olz + eps)

        feats = jnp.concatenate(
            [o_sc, olx.reshape(N, HPV), oly.reshape(N, HPV), olz.reshape(N, HPV),
             onorm.reshape(N, HPV), opair.reshape(N, H * C_P)], axis=-1)
        ipa = jnp.dot(feats.astype(BF16), wout_ref[...],
                      preferred_element_type=F32) + bout_ref[...]

        # residual + LayerNorm (ipa_dropout is identity in eval mode)
        x = _layer_norm(s + ipa, g1_ref[...], be1_ref[...])

        # StructureTransition (dropout identity)
        for l in range(L_TR):
            h0 = jnp.maximum(jnp.dot(x.astype(BF16), wt_ref[l, 0],
                                     preferred_element_type=F32) + bt_ref[l, 0], 0.0)
            h1 = jnp.maximum(jnp.dot(h0.astype(BF16), wt_ref[l, 1],
                                     preferred_element_type=F32) + bt_ref[l, 1], 0.0)
            h2 = jnp.dot(h1.astype(BF16), wt_ref[l, 2],
                         preferred_element_type=F32) + bt_ref[l, 2]
            x = x + h2
        x = _layer_norm(x, g2_ref[...], be2_ref[...])

        # BackboneUpdate, zero-padded so [x | upd] is one lane-dense store
        upd = jnp.dot(x.astype(BF16), wbb_ref[...],
                      preferred_element_type=F32) + bbb_ref[...]
        out_ref[...] = jnp.concatenate([x, upd], axis=-1).reshape(1, N, OUT_W)


# ----------------------------------------------------------------------------
# Parameters (module-style init) + packing into the fused kernel layout
# ----------------------------------------------------------------------------
def layer_param_init(key, C_S, C_P, C_H, H, PQ, PV, L_TR):
    HC, HPQ, HPV = H * C_H, H * PQ, H * PV
    F = H * (C_H + 4 * PV + C_P)

    def rnd(i, shape):
        return 0.05 * jax.random.normal(jax.random.fold_in(key, i), shape, F32)

    return {
        'wq': rnd(0, (C_S, HC)), 'bq': rnd(1, (HC,)),
        'wk': rnd(2, (C_S, HC)), 'bk': rnd(3, (HC,)),
        'wv': rnd(4, (C_S, HC)), 'bv': rnd(5, (HC,)),
        'wqp': rnd(6, (3, C_S, HPQ)), 'bqp': rnd(7, (3, HPQ)),
        'wkp': rnd(8, (3, C_S, HPQ)), 'bkp': rnd(9, (3, HPQ)),
        'wvp': rnd(10, (3, C_S, HPV)), 'bvp': rnd(11, (3, HPV)),
        'wb': rnd(12, (C_P, H)), 'bpb': rnd(13, (H,)),
        'hw': rnd(14, (H,)),
        'wout': rnd(15, (F, C_S)), 'bout': rnd(16, (C_S,)),
        'g1': jnp.ones((C_S,), F32), 'be1': jnp.zeros((C_S,), F32),
        'wt': rnd(17, (L_TR, 3, C_S, C_S)), 'bt': rnd(18, (L_TR, 3, C_S)),
        'g2': jnp.ones((C_S,), F32), 'be2': jnp.zeros((C_S,), F32),
        'wbb': rnd(19, (C_S, 6)), 'bbb': rnd(20, (6,)),
    }


def pack_layer_params(p, OUT_W):
    """Pack per-submodule parameters into the fused / padded kernel layout.

    Projection column order: [q | k | v | (qpx kpx vpx) | (qpy kpy vpy) | (qpz kpz vpz)].
    The pair-bias bias `bpb` is a per-row constant under softmax -> dropped exactly.
    """
    C_S = p['wq'].shape[0]
    wproj = jnp.concatenate(
        [p['wq'], p['wk'], p['wv'],
         p['wqp'][0], p['wkp'][0], p['wvp'][0],
         p['wqp'][1], p['wkp'][1], p['wvp'][1],
         p['wqp'][2], p['wkp'][2], p['wvp'][2]], axis=1)
    bproj = jnp.concatenate(
        [p['bq'], p['bk'], p['bv'],
         p['bqp'][0], p['bkp'][0], p['bvp'][0],
         p['bqp'][1], p['bkp'][1], p['bvp'][1],
         p['bqp'][2], p['bkp'][2], p['bvp'][2]], axis=0)[None, :]
    pad = OUT_W - C_S
    wbb = jnp.zeros((C_S, pad), F32).at[:, :6].set(p['wbb'])
    bbb = jnp.zeros((1, pad), F32).at[0, :6].set(p['bbb'])
    return [
        wproj.astype(BF16), bproj,
        jnp.transpose(p['wb']).astype(BF16),            # [H, C_P]
        p['hw'][None, :],
        p['wout'].astype(BF16), p['bout'][None, :],
        p['g1'][None, :], p['be1'][None, :],
        p['wt'].astype(BF16), p['bt'][:, :, None, :],
        p['g2'][None, :], p['be2'][None, :],
        wbb.astype(BF16), bbb,
    ]


# ----------------------------------------------------------------------------
# pallas_call builder
# ----------------------------------------------------------------------------
def build_layer_call(B, N, C_S, C_P, C_H, H, PQ, PV, L_TR, TJ, OUT_W, packed_params):
    assert N % TJ == 0 and TJ % 8 == 0
    NJ = N // TJ
    DQK = C_H + 3 * PQ
    DV = C_H + 3 * PV

    kernel = functools.partial(
        structure_layer_kernel, N=N, C_S=C_S, C_P=C_P, C_H=C_H, H=H,
        PQ=PQ, PV=PV, L_TR=L_TR, TJ=TJ, OUT_W=OUT_W)

    def batch_spec(shape):
        nd = len(shape)
        return pl.BlockSpec((1,) + tuple(shape[1:]),
                            lambda b, j, _nd=nd: (b,) + (0,) * (_nd - 1))

    def full_spec(shape):
        nd = len(shape)
        return pl.BlockSpec(tuple(shape), lambda b, j, _nd=nd: (0,) * _nd)

    # pair rep streamed per (batch, j) tile; BlockSpec double-buffers the DMA.
    # TODO(synk): sweep pipeline_mode=pl.Buffered(2..3) here once DMA exposure
    # is measured on real shapes.
    pair_spec = pl.BlockSpec((1, N, TJ, C_P), lambda b, j: (b, 0, j, 0))

    in_specs = ([batch_spec((B, N, C_S)),      # s
                 pair_spec,                    # p (bf16)
                 batch_spec((B, N, 9)),        # rot (row-major, flattened)
                 batch_spec((B, N, 3)),        # trans
                 batch_spec((B, N, 1))]        # residue mask (column layout)
                + [full_spec(w.shape) for w in packed_params])

    scratch = [
        pltpu.VMEM((H, N, DQK), BF16),   # qcat (head-major, scales folded)
        pltpu.VMEM((H, N, DQK), BF16),   # kcat
        pltpu.VMEM((H, N, DV), BF16),    # vcat (scalar + point values fused)
        pltpu.VMEM((H, N, 1), F32),      # hw_r * ||k_j||^2 (column layout)
        pltpu.VMEM((H, N, 1), F32),      # online-softmax running max
        pltpu.VMEM((H, N, 1), F32),      # online-softmax running denom
        pltpu.VMEM((H, N, DV), F32),     # value accumulator
        pltpu.VMEM((N, H, C_P), F32),    # pair-value accumulator
    ]

    return pl.pallas_call(
        kernel,
        out_shape=jax.ShapeDtypeStruct((B, N, OUT_W), F32),
        grid=(B, NJ),
        in_specs=in_specs,
        out_specs=pl.BlockSpec((1, N, OUT_W), lambda b, j: (b, 0, 0)),
        scratch_shapes=scratch,
        compiler_params=pltpu.CompilerParams(
            dimension_semantics=("parallel", "arbitrary"),
            vmem_limit_bytes=_vmem_limit_bytes()),
    )


# ----------------------------------------------------------------------------
# Frame composition (plain-JAX glue; tiny per-residue 3x3 math)
# ----------------------------------------------------------------------------
def compose_frames(rot9, trans, upd):
    """AlphaFold2-style frame composition from a 6-vector backbone update."""
    b, c, d = upd[..., 0], upd[..., 1], upd[..., 2]
    t_u = upd[..., 3:6]
    w = jnp.ones_like(b)
    norm = jnp.sqrt(w * w + b * b + c * c + d * d)
    w, b, c, d = w / norm, b / norm, c / norm, d / norm
    R_upd = jnp.stack([
        w * w + b * b - c * c - d * d, 2 * (b * c - w * d), 2 * (b * d + w * c),
        2 * (b * c + w * d), w * w - b * b + c * c - d * d, 2 * (c * d - w * b),
        2 * (b * d - w * c), 2 * (c * d + w * b), w * w - b * b - c * c + d * d,
    ], axis=-1)                                                       # [B, N, 9]
    rotm = rot9.reshape(rot9.shape[:-1] + (3, 3))
    Rm = R_upd.reshape(R_upd.shape[:-1] + (3, 3))
    new_rot = jnp.einsum('bnij,bnjk->bnik', rotm, Rm).reshape(rot9.shape)
    new_trans = jnp.einsum('bnij,bnj->bni', rotm, t_u) + trans
    return new_rot, new_trans


# ----------------------------------------------------------------------------
# Main
# ----------------------------------------------------------------------------
if __name__ == "__main__":
    # small, self-consistent config
    B, N = 2, 16
    C_S, C_P = 32, 16
    C_H, H, PQ, PV = 16, 4, 4, 8
    n_structure_layer = 2
    n_structure_block = 1
    L_TR = 1                              # n_structure_transition_layer
    TJ = 8                                # key/pair tile (flash j axis) -> NJ = 2
    OUT_W = 128 * pl.cdiv(C_S + 6, 128)   # lane-dense combined output width

    key = jax.random.PRNGKey(0)
    raw_layers = [layer_param_init(jax.random.fold_in(key, 1000 + i),
                                   C_S, C_P, C_H, H, PQ, PV, L_TR)
                  for i in range(n_structure_layer)]
    packed_layers = [pack_layer_params(p, OUT_W) for p in raw_layers]

    ks = jax.random.split(key, 4)
    s = jax.random.normal(ks[0], (B, N, C_S), F32)
    p = jax.random.normal(ks[1], (B, N, N, C_P), F32)
    rot9 = jnp.tile(jnp.eye(3, dtype=F32).reshape(1, 1, 9), (B, N, 1))
    trans = 0.1 * jax.random.normal(ks[2], (B, N, 3), F32)
    features = {'residue_mask': jnp.ones((B, N), F32)}

    layer_call = build_layer_call(B, N, C_S, C_P, C_H, H, PQ, PV, L_TR,
                                  TJ, OUT_W, packed_layers[0])

    def structure_net_forward(s, p, rot9, trans, features):
        mask_col = features['residue_mask'][:, :, None]        # [B, N, 1]
        # TODO(synk): quantize the pair rep (int8 on v5e/v6e, fp8 on v7x).
        p16 = p.astype(BF16)       # halves the dominant HBM stream (pair rep)
        states = [s[None]]
        r, t = rot9, trans
        for _ in range(n_structure_block):
            for lp in packed_layers:
                out = layer_call(s, p16, r, t, mask_col, *lp)
                s = out[..., :C_S]
                upd = out[..., C_S:C_S + 6]
                states.append(s[None])
                r, t = compose_frames(r, t, upd)
        return jnp.concatenate(states, axis=0), (r, t)

    states, (rot_out, trans_out) = jax.jit(structure_net_forward)(s, p, rot9, trans, features)
    jax.block_until_ready((states, rot_out, trans_out))

    assert states.shape == (1 + n_structure_block * n_structure_layer, B, N, C_S)
    assert rot_out.shape == (B, N, 9) and trans_out.shape == (B, N, 3)
    assert bool(jnp.all(jnp.isfinite(states))) and bool(jnp.all(jnp.isfinite(trans_out)))
    print("KERNEL_OK")
</pallas_src>

<mosaic_0001>
module attributes {stable_mosaic.version = 11 : i64} {
  func.func @structure_layer_kernel(%arg0: i32, %arg1: i32, %arg2: memref<1x16x32xf32, #tpu.memory_space<vmem>>, %arg3: memref<1x16x8x16xbf16, #tpu.memory_space<vmem>>, %arg4: memref<1x16x9xf32, #tpu.memory_space<vmem>>, %arg5: memref<1x16x3xf32, #tpu.memory_space<vmem>>, %arg6: memref<1x16x1xf32, #tpu.memory_space<vmem>>, %arg7: memref<32x384xbf16, #tpu.memory_space<vmem>>, %arg8: memref<1x384xf32, #tpu.memory_space<vmem>>, %arg9: memref<4x16xbf16, #tpu.memory_space<vmem>>, %arg10: memref<1x4xf32, #tpu.memory_space<vmem>>, %arg11: memref<256x32xbf16, #tpu.memory_space<vmem>>, %arg12: memref<1x32xf32, #tpu.memory_space<vmem>>, %arg13: memref<1x32xf32, #tpu.memory_space<vmem>>, %arg14: memref<1x32xf32, #tpu.memory_space<vmem>>, %arg15: memref<1x3x32x32xbf16, #tpu.memory_space<vmem>>, %arg16: memref<1x3x1x32xf32, #tpu.memory_space<vmem>>, %arg17: memref<1x32xf32, #tpu.memory_space<vmem>>, %arg18: memref<1x32xf32, #tpu.memory_space<vmem>>, %arg19: memref<32x96xbf16, #tpu.memory_space<vmem>>, %arg20: memref<1x96xf32, #tpu.memory_space<vmem>>, %arg21: memref<1x16x128xf32, #tpu.memory_space<vmem>>, %arg22: memref<4x16x28xbf16, #tpu.memory_space<vmem>>, %arg23: memref<4x16x28xbf16, #tpu.memory_space<vmem>>, %arg24: memref<4x16x40xbf16, #tpu.memory_space<vmem>>, %arg25: memref<4x16x1xf32, #tpu.memory_space<vmem>>, %arg26: memref<4x16x1xf32, #tpu.memory_space<vmem>>, %arg27: memref<4x16x1xf32, #tpu.memory_space<vmem>>, %arg28: memref<4x16x40xf32, #tpu.memory_space<vmem>>, %arg29: memref<16x4x16xf32, #tpu.memory_space<vmem>>) attributes {dimension_semantics = [#tpu.dimension_semantics<parallel>, #tpu.dimension_semantics<arbitrary>], iteration_bounds = array<i64: 2, 2>, scalar_prefetch = 0 : i64, scratch_operands = 8 : i64, tpu.core_type = #tpu.core_type<tc>, window_params = [{transform_indices = @transform_0, window_bounds = array<i64: 1, 16, 32>}, {transform_indices = @transform_1, window_bounds = array<i64: 1, 16, 8, 16>}, {transform_indices = @transform_2, window_bounds = array<i64: 1, 16, 9>}, {transform_indices = @transform_3, window_bounds = array<i64: 1, 16, 3>}, {transform_indices = @transform_4, window_bounds = array<i64: 1, 16, 1>}, {pipeline_mode = #tpu.pipeline_mode<synchronous>, transform_indices = @transform_5, window_bounds = array<i64: 32, 384>}, {pipeline_mode = #tpu.pipeline_mode<synchronous>, transform_indices = @transform_6, window_bounds = array<i64: 1, 384>}, {pipeline_mode = #tpu.pipeline_mode<synchronous>, transform_indices = @transform_7, window_bounds = array<i64: 4, 16>}, {pipeline_mode = #tpu.pipeline_mode<synchronous>, transform_indices = @transform_8, window_bounds = array<i64: 1, 4>}, {pipeline_mode = #tpu.pipeline_mode<synchronous>, transform_indices = @transform_9, window_bounds = array<i64: 256, 32>}, {pipeline_mode = #tpu.pipeline_mode<synchronous>, transform_indices = @transform_10, window_bounds = array<i64: 1, 32>}, {pipeline_mode = #tpu.pipeline_mode<synchronous>, transform_indices = @transform_11, window_bounds = array<i64: 1, 32>}, {pipeline_mode = #tpu.pipeline_mode<synchronous>, transform_indices = @transform_12, window_bounds = array<i64: 1, 32>}, {pipeline_mode = #tpu.pipeline_mode<synchronous>, transform_indices = @transform_13, window_bounds = array<i64: 1, 3, 32, 32>}, {pipeline_mode = #tpu.pipeline_mode<synchronous>, transform_indices = @transform_14, window_bounds = array<i64: 1, 3, 1, 32>}, {pipeline_mode = #tpu.pipeline_mode<synchronous>, transform_indices = @transform_15, window_bounds = array<i64: 1, 32>}, {pipeline_mode = #tpu.pipeline_mode<synchronous>, transform_indices = @transform_16, window_bounds = array<i64: 1, 32>}, {pipeline_mode = #tpu.pipeline_mode<synchronous>, transform_indices = @transform_17, window_bounds = array<i64: 32, 96>}, {pipeline_mode = #tpu.pipeline_mode<synchronous>, transform_indices = @transform_18, window_bounds = array<i64: 1, 96>}, {transform_indices = @transform_19, window_bounds = array<i64: 1, 16, 128>}]} {
    %c0_i32 = arith.constant 0 : i32
    %0 = arith.cmpi eq, %arg1, %c0_i32 : i32
    %1 = arith.extui %0 : i1 to i32
    %c0_i32_0 = arith.constant 0 : i32
    %2 = arith.cmpi ne, %1, %c0_i32_0 : i32
    scf.if %2 {
      %c0_53 = arith.constant 0 : index
      %c0_54 = arith.constant 0 : index
      %c0_55 = arith.constant 0 : index
      %72 = vector.load %arg2[%c0_53, %c0_54, %c0_55] : memref<1x16x32xf32, #tpu.memory_space<vmem>>, vector<1x16x32xf32>
      %73 = vector.shape_cast %72 : vector<1x16x32xf32> to vector<16x32xf32>
      %c0_56 = arith.constant 0 : index
      %c0_57 = arith.constant 0 : index
      %c0_58 = arith.constant 0 : index
      %74 = vector.load %arg4[%c0_56, %c0_57, %c0_58] : memref<1x16x9xf32, #tpu.memory_space<vmem>>, vector<1x16x9xf32>
      %75 = vector.shape_cast %74 : vector<1x16x9xf32> to vector<16x9xf32>
      %c0_59 = arith.constant 0 : index
      %c0_60 = arith.constant 0 : index
      %c0_61 = arith.constant 0 : index
      %76 = vector.load %arg5[%c0_59, %c0_60, %c0_61] : memref<1x16x3xf32, #tpu.memory_space<vmem>>, vector<1x16x3xf32>
      %77 = vector.shape_cast %76 : vector<1x16x3xf32> to vector<16x3xf32>
      %78 = arith.truncf %73 : vector<16x32xf32> to vector<16x32xbf16>
      %c0_62 = arith.constant 0 : index
      %c0_63 = arith.constant 0 : index
      %79 = vector.load %arg7[%c0_62, %c0_63] : memref<32x384xbf16, #tpu.memory_space<vmem>>, vector<32x384xbf16>
      %cst_64 = arith.constant dense<0.000000e+00> : vector<16x384xf32>
      %80 = tpu.matmul %78, %79, %cst_64 {dimension_numbers = #tpu.dot_dimension_numbers<[1], [0], [0], [1], [0, 0, 1, 1], [], []>} : vector<16x32xbf16>, vector<32x384xbf16>, vector<16x384xf32> -> vector<16x384xf32>
      %c0_65 = arith.constant 0 : index
      %c0_66 = arith.constant 0 : index
      %81 = vector.load %arg8[%c0_65, %c0_66] : memref<1x384xf32, #tpu.memory_space<vmem>>, vector<1x384xf32>
      %82 = vector.broadcast %81 : vector<1x384xf32> to vector<16x384xf32>
      %83 = arith.addf %80, %82 : vector<16x384xf32>
      %84 = vector.extract_strided_slice %83 {offsets = [0, 0], sizes = [16, 64], strides = [1, 1]} : vector<16x384xf32> to vector<16x64xf32>
      %85 = vector.extract_strided_slice %83 {offsets = [0, 64], sizes = [16, 64], strides = [1, 1]} : vector<16x384xf32> to vector<16x64xf32>
      %86 = vector.extract_strided_slice %83 {offsets = [0, 128], sizes = [16, 64], strides = [1, 1]} : vector<16x384xf32> to vector<16x64xf32>
      %87 = vector.extract_strided_slice %83 {offsets = [0, 192], sizes = [16, 64], strides = [1, 1]} : vector<16x384xf32> to vector<16x64xf32>
      %88 = vector.extract_strided_slice %83 {offsets = [0, 256], sizes = [16, 64], strides = [1, 1]} : vector<16x384xf32> to vector<16x64xf32>
      %89 = vector.extract_strided_slice %83 {offsets = [0, 320], sizes = [16, 64], strides = [1, 1]} : vector<16x384xf32> to vector<16x64xf32>
      %90 = vector.extract_strided_slice %75 {offsets = [0, 0], sizes = [16, 1], strides = [1, 1]} : vector<16x9xf32> to vector<16x1xf32>
      %91 = vector.extract_strided_slice %75 {offsets = [0, 1], sizes = [16, 1], strides = [1, 1]} : vector<16x9xf32> to vector<16x1xf32>
      %92 = vector.extract_strided_slice %75 {offsets = [0, 2], sizes = [16, 1], strides = [1, 1]} : vector<16x9xf32> to vector<16x1xf32>
      %93 = vector.extract_strided_slice %75 {offsets = [0, 3], sizes = [16, 1], strides = [1, 1]} : vector<16x9xf32> to vector<16x1xf32>
      %94 = vector.extract_strided_slice %75 {offsets = [0, 4], sizes = [16, 1], strides = [1, 1]} : vector<16x9xf32> to vector<16x1xf32>
      %95 = vector.extract_strided_slice %75 {offsets = [0, 5], sizes = [16, 1], strides = [1, 1]} : vector<16x9xf32> to vector<16x1xf32>
      %96 = vector.extract_strided_slice %75 {offsets = [0, 6], sizes = [16, 1], strides = [1, 1]} : vector<16x9xf32> to vector<16x1xf32>
      %97 = vector.extract_strided_slice %75 {offsets = [0, 7], sizes = [16, 1], strides = [1, 1]} : vector<16x9xf32> to vector<16x1xf32>
      %98 = vector.extract_strided_slice %75 {offsets = [0, 8], sizes = [16, 1], strides = [1, 1]} : vector<16x9xf32> to vector<16x1xf32>
      %99 = vector.extract_strided_slice %77 {offsets = [0, 0], sizes = [16, 1], strides = [1, 1]} : vector<16x3xf32> to vector<16x1xf32>
      %100 = vector.extract_strided_slice %77 {offsets = [0, 1], sizes = [16, 1], strides = [1, 1]} : vector<16x3xf32> to vector<16x1xf32>
      %101 = vector.extract_strided_slice %77 {offsets = [0, 2], sizes = [16, 1], strides = [1, 1]} : vector<16x3xf32> to vector<16x1xf32>
      %102 = vector.broadcast %90 : vector<16x1xf32> to vector<16x64xf32>
      %103 = arith.mulf %102, %87 : vector<16x64xf32>
      %104 = vector.broadcast %91 : vector<16x1xf32> to vector<16x64xf32>
      %105 = arith.mulf %104, %88 : vector<16x64xf32>
      %106 = arith.addf %103, %105 : vector<16x64xf32>
      %107 = vector.broadcast %92 : vector<16x1xf32> to vector<16x64xf32>
      %108 = arith.mulf %107, %89 : vector<16x64xf32>
      %109 = arith.addf %106, %108 : vector<16x64xf32>
      %110 = vector.broadcast %99 : vector<16x1xf32> to vector<16x64xf32>
      %111 = arith.addf %109, %110 : vector<16x64xf32>
      %112 = vector.broadcast %93 : vector<16x1xf32> to vector<16x64xf32>
      %113 = arith.mulf %112, %87 : vector<16x64xf32>
      %114 = vector.broadcast %94 : vector<16x1xf32> to vector<16x64xf32>
      %115 = arith.mulf %114, %88 : vector<16x64xf32>
      %116 = arith.addf %113, %115 : vector<16x64xf32>
      %117 = vector.broadcast %95 : vector<16x1xf32> to vector<16x64xf32>
      %118 = arith.mulf %117, %89 : vector<16x64xf32>
      %119 = arith.addf %116, %118 : vector<16x64xf32>
      %120 = vector.broadcast %100 : vector<16x1xf32> to vector<16x64xf32>
      %121 = arith.addf %119, %120 : vector<16x64xf32>
      %122 = vector.broadcast %96 : vector<16x1xf32> to vector<16x64xf32>
      %123 = arith.mulf %122, %87 : vector<16x64xf32>
      %124 = vector.broadcast %97 : vector<16x1xf32> to vector<16x64xf32>
      %125 = arith.mulf %124, %88 : vector<16x64xf32>
      %126 = arith.addf %123, %125 : vector<16x64xf32>
      %127 = vector.broadcast %98 : vector<16x1xf32> to vector<16x64xf32>
      %128 = arith.mulf %127, %89 : vector<16x64xf32>
      %129 = arith.addf %126, %128 : vector<16x64xf32>
      %130 = vector.broadcast %101 : vector<16x1xf32> to vector<16x64xf32>
      %131 = arith.addf %129, %130 : vector<16x64xf32>
      %132 = vector.extract_strided_slice %111 {offsets = [0, 0], sizes = [16, 16], strides = [1, 1]} : vector<16x64xf32> to vector<16x16xf32>
      %133 = vector.extract_strided_slice %111 {offsets = [0, 16], sizes = [16, 16], strides = [1, 1]} : vector<16x64xf32> to vector<16x16xf32>
      %134 = vector.extract_strided_slice %111 {offsets = [0, 32], sizes = [16, 32], strides = [1, 1]} : vector<16x64xf32> to vector<16x32xf32>
      %135 = vector.extract_strided_slice %121 {offsets = [0, 0], sizes = [16, 16], strides = [1, 1]} : vector<16x64xf32> to vector<16x16xf32>
      %136 = vector.extract_strided_slice %121 {offsets = [0, 16], sizes = [16, 16], strides = [1, 1]} : vector<16x64xf32> to vector<16x16xf32>
      %137 = vector.extract_strided_slice %121 {offsets = [0, 32], sizes = [16, 32], strides = [1, 1]} : vector<16x64xf32> to vector<16x32xf32>
      %138 = vector.extract_strided_slice %131 {offsets = [0, 0], sizes = [16, 16], strides = [1, 1]} : vector<16x64xf32> to vector<16x16xf32>
      %139 = vector.extract_strided_slice %131 {offsets = [0, 16], sizes = [16, 16], strides = [1, 1]} : vector<16x64xf32> to vector<16x16xf32>
      %140 = vector.extract_strided_slice %131 {offsets = [0, 32], sizes = [16, 32], strides = [1, 1]} : vector<16x64xf32> to vector<16x32xf32>
      %c0_67 = arith.constant 0 : index
      %c0_68 = arith.constant 0 : index
      %141 = vector.load %arg10[%c0_67, %c0_68] : memref<1x4xf32, #tpu.memory_space<vmem>>, vector<1x4xf32>
      %cst_69 = arith.constant 0.000000e+00 : f32
      %142 = vector.broadcast %cst_69 : f32 to vector<1x4xf32>
      %143 = arith.maximumf %141, %142 : vector<1x4xf32>
      %144 = vector.broadcast %cst_69 : f32 to vector<1x4xf32>
      %145 = arith.subf %141, %144 : vector<1x4xf32>
      %146 = arith.cmpf one, %145, %145 : vector<1x4xf32>
      %147 = vector.broadcast %cst_69 : f32 to vector<1x4xf32>
      %148 = arith.addf %141, %147 : vector<1x4xf32>
      %149 = math.absf %145 : vector<1x4xf32>
      %cst_70 = arith.constant 0.000000e+00 : f32
      %150 = vector.broadcast %cst_70 : f32 to vector<1x4xf32>
      %151 = arith.subf %150, %149 : vector<1x4xf32>
      %152 = math.exp %151 : vector<1x4xf32>
      %153 = math.log1p %152 : vector<1x4xf32>
      %154 = arith.addf %143, %153 : vector<1x4xf32>
      %155 = arith.select %146, %148, %154 : vector<1x4xi1>, vector<1x4xf32>
      %cst_71 = arith.constant -0.0680413842 : f32
      %156 = vector.broadcast %cst_71 : f32 to vector<1x4xf32>
      %157 = arith.mulf %156, %155 : vector<1x4xf32>
      %cst_72 = arith.constant -2.000000e+00 : f32
      %158 = vector.broadcast %cst_72 : f32 to vector<1x4xf32>
      %159 = arith.mulf %158, %157 : vector<1x4xf32>
      %160 = vector.shape_cast %159 : vector<1x4xf32> to vector<1x4x1xf32>
      %161 = vector.shape_cast %84 : vector<16x64xf32> to vector<16x4x16xf32>
      %cst_73 = arith.constant 0.144337565 : f32
      %162 = vector.broadcast %cst_73 : f32 to vector<16x4x16xf32>
      %163 = arith.mulf %161, %162 : vector<16x4x16xf32>
      %164 = vector.shape_cast %132 : vector<16x16xf32> to vector<16x4x4xf32>
      %165 = vector.broadcast %160 : vector<1x4x1xf32> to vector<16x4x4xf32>
      %166 = arith.mulf %164, %165 : vector<16x4x4xf32>
      %167 = vector.shape_cast %135 : vector<16x16xf32> to vector<16x4x4xf32>
      %168 = vector.broadcast %160 : vector<1x4x1xf32> to vector<16x4x4xf32>
      %169 = arith.mulf %167, %168 : vector<16x4x4xf32>
      %170 = vector.shape_cast %138 : vector<16x16xf32> to vector<16x4x4xf32>
      %171 = vector.broadcast %160 : vector<1x4x1xf32> to vector<16x4x4xf32>
      %172 = arith.mulf %170, %171 : vector<16x4x4xf32>
      %173 = tpu.concatenate %163, %166, %169, %172 in 2 : vector<16x4x16xf32>, vector<16x4x4xf32>, vector<16x4x4xf32>, vector<16x4x4xf32> -> vector<16x4x28xf32>
      %174 = vector.shape_cast %85 : vector<16x64xf32> to vector<16x4x16xf32>
      %175 = vector.shape_cast %133 : vector<16x16xf32> to vector<16x4x4xf32>
      %176 = vector.shape_cast %136 : vector<16x16xf32> to vector<16x4x4xf32>
      %177 = vector.shape_cast %139 : vector<16x16xf32> to vector<16x4x4xf32>
      %178 = tpu.concatenate %174, %175, %176, %177 in 2 : vector<16x4x16xf32>, vector<16x4x4xf32>, vector<16x4x4xf32>, vector<16x4x4xf32> -> vector<16x4x28xf32>
      %179 = vector.shape_cast %86 : vector<16x64xf32> to vector<16x4x16xf32>
      %180 = vector.shape_cast %134 : vector<16x32xf32> to vector<16x4x8xf32>
      %181 = vector.shape_cast %137 : vector<16x32xf32> to vector<16x4x8xf32>
      %182 = vector.shape_cast %140 : vector<16x32xf32> to vector<16x4x8xf32>
      %183 = tpu.concatenate %179, %180, %181, %182 in 2 : vector<16x4x16xf32>, vector<16x4x8xf32>, vector<16x4x8xf32>, vector<16x4x8xf32> -> vector<16x4x40xf32>
      %184 = tpu.transpose %173, [1, 0, 2] : vector<16x4x28xf32> -> vector<4x16x28xf32>
      %185 = arith.truncf %184 : vector<4x16x28xf32> to vector<4x16x28xbf16>
      %c0_74 = arith.constant 0 : index
      %c0_75 = arith.constant 0 : index
      %c0_76 = arith.constant 0 : index
      %186 = vector.load %arg22[%c0_74, %c0_75, %c0_76] : memref<4x16x28xbf16, #tpu.memory_space<vmem>>, vector<4x16x28xbf16>
      tpu.vector_store %arg22[%c0_74, %c0_75, %c0_76], %185 {strides = array<i32>} : memref<4x16x28xbf16, #tpu.memory_space<vmem>>, vector<4x16x28xbf16>,
      %187 = tpu.transpose %178, [1, 0, 2] : vector<16x4x28xf32> -> vector<4x16x28xf32>
      %188 = arith.truncf %187 : vector<4x16x28xf32> to vector<4x16x28xbf16>
      %c0_77 = arith.constant 0 : index
      %c0_78 = arith.constant 0 : index
      %c0_79 = arith.constant 0 : index
      %189 = vector.load %arg23[%c0_77, %c0_78, %c0_79] : memref<4x16x28xbf16, #tpu.memory_space<vmem>>, vector<4x16x28xbf16>
      tpu.vector_store %arg23[%c0_77, %c0_78, %c0_79], %188 {strides = array<i32>} : memref<4x16x28xbf16, #tpu.memory_space<vmem>>, vector<4x16x28xbf16>,
      %190 = tpu.transpose %183, [1, 0, 2] : vector<16x4x40xf32> -> vector<4x16x40xf32>
      %191 = arith.truncf %190 : vector<4x16x40xf32> to vector<4x16x40xbf16>
      %c0_80 = arith.constant 0 : index
      %c0_81 = arith.constant 0 : index
      %c0_82 = arith.constant 0 : index
      %192 = vector.load %arg24[%c0_80, %c0_81, %c0_82] : memref<4x16x40xbf16, #tpu.memory_space<vmem>>, vector<4x16x40xbf16>
      tpu.vector_store %arg24[%c0_80, %c0_81, %c0_82], %191 {strides = array<i32>} : memref<4x16x40xbf16, #tpu.memory_space<vmem>>, vector<4x16x40xbf16>,
      %193 = arith.mulf %133, %133 : vector<16x16xf32>
      %194 = arith.mulf %136, %136 : vector<16x16xf32>
      %195 = arith.addf %193, %194 : vector<16x16xf32>
      %196 = arith.mulf %139, %139 : vector<16x16xf32>
      %197 = arith.addf %195, %196 : vector<16x16xf32>
      %198 = vector.shape_cast %197 : vector<16x16xf32> to vector<16x4x4xf32>
      %cst_83 = arith.constant dense<0.000000e+00> : vector<16x4xf32>
      %199 = vector.multi_reduction <add>, %198, %cst_83 [2] : vector<16x4x4xf32> to vector<16x4xf32>
      %200 = vector.broadcast %157 : vector<1x4xf32> to vector<16x4xf32>
      %201 = arith.mulf %199, %200 : vector<16x4xf32>
      %202 = tpu.transpose %201, [1, 0] : vector<16x4xf32> -> vector<4x16xf32>
      %203 = vector.shape_cast %202 : vector<4x16xf32> to vector<4x16x1xf32>
      %c0_84 = arith.constant 0 : index
      %c0_85 = arith.constant 0 : index
      %c0_86 = arith.constant 0 : index
      %204 = vector.load %arg25[%c0_84, %c0_85, %c0_86] : memref<4x16x1xf32, #tpu.memory_space<vmem>>, vector<4x16x1xf32>
      tpu.vector_store %arg25[%c0_84, %c0_85, %c0_86], %203 {strides = array<i32>} : memref<4x16x1xf32, #tpu.memory_space<vmem>>, vector<4x16x1xf32>,
      %cst_87 = arith.constant -1.000000e+30 : f32
      %205 = vector.broadcast %cst_87 : f32 to vector<4x16x1xf32>
      %c0_88 = arith.constant 0 : index
      %c0_89 = arith.constant 0 : index
      %c0_90 = arith.constant 0 : index
      %206 = vector.load %arg26[%c0_88, %c0_89, %c0_90] : memref<4x16x1xf32, #tpu.memory_space<vmem>>, vector<4x16x1xf32>
      tpu.vector_store %arg26[%c0_88, %c0_89, %c0_90], %205 {strides = array<i32>} : memref<4x16x1xf32, #tpu.memory_space<vmem>>, vector<4x16x1xf32>,
      %cst_91 = arith.constant 0.000000e+00 : f32
      %207 = vector.broadcast %cst_91 : f32 to vector<4x16x1xf32>
      %c0_92 = arith.constant 0 : index
      %c0_93 = arith.constant 0 : index
      %c0_94 = arith.constant 0 : index
      %208 = vector.load %arg27[%c0_92, %c0_93, %c0_94] : memref<4x16x1xf32, #tpu.memory_space<vmem>>, vector<4x16x1xf32>
      tpu.vector_store %arg27[%c0_92, %c0_93, %c0_94], %207 {strides = array<i32>} : memref<4x16x1xf32, #tpu.memory_space<vmem>>, vector<4x16x1xf32>,
      %cst_95 = arith.constant 0.000000e+00 : f32
      %209 = vector.broadcast %cst_95 : f32 to vector<4x16x40xf32>
      %c0_96 = arith.constant 0 : index
      %c0_97 = arith.constant 0 : index
      %c0_98 = arith.constant 0 : index
      %210 = vector.load %arg28[%c0_96, %c0_97, %c0_98] : memref<4x16x40xf32, #tpu.memory_space<vmem>>, vector<4x16x40xf32>
      tpu.vector_store %arg28[%c0_96, %c0_97, %c0_98], %209 {strides = array<i32>} : memref<4x16x40xf32, #tpu.memory_space<vmem>>, vector<4x16x40xf32>,
      %cst_99 = arith.constant 0.000000e+00 : f32
      %211 = vector.broadcast %cst_99 : f32 to vector<16x4x16xf32>
      %c0_100 = arith.constant 0 : index
      %c0_101 = arith.constant 0 : index
      %c0_102 = arith.constant 0 : index
      %212 = vector.load %arg29[%c0_100, %c0_101, %c0_102] : memref<16x4x16xf32, #tpu.memory_space<vmem>>, vector<16x4x16xf32>
      tpu.vector_store %arg29[%c0_100, %c0_101, %c0_102], %211 {strides = array<i32>} : memref<16x4x16xf32, #tpu.memory_space<vmem>>, vector<16x4x16xf32>,
    } else {
    }
    %c8_i32 = arith.constant 8 : i32
    %3 = arith.muli %arg1, %c8_i32 : i32
    %4 = tpu.assume_multiple %3, 8 : i32
    %c0 = arith.constant 0 : index
    %c0_1 = arith.constant 0 : index
    %c0_2 = arith.constant 0 : index
    %c0_3 = arith.constant 0 : index
    %5 = vector.load %arg3[%c0, %c0_1, %c0_2, %c0_3] : memref<1x16x8x16xbf16, #tpu.memory_space<vmem>>, vector<1x16x8x16xbf16>
    %6 = vector.shape_cast %5 : vector<1x16x8x16xbf16> to vector<16x8x16xbf16>
    %c0_4 = arith.constant 0 : index
    %7 = arith.index_cast %4 : i32 to index
    %c0_5 = arith.constant 0 : index
    %8 = vector.load %arg23[%c0_4, %7, %c0_5] : memref<4x16x28xbf16, #tpu.memory_space<vmem>>, vector<4x8x28xbf16>
    %c0_6 = arith.constant 0 : index
    %9 = arith.index_cast %4 : i32 to index
    %c0_7 = arith.constant 0 : index
    %10 = vector.load %arg24[%c0_6, %9, %c0_7] : memref<4x16x40xbf16, #tpu.memory_space<vmem>>, vector<4x8x40xbf16>
    %c0_8 = arith.constant 0 : index
    %c0_9 = arith.constant 0 : index
    %c0_10 = arith.constant 0 : index
    %11 = vector.load %arg22[%c0_8, %c0_9, %c0_10] : memref<4x16x28xbf16, #tpu.memory_space<vmem>>, vector<4x16x28xbf16>
    "tpu.trace_start"() <{level = 10 : i32, message = "hid,hjd->hij"}> : () -> ()
    %cst = arith.constant dense<0.000000e+00> : vector<4x16x8xf32>
    %12 = tpu.matmul %11, %8, %cst {dimension_numbers = #tpu.dot_dimension_numbers<[2], [2], [1], [1], [0, 0, 0, 1, 1, 1], [0], [0]>} : vector<4x16x28xbf16>, vector<4x8x28xbf16>, vector<4x16x8xf32> -> vector<4x16x8xf32>
    "tpu.trace_stop"() : () -> ()
    %c0_11 = arith.constant 0 : index
    %c0_12 = arith.constant 0 : index
    %13 = vector.load %arg9[%c0_11, %c0_12] : memref<4x16xbf16, #tpu.memory_space<vmem>>, vector<4x16xbf16>
    "tpu.trace_start"() <{level = 10 : i32, message = "hc,ijc->hij"}> : () -> ()
    %cst_13 = arith.constant dense<0.000000e+00> : vector<4x16x8xf32>
    %14 = tpu.matmul %13, %6, %cst_13 {dimension_numbers = #tpu.dot_dimension_numbers<[1], [2], [0], [0, 1], [0, 0, 1, 0, 1, 1], [], []>} : vector<4x16xbf16>, vector<16x8x16xbf16>, vector<4x16x8xf32> -> vector<4x16x8xf32>
    "tpu.trace_stop"() : () -> ()
    %cst_14 = arith.constant 0.577350259 : f32
    %15 = vector.broadcast %cst_14 : f32 to vector<4x16x8xf32>
    %16 = arith.mulf %15, %14 : vector<4x16x8xf32>
    %17 = arith.addf %12, %16 : vector<4x16x8xf32>
    %c0_15 = arith.constant 0 : index
    %18 = arith.index_cast %4 : i32 to index
    %c0_16 = arith.constant 0 : index
    %19 = vector.load %arg25[%c0_15, %18, %c0_16] : memref<4x16x1xf32, #tpu.memory_space<vmem>>, vector<4x8x1xf32>
    %20 = tpu.transpose %19, [0, 2, 1] : vector<4x8x1xf32> -> vector<4x1x8xf32>
    %21 = vector.broadcast %20 : vector<4x1x8xf32> to vector<4x16x8xf32>
    %22 = arith.addf %17, %21 : vector<4x16x8xf32>
    %c0_17 = arith.constant 0 : index
    %c0_18 = arith.constant 0 : index
    %c0_19 = arith.constant 0 : index
    %23 = vector.load %arg6[%c0_17, %c0_18, %c0_19] : memref<1x16x1xf32, #tpu.memory_space<vmem>>, vector<1x16x1xf32>
    %24 = vector.shape_cast %23 : vector<1x16x1xf32> to vector<16x1xf32>
    %c0_20 = arith.constant 0 : index
    %25 = arith.index_cast %4 : i32 to index
    %c0_21 = arith.constant 0 : index
    %26 = vector.load %arg6[%c0_20, %25, %c0_21] : memref<1x16x1xf32, #tpu.memory_space<vmem>>, vector<1x8x1xf32>
    %27 = vector.shape_cast %26 : vector<1x8x1xf32> to vector<8x1xf32>
    %28 = tpu.transpose %27, [1, 0] : vector<8x1xf32> -> vector<1x8xf32>
    %29 = vector.broadcast %24 : vector<16x1xf32> to vector<16x8xf32>
    %30 = vector.broadcast %28 : vector<1x8xf32> to vector<16x8xf32>
    %31 = arith.mulf %29, %30 : vector<16x8xf32>
    %cst_22 = arith.constant 1.000000e+00 : f32
    %32 = vector.broadcast %cst_22 : f32 to vector<16x8xf32>
    %33 = arith.subf %31, %32 : vector<16x8xf32>
    %cst_23 = arith.constant 1.000000e+05 : f32
    %34 = vector.broadcast %cst_23 : f32 to vector<16x8xf32>
    %35 = arith.mulf %34, %33 : vector<16x8xf32>
    %36 = vector.shape_cast %35 : vector<16x8xf32> to vector<1x16x8xf32>
    %37 = vector.broadcast %36 : vector<1x16x8xf32> to vector<4x16x8xf32>
    %38 = arith.addf %22, %37 : vector<4x16x8xf32>
    %c0_24 = arith.constant 0 : index
    %c0_25 = arith.constant 0 : index
    %c0_26 = arith.constant 0 : index
    %39 = vector.load %arg26[%c0_24, %c0_25, %c0_26] : memref<4x16x1xf32, #tpu.memory_space<vmem>>, vector<4x16x1xf32>
    %cst_27 = arith.constant dense<0xFF800000> : vector<4x16xf32>
    %40 = vector.multi_reduction <maximumf>, %38, %cst_27 [2] : vector<4x16x8xf32> to vector<4x16xf32>
    %41 = vector.shape_cast %40 : vector<4x16xf32> to vector<4x16x1xf32>
    %42 = arith.maximumf %39, %41 : vector<4x16x1xf32>
    %43 = arith.subf %39, %42 : vector<4x16x1xf32>
    %44 = math.exp %43 : vector<4x16x1xf32>
    %45 = vector.broadcast %42 : vector<4x16x1xf32> to vector<4x16x8xf32>
    %46 = arith.subf %38, %45 : vector<4x16x8xf32>
    %47 = math.exp %46 : vector<4x16x8xf32>
    %c0_28 = arith.constant 0 : index
    %c0_29 = arith.constant 0 : index
    %c0_30 = arith.constant 0 : index
    %48 = vector.load %arg27[%c0_28, %c0_29, %c0_30] : memref<4x16x1xf32, #tpu.memory_space<vmem>>, vector<4x16x1xf32>
    %49 = arith.mulf %44, %48 : vector<4x16x1xf32>
    %cst_31 = arith.constant dense<0.000000e+00> : vector<4x16xf32>
    %50 = vector.multi_reduction <add>, %47, %cst_31 [2] : vector<4x16x8xf32> to vector<4x16xf32>
    %51 = vector.shape_cast %50 : vector<4x16xf32> to vector<4x16x1xf32>
    %52 = arith.addf %49, %51 : vector<4x16x1xf32>
    %c0_32 = arith.constant 0 : index
    %c0_33 = arith.constant 0 : index
    %c0_34 = arith.constant 0 : index
    %53 = vector.load %arg27[%c0_32, %c0_33, %c0_34] : memref<4x16x1xf32, #tpu.memory_space<vmem>>, vector<4x16x1xf32>
    tpu.vector_store %arg27[%c0_32, %c0_33, %c0_34], %52 {strides = array<i32>} : memref<4x16x1xf32, #tpu.memory_space<vmem>>, vector<4x16x1xf32>,
    %54 = arith.truncf %47 : vector<4x16x8xf32> to vector<4x16x8xbf16>
    %c0_35 = arith.constant 0 : index
    %c0_36 = arith.constant 0 : index
    %c0_37 = arith.constant 0 : index
    %55 = vector.load %arg28[%c0_35, %c0_36, %c0_37] : memref<4x16x40xf32, #tpu.memory_space<vmem>>, vector<4x16x40xf32>
    %56 = vector.broadcast %44 : vector<4x16x1xf32> to vector<4x16x40xf32>
    %57 = arith.mulf %56, %55 : vector<4x16x40xf32>
    "tpu.trace_start"() <{level = 10 : i32, message = "hij,hjd->hid"}> : () -> ()
    %cst_38 = arith.constant dense<0.000000e+00> : vector<4x16x40xf32>
    %58 = tpu.matmul %54, %10, %cst_38 {dimension_numbers = #tpu.dot_dimension_numbers<[2], [1], [1], [2], [0, 0, 0, 1, 1, 2], [0], [0]>} : vector<4x16x8xbf16>, vector<4x8x40xbf16>, vector<4x16x40xf32> -> vector<4x16x40xf32>
    "tpu.trace_stop"() : () -> ()
    %59 = arith.addf %57, %58 : vector<4x16x40xf32>
    %c0_39 = arith.constant 0 : index
    %c0_40 = arith.constant 0 : index
    %c0_41 = arith.constant 0 : index
    %60 = vector.load %arg28[%c0_39, %c0_40, %c0_41] : memref<4x16x40xf32, #tpu.memory_space<vmem>>, vector<4x16x40xf32>
    tpu.vector_store %arg28[%c0_39, %c0_40, %c0_41], %59 {strides = array<i32>} : memref<4x16x40xf32, #tpu.memory_space<vmem>>, vector<4x16x40xf32>,
    %61 = tpu.transpose %44, [1, 0, 2] : vector<4x16x1xf32> -> vector<16x4x1xf32>
    %c0_42 = arith.constant 0 : index
    %c0_43 = arith.constant 0 : index
    %c0_44 = arith.constant 0 : index
    %62 = vector.load %arg29[%c0_42, %c0_43, %c0_44] : memref<16x4x16xf32, #tpu.memory_space<vmem>>, vector<16x4x16xf32>
    %63 = vector.broadcast %61 : vector<16x4x1xf32> to vector<16x4x16xf32>
    %64 = arith.mulf %63, %62 : vector<16x4x16xf32>
    "tpu.trace_start"() <{level = 10 : i32, message = "hij,ijc->ihc"}> : () -> ()
    %cst_45 = arith.constant dense<0.000000e+00> : vector<16x4x16xf32>
    %65 = tpu.matmul %54, %6, %cst_45 {dimension_numbers = #tpu.dot_dimension_numbers<[2], [1], [0], [2], [0, 1, 0, 0, 1, 2], [1], [0]>} : vector<4x16x8xbf16>, vector<16x8x16xbf16>, vector<16x4x16xf32> -> vector<16x4x16xf32>
    "tpu.trace_stop"() : () -> ()
    %66 = arith.addf %64, %65 : vector<16x4x16xf32>
    %c0_46 = arith.constant 0 : index
    %c0_47 = arith.constant 0 : index
    %c0_48 = arith.constant 0 : index
    %67 = vector.load %arg29[%c0_46, %c0_47, %c0_48] : memref<16x4x16xf32, #tpu.memory_space<vmem>>, vector<16x4x16xf32>
    tpu.vector_store %arg29[%c0_46, %c0_47, %c0_48], %66 {strides = array<i32>} : memref<16x4x16xf32, #tpu.memory_space<vmem>>, vector<16x4x16xf32>,
    %c0_49 = arith.constant 0 : index
    %c0_50 = arith.constant 0 : index
    %c0_51 = arith.constant 0 : index
    %68 = vector.load %arg26[%c0_49, %c0_50, %c0_51] : memref<4x16x1xf32, #tpu.memory_space<vmem>>, vector<4x16x1xf32>
    tpu.vector_store %arg26[%c0_49, %c0_50, %c0_51], %42 {strides = array<i32>} : memref<4x16x1xf32, #tpu.memory_space<vmem>>, vector<4x16x1xf32>,
    %c1_i32 = arith.constant 1 : i32
    %69 = arith.cmpi eq, %arg1, %c1_i32 : i32
    %70 = arith.extui %69 : i1 to i32
    %c0_i32_52 = arith.constant 0 : i32
    %71 = arith.cmpi ne, %70, %c0_i32_52 : i32
    scf.if %71 {
      %c0_53 = arith.constant 0 : index
      %c0_54 = arith.constant 0 : index
      %c0_55 = arith.constant 0 : index
      %72 = vector.load %arg2[%c0_53, %c0_54, %c0_55] : memref<1x16x32xf32, #tpu.memory_space<vmem>>, vector<1x16x32xf32>
      %73 = vector.shape_cast %72 : vector<1x16x32xf32> to vector<16x32xf32>
      %c0_56 = arith.constant 0 : index
      %c0_57 = arith.constant 0 : index
      %c0_58 = arith.constant 0 : index
      %74 = vector.load %arg4[%c0_56, %c0_57, %c0_58] : memref<1x16x9xf32, #tpu.memory_space<vmem>>, vector<1x16x9xf32>
      %75 = vector.shape_cast %74 : vector<1x16x9xf32> to vector<16x9xf32>
      %c0_59 = arith.constant 0 : index
      %c0_60 = arith.constant 0 : index
      %c0_61 = arith.constant 0 : index
      %76 = vector.load %arg5[%c0_59, %c0_60, %c0_61] : memref<1x16x3xf32, #tpu.memory_space<vmem>>, vector<1x16x3xf32>
      %77 = vector.shape_cast %76 : vector<1x16x3xf32> to vector<16x3xf32>
      %c0_62 = arith.constant 0 : index
      %c0_63 = arith.constant 0 : index
      %c0_64 = arith.constant 0 : index
      %78 = vector.load %arg27[%c0_62, %c0_63, %c0_64] : memref<4x16x1xf32, #tpu.memory_space<vmem>>, vector<4x16x1xf32>
      %79 = tpu.reciprocal %78 {approx = true} : vector<4x16x1xf32> -> vector<4x16x1xf32>
      %c0_65 = arith.constant 0 : index
      %c0_66 = arith.constant 0 : index
      %c0_67 = arith.constant 0 : index
      %80 = vector.load %arg28[%c0_65, %c0_66, %c0_67] : memref<4x16x40xf32, #tpu.memory_space<vmem>>, vector<4x16x40xf32>
      %81 = vector.broadcast %79 : vector<4x16x1xf32> to vector<4x16x40xf32>
      %82 = arith.mulf %80, %81 : vector<4x16x40xf32>
      %83 = tpu.transpose %82, [1, 0, 2] : vector<4x16x40xf32> -> vector<16x4x40xf32>
      %84 = vector.extract_strided_slice %83 {offsets = [0, 0, 0], sizes = [16, 4, 16], strides = [1, 1, 1]} : vector<16x4x40xf32> to vector<16x4x16xf32>
      %85 = vector.shape_cast %84 : vector<16x4x16xf32> to vector<16x64xf32>
      %86 = vector.extract_strided_slice %83 {offsets = [0, 0, 16], sizes = [16, 4, 8], strides = [1, 1, 1]} : vector<16x4x40xf32> to vector<16x4x8xf32>
      %87 = vector.extract_strided_slice %83 {offsets = [0, 0, 24], sizes = [16, 4, 8], strides = [1, 1, 1]} : vector<16x4x40xf32> to vector<16x4x8xf32>
      %88 = vector.extract_strided_slice %83 {offsets = [0, 0, 32], sizes = [16, 4, 8], strides = [1, 1, 1]} : vector<16x4x40xf32> to vector<16x4x8xf32>
      %c0_68 = arith.constant 0 : index
      %c0_69 = arith.constant 0 : index
      %c0_70 = arith.constant 0 : index
      %89 = vector.load %arg29[%c0_68, %c0_69, %c0_70] : memref<16x4x16xf32, #tpu.memory_space<vmem>>, vector<16x4x16xf32>
      %90 = tpu.transpose %79, [1, 0, 2] : vector<4x16x1xf32> -> vector<16x4x1xf32>
      %91 = vector.broadcast %90 : vector<16x4x1xf32> to vector<16x4x16xf32>
      %92 = arith.mulf %89, %91 : vector<16x4x16xf32>
      %93 = vector.extract_strided_slice %77 {offsets = [0, 0], sizes = [16, 1], strides = [1, 1]} : vector<16x3xf32> to vector<16x1xf32>
      %94 = vector.shape_cast %93 : vector<16x1xf32> to vector<16x1x1xf32>
      %95 = vector.extract_strided_slice %77 {offsets = [0, 1], sizes = [16, 1], strides = [1, 1]} : vector<16x3xf32> to vector<16x1xf32>
      %96 = vector.shape_cast %95 : vector<16x1xf32> to vector<16x1x1xf32>
      %97 = vector.extract_strided_slice %77 {offsets = [0, 2], sizes = [16, 1], strides = [1, 1]} : vector<16x3xf32> to vector<16x1xf32>
      %98 = vector.shape_cast %97 : vector<16x1xf32> to vector<16x1x1xf32>
      %99 = vector.broadcast %94 : vector<16x1x1xf32> to vector<16x4x8xf32>
      %100 = arith.subf %86, %99 : vector<16x4x8xf32>
      %101 = vector.broadcast %96 : vector<16x1x1xf32> to vector<16x4x8xf32>
      %102 = arith.subf %87, %101 : vector<16x4x8xf32>
      %103 = vector.broadcast %98 : vector<16x1x1xf32> to vector<16x4x8xf32>
      %104 = arith.subf %88, %103 : vector<16x4x8xf32>
      %105 = vector.extract_strided_slice %75 {offsets = [0, 0], sizes = [16, 1], strides = [1, 1]} : vector<16x9xf32> to vector<16x1xf32>
      %106 = vector.shape_cast %105 : vector<16x1xf32> to vector<16x1x1xf32>
      %107 = vector.broadcast %106 : vector<16x1x1xf32> to vector<16x4x8xf32>
      %108 = arith.mulf %107, %100 : vector<16x4x8xf32>
      %109 = vector.extract_strided_slice %75 {offsets = [0, 3], sizes = [16, 1], strides = [1, 1]} : vector<16x9xf32> to vector<16x1xf32>
      %110 = vector.shape_cast %109 : vector<16x1xf32> to vector<16x1x1xf32>
      %111 = vector.broadcast %110 : vector<16x1x1xf32> to vector<16x4x8xf32>
      %112 = arith.mulf %111, %102 : vector<16x4x8xf32>
      %113 = arith.addf %108, %112 : vector<16x4x8xf32>
      %114 = vector.extract_strided_slice %75 {offsets = [0, 6], sizes = [16, 1], strides = [1, 1]} : vector<16x9xf32> to vector<16x1xf32>
      %115 = vector.shape_cast %114 : vector<16x1xf32> to vector<16x1x1xf32>
      %116 = vector.broadcast %115 : vector<16x1x1xf32> to vector<16x4x8xf32>
      %117 = arith.mulf %116, %104 : vector<16x4x8xf32>
      %118 = arith.addf %113, %117 : vector<16x4x8xf32>
      %119 = vector.extract_strided_slice %75 {offsets = [0, 1], sizes = [16, 1], strides = [1, 1]} : vector<16x9xf32> to vector<16x1xf32>
      %120 = vector.shape_cast %119 : vector<16x1xf32> to vector<16x1x1xf32>
      %121 = vector.broadcast %120 : vector<16x1x1xf32> to vector<16x4x8xf32>
      %122 = arith.mulf %121, %100 : vector<16x4x8xf32>
      %123 = vector.extract_strided_slice %75 {offsets = [0, 4], sizes = [16, 1], strides = [1, 1]} : vector<16x9xf32> to vector<16x1xf32>
      %124 = vector.shape_cast %123 : vector<16x1xf32> to vector<16x1x1xf32>
      %125 = vector.broadcast %124 : vector<16x1x1xf32> to vector<16x4x8xf32>
      %126 = arith.mulf %125, %102 : vector<16x4x8xf32>
      %127 = arith.addf %122, %126 : vector<16x4x8xf32>
      %128 = vector.extract_strided_slice %75 {offsets = [0, 7], sizes = [16, 1], strides = [1, 1]} : vector<16x9xf32> to vector<16x1xf32>
      %129 = vector.shape_cast %128 : vector<16x1xf32> to vector<16x1x1xf32>
      %130 = vector.broadcast %129 : vector<16x1x1xf32> to vector<16x4x8xf32>
      %131 = arith.mulf %130, %104 : vector<16x4x8xf32>
      %132 = arith.addf %127, %131 : vector<16x4x8xf32>
      %133 = vector.extract_strided_slice %75 {offsets = [0, 2], sizes = [16, 1], strides = [1, 1]} : vector<16x9xf32> to vector<16x1xf32>
      %134 = vector.shape_cast %133 : vector<16x1xf32> to vector<16x1x1xf32>
      %135 = vector.broadcast %134 : vector<16x1x1xf32> to vector<16x4x8xf32>
      %136 = arith.mulf %135, %100 : vector<16x4x8xf32>
      %137 = vector.extract_strided_slice %75 {offsets = [0, 5], sizes = [16, 1], strides = [1, 1]} : vector<16x9xf32> to vector<16x1xf32>
      %138 = vector.shape_cast %137 : vector<16x1xf32> to vector<16x1x1xf32>
      %139 = vector.broadcast %138 : vector<16x1x1xf32> to vector<16x4x8xf32>
      %140 = arith.mulf %139, %102 : vector<16x4x8xf32>
      %141 = arith.addf %136, %140 : vector<16x4x8xf32>
      %142 = vector.extract_strided_slice %75 {offsets = [0, 8], sizes = [16, 1], strides = [1, 1]} : vector<16x9xf32> to vector<16x1xf32>
      %143 = vector.shape_cast %142 : vector<16x1xf32> to vector<16x1x1xf32>
      %144 = vector.broadcast %143 : vector<16x1x1xf32> to vector<16x4x8xf32>
      %145 = arith.mulf %144, %104 : vector<16x4x8xf32>
      %146 = arith.addf %141, %145 : vector<16x4x8xf32>
      %147 = arith.mulf %118, %118 : vector<16x4x8xf32>
      %148 = arith.mulf %132, %132 : vector<16x4x8xf32>
      %149 = arith.addf %147, %148 : vector<16x4x8xf32>
      %150 = arith.mulf %146, %146 : vector<16x4x8xf32>
      %151 = arith.addf %149, %150 : vector<16x4x8xf32>
      %cst_71 = arith.constant 9.99999993E-9 : f32
      %152 = vector.broadcast %cst_71 : f32 to vector<16x4x8xf32>
      %153 = arith.addf %151, %152 : vector<16x4x8xf32>
      %154 = math.sqrt %153 : vector<16x4x8xf32>
      %155 = vector.shape_cast %118 : vector<16x4x8xf32> to vector<16x32xf32>
      %156 = vector.shape_cast %132 : vector<16x4x8xf32> to vector<16x32xf32>
      %157 = vector.shape_cast %146 : vector<16x4x8xf32> to vector<16x32xf32>
      %158 = vector.shape_cast %154 : vector<16x4x8xf32> to vector<16x32xf32>
      %159 = vector.shape_cast %92 : vector<16x4x16xf32> to vector<16x64xf32>
      %160 = tpu.concatenate %85, %155, %156, %157, %158, %159 in 1 : vector<16x64xf32>, vector<16x32xf32>, vector<16x32xf32>, vector<16x32xf32>, vector<16x32xf32>, vector<16x64xf32> -> vector<16x256xf32>
      %161 = arith.truncf %160 : vector<16x256xf32> to vector<16x256xbf16>
      %c0_72 = arith.constant 0 : index
      %c0_73 = arith.constant 0 : index
      %162 = vector.load %arg11[%c0_72, %c0_73] : memref<256x32xbf16, #tpu.memory_space<vmem>>, vector<256x32xbf16>
      %cst_74 = arith.constant dense<0.000000e+00> : vector<16x32xf32>
      %163 = tpu.matmul %161, %162, %cst_74 {dimension_numbers = #tpu.dot_dimension_numbers<[1], [0], [0], [1], [0, 0, 1, 1], [], []>} : vector<16x256xbf16>, vector<256x32xbf16>, vector<16x32xf32> -> vector<16x32xf32>
      %c0_75 = arith.constant 0 : index
      %c0_76 = arith.constant 0 : index
      %164 = vector.load %arg12[%c0_75, %c0_76] : memref<1x32xf32, #tpu.memory_space<vmem>>, vector<1x32xf32>
      %165 = vector.broadcast %164 : vector<1x32xf32> to vector<16x32xf32>
      %166 = arith.addf %163, %165 : vector<16x32xf32>
      %167 = arith.addf %73, %166 : vector<16x32xf32>
      %c0_77 = arith.constant 0 : index
      %c0_78 = arith.constant 0 : index
      %168 = vector.load %arg13[%c0_77, %c0_78] : memref<1x32xf32, #tpu.memory_space<vmem>>, vector<1x32xf32>
      %c0_79 = arith.constant 0 : index
      %c0_80 = arith.constant 0 : index
      %169 = vector.load %arg14[%c0_79, %c0_80] : memref<1x32xf32, #tpu.memory_space<vmem>>, vector<1x32xf32>
      %cst_81 = arith.constant dense<0.000000e+00> : vector<16xf32>
      %170 = vector.multi_reduction <add>, %167, %cst_81 [1] : vector<16x32xf32> to vector<16xf32>
      %171 = vector.shape_cast %170 : vector<16xf32> to vector<16x1xf32>
      %cst_82 = arith.constant 3.200000e+01 : f32
      %172 = vector.broadcast %cst_82 : f32 to vector<16x1xf32>
      %173 = arith.divf %171, %172 : vector<16x1xf32>
      %174 = vector.broadcast %173 : vector<16x1xf32> to vector<16x32xf32>
      %175 = arith.subf %167, %174 : vector<16x32xf32>
      %176 = arith.mulf %175, %175 : vector<16x32xf32>
      %cst_83 = arith.constant dense<0.000000e+00> : vector<16xf32>
      %177 = vector.multi_reduction <add>, %176, %cst_83 [1] : vector<16x32xf32> to vector<16xf32>
      %178 = vector.shape_cast %177 : vector<16xf32> to vector<16x1xf32>
      %cst_84 = arith.constant 3.200000e+01 : f32
      %179 = vector.broadcast %cst_84 : f32 to vector<16x1xf32>
      %180 = arith.divf %178, %179 : vector<16x1xf32>
      %181 = vector.broadcast %173 : vector<16x1xf32> to vector<16x32xf32>
      %182 = arith.subf %167, %181 : vector<16x32xf32>
      %cst_85 = arith.constant 9.99999974E-6 : f32
      %183 = vector.broadcast %cst_85 : f32 to vector<16x1xf32>
      %184 = arith.addf %180, %183 : vector<16x1xf32>
      %185 = math.rsqrt %184 : vector<16x1xf32>
      %186 = vector.broadcast %185 : vector<16x1xf32> to vector<16x32xf32>
      %187 = arith.mulf %182, %186 : vector<16x32xf32>
      %188 = vector.broadcast %168 : vector<1x32xf32> to vector<16x32xf32>
      %189 = arith.mulf %187, %188 : vector<16x32xf32>
      %190 = vector.broadcast %169 : vector<1x32xf32> to vector<16x32xf32>
      %191 = arith.addf %189, %190 : vector<16x32xf32>
      %192 = arith.truncf %191 : vector<16x32xf32> to vector<16x32xbf16>
      %c0_86 = arith.constant 0 : index
      %c0_87 = arith.constant 0 : index
      %c0_88 = arith.constant 0 : index
      %c0_89 = arith.constant 0 : index
      %193 = vector.load %arg15[%c0_86, %c0_87, %c0_88, %c0_89] : memref<1x3x32x32xbf16, #tpu.memory_space<vmem>>, vector<1x1x32x32xbf16>
      %194 = vector.shape_cast %193 : vector<1x1x32x32xbf16> to vector<32x32xbf16>
      %cst_90 = arith.constant dense<0.000000e+00> : vector<16x32xf32>
      %195 = tpu.matmul %192, %194, %cst_90 {dimension_numbers = #tpu.dot_dimension_numbers<[1], [0], [0], [1], [0, 0, 1, 1], [], []>} : vector<16x32xbf16>, vector<32x32xbf16>, vector<16x32xf32> -> vector<16x32xf32>
      %c0_91 = arith.constant 0 : index
      %c0_92 = arith.constant 0 : index
      %c0_93 = arith.constant 0 : index
      %c0_94 = arith.constant 0 : index
      %196 = vector.load %arg16[%c0_91, %c0_92, %c0_93, %c0_94] : memref<1x3x1x32xf32, #tpu.memory_space<vmem>>, vector<1x1x1x32xf32>
      %197 = vector.shape_cast %196 : vector<1x1x1x32xf32> to vector<1x32xf32>
      %198 = vector.broadcast %197 : vector<1x32xf32> to vector<16x32xf32>
      %199 = arith.addf %195, %198 : vector<16x32xf32>
      %cst_95 = arith.constant 0.000000e+00 : f32
      %200 = vector.broadcast %cst_95 : f32 to vector<16x32xf32>
      %201 = arith.maximumf %199, %200 : vector<16x32xf32>
      %202 = arith.truncf %201 : vector<16x32xf32> to vector<16x32xbf16>
      %c0_96 = arith.constant 0 : index
      %c1 = arith.constant 1 : index
      %c0_97 = arith.constant 0 : index
      %c0_98 = arith.constant 0 : index
      %203 = vector.load %arg15[%c0_96, %c1, %c0_97, %c0_98] : memref<1x3x32x32xbf16, #tpu.memory_space<vmem>>, vector<1x1x32x32xbf16>
      %204 = vector.shape_cast %203 : vector<1x1x32x32xbf16> to vector<32x32xbf16>
      %cst_99 = arith.constant dense<0.000000e+00> : vector<16x32xf32>
      %205 = tpu.matmul %202, %204, %cst_99 {dimension_numbers = #tpu.dot_dimension_numbers<[1], [0], [0], [1], [0, 0, 1, 1], [], []>} : vector<16x32xbf16>, vector<32x32xbf16>, vector<16x32xf32> -> vector<16x32xf32>
      %c0_100 = arith.constant 0 : index
      %c1_101 = arith.constant 1 : index
      %c0_102 = arith.constant 0 : index
      %c0_103 = arith.constant 0 : index
      %206 = vector.load %arg16[%c0_100, %c1_101, %c0_102, %c0_103] : memref<1x3x1x32xf32, #tpu.memory_space<vmem>>, vector<1x1x1x32xf32>
      %207 = vector.shape_cast %206 : vector<1x1x1x32xf32> to vector<1x32xf32>
      %208 = vector.broadcast %207 : vector<1x32xf32> to vector<16x32xf32>
      %209 = arith.addf %205, %208 : vector<16x32xf32>
      %cst_104 = arith.constant 0.000000e+00 : f32
      %210 = vector.broadcast %cst_104 : f32 to vector<16x32xf32>
      %211 = arith.maximumf %209, %210 : vector<16x32xf32>
      %212 = arith.truncf %211 : vector<16x32xf32> to vector<16x32xbf16>
      %c0_105 = arith.constant 0 : index
      %c2 = arith.constant 2 : index
      %c0_106 = arith.constant 0 : index
      %c0_107 = arith.constant 0 : index
      %213 = vector.load %arg15[%c0_105, %c2, %c0_106, %c0_107] : memref<1x3x32x32xbf16, #tpu.memory_space<vmem>>, vector<1x1x32x32xbf16>
      %214 = vector.shape_cast %213 : vector<1x1x32x32xbf16> to vector<32x32xbf16>
      %cst_108 = arith.constant dense<0.000000e+00> : vector<16x32xf32>
      %215 = tpu.matmul %212, %214, %cst_108 {dimension_numbers = #tpu.dot_dimension_numbers<[1], [0], [0], [1], [0, 0, 1, 1], [], []>} : vector<16x32xbf16>, vector<32x32xbf16>, vector<16x32xf32> -> vector<16x32xf32>
      %c0_109 = arith.constant 0 : index
      %c2_110 = arith.constant 2 : index
      %c0_111 = arith.constant 0 : index
      %c0_112 = arith.constant 0 : index
      %216 = vector.load %arg16[%c0_109, %c2_110, %c0_111, %c0_112] : memref<1x3x1x32xf32, #tpu.memory_space<vmem>>, vector<1x1x1x32xf32>
      %217 = vector.shape_cast %216 : vector<1x1x1x32xf32> to vector<1x32xf32>
      %218 = vector.broadcast %217 : vector<1x32xf32> to vector<16x32xf32>
      %219 = arith.addf %215, %218 : vector<16x32xf32>
      %220 = arith.addf %191, %219 : vector<16x32xf32>
      %c0_113 = arith.constant 0 : index
      %c0_114 = arith.constant 0 : index
      %221 = vector.load %arg17[%c0_113, %c0_114] : memref<1x32xf32, #tpu.memory_space<vmem>>, vector<1x32xf32>
      %c0_115 = arith.constant 0 : index
      %c0_116 = arith.constant 0 : index
      %222 = vector.load %arg18[%c0_115, %c0_116] : memref<1x32xf32, #tpu.memory_space<vmem>>, vector<1x32xf32>
      %cst_117 = arith.constant dense<0.000000e+00> : vector<16xf32>
      %223 = vector.multi_reduction <add>, %220, %cst_117 [1] : vector<16x32xf32> to vector<16xf32>
      %224 = vector.shape_cast %223 : vector<16xf32> to vector<16x1xf32>
      %cst_118 = arith.constant 3.200000e+01 : f32
      %225 = vector.broadcast %cst_118 : f32 to vector<16x1xf32>
      %226 = arith.divf %224, %225 : vector<16x1xf32>
      %227 = vector.broadcast %226 : vector<16x1xf32> to vector<16x32xf32>
      %228 = arith.subf %220, %227 : vector<16x32xf32>
      %229 = arith.mulf %228, %228 : vector<16x32xf32>
      %cst_119 = arith.constant dense<0.000000e+00> : vector<16xf32>
      %230 = vector.multi_reduction <add>, %229, %cst_119 [1] : vector<16x32xf32> to vector<16xf32>
      %231 = vector.shape_cast %230 : vector<16xf32> to vector<16x1xf32>
      %cst_120 = arith.constant 3.200000e+01 : f32
      %232 = vector.broadcast %cst_120 : f32 to vector<16x1xf32>
      %233 = arith.divf %231, %232 : vector<16x1xf32>
      %234 = vector.broadcast %226 : vector<16x1xf32> to vector<16x32xf32>
      %235 = arith.subf %220, %234 : vector<16x32xf32>
      %cst_121 = arith.constant 9.99999974E-6 : f32
      %236 = vector.broadcast %cst_121 : f32 to vector<16x1xf32>
      %237 = arith.addf %233, %236 : vector<16x1xf32>
      %238 = math.rsqrt %237 : vector<16x1xf32>
      %239 = vector.broadcast %238 : vector<16x1xf32> to vector<16x32xf32>
      %240 = arith.mulf %235, %239 : vector<16x32xf32>
      %241 = vector.broadcast %221 : vector<1x32xf32> to vector<16x32xf32>
      %242 = arith.mulf %240, %241 : vector<16x32xf32>
      %243 = vector.broadcast %222 : vector<1x32xf32> to vector<16x32xf32>
      %244 = arith.addf %242, %243 : vector<16x32xf32>
      %245 = arith.truncf %244 : vector<16x32xf32> to vector<16x32xbf16>
      %c0_122 = arith.constant 0 : index
      %c0_123 = arith.constant 0 : index
      %246 = vector.load %arg19[%c0_122, %c0_123] : memref<32x96xbf16, #tpu.memory_space<vmem>>, vector<32x96xbf16>
      %cst_124 = arith.constant dense<0.000000e+00> : vector<16x96xf32>
      %247 = tpu.matmul %245, %246, %cst_124 {dimension_numbers = #tpu.dot_dimension_numbers<[1], [0], [0], [1], [0, 0, 1, 1], [], []>} : vector<16x32xbf16>, vector<32x96xbf16>, vector<16x96xf32> -> vector<16x96xf32>
      %c0_125 = arith.constant 0 : index
      %c0_126 = arith.constant 0 : index
      %248 = vector.load %arg20[%c0_125, %c0_126] : memref<1x96xf32, #tpu.memory_space<vmem>>, vector<1x96xf32>
      %249 = vector.broadcast %248 : vector<1x96xf32> to vector<16x96xf32>
      %250 = arith.addf %247, %249 : vector<16x96xf32>
      %251 = tpu.concatenate %244, %250 in 1 : vector<16x32xf32>, vector<16x96xf32> -> vector<16x128xf32>
      %252 = vector.shape_cast %251 : vector<16x128xf32> to vector<1x16x128xf32>
      %c0_127 = arith.constant 0 : index
      %c0_128 = arith.constant 0 : index
      %c0_129 = arith.constant 0 : index
      %253 = vector.load %arg21[%c0_127, %c0_128, %c0_129] : memref<1x16x128xf32, #tpu.memory_space<vmem>>, vector<1x16x128xf32>
      tpu.vector_store %arg21[%c0_127, %c0_128, %c0_129], %252 {strides = array<i32>} : memref<1x16x128xf32, #tpu.memory_space<vmem>>, vector<1x16x128xf32>,
    } else {
    }
    return
  }
  func.func @transform_0(%arg0: i32, %arg1: i32) -> (i32, i32, i32) {
    %c0_i32 = arith.constant 0 : i32
    %c0_i32_0 = arith.constant 0 : i32
    %c0_i32_1 = arith.constant 0 : i32
    return %arg0, %c0_i32, %c0_i32_0 : i32, i32, i32
  }
  func.func @transform_1(%arg0: i32, %arg1: i32) -> (i32, i32, i32, i32) {
    %c0_i32 = arith.constant 0 : i32
    %c0_i32_0 = arith.constant 0 : i32
    %c0_i32_1 = arith.constant 0 : i32
    return %arg0, %c0_i32, %arg1, %c0_i32_0 : i32, i32, i32, i32
  }
  func.func @transform_2(%arg0: i32, %arg1: i32) -> (i32, i32, i32) {
    %c0_i32 = arith.constant 0 : i32
    %c0_i32_0 = arith.constant 0 : i32
    %c0_i32_1 = arith.constant 0 : i32
    return %arg0, %c0_i32, %c0_i32_0 : i32, i32, i32
  }
  func.func @transform_3(%arg0: i32, %arg1: i32) -> (i32, i32, i32) {
    %c0_i32 = arith.constant 0 : i32
    %c0_i32_0 = arith.constant 0 : i32
    %c0_i32_1 = arith.constant 0 : i32
    return %arg0, %c0_i32, %c0_i32_0 : i32, i32, i32
  }
  func.func @transform_4(%arg0: i32, %arg1: i32) -> (i32, i32, i32) {
    %c0_i32 = arith.constant 0 : i32
    %c0_i32_0 = arith.constant 0 : i32
    %c0_i32_1 = arith.constant 0 : i32
    return %arg0, %c0_i32, %c0_i32_0 : i32, i32, i32
  }
  func.func @transform_5(%arg0: i32, %arg1: i32) -> (i32, i32) {
    %c0_i32 = arith.constant 0 : i32
    %c0_i32_0 = arith.constant 0 : i32
    %c0_i32_1 = arith.constant 0 : i32
    return %c0_i32, %c0_i32_0 : i32, i32
  }
  func.func @transform_6(%arg0: i32, %arg1: i32) -> (i32, i32) {
    %c0_i32 = arith.constant 0 : i32
    %c0_i32_0 = arith.constant 0 : i32
    %c0_i32_1 = arith.constant 0 : i32
    return %c0_i32, %c0_i32_0 : i32, i32
  }
  func.func @transform_7(%arg0: i32, %arg1: i32) -> (i32, i32) {
    %c0_i32 = arith.constant 0 : i32
    %c0_i32_0 = arith.constant 0 : i32
    %c0_i32_1 = arith.constant 0 : i32
    return %c0_i32, %c0_i32_0 : i32, i32
  }
  func.func @transform_8(%arg0: i32, %arg1: i32) -> (i32, i32) {
    %c0_i32 = arith.constant 0 : i32
    %c0_i32_0 = arith.constant 0 : i32
    %c0_i32_1 = arith.constant 0 : i32
    return %c0_i32, %c0_i32_0 : i32, i32
  }
  func.func @transform_9(%arg0: i32, %arg1: i32) -> (i32, i32) {
    %c0_i32 = arith.constant 0 : i32
    %c0_i32_0 = arith.constant 0 : i32
    %c0_i32_1 = arith.constant 0 : i32
    return %c0_i32, %c0_i32_0 : i32, i32
  }
  func.func @transform_10(%arg0: i32, %arg1: i32) -> (i32, i32) {
    %c0_i32 = arith.constant 0 : i32
    %c0_i32_0 = arith.constant 0 : i32
    %c0_i32_1 = arith.constant 0 : i32
    return %c0_i32, %c0_i32_0 : i32, i32
  }
  func.func @transform_11(%arg0: i32, %arg1: i32) -> (i32, i32) {
    %c0_i32 = arith.constant 0 : i32
    %c0_i32_0 = arith.constant 0 : i32
    %c0_i32_1 = arith.constant 0 : i32
    return %c0_i32, %c0_i32_0 : i32, i32
  }
  func.func @transform_12(%arg0: i32, %arg1: i32) -> (i32, i32) {
    %c0_i32 = arith.constant 0 : i32
    %c0_i32_0 = arith.constant 0 : i32
    %c0_i32_1 = arith.constant 0 : i32
    return %c0_i32, %c0_i32_0 : i32, i32
  }
  func.func @transform_13(%arg0: i32, %arg1: i32) -> (i32, i32, i32, i32) {
    %c0_i32 = arith.constant 0 : i32
    %c0_i32_0 = arith.constant 0 : i32
    %c0_i32_1 = arith.constant 0 : i32
    %c0_i32_2 = arith.constant 0 : i32
    %c0_i32_3 = arith.constant 0 : i32
    return %c0_i32, %c0_i32_0, %c0_i32_1, %c0_i32_2 : i32, i32, i32, i32
  }
  func.func @transform_14(%arg0: i32, %arg1: i32) -> (i32, i32, i32, i32) {
    %c0_i32 = arith.constant 0 : i32
    %c0_i32_0 = arith.constant 0 : i32
    %c0_i32_1 = arith.constant 0 : i32
    %c0_i32_2 = arith.constant 0 : i32
    %c0_i32_3 = arith.constant 0 : i32
    return %c0_i32, %c0_i32_0, %c0_i32_1, %c0_i32_2 : i32, i32, i32, i32
  }
  func.func @transform_15(%arg0: i32, %arg1: i32) -> (i32, i32) {
    %c0_i32 = arith.constant 0 : i32
    %c0_i32_0 = arith.constant 0 : i32
    %c0_i32_1 = arith.constant 0 : i32
    return %c0_i32, %c0_i32_0 : i32, i32
  }
  func.func @transform_16(%arg0: i32, %arg1: i32) -> (i32, i32) {
    %c0_i32 = arith.constant 0 : i32
    %c0_i32_0 = arith.constant 0 : i32
    %c0_i32_1 = arith.constant 0 : i32
    return %c0_i32, %c0_i32_0 : i32, i32
  }
  func.func @transform_17(%arg0: i32, %arg1: i32) -> (i32, i32) {
    %c0_i32 = arith.constant 0 : i32
    %c0_i32_0 = arith.constant 0 : i32
    %c0_i32_1 = arith.constant 0 : i32
    return %c0_i32, %c0_i32_0 : i32, i32
  }
  func.func @transform_18(%arg0: i32, %arg1: i32) -> (i32, i32) {
    %c0_i32 = arith.constant 0 : i32
    %c0_i32_0 = arith.constant 0 : i32
    %c0_i32_1 = arith.constant 0 : i32
    return %c0_i32, %c0_i32_0 : i32, i32
  }
  func.func @transform_19(%arg0: i32, %arg1: i32) -> (i32, i32, i32) {
    %c0_i32 = arith.constant 0 : i32
    %c0_i32_0 = arith.constant 0 : i32
    %c0_i32_1 = arith.constant 0 : i32
    return %arg0, %c0_i32, %c0_i32_0 : i32, i32, i32
  }
}

</mosaic_0001>

<llo_original>
// kernel: structure_net_forward.2
$region0: #{structure_net_forward.2}
  #allocation0 [shape = 'u32[]', space=smem, size = 0x4, offset = 0x4, fixed_abs, tag = 'smem constant byte address 0x4 - core index']
  #allocation1 [shape = 'u32[72,128]{1,0:T(1,128)}', space=vmem, size = 0x9000, scoped, tag = 'internal scratch']
  #allocation2 [shape = 'bf16[4,16,28]{2,1,0:T(8,128)(2,1)}', space=vmem, size = 0x4000, scoped, tag = 'scratch operand']
  #allocation3 [shape = 'bf16[4,16,28]{2,1,0:T(8,128)(2,1)}', space=vmem, size = 0x4000, scoped, tag = 'scratch operand']
  #allocation4 [shape = 'bf16[4,16,40]{2,1,0:T(8,128)(2,1)}', space=vmem, size = 0x4000, scoped, tag = 'scratch operand']
  #allocation5 [shape = 'f32[4,16,1]{2,1,0:T(8,128)}', space=vmem, size = 0x8000, scoped, tag = 'scratch operand']
  #allocation6 [shape = 'f32[4,16,1]{2,1,0:T(8,128)}', space=vmem, size = 0x8000, scoped, tag = 'scratch operand']
  #allocation7 [shape = 'f32[4,16,1]{2,1,0:T(8,128)}', space=vmem, size = 0x8000, scoped, tag = 'scratch operand']
  #allocation8 [shape = 'f32[4,16,40]{2,1,0:T(8,128)}', space=vmem, size = 0x8000, scoped, tag = 'scratch operand']
  #allocation9 [shape = 'f32[16,4,16]{2,1,0:T(4,128)}', space=vmem, size = 0x8000, scoped, tag = 'scratch operand']
  %s0 = inlined_call_operand.vmem [shape: f32[2,16,32], index: 0, kind: input, shape index: {}]
  %s1 = inlined_call_operand.vmem [shape: bf16[2,16,16,16], index: 1, kind: input, shape index: {}]
  %s2 = inlined_call_operand.vmem [shape: f32[2,16,9], index: 2, kind: input, shape index: {}]
  %s3 = inlined_call_operand.vmem [shape: f32[2,16,3], index: 3, kind: input, shape index: {}]
  %s4 = inlined_call_operand.vmem [shape: f32[2,16,1], index: 4, kind: input, shape index: {}]
  %s5 = inlined_call_operand.vmem [shape: bf16[32,384], index: 5, kind: input, shape index: {}]
  %s6 = inlined_call_operand.vmem [shape: f32[1,384], index: 6, kind: input, shape index: {}]
  %s7 = inlined_call_operand.vmem [shape: bf16[4,16], index: 7, kind: input, shape index: {}]
  %s8 = inlined_call_operand.vmem [shape: f32[1,4], index: 8, kind: input, shape index: {}]
  %s9 = inlined_call_operand.vmem [shape: bf16[256,32], index: 9, kind: input, shape index: {}]
  %s10 = inlined_call_operand.vmem [shape: f32[1,32], index: 10, kind: input, shape index: {}]
  %s11 = inlined_call_operand.vmem [shape: f32[1,32], index: 11, kind: input, shape index: {}, may-alias: {11,15}]
  %s12 = inlined_call_operand.vmem [shape: f32[1,32], index: 12, kind: input, shape index: {}, may-alias: {12,16}]
  %s13 = inlined_call_operand.vmem [shape: bf16[1,3,32,32], index: 13, kind: input, shape index: {}]
  %s14 = inlined_call_operand.vmem [shape: f32[1,3,1,32], index: 14, kind: input, shape index: {}]
  %s15 = inlined_call_operand.vmem [shape: f32[1,32], index: 15, kind: input, shape index: {}, may-alias: {11,15}]
  %s16 = inlined_call_operand.vmem [shape: f32[1,32], index: 16, kind: input, shape index: {}, may-alias: {12,16}]
  %s17 = inlined_call_operand.vmem [shape: bf16[32,96], index: 17, kind: input, shape index: {}]
  %s18 = inlined_call_operand.vmem [shape: f32[1,96], index: 18, kind: input, shape index: {}]
  %s19 = inlined_call_operand.vmem [shape: f32[2,16,128], index: 19, kind: output, shape index: {}]
  %s20 = sld [smem:[#allocation0]]
  $region158: #{structure_net_forward.2} parent=0
    _
  %s22 = ssub.s32 1, %s20
  %s23 = scalar_select 0, %s22, %s20
  $region1: #{structure_net_forward.2} parent=0
    #allocation10 [shape = 'u8[65536]{0}', space=vmem, size = 0x10000, scoped, tag = 'input window, operand 1']
    loop: start=0, step=1, limit=6
    $region2: #{structure_net_forward.2} parent=1 // loop_pre_header
      _
    $region3: #{structure_net_forward.2} parent=1 // loop_header
      %s25 = sphi 0, %s29
      %p26 = scmp.ge.s32.totalorder %s25, 6
      %s32 = sphi 0, %s44
      %s33 = sphi 0, %s40
      %s34 = sphi 0, %s32
      %s35 = sphi 0, %s33
      %s36 = sphi 0, %s34
      %s37 = sphi 0, %s35
      %s47 = sphi 0, %s49
      %s50 = sphi 0, %s47
      %s51 = sphi 0, %s50
      %s67 = sphi 0, %s51
      %s75 = sphi 0, %s77
      %s78 = sphi 0, %s75
      %s79 = sphi 0, %s78
      %s95 = sphi 0, %s79
      %s101 = sphi 0, %s103
      %s104 = sphi 0, %s101
      %s105 = sphi 0, %s104
      %s121 = sphi 0, %s105
      %s127 = sphi 0, %s129
      %s130 = sphi 0, %s127
      %s131 = sphi 0, %s130
      %s147 = sphi 0, %s131
      %s153 = sphi 0, %s155
      %s156 = sphi 0, %s153
      %s157 = sphi 0, %s156
      %s173 = sphi 0, %s157
      %s177 = sphi 0, %s177
      %s179 = sphi 0, %s177
      %s180 = sphi 0, %s179
      %s194 = sphi 0, %s180
      %s198 = sphi 0, %s198
      %s200 = sphi 0, %s198
      %s201 = sphi 0, %s200
      %s215 = sphi 0, %s201
      %s219 = sphi 0, %s219
      %s221 = sphi 0, %s219
      %s222 = sphi 0, %s221
      %s236 = sphi 0, %s222
      %s240 = sphi 0, %s240
      %s242 = sphi 0, %s240
      %s243 = sphi 0, %s242
      %s257 = sphi 0, %s243
      %s261 = sphi 0, %s261
      %s263 = sphi 0, %s261
      %s264 = sphi 0, %s263
      %s278 = sphi 0, %s264
      %s282 = sphi 0, %s282
      %s284 = sphi 0, %s282
      %s285 = sphi 0, %s284
      %s299 = sphi 0, %s285
      %s303 = sphi 0, %s303
      %s305 = sphi 0, %s303
      %s306 = sphi 0, %s305
      %s320 = sphi 0, %s306
      %s324 = sphi 0, %s324
      %s326 = sphi 0, %s324
      %s327 = sphi 0, %s326
      %s341 = sphi 0, %s327
      %s345 = sphi 0, %s345
      %s347 = sphi 0, %s345
      %s348 = sphi 0, %s347
      %s362 = sphi 0, %s348
      %s366 = sphi 0, %s366
      %s368 = sphi 0, %s366
      %s369 = sphi 0, %s368
      %s383 = sphi 0, %s369
      %s387 = sphi 0, %s387
      %s389 = sphi 0, %s387
      %s390 = sphi 0, %s389
      %s404 = sphi 0, %s390
      %s408 = sphi 0, %s408
      %s410 = sphi 0, %s408
      %s411 = sphi 0, %s410
      %s425 = sphi 0, %s411
      %s429 = sphi 0, %s429
      %s431 = sphi 0, %s429
      %s432 = sphi 0, %s431
      %s446 = sphi 0, %s432
      %s450 = sphi 0, %s450
      %s452 = sphi 0, %s450
      %s453 = sphi 0, %s452
      %s467 = sphi 0, %s453
      %s473 = sphi 0, %s475
      %s476 = sphi 0, %s473
      %s477 = sphi 0, %s476
      %s493 = sphi 0, %s477
    $region4: #{structure_net_forward.2} parent=1 // loop_header_branch
      %28 = sbr.rel (%p26) target = $region8
    $region5: #{structure_net_forward.2} parent=1 // loop_body
      %s30 = ssub.s32 %s25, 1
      %s31 = ssub.s32 %s25, 2
      %s38 = sadd.s32 1, %s33
      %p39 = scmp.ge.s32.totalorder %s38, 2
      %s40 = scalar_select %p39, 0, %s38
      %s41 = sadd.s32 1, %s32
      %s42 = scalar_select %p39, %s41, %s32
      %p43 = scmp.ge.s32.totalorder %s42, 2
      %s44 = scalar_select %p43, 0, %s42
      %s45 = ssub.s32 %s32, %s44
      %p46 = scmp.eq.s32.totalorder %s45, 0
      %s48 = sadd.s32 %s47, 1
      %s49 = scalar_select %p46, %s47, %s48
      %p52 = pneg %p46
      %p53 = scmp.eq.s32.totalorder %s25, 3
      %p54 = por %p52, %p53
      %p55 = scmp.ne.s32.totalorder %s47, %s50
      %p56 = scmp.eq.s32.totalorder %s25, 0
      %p57 = por %p55, %p56
      %p58 = scmp.ne.s32.totalorder %s47, %s50
      %p59 = scmp.eq.s32.totalorder %s30, 3
      %p60 = por %p58, %p59
      %p61 = scmp.ne.s32.totalorder %s50, %s51
      %p62 = scmp.eq.s32.totalorder %s30, 0
      %p63 = por %p61, %p62
      %p64 = scmp.ne.s32.totalorder %s50, %s51
      %p65 = scmp.eq.s32.totalorder %s31, 3
      %p66 = por %p64, %p65
      %p68 = scmp.ne.s32.totalorder %s51, %s67
      %p69 = scmp.eq.s32.totalorder %s31, 0
      %p70 = por %p68, %p69
      %s71 = ssub.s32 %s32, %s44
      %s72 = ssub.s32 %s33, %s40
      %s73 = sor.u32 %s71, %s72
      %p74 = scmp.eq.s32.totalorder %s73, 0
      %s76 = sadd.s32 %s75, 1
      %s77 = scalar_select %p74, %s75, %s76
      %p80 = pneg %p74
      %p81 = scmp.eq.s32.totalorder %s25, 3
      %p82 = por %p80, %p81
      %p83 = scmp.ne.s32.totalorder %s75, %s78
      %p84 = scmp.eq.s32.totalorder %s25, 0
      %p85 = por %p83, %p84
      %p86 = scmp.ne.s32.totalorder %s75, %s78
      %p87 = scmp.eq.s32.totalorder %s30, 3
      %p88 = por %p86, %p87
      %p89 = scmp.ne.s32.totalorder %s78, %s79
      %p90 = scmp.eq.s32.totalorder %s30, 0
      %p91 = por %p89, %p90
      %p92 = scmp.ne.s32.totalorder %s78, %s79
      %p93 = scmp.eq.s32.totalorder %s31, 3
      %p94 = por %p92, %p93
      %p96 = scmp.ne.s32.totalorder %s79, %s95
      %p97 = scmp.eq.s32.totalorder %s31, 0
      %p98 = por %p96, %p97
      %s99 = ssub.s32 %s32, %s44
      %p100 = scmp.eq.s32.totalorder %s99, 0
      %s102 = sadd.s32 %s101, 1
      %s103 = scalar_select %p100, %s101, %s102
      %p106 = pneg %p100
      %p107 = scmp.eq.s32.totalorder %s25, 3
      %p108 = por %p106, %p107
      %p109 = scmp.ne.s32.totalorder %s101, %s104
      %p110 = scmp.eq.s32.totalorder %s25, 0
      %p111 = por %p109, %p110
      %p112 = scmp.ne.s32.totalorder %s101, %s104
      %p113 = scmp.eq.s32.totalorder %s30, 3
      %p114 = por %p112, %p113
      %p115 = scmp.ne.s32.totalorder %s104, %s105
      %p116 = scmp.eq.s32.totalorder %s30, 0
      %p117 = por %p115, %p116
      %p118 = scmp.ne.s32.totalorder %s104, %s105
      %p119 = scmp.eq.s32.totalorder %s31, 3
      %p120 = por %p118, %p119
      %p122 = scmp.ne.s32.totalorder %s105, %s121
      %p123 = scmp.eq.s32.totalorder %s31, 0
      %p124 = por %p122, %p123
      %s125 = ssub.s32 %s32, %s44
      %p126 = scmp.eq.s32.totalorder %s125, 0
      %s128 = sadd.s32 %s127, 1
      %s129 = scalar_select %p126, %s127, %s128
      %p132 = pneg %p126
      %p133 = scmp.eq.s32.totalorder %s25, 3
      %p134 = por %p132, %p133
      %p135 = scmp.ne.s32.totalorder %s127, %s130
      %p136 = scmp.eq.s32.totalorder %s25, 0
      %p137 = por %p135, %p136
      %p138 = scmp.ne.s32.totalorder %s127, %s130
      %p139 = scmp.eq.s32.totalorder %s30, 3
      %p140 = por %p138, %p139
      %p141 = scmp.ne.s32.totalorder %s130, %s131
      %p142 = scmp.eq.s32.totalorder %s30, 0
      %p143 = por %p141, %p142
      %p144 = scmp.ne.s32.totalorder %s130, %s131
      %p145 = scmp.eq.s32.totalorder %s31, 3
      %p146 = por %p144, %p145
      %p148 = scmp.ne.s32.totalorder %s131, %s147
      %p149 = scmp.eq.s32.totalorder %s31, 0
      %p150 = por %p148, %p149
      %s151 = ssub.s32 %s32, %s44
      %p152 = scmp.eq.s32.totalorder %s151, 0
      %s154 = sadd.s32 %s153, 1
      %s155 = scalar_select %p152, %s153, %s154
      %p158 = pneg %p152
      %p159 = scmp.eq.s32.totalorder %s25, 3
      %p160 = por %p158, %p159
      %p161 = scmp.ne.s32.totalorder %s153, %s156
      %p162 = scmp.eq.s32.totalorder %s25, 0
      %p163 = por %p161, %p162
      %p164 = scmp.ne.s32.totalorder %s153, %s156
      %p165 = scmp.eq.s32.totalorder %s30, 3
      %p166 = por %p164, %p165
      %p167 = scmp.ne.s32.totalorder %s156, %s157
      %p168 = scmp.eq.s32.totalorder %s30, 0
      %p169 = por %p167, %p168
      %p170 = scmp.ne.s32.totalorder %s156, %s157
      %p171 = scmp.eq.s32.totalorder %s31, 3
      %p172 = por %p170, %p171
      %p174 = scmp.ne.s32.totalorder %s157, %s173
      %p175 = scmp.eq.s32.totalorder %s31, 0
      %p176 = por %p174, %p175
      %s178 = sadd.s32 %s177, 1
      %p181 = scmp.eq.s32.totalorder %s25, 3
      %p182 = scmp.ne.s32.totalorder %s177, %s179
      %p183 = scmp.eq.s32.totalorder %s25, 0
      %p184 = por %p182, %p183
      %p185 = scmp.ne.s32.totalorder %s177, %s179
      %p186 = scmp.eq.s32.totalorder %s30, 3
      %p187 = por %p185, %p186
      %p188 = scmp.ne.s32.totalorder %s179, %s180
      %p189 = scmp.eq.s32.totalorder %s30, 0
      %p190 = por %p188, %p189
      %p191 = scmp.ne.s32.totalorder %s179, %s180
      %p192 = scmp.eq.s32.totalorder %s31, 3
      %p193 = por %p191, %p192
      %p195 = scmp.ne.s32.totalorder %s180, %s194
      %p196 = scmp.eq.s32.totalorder %s31, 0
      %p197 = por %p195, %p196
      %s199 = sadd.s32 %s198, 1
      %p202 = scmp.eq.s32.totalorder %s25, 3
      %p203 = scmp.ne.s32.totalorder %s198, %s200
      %p204 = scmp.eq.s32.totalorder %s25, 0
      %p205 = por %p203, %p204
      %p206 = scmp.ne.s32.totalorder %s198, %s200
      %p207 = scmp.eq.s32.totalorder %s30, 3
      %p208 = por %p206, %p207
      %p209 = scmp.ne.s32.totalorder %s200, %s201
      %p210 = scmp.eq.s32.totalorder %s30, 0
      %p211 = por %p209, %p210
      %p212 = scmp.ne.s32.totalorder %s200, %s201
      %p213 = scmp.eq.s32.totalorder %s31, 3
      %p214 = por %p212, %p213
      %p216 = scmp.ne.s32.totalorder %s201, %s215
      %p217 = scmp.eq.s32.totalorder %s31, 0
      %p218 = por %p216, %p217
      %s220 = sadd.s32 %s219, 1
      %p223 = scmp.eq.s32.totalorder %s25, 3
      %p224 = scmp.ne.s32.totalorder %s219, %s221
      %p225 = scmp.eq.s32.totalorder %s25, 0
      %p226 = por %p224, %p225
      %p227 = scmp.ne.s32.totalorder %s219, %s221
      %p228 = scmp.eq.s32.totalorder %s30, 3
      %p229 = por %p227, %p228
      %p230 = scmp.ne.s32.totalorder %s221, %s222
      %p231 = scmp.eq.s32.totalorder %s30, 0
      %p232 = por %p230, %p231
      %p233 = scmp.ne.s32.totalorder %s221, %s222
      %p234 = scmp.eq.s32.totalorder %s31, 3
      %p235 = por %p233, %p234
      %p237 = scmp.ne.s32.totalorder %s222, %s236
      %p238 = scmp.eq.s32.totalorder %s31, 0
      %p239 = por %p237, %p238
      %s241 = sadd.s32 %s240, 1
      %p244 = scmp.eq.s32.totalorder %s25, 3
      %p245 = scmp.ne.s32.totalorder %s240, %s242
      %p246 = scmp.eq.s32.totalorder %s25, 0
      %p247 = por %p245, %p246
      %p248 = scmp.ne.s32.totalorder %s240, %s242
      %p249 = scmp.eq.s32.totalorder %s30, 3
      %p250 = por %p248, %p249
      %p251 = scmp.ne.s32.totalorder %s242, %s243
      %p252 = scmp.eq.s32.totalorder %s30, 0
      %p253 = por %p251, %p252
      %p254 = scmp.ne.s32.totalorder %s242, %s243
      %p255 = scmp.eq.s32.totalorder %s31, 3
      %p256 = por %p254, %p255
      %p258 = scmp.ne.s32.totalorder %s243, %s257
      %p259 = scmp.eq.s32.totalorder %s31, 0
      %p260 = por %p258, %p259
      %s262 = sadd.s32 %s261, 1
      %p265 = scmp.eq.s32.totalorder %s25, 3
      %p266 = scmp.ne.s32.totalorder %s261, %s263
      %p267 = scmp.eq.s32.totalorder %s25, 0
      %p268 = por %p266, %p267
      %p269 = scmp.ne.s32.totalorder %s261, %s263
      %p270 = scmp.eq.s32.totalorder %s30, 3
      %p271 = por %p269, %p270
      %p272 = scmp.ne.s32.totalorder %s263, %s264
      %p273 = scmp.eq.s32.totalorder %s30, 0
      %p274 = por %p272, %p273
      %p275 = scmp.ne.s32.totalorder %s263, %s264
      %p276 = scmp.eq.s32.totalorder %s31, 3
      %p277 = por %p275, %p276
      %p279 = scmp.ne.s32.totalorder %s264, %s278
      %p280 = scmp.eq.s32.totalorder %s31, 0
      %p281 = por %p279, %p280
      %s283 = sadd.s32 %s282, 1
      %p286 = scmp.eq.s32.totalorder %s25, 3
      %p287 = scmp.ne.s32.totalorder %s282, %s284
      %p288 = scmp.eq.s32.totalorder %s25, 0
      %p289 = por %p287, %p288
      %p290 = scmp.ne.s32.totalorder %s282, %s284
      %p291 = scmp.eq.s32.totalorder %s30, 3
      %p292 = por %p290, %p291
      %p293 = scmp.ne.s32.totalorder %s284, %s285
      %p294 = scmp.eq.s32.totalorder %s30, 0
      %p295 = por %p293, %p294
      %p296 = scmp.ne.s32.totalorder %s284, %s285
      %p297 = scmp.eq.s32.totalorder %s31, 3
      %p298 = por %p296, %p297
      %p300 = scmp.ne.s32.totalorder %s285, %s299
      %p301 = scmp.eq.s32.totalorder %s31, 0
      %p302 = por %p300, %p301
      %s304 = sadd.s32 %s303, 1
      %p307 = scmp.eq.s32.totalorder %s25, 3
      %p308 = scmp.ne.s32.totalorder %s303, %s305
      %p309 = scmp.eq.s32.totalorder %s25, 0
      %p310 = por %p308, %p309
      %p311 = scmp.ne.s32.totalorder %s303, %s305
      %p312 = scmp.eq.s32.totalorder %s30, 3
      %p313 = por %p311, %p312
      %p314 = scmp.ne.s32.totalorder %s305, %s306
      %p315 = scmp.eq.s32.totalorder %s30, 0
      %p316 = por %p314, %p315
      %p317 = scmp.ne.s32.totalorder %s305, %s306
      %p318 = scmp.eq.s32.totalorder %s31, 3
      %p319 = por %p317, %p318
      %p321 = scmp.ne.s32.totalorder %s306, %s320
      %p322 = scmp.eq.s32.totalorder %s31, 0
      %p323 = por %p321, %p322
      %s325 = sadd.s32 %s324, 1
      %p328 = scmp.eq.s32.totalorder %s25, 3
      %p329 = scmp.ne.s32.totalorder %s324, %s326
      %p330 = scmp.eq.s32.totalorder %s25, 0
      %p331 = por %p329, %p330
      %p332 = scmp.ne.s32.totalorder %s324, %s326
      %p333 = scmp.eq.s32.totalorder %s30, 3
      %p334 = por %p332, %p333
      %p335 = scmp.ne.s32.totalorder %s326, %s327
      %p336 = scmp.eq.s32.totalorder %s30, 0
      %p337 = por %p335, %p336
      %p338 = scmp.ne.s32.totalorder %s326, %s327
      %p339 = scmp.eq.s32.totalorder %s31, 3
      %p340 = por %p338, %p339
      %p342 = scmp.ne.s32.totalorder %s327, %s341
      %p343 = scmp.eq.s32.totalorder %s31, 0
      %p344 = por %p342, %p343
      %s346 = sadd.s32 %s345, 1
      %p349 = scmp.eq.s32.totalorder %s25, 3
      %p350 = scmp.ne.s32.totalorder %s345, %s347
      %p351 = scmp.eq.s32.totalorder %s25, 0
      %p352 = por %p350, %p351
      %p353 = scmp.ne.s32.totalorder %s345, %s347
      %p354 = scmp.eq.s32.totalorder %s30, 3
      %p355 = por %p353, %p354
      %p356 = scmp.ne.s32.totalorder %s347, %s348
      %p357 = scmp.eq.s32.totalorder %s30, 0
      %p358 = por %p356, %p357
      %p359 = scmp.ne.s32.totalorder %s347, %s348
      %p360 = scmp.eq.s32.totalorder %s31, 3
      %p361 = por %p359, %p360
      %p363 = scmp.ne.s32.totalorder %s348, %s362
      %p364 = scmp.eq.s32.totalorder %s31, 0
      %p365 = por %p363, %p364
      %s367 = sadd.s32 %s366, 1
      %p370 = scmp.eq.s32.totalorder %s25, 3
      %p371 = scmp.ne.s32.totalorder %s366, %s368
      %p372 = scmp.eq.s32.totalorder %s25, 0
      %p373 = por %p371, %p372
      %p374 = scmp.ne.s32.totalorder %s366, %s368
      %p375 = scmp.eq.s32.totalorder %s30, 3
      %p376 = por %p374, %p375
      %p377 = scmp.ne.s32.totalorder %s368, %s369
      %p378 = scmp.eq.s32.totalorder %s30, 0
      %p379 = por %p377, %p378
      %p380 = scmp.ne.s32.totalorder %s368, %s369
      %p381 = scmp.eq.s32.totalorder %s31, 3
      %p382 = por %p380, %p381
      %p384 = scmp.ne.s32.totalorder %s369, %s383
      %p385 = scmp.eq.s32.totalorder %s31, 0
      %p386 = por %p384, %p385
      %s388 = sadd.s32 %s387, 1
      %p391 = scmp.eq.s32.totalorder %s25, 3
      %p392 = scmp.ne.s32.totalorder %s387, %s389
      %p393 = scmp.eq.s32.totalorder %s25, 0
      %p394 = por %p392, %p393
      %p395 = scmp.ne.s32.totalorder %s387, %s389
      %p396 = scmp.eq.s32.totalorder %s30, 3
      %p397 = por %p395, %p396
      %p398 = scmp.ne.s32.totalorder %s389, %s390
      %p399 = scmp.eq.s32.totalorder %s30, 0
      %p400 = por %p398, %p399
      %p401 = scmp.ne.s32.totalorder %s389, %s390
      %p402 = scmp.eq.s32.totalorder %s31, 3
      %p403 = por %p401, %p402
      %p405 = scmp.ne.s32.totalorder %s390, %s404
      %p406 = scmp.eq.s32.totalorder %s31, 0
      %p407 = por %p405, %p406
      %s409 = sadd.s32 %s408, 1
      %p412 = scmp.eq.s32.totalorder %s25, 3
      %p413 = scmp.ne.s32.totalorder %s408, %s410
      %p414 = scmp.eq.s32.totalorder %s25, 0
      %p415 = por %p413, %p414
      %p416 = scmp.ne.s32.totalorder %s408, %s410
      %p417 = scmp.eq.s32.totalorder %s30, 3
      %p418 = por %p416, %p417
      %p419 = scmp.ne.s32.totalorder %s410, %s411
      %p420 = scmp.eq.s32.totalorder %s30, 0
      %p421 = por %p419, %p420
      %p422 = scmp.ne.s32.totalorder %s410, %s411
      %p423 = scmp.eq.s32.totalorder %s31, 3
      %p424 = por %p422, %p423
      %p426 = scmp.ne.s32.totalorder %s411, %s425
      %p427 = scmp.eq.s32.totalorder %s31, 0
      %p428 = por %p426, %p427
      %s430 = sadd.s32 %s429, 1
      %p433 = scmp.eq.s32.totalorder %s25, 3
      %p434 = scmp.ne.s32.totalorder %s429, %s431
      %p435 = scmp.eq.s32.totalorder %s25, 0
      %p436 = por %p434, %p435
      %p437 = scmp.ne.s32.totalorder %s429, %s431
      %p438 = scmp.eq.s32.totalorder %s30, 3
      %p439 = por %p437, %p438
      %p440 = scmp.ne.s32.totalorder %s431, %s432
      %p441 = scmp.eq.s32.totalorder %s30, 0
      %p442 = por %p440, %p441
      %p443 = scmp.ne.s32.totalorder %s431, %s432
      %p444 = scmp.eq.s32.totalorder %s31, 3
      %p445 = por %p443, %p444
      %p447 = scmp.ne.s32.totalorder %s432, %s446
      %p448 = scmp.eq.s32.totalorder %s31, 0
      %p449 = por %p447, %p448
      %s451 = sadd.s32 %s450, 1
      %p454 = scmp.eq.s32.totalorder %s25, 3
      %p455 = scmp.ne.s32.totalorder %s450, %s452
      %p456 = scmp.eq.s32.totalorder %s25, 0
      %p457 = por %p455, %p456
      %p458 = scmp.ne.s32.totalorder %s450, %s452
      %p459 = scmp.eq.s32.totalorder %s30, 3
      %p460 = por %p458, %p459
      %p461 = scmp.ne.s32.totalorder %s452, %s453
      %p462 = scmp.eq.s32.totalorder %s30, 0
      %p463 = por %p461, %p462
      %p464 = scmp.ne.s32.totalorder %s452, %s453
      %p465 = scmp.eq.s32.totalorder %s31, 3
      %p466 = por %p464, %p465
      %p468 = scmp.ne.s32.totalorder %s453, %s467
      %p469 = scmp.eq.s32.totalorder %s31, 0
      %p470 = por %p468, %p469
      %s471 = ssub.s32 %s32, %s44
      %p472 = scmp.eq.s32.totalorder %s471, 0
      %s474 = sadd.s32 %s473, 1
      %s475 = scalar_select %p472, %s473, %s474
      %p478 = pneg %p472
      %p479 = scmp.eq.s32.totalorder %s25, 3
      %p480 = por %p478, %p479
      %p481 = scmp.ne.s32.totalorder %s473, %s476
      %p482 = scmp.eq.s32.totalorder %s25, 0
      %p483 = por %p481, %p482
      %p484 = scmp.ne.s32.totalorder %s473, %s476
      %p485 = scmp.eq.s32.totalorder %s30, 3
      %p486 = por %p484, %p485
      %p487 = scmp.ne.s32.totalorder %s476, %s477
      %p488 = scmp.eq.s32.totalorder %s30, 0
      %p489 = por %p487, %p488
      %p490 = scmp.ne.s32.totalorder %s476, %s477
      %p491 = scmp.eq.s32.totalorder %s31, 3
      %p492 = por %p490, %p491
      %p494 = scmp.ne.s32.totalorder %s477, %s493
      %p495 = scmp.eq.s32.totalorder %s31, 0
      %p496 = por %p494, %p495
      %p497 = scmp.le.s32.totalorder 1, %s25
      %p498 = scmp.lt.s32.totalorder %s25, 5
      %p499 = pnand %p497, %p498
      %p500 = pneg %p499
      // Predicated region
      $region9: #{structure_net_forward.2} parent=5 // pred_check
        _
      $region10: #{structure_net_forward.2} parent=5 // pred_check_branch
        %502 = sbr.rel (%p499) target = $region12
      $region11: #{structure_net_forward.2} parent=5 // pred_region
        %s503 = ssub.s32 %s25, 1
        // Predicated region
        $region13: #{structure_net_forward.2} parent=11 // pred_check
          %p504 = pneg %p190
        $region14: #{structure_net_forward.2} parent=11 // pred_check_branch
          %506 = sbr.rel (%p504) target = $region16
        $region15: #{structure_net_forward.2} parent=11 // pred_region
          _
        $region16: #{structure_net_forward.2} parent=11 // pred_fallthru
          _
        // Predicated region
        $region17: #{structure_net_forward.2} parent=11 // pred_check
          %p507 = pneg %p211
        $region18: #{structure_net_forward.2} parent=11 // pred_check_branch
          %509 = sbr.rel (%p507) target = $region20
        $region19: #{structure_net_forward.2} parent=11 // pred_region
          _
        $region20: #{structure_net_forward.2} parent=11 // pred_fallthru
          _
        // Predicated region
        $region21: #{structure_net_forward.2} parent=11 // pred_check
          %p510 = pneg %p232
        $region22: #{structure_net_forward.2} parent=11 // pred_check_branch
          %512 = sbr.rel (%p510) target = $region24
        $region23: #{structure_net_forward.2} parent=11 // pred_region
          _
        $region24: #{structure_net_forward.2} parent=11 // pred_fallthru
          _
        // Predicated region
        $region25: #{structure_net_forward.2} parent=11 // pred_check
          %p513 = pneg %p253
        $region26: #{structure_net_forward.2} parent=11 // pred_check_branch
          %515 = sbr.rel (%p513) target = $region28
        $region27: #{structure_net_forward.2} parent=11 // pred_region
          _
        $region28: #{structure_net_forward.2} parent=11 // pred_fallthru
          _
        // Predicated region
        $region29: #{structure_net_forward.2} parent=11 // pred_check
          %p516 = pneg %p274
        $region30: #{structure_net_forward.2} parent=11 // pred_check_branch
          %518 = sbr.rel (%p516) target = $region32
        $region31: #{structure_net_forward.2} parent=11 // pred_region
          _
        $region32: #{structure_net_forward.2} parent=11 // pred_fallthru
          _
        // Predicated region
        $region33: #{structure_net_forward.2} parent=11 // pred_check
          %p519 = pneg %p295
        $region34: #{structure_net_forward.2} parent=11 // pred_check_branch
          %521 = sbr.rel (%p519) target = $region36
        $region35: #{structure_net_forward.2} parent=11 // pred_region
          _
        $region36: #{structure_net_forward.2} parent=11 // pred_fallthru
          _
        // Predicated region
        $region37: #{structure_net_forward.2} parent=11 // pred_check
          %p522 = pneg %p316
        $region38: #{structure_net_forward.2} parent=11 // pred_check_branch
          %524 = sbr.rel (%p522) target = $region40
        $region39: #{structure_net_forward.2} parent=11 // pred_region
          _
        $region40: #{structure_net_forward.2} parent=11 // pred_fallthru
          _
        // Predicated region
        $region41: #{structure_net_forward.2} parent=11 // pred_check
          %p525 = pneg %p337
        $region42: #{structure_net_forward.2} parent=11 // pred_check_branch
          %527 = sbr.rel (%p525) target = $region44
        $region43: #{structure_net_forward.2} parent=11 // pred_region
          _
        $region44: #{structure_net_forward.2} parent=11 // pred_fallthru
          _
        // Predicated region
        $region45: #{structure_net_forward.2} parent=11 // pred_check
          %p528 = pneg %p358
        $region46: #{structure_net_forward.2} parent=11 // pred_check_branch
          %530 = sbr.rel (%p528) target = $region48
        $region47: #{structure_net_forward.2} parent=11 // pred_region
          _
        $region48: #{structure_net_forward.2} parent=11 // pred_fallthru
          _
        // Predicated region
        $region49: #{structure_net_forward.2} parent=11 // pred_check
          %p531 = pneg %p379
        $region50: #{structure_net_forward.2} parent=11 // pred_check_branch
          %533 = sbr.rel (%p531) target = $region52
        $region51: #{structure_net_forward.2} parent=11 // pred_region
          _
        $region52: #{structure_net_forward.2} parent=11 // pred_fallthru
          _
        // Predicated region
        $region53: #{structure_net_forward.2} parent=11 // pred_check
          %p534 = pneg %p400
        $region54: #{structure_net_forward.2} parent=11 // pred_check_branch
          %536 = sbr.rel (%p534) target = $region56
        $region55: #{structure_net_forward.2} parent=11 // pred_region
          _
        $region56: #{structure_net_forward.2} parent=11 // pred_fallthru
          _
        // Predicated region
        $region57: #{structure_net_forward.2} parent=11 // pred_check
          %p537 = pneg %p421
        $region58: #{structure_net_forward.2} parent=11 // pred_check_branch
          %539 = sbr.rel (%p537) target = $region60
        $region59: #{structure_net_forward.2} parent=11 // pred_region
          _
        $region60: #{structure_net_forward.2} parent=11 // pred_fallthru
          _
        // Predicated region
        $region61: #{structure_net_forward.2} parent=11 // pred_check
          %p540 = pneg %p442
        $region62: #{structure_net_forward.2} parent=11 // pred_check_branch
          %542 = sbr.rel (%p540) target = $region64
        $region63: #{structure_net_forward.2} parent=11 // pred_region
          _
        $region64: #{structure_net_forward.2} parent=11 // pred_fallthru
          _
        // Predicated region
        $region65: #{structure_net_forward.2} parent=11 // pred_check
          %p543 = pneg %p463
        $region66: #{structure_net_forward.2} parent=11 // pred_check_branch
          %545 = sbr.rel (%p543) target = $region68
        $region67: #{structure_net_forward.2} parent=11 // pred_region
          _
        $region68: #{structure_net_forward.2} parent=11 // pred_fallthru
          _
      $region12: #{structure_net_forward.2} parent=5 // pred_fallthru
        _
      %p546 = scmp.lt.s32.totalorder %s25, 4
      // Predicated region
      $region69: #{structure_net_forward.2} parent=5 // pred_check
        %p547 = pneg %p546
      $region70: #{structure_net_forward.2} parent=5 // pred_check_branch
        %549 = sbr.rel (%p547) target = $region72
      $region71: #{structure_net_forward.2} parent=5 // pred_region
        // Predicated region
        $region73: #{structure_net_forward.2} parent=71 // pred_check
          %p550 = pneg %p57
        $region74: #{structure_net_forward.2} parent=71 // pred_check_branch
          %552 = sbr.rel (%p550) target = $region76
        $region75: #{structure_net_forward.2} parent=71 // pred_region
          %p553 = scmp.lt.s32.totalorder %s32, 1
          %s554 = scalar_select %p553, %s32, 1
          %s555 = smul.addr %s554, 2
          %s556 = smul.addr %s555, 8
          %s557 = scalar_lea.vmem %s0, %s556
        $region76: #{structure_net_forward.2} parent=71 // pred_fallthru
          _
        // Predicated region
        $region77: #{structure_net_forward.2} parent=71 // pred_check
          %p558 = pneg %p85
        $region78: #{structure_net_forward.2} parent=71 // pred_check_branch
          %560 = sbr.rel (%p558) target = $region80
        $region79: #{structure_net_forward.2} parent=71 // pred_region
          %s561 = sand.u32 %s75, 1
          %s562 = sand.u32 %s75, 1
          %s563 = smul.addr %s562, 64
          %s564 = scalar_lea.vmem [#allocation10], %s563
          %s565 = smul.addr %s32, 32
          %s566 = sadd.s32 %s33, %s565
          %s567 = smul.addr %s566, 4
          %s568 = scalar_lea.vmem %s1, %s567
          // Predicated region
          $region81: #{structure_net_forward.2} parent=79 // pred_check
            _
          $region82: #{structure_net_forward.2} parent=79 // pred_check_branch
            %570 = sbr.rel (0) target = $region84
          $region83: #{structure_net_forward.2} parent=79 // pred_region
            // Predicated region
            $region85: #{structure_net_forward.2} parent=83 // pred_check
              _
            $region86: #{structure_net_forward.2} parent=83 // pred_check_branch
              %572 = sbr.rel target = $region88
            $region87: #{structure_net_forward.2} parent=83 // pred_region
              // Predicated region
              $region100: #{structure_net_forward.2} parent=87 // pred_check
                _
              $region101: #{structure_net_forward.2} parent=87 // pred_check_branch
                %618 = sbr.rel (0) target = $region103
              $region102: #{structure_net_forward.2} parent=87 // pred_region
                loop: start=0, step=1, limit=1
                $region104: #{structure_net_forward.2} parent=102 // loop_pre_header
                  _
                $region105: #{structure_net_forward.2} parent=102 // loop_header
                  %s620 = sphi 0, %s624
                  %p621 = scmp.ge.s32.totalorder %s620, 1
                  %s625 = sphi %s568, %s568
                  %s626 = sphi %s564, %s564
                $region106: #{structure_net_forward.2} parent=102 // loop_header_branch
                  %623 = sbr.rel (%p621) target = $region110
                $region107: #{structure_net_forward.2} parent=102 // loop_body
                  _
                $region108: #{structure_net_forward.2} parent=102 // loop_footer
                  %s624 = sadd.s32 1, %s620
                $region109: #{structure_net_forward.2} parent=102 // loop_footer_branch
                  %619 = sbr.rel target = $region105
                $region110: #{structure_net_forward.2} parent=102 // loop_exit
                  _
                %s628 = ssub.s32 16, 1
                loop: start=0, step=1, limit=1
                $region111: #{structure_net_forward.2} parent=102 // loop_pre_header
                  _
                $region112: #{structure_net_forward.2} parent=102 // loop_header
                  %s630 = sphi 0, %s634
                  %p631 = scmp.ge.s32.totalorder %s630, 1
                  %s635 = sphi %s568, %s568
                  %s636 = sphi %s564, %s564
                $region113: #{structure_net_forward.2} parent=102 // loop_header_branch
                  %633 = sbr.rel (%p631) target = $region117
                $region114: #{structure_net_forward.2} parent=102 // loop_body
                  %v637 = vld [vmem:[%s635] sm:%s628]
                  %638 = vst [vmem:[%s636] sm:%s628] %v637
                  %v639 = vld [vmem:[%s635 + $0x8] sm:%s628]
                  %640 = vst [vmem:[%s636 + $0x4] sm:%s628] %v639
                  %v641 = vld [vmem:[%s635 + $0x10] sm:%s628]
                  %642 = vst [vmem:[%s636 + $0x8] sm:%s628] %v641
                  %v643 = vld [vmem:[%s635 + $0x18] sm:%s628]
                  %644 = vst [vmem:[%s636 + $0xc] sm:%s628] %v643
                  %v645 = vld [vmem:[%s635 + $0x20] sm:%s628]
                  %646 = vst [vmem:[%s636 + $0x10] sm:%s628] %v645
                  %v647 = vld [vmem:[%s635 + $0x28] sm:%s628]
                  %648 = vst [vmem:[%s636 + $0x14] sm:%s628] %v647
                  %v649 = vld [vmem:[%s635 + $0x30] sm:%s628]
                  %650 = vst [vmem:[%s636 + $0x18] sm:%s628] %v649
                  %v651 = vld [vmem:[%s635 + $0x38] sm:%s628]
                  %652 = vst [vmem:[%s636 + $0x1c] sm:%s628] %v651
                  %v653 = vld [vmem:[%s635 + $0x40] sm:%s628]
                  %654 = vst [vmem:[%s636 + $0x20] sm:%s628] %v653
                  %v655 = vld [vmem:[%s635 + $0x48] sm:%s628]
                  %656 = vst [vmem:[%s636 + $0x24] sm:%s628] %v655
                  %v657 = vld [vmem:[%s635 + $0x50] sm:%s628]
                  %658 = vst [vmem:[%s636 + $0x28] sm:%s628] %v657
                  %v659 = vld [vmem:[%s635 + $0x58] sm:%s628]
                  %660 = vst [vmem:[%s636 + $0x2c] sm:%s628] %v659
                  %v661 = vld [vmem:[%s635 + $0x60] sm:%s628]
                  %662 = vst [vmem:[%s636 + $0x30] sm:%s628] %v661
                  %v663 = vld [vmem:[%s635 + $0x68] sm:%s628]
                  %664 = vst [vmem:[%s636 + $0x34] sm:%s628] %v663
                  %v665 = vld [vmem:[%s635 + $0x70] sm:%s628]
                  %666 = vst [vmem:[%s636 + $0x38] sm:%s628] %v665
                  %v667 = vld [vmem:[%s635 + $0x78] sm:%s628]
                  %668 = vst [vmem:[%s636 + $0x3c] sm:%s628] %v667
                $region115: #{structure_net_forward.2} parent=102 // loop_footer
                  %s634 = sadd.s32 1, %s630
                $region116: #{structure_net_forward.2} parent=102 // loop_footer_branch
                  %629 = sbr.rel target = $region112
                $region117: #{structure_net_forward.2} parent=102 // loop_exit
                  _
              $region103: #{structure_net_forward.2} parent=87 // pred_fallthru
                _
            $region88: #{structure_net_forward.2} parent=83 // pred_fallthru
              _
            // Predicated region
            $region89: #{structure_net_forward.2} parent=83 // pred_check
              _
            $region90: #{structure_net_forward.2} parent=83 // pred_check_branch
              %574 = sbr.rel (0) target = $region92
            $region91: #{structure_net_forward.2} parent=83 // pred_region
              %s576 = ssub.s32 16, 1
              loop: start=0, step=1, limit=1
              $region93: #{structure_net_forward.2} parent=91 // loop_pre_header
                _
              $region94: #{structure_net_forward.2} parent=91 // loop_header
                %s578 = sphi 0, %s582
                %p579 = scmp.ge.s32.totalorder %s578, 1
                %s583 = sphi %s568, %s568
                %s584 = sphi %s564, %s564
              $region95: #{structure_net_forward.2} parent=91 // loop_header_branch
                %581 = sbr.rel (%p579) target = $region99
              $region96: #{structure_net_forward.2} parent=91 // loop_body
                %v585 = vld [vmem:[%s583] sm:%s576]
                %586 = vst [vmem:[%s584] sm:%s576] %v585
                %v587 = vld [vmem:[%s583 + $0x8] sm:%s576]
                %588 = vst [vmem:[%s584 + $0x4] sm:%s576] %v587
                %v589 = vld [vmem:[%s583 + $0x10] sm:%s576]
                %590 = vst [vmem:[%s584 + $0x8] sm:%s576] %v589
                %v591 = vld [vmem:[%s583 + $0x18] sm:%s576]
                %592 = vst [vmem:[%s584 + $0xc] sm:%s576] %v591
                %v593 = vld [vmem:[%s583 + $0x20] sm:%s576]
                %594 = vst [vmem:[%s584 + $0x10] sm:%s576] %v593
                %v595 = vld [vmem:[%s583 + $0x28] sm:%s576]
                %596 = vst [vmem:[%s584 + $0x14] sm:%s576] %v595
                %v597 = vld [vmem:[%s583 + $0x30] sm:%s576]
                %598 = vst [vmem:[%s584 + $0x18] sm:%s576] %v597
                %v599 = vld [vmem:[%s583 + $0x38] sm:%s576]
                %600 = vst [vmem:[%s584 + $0x1c] sm:%s576] %v599
                %v601 = vld [vmem:[%s583 + $0x40] sm:%s576]
                %602 = vst [vmem:[%s584 + $0x20] sm:%s576] %v601
                %v603 = vld [vmem:[%s583 + $0x48] sm:%s576]
                %604 = vst [vmem:[%s584 + $0x24] sm:%s576] %v603
                %v605 = vld [vmem:[%s583 + $0x50] sm:%s576]
                %606 = vst [vmem:[%s584 + $0x28] sm:%s576] %v605
                %v607 = vld [vmem:[%s583 + $0x58] sm:%s576]
                %608 = vst [vmem:[%s584 + $0x2c] sm:%s576] %v607
                %v609 = vld [vmem:[%s583 + $0x60] sm:%s576]
                %610 = vst [vmem:[%s584 + $0x30] sm:%s576] %v609
                %v611 = vld [vmem:[%s583 + $0x68] sm:%s576]
                %612 = vst [vmem:[%s584 + $0x34] sm:%s576] %v611
                %v613 = vld [vmem:[%s583 + $0x70] sm:%s576]
                %614 = vst [vmem:[%s584 + $0x38] sm:%s576] %v613
                %v615 = vld [vmem:[%s583 + $0x78] sm:%s576]
                %616 = vst [vmem:[%s584 + $0x3c] sm:%s576] %v615
              $region97: #{structure_net_forward.2} parent=91 // loop_footer
                %s582 = sadd.s32 1, %s578
              $region98: #{structure_net_forward.2} parent=91 // loop_footer_branch
                %577 = sbr.rel target = $region94
              $region99: #{structure_net_forward.2} parent=91 // loop_exit
                _
            $region92: #{structure_net_forward.2} parent=83 // pred_fallthru
              _
          $region84: #{structure_net_forward.2} parent=79 // pred_fallthru
            _
          %669 = vnop
        $region80: #{structure_net_forward.2} parent=71 // pred_fallthru
          _
        // Predicated region
        $region118: #{structure_net_forward.2} parent=71 // pred_check
          %p670 = pneg %p111
        $region119: #{structure_net_forward.2} parent=71 // pred_check_branch
          %672 = sbr.rel (%p670) target = $region121
        $region120: #{structure_net_forward.2} parent=71 // pred_region
          %p673 = scmp.lt.s32.totalorder %s32, 1
          %s674 = scalar_select %p673, %s32, 1
          %s675 = smul.addr %s674, 2
          %s676 = smul.addr %s675, 8
          %s677 = scalar_lea.vmem %s2, %s676
        $region121: #{structure_net_forward.2} parent=71 // pred_fallthru
          _
        // Predicated region
        $region122: #{structure_net_forward.2} parent=71 // pred_check
          %p678 = pneg %p137
        $region123: #{structure_net_forward.2} parent=71 // pred_check_branch
          %680 = sbr.rel (%p678) target = $region125
        $region124: #{structure_net_forward.2} parent=71 // pred_region
          %p681 = scmp.lt.s32.totalorder %s32, 1
          %s682 = scalar_select %p681, %s32, 1
          %s683 = smul.addr %s682, 2
          %s684 = smul.addr %s683, 8
          %s685 = scalar_lea.vmem %s3, %s684
        $region125: #{structure_net_forward.2} parent=71 // pred_fallthru
          _
        // Predicated region
        $region126: #{structure_net_forward.2} parent=71 // pred_check
          %p686 = pneg %p163
        $region127: #{structure_net_forward.2} parent=71 // pred_check_branch
          %688 = sbr.rel (%p686) target = $region129
        $region128: #{structure_net_forward.2} parent=71 // pred_region
          %p689 = scmp.lt.s32.totalorder %s32, 1
          %s690 = scalar_select %p689, %s32, 1
          %s691 = smul.addr %s690, 2
          %s692 = smul.addr %s691, 8
          %s693 = scalar_lea.vmem %s4, %s692
        $region129: #{structure_net_forward.2} parent=71 // pred_fallthru
          _
      $region72: #{structure_net_forward.2} parent=5 // pred_fallthru
        _
      %p694 = scmp.le.s32.totalorder 1, %s25
      %p695 = scmp.lt.s32.totalorder %s25, 5
      %p696 = pnand %p694, %p695
      %p697 = pneg %p696
      // Predicated region
      $region130: #{structure_net_forward.2} parent=5 // pred_check
        _
      $region131: #{structure_net_forward.2} parent=5 // pred_check_branch
        %699 = sbr.rel (%p696) target = $region133
      $region132: #{structure_net_forward.2} parent=5 // pred_region
        %s700 = ssub.s32 %s25, 1
        %s701 = sand.u32 %s78, 1
        %s702 = sand.u32 %s78, 1
        %s703 = smul.addr %s702, 64
        %s704 = scalar_lea.vmem [#allocation10], %s703
        // Predicated region
        $region134: #{structure_net_forward.2} parent=132 // pred_check
          %p705 = pneg %p91
        $region135: #{structure_net_forward.2} parent=132 // pred_check_branch
          %707 = sbr.rel (%p705) target = $region137
        $region136: #{structure_net_forward.2} parent=132 // pred_region
          _
        $region137: #{structure_net_forward.2} parent=132 // pred_fallthru
          _
        %p708 = scmp.lt.s32.totalorder %s34, 1
        %s709 = scalar_select %p708, %s34, 1
        %s710 = smul.addr %s709, 2
        %s711 = smul.addr %s710, 8
        %s712 = scalar_lea.vmem %s0, %s711
        %p713 = pneg %p63
        %p714 = pneg %p60
        %s715 = sand.u32 %s78, 1
        %s716 = sand.u32 %s78, 1
        %s717 = smul.addr %s716, 64
        %s718 = scalar_lea.vmem [#allocation10], %s717
        %p719 = pneg %p91
        %p720 = pneg %p88
        %p721 = scmp.lt.s32.totalorder %s34, 1
        %s722 = scalar_select %p721, %s34, 1
        %s723 = smul.addr %s722, 2
        %s724 = smul.addr %s723, 8
        %s725 = scalar_lea.vmem %s2, %s724
        %p726 = pneg %p117
        %p727 = pneg %p114
        %p728 = scmp.lt.s32.totalorder %s34, 1
        %s729 = scalar_select %p728, %s34, 1
        %s730 = smul.addr %s729, 2
        %s731 = smul.addr %s730, 8
        %s732 = scalar_lea.vmem %s3, %s731
        %p733 = pneg %p143
        %p734 = pneg %p140
        %p735 = scmp.lt.s32.totalorder %s34, 1
        %s736 = scalar_select %p735, %s34, 1
        %s737 = smul.addr %s736, 2
        %s738 = smul.addr %s737, 8
        %s739 = scalar_lea.vmem %s4, %s738
        %p740 = pneg %p169
        %p741 = pneg %p166
        %p742 = pneg %p190
        %p743 = pneg %p187
        %p744 = pneg %p211
        %p745 = pneg %p208
        %p746 = pneg %p232
        %p747 = pneg %p229
        %p748 = pneg %p253
        %p749 = pneg %p250
        %p750 = pneg %p274
        %p751 = pneg %p271
        %p752 = pneg %p295
        %p753 = pneg %p292
        %p754 = pneg %p316
        %p755 = pneg %p313
        %p756 = pneg %p337
        %p757 = pneg %p334
        %p758 = pneg %p358
        %p759 = pneg %p355
        %p760 = pneg %p379
        %p761 = pneg %p376
        %p762 = pneg %p400
        %p763 = pneg %p397
        %p764 = pneg %p421
        %p765 = pneg %p418
        %p766 = pneg %p442
        %p767 = pneg %p439
        %p768 = pneg %p463
        %p769 = pneg %p460
        %p770 = pneg %p489
        %p771 = pneg %p486
        %p772 = scmp.lt.s32.totalorder %s34, 1
        %s773 = scalar_select %p772, %s34, 1
        %s774 = smul.addr %s773, 2
        %s775 = smul.addr %s774, 8
        %s776 = scalar_lea.vmem %s19, %s775
        %p777 = scmp.lt.s32.totalorder %s34, 1
        %s778 = scalar_select %p777, %s34, 1
        %s779 = smul.addr %s778, 2
        %s780 = smul.addr %s779, 8
        %s781 = scalar_lea.vmem %s0, %s780
        %p782 = scmp.lt.s32.totalorder %s34, 1
        %s783 = scalar_select %p782, %s34, 1
        %s784 = smul.addr %s783, 2
        %s785 = smul.addr %s784, 8
        %s786 = scalar_lea.vmem %s2, %s785
        %p787 = scmp.lt.s32.totalorder %s34, 1
        %s788 = scalar_select %p787, %s34, 1
        %s789 = smul.addr %s788, 2
        %s790 = smul.addr %s789, 8
        %s791 = scalar_lea.vmem %s3, %s790
        %p792 = scmp.lt.s32.totalorder %s34, 1
        %s793 = scalar_select %p792, %s34, 1
        %s794 = smul.addr %s793, 2
        %s795 = smul.addr %s794, 8
        %s796 = scalar_lea.vmem %s4, %s795
        %p797 = scmp.lt.s32.totalorder %s34, 1
        %s798 = scalar_select %p797, %s34, 1
        %s799 = smul.addr %s798, 2
        %s800 = smul.addr %s799, 8
        %s801 = scalar_lea.vmem %s19, %s800
        %p803 = scmp.eq.s32.totalorder %s35, 0
        // Predicated region
        $region138: #{structure_net_forward.2} parent=132 // pred_check
          %p804 = pneg %p803
        $region139: #{structure_net_forward.2} parent=132 // pred_check_branch
          %806 = sbr.rel (%p804) target = $region141
        $region140: #{structure_net_forward.2} parent=132 // pred_region
          %v807 = vld [vmem:[%s781] sm:$0xff]
          %v808 = vld [vmem:[%s781 + $0x8] sm:$0xff]
          %v809 = vld [vmem:[%s786] sm:$0xff]
          %v810 = vld [vmem:[%s786 + $0x8] sm:$0xff]
          %v811 = vld [vmem:[%s791] sm:$0xff]
          %v812 = vld [vmem:[%s791 + $0x8] sm:$0xff]
          %v813 = vpack.c.bf16 %v808, %v807
          %v814 = vld [vmem:[%s5] sm:$0xff]
          %v815 = vld [vmem:[%s5 + $0x8] sm:$0xf]
          %v816 = vld [vmem:[%s5 + $0xc] sm:$0xff]
          %v817 = vld [vmem:[%s5 + $0x14] sm:$0xf]
          %v818 = vld [vmem:[%s5 + $0x18] sm:$0xff]
          %v819 = vld [vmem:[%s5 + $0x20] sm:$0xf]
          %v820 = vld [vmem:[%s5 + $0x24] sm:$0xff]
          %v821 = vld [vmem:[%s5 + $0x2c] sm:$0xf]
          %v822 = vld [vmem:[%s6] sm:$0x7]
          %v824 = vperm.slane %v822, 0
          %v825 = vperm.slane %v822, 1
          %v826 = vperm.slane %v822, 2
          %v838 = vunpack.c.l.b16 %v814
          %v839 = vunpack.c.h.b16 %v814
          %v840 = vunpack.c.l.b16 %v815
          %v841 = vunpack.c.l.b16 %v816
          %v842 = vunpack.c.h.b16 %v816
          %v843 = vunpack.c.l.b16 %v817
          %v844 = vunpack.c.l.b16 %v818
          %v845 = vunpack.c.h.b16 %v818
          %v846 = vunpack.c.l.b16 %v819
          %v847 = vunpack.c.l.b16 %v820
          %v848 = vunpack.c.h.b16 %v820
          %v849 = vunpack.c.l.b16 %v821
          %v850 = vpack.c.b16 %v841, %v838
          %v851 = vpack.c.b16 %v842, %v839
          %v852 = vpack.c.b16 %v843, %v840
          %v853 = vpack.c.b16 %v847, %v844
          %v854 = vpack.c.b16 %v848, %v845
          %v855 = vpack.c.b16 %v849, %v846
          %vm862 = vcmask 261120
          %v864 = vsel %vm862, %v813, 0
          %866 = vmatpush.bf16.msra.mxu0 0
          %867 = vmatpush.bf16.msra.mxu0 0
          %868 = vmatpush.bf16.msra.mxu0 0
          %869 = vmatpush.bf16.msra.mxu0 0
          %870 = vmatpush.bf16.msra.mxu0 0
          %871 = vmatpush.bf16.msra.mxu0 0
          %872 = vmatpush.bf16.msra.mxu0 %v853
          %873 = vmatpush.bf16.msra.mxu0 %v850
          %874 = vmatmul.bf16.gmra.mxu0 %v864
          %v875 = vpop.f32.mrf.mxu0
          %v876 = vadd.f32 %v824, %v875
          %v877 = vpop.f32.mrf.mxu0
          %v878 = vadd.f32 %v824, %v877
          %879 = vdwg.mxu0
          %880 = vmatpush.bf16.msra.mxu0 0
          %881 = vmatpush.bf16.msra.mxu0 0
          %882 = vmatpush.bf16.msra.mxu0 0
          %883 = vmatpush.bf16.msra.mxu0 0
          %884 = vmatpush.bf16.msra.mxu0 0
          %885 = vmatpush.bf16.msra.mxu0 0
          %886 = vmatpush.bf16.msra.mxu0 %v854
          %887 = vmatpush.bf16.msra.mxu0 %v851
          %888 = vmatmul.bf16.gmra.mxu0 %v864
          %v889 = vpop.f32.mrf.mxu0
          %v890 = vadd.f32 %v825, %v889
          %v891 = vpop.f32.mrf.mxu0
          %v892 = vadd.f32 %v825, %v891
          %893 = vdwg.mxu0
          %894 = vmatpush.bf16.msra.mxu0 0
          %895 = vmatpush.bf16.msra.mxu0 0
          %896 = vmatpush.bf16.msra.mxu0 0
          %897 = vmatpush.bf16.msra.mxu0 0
          %898 = vmatpush.bf16.msra.mxu0 0
          %899 = vmatpush.bf16.msra.mxu0 0
          %900 = vmatpush.bf16.msra.mxu0 %v855
          %901 = vmatpush.bf16.msra.mxu0 %v852
          %902 = vmatmul.bf16.gmra.mxu0 %v864
          %v903 = vpop.f32.mrf.mxu0
          %v904 = vadd.f32 %v826, %v903
          %v905 = vpop.f32.mrf.mxu0
          %v906 = vadd.f32 %v826, %v905
          %907 = vdwg.mxu0
          %909 = vset.pattern.permute.xlu0 0
          %910 = vperm.xlu0 %909, %v809
          %v911 = vpop.permute.xlu0 %910
          %914 = vset.pattern.permute.xlu0 0
          %915 = vperm.xlu0 %914, %v810
          %v916 = vpop.permute.xlu0 %915
          %v918 = vmul.f32 %v911, %v890
          %v919 = vmul.f32 %v916, %v892
          %920 = vset.pattern.permute.xlu0 1
          %921 = vperm.xlu0 %920, %v809
          %v922 = vpop.permute.xlu0 %921
          %924 = vset.pattern.permute.xlu0 1
          %925 = vperm.xlu0 %924, %v810
          %v926 = vpop.permute.xlu0 %925
          %v928 = vmul.f32 %v922, %v904
          %v929 = vmul.f32 %v926, %v906
          %932 = vrot.lane.b32.xlu0 %v928, 64
          %v933 = vpop.permute.xlu0 %932
          %934 = vrot.lane.b32.xlu0 %v929, 64
          %v935 = vpop.permute.xlu0 %934
          %v938 = vadd.f32 %v918, %v933
          %v939 = vadd.f32 %v919, %v935
          %940 = vset.pattern.permute.xlu0 2
          %941 = vperm.xlu0 %940, %v809
          %v942 = vpop.permute.xlu0 %941
          %944 = vset.pattern.permute.xlu0 2
          %945 = vperm.xlu0 %944, %v810
          %v946 = vpop.permute.xlu0 %945
          %v948 = vmul.f32 %v942, %v904
          %v949 = vmul.f32 %v946, %v906
          %v950 = vadd.f32 %v938, %v948
          %v951 = vadd.f32 %v939, %v949
          %953 = vset.pattern.permute.xlu0 0
          %954 = vperm.xlu0 %953, %v811
          %v955 = vpop.permute.xlu0 %954
          %958 = vset.pattern.permute.xlu0 0
          %959 = vperm.xlu0 %958, %v812
          %v960 = vpop.permute.xlu0 %959
          %v962 = vadd.f32 %v950, %v955
          %v963 = vadd.f32 %v951, %v960
          %964 = vset.pattern.permute.xlu0 3
          %965 = vperm.xlu0 %964, %v809
          %v966 = vpop.permute.xlu0 %965
          %968 = vset.pattern.permute.xlu0 3
          %969 = vperm.xlu0 %968, %v810
          %v970 = vpop.permute.xlu0 %969
          %v972 = vmul.f32 %v966, %v890
          %v973 = vmul.f32 %v970, %v892
          %974 = vset.pattern.permute.xlu0 4
          %975 = vperm.xlu0 %974, %v809
          %v976 = vpop.permute.xlu0 %975
          %978 = vset.pattern.permute.xlu0 4
          %979 = vperm.xlu0 %978, %v810
          %v980 = vpop.permute.xlu0 %979
          %v982 = vmul.f32 %v976, %v904
          %v983 = vmul.f32 %v980, %v906
          %986 = vrot.lane.b32.xlu0 %v982, 64
          %v987 = vpop.permute.xlu0 %986
          %988 = vrot.lane.b32.xlu0 %v983, 64
          %v989 = vpop.permute.xlu0 %988
          %v992 = vadd.f32 %v972, %v987
          %v993 = vadd.f32 %v973, %v989
          %994 = vset.pattern.permute.xlu0 5
          %995 = vperm.xlu0 %994, %v809
          %v996 = vpop.permute.xlu0 %995
          %998 = vset.pattern.permute.xlu0 5
          %999 = vperm.xlu0 %998, %v810
          %v1000 = vpop.permute.xlu0 %999
          %v1002 = vmul.f32 %v996, %v904
          %v1003 = vmul.f32 %v1000, %v906
          %v1004 = vadd.f32 %v992, %v1002
          %v1005 = vadd.f32 %v993, %v1003
          %1006 = vset.pattern.permute.xlu0 1
          %1007 = vperm.xlu0 %1006, %v811
          %v1008 = vpop.permute.xlu0 %1007
          %1010 = vset.pattern.permute.xlu0 1
          %1011 = vperm.xlu0 %1010, %v812
          %v1012 = vpop.permute.xlu0 %1011
          %v1014 = vadd.f32 %v1004, %v1008
          %v1015 = vadd.f32 %v1005, %v1012
          %1016 = vset.pattern.permute.xlu0 6
          %1017 = vperm.xlu0 %1016, %v809
          %v1018 = vpop.permute.xlu0 %1017
          %1020 = vset.pattern.permute.xlu0 6
          %1021 = vperm.xlu0 %1020, %v810
          %v1022 = vpop.permute.xlu0 %1021
          %v1024 = vmul.f32 %v1018, %v890
          %v1025 = vmul.f32 %v1022, %v892
          %1026 = vset.pattern.permute.xlu0 7
          %1027 = vperm.xlu0 %1026, %v809
          %v1028 = vpop.permute.xlu0 %1027
          %1030 = vset.pattern.permute.xlu0 7
          %1031 = vperm.xlu0 %1030, %v810
          %v1032 = vpop.permute.xlu0 %1031
          %v1034 = vmul.f32 %v1028, %v904
          %v1035 = vmul.f32 %v1032, %v906
          %1038 = vrot.lane.b32.xlu0 %v1034, 64
          %v1039 = vpop.permute.xlu0 %1038
          %1040 = vrot.lane.b32.xlu0 %v1035, 64
          %v1041 = vpop.permute.xlu0 %1040
          %v1044 = vadd.f32 %v1024, %v1039
          %v1045 = vadd.f32 %v1025, %v1041
          %1046 = vset.pattern.permute.xlu0 8
          %1047 = vperm.xlu0 %1046, %v809
          %v1048 = vpop.permute.xlu0 %1047
          %1050 = vset.pattern.permute.xlu0 8
          %1051 = vperm.xlu0 %1050, %v810
          %v1052 = vpop.permute.xlu0 %1051
          %v1054 = vmul.f32 %v1048, %v904
          %v1055 = vmul.f32 %v1052, %v906
          %v1056 = vadd.f32 %v1044, %v1054
          %v1057 = vadd.f32 %v1045, %v1055
          %1058 = vset.pattern.permute.xlu0 2
          %1059 = vperm.xlu0 %1058, %v811
          %v1060 = vpop.permute.xlu0 %1059
          %1062 = vset.pattern.permute.xlu0 2
          %1063 = vperm.xlu0 %1062, %v812
          %v1064 = vpop.permute.xlu0 %1063
          %v1066 = vadd.f32 %v1056, %v1060
          %v1067 = vadd.f32 %v1057, %v1064
          %v1068 = vld [vmem:[%s8] sm:$0x1]
          %v1069 = vmax.f32 %v1068, 0.0
          %vm1070 = vcmp.ne.f32.partialorder %v1068, %v1068
          %v1071 = vadd.f32 %v1068, 0.0
          %v1072 = vand.u32 2147483647, %v1068
          %v1073 = vsub.f32 0.0, %v1072
          %v1074 = vmul.f32 %v1073, 1.442695
          %v1075 = vpow.pop %v1074
          %v1076 = vadd.f32 %v1075, 1.0
          %v1077 = vlog2.pop %v1076
          %v1078 = vmul.f32 %v1077, 0.6931472
          %v1079 = vmul.f32 -0.5, %v1075
          %v1080 = vadd.f32 %v1079, 1.0
          %v1081 = vmul.f32 %v1080, %v1075
          %v1082 = vand.u32 2147483647, %v1075
          %vm1083 = vcmp.lt.f32.partialorder %v1082, 0.0004427343
          %v1084 = vsel %vm1083, %v1081, %v1078
          %v1085 = vadd.f32 %v1069, %v1084
          %v1086 = vsel %vm1070, %v1071, %v1085
          %v1087 = vmul.f32 %v1086, -0.068041384
          %v1088 = vmul.f32 %v1087, -2.0
          %v1089 = vperm.slane %v1088, 0
          %v1090 = vlaneseq
          %v1091 = vshrl.u32 %v1090, 7
          %1093 = vset.pattern.permute.xlu0 %v1091
          %1094 = vperm.xlu0 %1093, %v1089
          %v1095 = vpop.permute.xlu0 %1094
          %1098 = vrot.lane.b32.xlu0 %v876, 112
          %v1099 = vpop.permute.xlu0 %1098
          %1100 = vrot.lane.b32.xlu0 %v878, 112
          %v1101 = vpop.permute.xlu0 %1100
          %1104 = vrot.lane.b32.xlu0 %v876, 96
          %v1105 = vpop.permute.xlu0 %1104
          %1106 = vrot.lane.b32.xlu0 %v878, 96
          %v1107 = vpop.permute.xlu0 %1106
          %1110 = vrot.lane.b32.xlu0 %v876, 80
          %v1111 = vpop.permute.xlu0 %1110
          %1112 = vrot.lane.b32.xlu0 %v878, 80
          %v1113 = vpop.permute.xlu0 %1112
          %v1116 = vrot.slane %v1105, 4
          %vm1117 = vcmask 1047556
          %v1118 = vsel %vm1117, %v1116, %v876
          %v1119 = vrot.slane %v876, 4
          %v1120 = vsel %vm1117, %v1105, %v1119
          %v1122 = vunpack.c.l.s4 1983009808
          %v1123 = vunpack.c.0.s8 %v1122
          %v1124 = vperm.slane %v1118, %v1123
          %v1126 = vunpack.c.l.s4 1983009808
          %v1127 = vunpack.c.0.s8 %v1126
          %v1128 = vperm.slane %v1120, %v1127
          %v1129 = vrot.slane %v1111, 4
          %v1130 = vsel %vm1117, %v1129, %v1099
          %v1131 = vrot.slane %v1099, 4
          %v1132 = vsel %vm1117, %v1111, %v1131
          %v1134 = vunpack.c.l.s4 1983009808
          %v1135 = vunpack.c.0.s8 %v1134
          %v1136 = vperm.slane %v1130, %v1135
          %v1138 = vunpack.c.l.s4 1983009808
          %v1139 = vunpack.c.0.s8 %v1138
          %v1140 = vperm.slane %v1132, %v1139
          %v1141 = vrot.slane %v1136, 4
          %v1142 = vsel %vm1117, %v1141, %v1124
          %v1143 = vrot.slane %v1124, 4
          %v1144 = vsel %vm1117, %v1136, %v1143
          %v1146 = vunpack.c.l.s4 1934713408
          %v1147 = vunpack.c.0.s8 %v1146
          %v1148 = vperm.slane %v1142, %v1147
          %v1150 = vunpack.c.l.s4 1934713408
          %v1151 = vunpack.c.0.s8 %v1150
          %v1152 = vperm.slane %v1144, %v1151
          %v1153 = vrot.slane %v1140, 4
          %v1154 = vsel %vm1117, %v1153, %v1128
          %v1155 = vrot.slane %v1128, 4
          %v1156 = vsel %vm1117, %v1140, %v1155
          %v1158 = vunpack.c.l.s4 1934713408
          %v1159 = vunpack.c.0.s8 %v1158
          %v1160 = vperm.slane %v1154, %v1159
          %v1162 = vunpack.c.l.s4 1934713408
          %v1163 = vunpack.c.0.s8 %v1162
          %v1164 = vperm.slane %v1156, %v1163
          %v1165 = vrot.slane %v1148, 4
          %v1166 = vsel %vm1117, 0.0, %v1165
          %v1167 = vrot.slane %v1152, 4
          %v1168 = vsel %vm1117, 0.0, %v1167
          %v1169 = vrot.slane %v1160, 4
          %v1170 = vsel %vm1117, 0.0, %v1169
          %v1171 = vrot.slane %v1164, 4
          %v1172 = vsel %vm1117, 0.0, %v1171
          %v1173 = vrot.slane %v1107, 4
          %v1174 = vsel %vm1117, %v1173, %v878
          %v1175 = vrot.slane %v878, 4
          %v1176 = vsel %vm1117, %v1107, %v1175
          %v1178 = vunpack.c.l.s4 1983009808
          %v1179 = vunpack.c.0.s8 %v1178
          %v1180 = vperm.slane %v1174, %v1179
          %v1182 = vunpack.c.l.s4 1983009808
          %v1183 = vunpack.c.0.s8 %v1182
          %v1184 = vperm.slane %v1176, %v1183
          %v1185 = vrot.slane %v1113, 4
          %v1186 = vsel %vm1117, %v1185, %v1101
          %v1187 = vrot.slane %v1101, 4
          %v1188 = vsel %vm1117, %v1113, %v1187
          %v1190 = vunpack.c.l.s4 1983009808
          %v1191 = vunpack.c.0.s8 %v1190
          %v1192 = vperm.slane %v1186, %v1191
          %v1194 = vunpack.c.l.s4 1983009808
          %v1195 = vunpack.c.0.s8 %v1194
          %v1196 = vperm.slane %v1188, %v1195
          %v1197 = vrot.slane %v1192, 4
          %v1198 = vsel %vm1117, %v1197, %v1180
          %v1199 = vrot.slane %v1180, 4
          %v1200 = vsel %vm1117, %v1192, %v1199
          %v1202 = vunpack.c.l.s4 1934713408
          %v1203 = vunpack.c.0.s8 %v1202
          %v1204 = vperm.slane %v1198, %v1203
          %v1206 = vunpack.c.l.s4 1934713408
          %v1207 = vunpack.c.0.s8 %v1206
          %v1208 = vperm.slane %v1200, %v1207
          %v1209 = vrot.slane %v1196, 4
          %v1210 = vsel %vm1117, %v1209, %v1184
          %v1211 = vrot.slane %v1184, 4
          %v1212 = vsel %vm1117, %v1196, %v1211
          %v1214 = vunpack.c.l.s4 1934713408
          %v1215 = vunpack.c.0.s8 %v1214
          %v1216 = vperm.slane %v1210, %v1215
          %v1218 = vunpack.c.l.s4 1934713408
          %v1219 = vunpack.c.0.s8 %v1218
          %v1220 = vperm.slane %v1212, %v1219
          %v1221 = vrot.slane %v1204, 4
          %v1222 = vsel %vm1117, 0.0, %v1221
          %v1223 = vrot.slane %v1208, 4
          %v1224 = vsel %vm1117, 0.0, %v1223
          %v1225 = vrot.slane %v1216, 4
          %v1226 = vsel %vm1117, 0.0, %v1225
          %v1227 = vrot.slane %v1220, 4
          %v1228 = vsel %vm1117, 0.0, %v1227
          %v1229 = vmul.f32 %v1148, 0.14433756
          %v1230 = vmul.f32 %v1166, 0.14433756
          %v1231 = vmul.f32 %v1152, 0.14433756
          %v1232 = vmul.f32 %v1168, 0.14433756
          %v1233 = vmul.f32 %v1160, 0.14433756
          %v1234 = vmul.f32 %v1170, 0.14433756
          %v1235 = vmul.f32 %v1164, 0.14433756
          %v1236 = vmul.f32 %v1172, 0.14433756
          %v1237 = vmul.f32 %v1204, 0.14433756
          %v1238 = vmul.f32 %v1222, 0.14433756
          %v1239 = vmul.f32 %v1208, 0.14433756
          %v1240 = vmul.f32 %v1224, 0.14433756
          %v1241 = vmul.f32 %v1216, 0.14433756
          %v1242 = vmul.f32 %v1226, 0.14433756
          %v1243 = vmul.f32 %v1220, 0.14433756
          %v1244 = vmul.f32 %v1228, 0.14433756
          %1247 = vrot.lane.b32.xlu0 %v962, 124
          %v1248 = vpop.permute.xlu0 %1247
          %1249 = vrot.lane.b32.xlu0 %v963, 124
          %v1250 = vpop.permute.xlu0 %1249
          %1251 = vrot.lane.b32.xlu0 %v962, 120
          %v1252 = vpop.permute.xlu0 %1251
          %1253 = vrot.lane.b32.xlu0 %v963, 120
          %v1254 = vpop.permute.xlu0 %1253
          %1255 = vrot.lane.b32.xlu0 %v962, 116
          %v1256 = vpop.permute.xlu0 %1255
          %1257 = vrot.lane.b32.xlu0 %v963, 116
          %v1258 = vpop.permute.xlu0 %1257
          %1259 = vrot.lane.b32.xlu0 %v962, 64
          %v1260 = vpop.permute.xlu0 %1259
          %1261 = vrot.lane.b32.xlu0 %v963, 64
          %v1262 = vpop.permute.xlu0 %1261
          %1263 = vrot.lane.b32.xlu0 %v1248, 64
          %v1264 = vpop.permute.xlu0 %1263
          %1265 = vrot.lane.b32.xlu0 %v1250, 64
          %v1266 = vpop.permute.xlu0 %1265
          %1267 = vrot.lane.b32.xlu0 %v1252, 64
          %v1268 = vpop.permute.xlu0 %1267
          %1269 = vrot.lane.b32.xlu0 %v1254, 64
          %v1270 = vpop.permute.xlu0 %1269
          %1271 = vrot.lane.b32.xlu0 %v1256, 64
          %v1272 = vpop.permute.xlu0 %1271
          %1273 = vrot.lane.b32.xlu0 %v1258, 64
          %v1274 = vpop.permute.xlu0 %1273
          %v1283 = vrot.slane %v1268, 4
          %v1284 = vsel %vm1117, %v1283, %v1260
          %v1285 = vrot.slane %v1260, 4
          %v1286 = vsel %vm1117, %v1268, %v1285
          %v1288 = vunpack.c.l.s4 1983009808
          %v1289 = vunpack.c.0.s8 %v1288
          %v1290 = vperm.slane %v1284, %v1289
          %v1292 = vunpack.c.l.s4 1983009808
          %v1293 = vunpack.c.0.s8 %v1292
          %v1294 = vperm.slane %v1286, %v1293
          %v1295 = vrot.slane %v1272, 4
          %v1296 = vsel %vm1117, %v1295, %v1264
          %v1297 = vrot.slane %v1264, 4
          %v1298 = vsel %vm1117, %v1272, %v1297
          %v1300 = vunpack.c.l.s4 1983009808
          %v1301 = vunpack.c.0.s8 %v1300
          %v1302 = vperm.slane %v1296, %v1301
          %v1304 = vunpack.c.l.s4 1983009808
          %v1305 = vunpack.c.0.s8 %v1304
          %v1306 = vperm.slane %v1298, %v1305
          %v1307 = vrot.slane %v1302, 4
          %v1308 = vsel %vm1117, %v1307, %v1290
          %v1309 = vrot.slane %v1290, 4
          %v1310 = vsel %vm1117, %v1302, %v1309
          %v1312 = vunpack.c.l.s4 1934713408
          %v1313 = vunpack.c.0.s8 %v1312
          %v1314 = vperm.slane %v1308, %v1313
          %v1316 = vunpack.c.l.s4 1934713408
          %v1317 = vunpack.c.0.s8 %v1316
          %v1318 = vperm.slane %v1310, %v1317
          %v1319 = vrot.slane %v1306, 4
          %v1320 = vsel %vm1117, %v1319, %v1294
          %v1321 = vrot.slane %v1294, 4
          %v1322 = vsel %vm1117, %v1306, %v1321
          %v1324 = vunpack.c.l.s4 1934713408
          %v1325 = vunpack.c.0.s8 %v1324
          %v1326 = vperm.slane %v1320, %v1325
          %v1328 = vunpack.c.l.s4 1934713408
          %v1329 = vunpack.c.0.s8 %v1328
          %v1330 = vperm.slane %v1322, %v1329
          %v1331 = vrot.slane %v1314, 4
          %v1332 = vsel %vm1117, 0.0, %v1331
          %v1333 = vrot.slane %v1318, 4
          %v1334 = vsel %vm1117, 0.0, %v1333
          %v1335 = vrot.slane %v1326, 4
          %v1336 = vsel %vm1117, 0.0, %v1335
          %v1337 = vrot.slane %v1330, 4
          %v1338 = vsel %vm1117, 0.0, %v1337
          %v1339 = vrot.slane %v1270, 4
          %v1340 = vsel %vm1117, %v1339, %v1262
          %v1341 = vrot.slane %v1262, 4
          %v1342 = vsel %vm1117, %v1270, %v1341
          %v1344 = vunpack.c.l.s4 1983009808
          %v1345 = vunpack.c.0.s8 %v1344
          %v1346 = vperm.slane %v1340, %v1345
          %v1348 = vunpack.c.l.s4 1983009808
          %v1349 = vunpack.c.0.s8 %v1348
          %v1350 = vperm.slane %v1342, %v1349
          %v1351 = vrot.slane %v1274, 4
          %v1352 = vsel %vm1117, %v1351, %v1266
          %v1353 = vrot.slane %v1266, 4
          %v1354 = vsel %vm1117, %v1274, %v1353
          %v1356 = vunpack.c.l.s4 1983009808
          %v1357 = vunpack.c.0.s8 %v1356
          %v1358 = vperm.slane %v1352, %v1357
          %v1360 = vunpack.c.l.s4 1983009808
          %v1361 = vunpack.c.0.s8 %v1360
          %v1362 = vperm.slane %v1354, %v1361
          %v1363 = vrot.slane %v1358, 4
          %v1364 = vsel %vm1117, %v1363, %v1346
          %v1365 = vrot.slane %v1346, 4
          %v1366 = vsel %vm1117, %v1358, %v1365
          %v1368 = vunpack.c.l.s4 1934713408
          %v1369 = vunpack.c.0.s8 %v1368
          %v1370 = vperm.slane %v1364, %v1369
          %v1372 = vunpack.c.l.s4 1934713408
          %v1373 = vunpack.c.0.s8 %v1372
          %v1374 = vperm.slane %v1366, %v1373
          %v1375 = vrot.slane %v1362, 4
          %v1376 = vsel %vm1117, %v1375, %v1350
          %v1377 = vrot.slane %v1350, 4
          %v1378 = vsel %vm1117, %v1362, %v1377
          %v1380 = vunpack.c.l.s4 1934713408
          %v1381 = vunpack.c.0.s8 %v1380
          %v1382 = vperm.slane %v1376, %v1381
          %v1384 = vunpack.c.l.s4 1934713408
          %v1385 = vunpack.c.0.s8 %v1384
          %v1386 = vperm.slane %v1378, %v1385
          %v1387 = vrot.slane %v1370, 4
          %v1388 = vsel %vm1117, 0.0, %v1387
          %v1389 = vrot.slane %v1374, 4
          %v1390 = vsel %vm1117, 0.0, %v1389
          %v1391 = vrot.slane %v1382, 4
          %v1392 = vsel %vm1117, 0.0, %v1391
          %v1393 = vrot.slane %v1386, 4
          %v1394 = vsel %vm1117, 0.0, %v1393
          %v1395 = vmul.f32 %v1314, %v1095
          %v1396 = vmul.f32 %v1332, %v1095
          %v1397 = vmul.f32 %v1318, %v1095
          %v1398 = vmul.f32 %v1334, %v1095
          %v1399 = vmul.f32 %v1326, %v1095
          %v1400 = vmul.f32 %v1336, %v1095
          %v1401 = vmul.f32 %v1330, %v1095
          %v1402 = vmul.f32 %v1338, %v1095
          %v1403 = vmul.f32 %v1370, %v1095
          %v1404 = vmul.f32 %v1388, %v1095
          %v1405 = vmul.f32 %v1374, %v1095
          %v1406 = vmul.f32 %v1390, %v1095
          %v1407 = vmul.f32 %v1382, %v1095
          %v1408 = vmul.f32 %v1392, %v1095
          %v1409 = vmul.f32 %v1386, %v1095
          %v1410 = vmul.f32 %v1394, %v1095
          %1413 = vrot.lane.b32.xlu0 %v1014, 124
          %v1414 = vpop.permute.xlu0 %1413
          %1415 = vrot.lane.b32.xlu0 %v1015, 124
          %v1416 = vpop.permute.xlu0 %1415
          %1417 = vrot.lane.b32.xlu0 %v1014, 120
          %v1418 = vpop.permute.xlu0 %1417
          %1419 = vrot.lane.b32.xlu0 %v1015, 120
          %v1420 = vpop.permute.xlu0 %1419
          %1421 = vrot.lane.b32.xlu0 %v1014, 116
          %v1422 = vpop.permute.xlu0 %1421
          %1423 = vrot.lane.b32.xlu0 %v1015, 116
          %v1424 = vpop.permute.xlu0 %1423
          %1425 = vrot.lane.b32.xlu0 %v1014, 64
          %v1426 = vpop.permute.xlu0 %1425
          %1427 = vrot.lane.b32.xlu0 %v1015, 64
          %v1428 = vpop.permute.xlu0 %1427
          %1429 = vrot.lane.b32.xlu0 %v1414, 64
          %v1430 = vpop.permute.xlu0 %1429
          %1431 = vrot.lane.b32.xlu0 %v1416, 64
          %v1432 = vpop.permute.xlu0 %1431
          %1433 = vrot.lane.b32.xlu0 %v1418, 64
          %v1434 = vpop.permute.xlu0 %1433
          %1435 = vrot.lane.b32.xlu0 %v1420, 64
          %v1436 = vpop.permute.xlu0 %1435
          %1437 = vrot.lane.b32.xlu0 %v1422, 64
          %v1438 = vpop.permute.xlu0 %1437
          %1439 = vrot.lane.b32.xlu0 %v1424, 64
          %v1440 = vpop.permute.xlu0 %1439
          %v1449 = vrot.slane %v1434, 4
          %v1450 = vsel %vm1117, %v1449, %v1426
          %v1451 = vrot.slane %v1426, 4
          %v1452 = vsel %vm1117, %v1434, %v1451
          %v1454 = vunpack.c.l.s4 1983009808
          %v1455 = vunpack.c.0.s8 %v1454
          %v1456 = vperm.slane %v1450, %v1455
          %v1458 = vunpack.c.l.s4 1983009808
          %v1459 = vunpack.c.0.s8 %v1458
          %v1460 = vperm.slane %v1452, %v1459
          %v1461 = vrot.slane %v1438, 4
          %v1462 = vsel %vm1117, %v1461, %v1430
          %v1463 = vrot.slane %v1430, 4
          %v1464 = vsel %vm1117, %v1438, %v1463
          %v1466 = vunpack.c.l.s4 1983009808
          %v1467 = vunpack.c.0.s8 %v1466
          %v1468 = vperm.slane %v1462, %v1467
          %v1470 = vunpack.c.l.s4 1983009808
          %v1471 = vunpack.c.0.s8 %v1470
          %v1472 = vperm.slane %v1464, %v1471
          %v1473 = vrot.slane %v1468, 4
          %v1474 = vsel %vm1117, %v1473, %v1456
          %v1475 = vrot.slane %v1456, 4
          %v1476 = vsel %vm1117, %v1468, %v1475
          %v1478 = vunpack.c.l.s4 1934713408
          %v1479 = vunpack.c.0.s8 %v1478
          %v1480 = vperm.slane %v1474, %v1479
          %v1482 = vunpack.c.l.s4 1934713408
          %v1483 = vunpack.c.0.s8 %v1482
          %v1484 = vperm.slane %v1476, %v1483
          %v1485 = vrot.slane %v1472, 4
          %v1486 = vsel %vm1117, %v1485, %v1460
          %v1487 = vrot.slane %v1460, 4
          %v1488 = vsel %vm1117, %v1472, %v1487
          %v1490 = vunpack.c.l.s4 1934713408
          %v1491 = vunpack.c.0.s8 %v1490
          %v1492 = vperm.slane %v1486, %v1491
          %v1494 = vunpack.c.l.s4 1934713408
          %v1495 = vunpack.c.0.s8 %v1494
          %v1496 = vperm.slane %v1488, %v1495
          %v1497 = vrot.slane %v1480, 4
          %v1498 = vsel %vm1117, 0.0, %v1497
          %v1499 = vrot.slane %v1484, 4
          %v1500 = vsel %vm1117, 0.0, %v1499
          %v1501 = vrot.slane %v1492, 4
          %v1502 = vsel %vm1117, 0.0, %v1501
          %v1503 = vrot.slane %v1496, 4
          %v1504 = vsel %vm1117, 0.0, %v1503
          %v1505 = vrot.slane %v1436, 4
          %v1506 = vsel %vm1117, %v1505, %v1428
          %v1507 = vrot.slane %v1428, 4
          %v1508 = vsel %vm1117, %v1436, %v1507
          %v1510 = vunpack.c.l.s4 1983009808
          %v1511 = vunpack.c.0.s8 %v1510
          %v1512 = vperm.slane %v1506, %v1511
          %v1514 = vunpack.c.l.s4 1983009808
          %v1515 = vunpack.c.0.s8 %v1514
          %v1516 = vperm.slane %v1508, %v1515
          %v1517 = vrot.slane %v1440, 4
          %v1518 = vsel %vm1117, %v1517, %v1432
          %v1519 = vrot.slane %v1432, 4
          %v1520 = vsel %vm1117, %v1440, %v1519
          %v1522 = vunpack.c.l.s4 1983009808
          %v1523 = vunpack.c.0.s8 %v1522
          %v1524 = vperm.slane %v1518, %v1523
          %v1526 = vunpack.c.l.s4 1983009808
          %v1527 = vunpack.c.0.s8 %v1526
          %v1528 = vperm.slane %v1520, %v1527
          %v1529 = vrot.slane %v1524, 4
          %v1530 = vsel %vm1117, %v1529, %v1512
          %v1531 = vrot.slane %v1512, 4
          %v1532 = vsel %vm1117, %v1524, %v1531
          %v1534 = vunpack.c.l.s4 1934713408
          %v1535 = vunpack.c.0.s8 %v1534
          %v1536 = vperm.slane %v1530, %v1535
          %v1538 = vunpack.c.l.s4 1934713408
          %v1539 = vunpack.c.0.s8 %v1538
          %v1540 = vperm.slane %v1532, %v1539
          %v1541 = vrot.slane %v1528, 4
          %v1542 = vsel %vm1117, %v1541, %v1516
          %v1543 = vrot.slane %v1516, 4
          %v1544 = vsel %vm1117, %v1528, %v1543
          %v1546 = vunpack.c.l.s4 1934713408
          %v1547 = vunpack.c.0.s8 %v1546
          %v1548 = vperm.slane %v1542, %v1547
          %v1550 = vunpack.c.l.s4 1934713408
          %v1551 = vunpack.c.0.s8 %v1550
          %v1552 = vperm.slane %v1544, %v1551
          %v1553 = vrot.slane %v1536, 4
          %v1554 = vsel %vm1117, 0.0, %v1553
          %v1555 = vrot.slane %v1540, 4
          %v1556 = vsel %vm1117, 0.0, %v1555
          %v1557 = vrot.slane %v1548, 4
          %v1558 = vsel %vm1117, 0.0, %v1557
          %v1559 = vrot.slane %v1552, 4
          %v1560 = vsel %vm1117, 0.0, %v1559
          %v1561 = vmul.f32 %v1480, %v1095
          %v1562 = vmul.f32 %v1498, %v1095
          %v1563 = vmul.f32 %v1484, %v1095
          %v1564 = vmul.f32 %v1500, %v1095
          %v1565 = vmul.f32 %v1492, %v1095
          %v1566 = vmul.f32 %v1502, %v1095
          %v1567 = vmul.f32 %v1496, %v1095
          %v1568 = vmul.f32 %v1504, %v1095
          %v1569 = vmul.f32 %v1536, %v1095
          %v1570 = vmul.f32 %v1554, %v1095
          %v1571 = vmul.f32 %v1540, %v1095
          %v1572 = vmul.f32 %v1556, %v1095
          %v1573 = vmul.f32 %v1548, %v1095
          %v1574 = vmul.f32 %v1558, %v1095
          %v1575 = vmul.f32 %v1552, %v1095
          %v1576 = vmul.f32 %v1560, %v1095
          %1579 = vrot.lane.b32.xlu0 %v1066, 124
          %v1580 = vpop.permute.xlu0 %1579
          %1581 = vrot.lane.b32.xlu0 %v1067, 124
          %v1582 = vpop.permute.xlu0 %1581
          %1583 = vrot.lane.b32.xlu0 %v1066, 120
          %v1584 = vpop.permute.xlu0 %1583
          %1585 = vrot.lane.b32.xlu0 %v1067, 120
          %v1586 = vpop.permute.xlu0 %1585
          %1587 = vrot.lane.b32.xlu0 %v1066, 116
          %v1588 = vpop.permute.xlu0 %1587
          %1589 = vrot.lane.b32.xlu0 %v1067, 116
          %v1590 = vpop.permute.xlu0 %1589
          %1591 = vrot.lane.b32.xlu0 %v1066, 64
          %v1592 = vpop.permute.xlu0 %1591
          %1593 = vrot.lane.b32.xlu0 %v1067, 64
          %v1594 = vpop.permute.xlu0 %1593
          %1595 = vrot.lane.b32.xlu0 %v1580, 64
          %v1596 = vpop.permute.xlu0 %1595
          %1597 = vrot.lane.b32.xlu0 %v1582, 64
          %v1598 = vpop.permute.xlu0 %1597
          %1599 = vrot.lane.b32.xlu0 %v1584, 64
          %v1600 = vpop.permute.xlu0 %1599
          %1601 = vrot.lane.b32.xlu0 %v1586, 64
          %v1602 = vpop.permute.xlu0 %1601
          %1603 = vrot.lane.b32.xlu0 %v1588, 64
          %v1604 = vpop.permute.xlu0 %1603
          %1605 = vrot.lane.b32.xlu0 %v1590, 64
          %v1606 = vpop.permute.xlu0 %1605
          %v1615 = vrot.slane %v1600, 4
          %v1616 = vsel %vm1117, %v1615, %v1592
          %v1617 = vrot.slane %v1592, 4
          %v1618 = vsel %vm1117, %v1600, %v1617
          %v1620 = vunpack.c.l.s4 1983009808
          %v1621 = vunpack.c.0.s8 %v1620
          %v1622 = vperm.slane %v1616, %v1621
          %v1624 = vunpack.c.l.s4 1983009808
          %v1625 = vunpack.c.0.s8 %v1624
          %v1626 = vperm.slane %v1618, %v1625
          %v1627 = vrot.slane %v1604, 4
          %v1628 = vsel %vm1117, %v1627, %v1596
          %v1629 = vrot.slane %v1596, 4
          %v1630 = vsel %vm1117, %v1604, %v1629
          %v1632 = vunpack.c.l.s4 1983009808
          %v1633 = vunpack.c.0.s8 %v1632
          %v1634 = vperm.slane %v1628, %v1633
          %v1636 = vunpack.c.l.s4 1983009808
          %v1637 = vunpack.c.0.s8 %v1636
          %v1638 = vperm.slane %v1630, %v1637
          %v1639 = vrot.slane %v1634, 4
          %v1640 = vsel %vm1117, %v1639, %v1622
          %v1641 = vrot.slane %v1622, 4
          %v1642 = vsel %vm1117, %v1634, %v1641
          %v1644 = vunpack.c.l.s4 1934713408
          %v1645 = vunpack.c.0.s8 %v1644
          %v1646 = vperm.slane %v1640, %v1645
          %v1648 = vunpack.c.l.s4 1934713408
          %v1649 = vunpack.c.0.s8 %v1648
          %v1650 = vperm.slane %v1642, %v1649
          %v1651 = vrot.slane %v1638, 4
          %v1652 = vsel %vm1117, %v1651, %v1626
          %v1653 = vrot.slane %v1626, 4
          %v1654 = vsel %vm1117, %v1638, %v1653
          %v1656 = vunpack.c.l.s4 1934713408
          %v1657 = vunpack.c.0.s8 %v1656
          %v1658 = vperm.slane %v1652, %v1657
          %v1660 = vunpack.c.l.s4 1934713408
          %v1661 = vunpack.c.0.s8 %v1660
          %v1662 = vperm.slane %v1654, %v1661
          %v1663 = vrot.slane %v1646, 4
          %v1664 = vsel %vm1117, 0.0, %v1663
          %v1665 = vrot.slane %v1650, 4
          %v1666 = vsel %vm1117, 0.0, %v1665
          %v1667 = vrot.slane %v1658, 4
          %v1668 = vsel %vm1117, 0.0, %v1667
          %v1669 = vrot.slane %v1662, 4
          %v1670 = vsel %vm1117, 0.0, %v1669
          %v1671 = vrot.slane %v1602, 4
          %v1672 = vsel %vm1117, %v1671, %v1594
          %v1673 = vrot.slane %v1594, 4
          %v1674 = vsel %vm1117, %v1602, %v1673
          %v1676 = vunpack.c.l.s4 1983009808
          %v1677 = vunpack.c.0.s8 %v1676
          %v1678 = vperm.slane %v1672, %v1677
          %v1680 = vunpack.c.l.s4 1983009808
          %v1681 = vunpack.c.0.s8 %v1680
          %v1682 = vperm.slane %v1674, %v1681
          %v1683 = vrot.slane %v1606, 4
          %v1684 = vsel %vm1117, %v1683, %v1598
          %v1685 = vrot.slane %v1598, 4
          %v1686 = vsel %vm1117, %v1606, %v1685
          %v1688 = vunpack.c.l.s4 1983009808
          %v1689 = vunpack.c.0.s8 %v1688
          %v1690 = vperm.slane %v1684, %v1689
          %v1692 = vunpack.c.l.s4 1983009808
          %v1693 = vunpack.c.0.s8 %v1692
          %v1694 = vperm.slane %v1686, %v1693
          %v1695 = vrot.slane %v1690, 4
          %v1696 = vsel %vm1117, %v1695, %v1678
          %v1697 = vrot.slane %v1678, 4
          %v1698 = vsel %vm1117, %v1690, %v1697
          %v1700 = vunpack.c.l.s4 1934713408
          %v1701 = vunpack.c.0.s8 %v1700
          %v1702 = vperm.slane %v1696, %v1701
          %v1704 = vunpack.c.l.s4 1934713408
          %v1705 = vunpack.c.0.s8 %v1704
          %v1706 = vperm.slane %v1698, %v1705
          %v1707 = vrot.slane %v1694, 4
          %v1708 = vsel %vm1117, %v1707, %v1682
          %v1709 = vrot.slane %v1682, 4
          %v1710 = vsel %vm1117, %v1694, %v1709
          %v1712 = vunpack.c.l.s4 1934713408
          %v1713 = vunpack.c.0.s8 %v1712
          %v1714 = vperm.slane %v1708, %v1713
          %v1716 = vunpack.c.l.s4 1934713408
          %v1717 = vunpack.c.0.s8 %v1716
          %v1718 = vperm.slane %v1710, %v1717
          %v1719 = vrot.slane %v1702, 4
          %v1720 = vsel %vm1117, 0.0, %v1719
          %v1721 = vrot.slane %v1706, 4
          %v1722 = vsel %vm1117, 0.0, %v1721
          %v1723 = vrot.slane %v1714, 4
          %v1724 = vsel %vm1117, 0.0, %v1723
          %v1725 = vrot.slane %v1718, 4
          %v1726 = vsel %vm1117, 0.0, %v1725
          %v1727 = vmul.f32 %v1646, %v1095
          %v1728 = vmul.f32 %v1664, %v1095
          %v1729 = vmul.f32 %v1650, %v1095
          %v1730 = vmul.f32 %v1666, %v1095
          %v1731 = vmul.f32 %v1658, %v1095
          %v1732 = vmul.f32 %v1668, %v1095
          %v1733 = vmul.f32 %v1662, %v1095
          %v1734 = vmul.f32 %v1670, %v1095
          %v1735 = vmul.f32 %v1702, %v1095
          %v1736 = vmul.f32 %v1720, %v1095
          %v1737 = vmul.f32 %v1706, %v1095
          %v1738 = vmul.f32 %v1722, %v1095
          %v1739 = vmul.f32 %v1714, %v1095
          %v1740 = vmul.f32 %v1724, %v1095
          %v1741 = vmul.f32 %v1718, %v1095
          %v1742 = vmul.f32 %v1726, %v1095
          %1759 = vrot.lane.b32.xlu0 %v1395, 16
          %v1760 = vpop.permute.xlu0 %1759
          %1761 = vrot.lane.b32.xlu0 %v1396, 16
          %v1762 = vpop.permute.xlu0 %1761
          %1763 = vrot.lane.b32.xlu0 %v1397, 16
          %v1764 = vpop.permute.xlu0 %1763
          %1765 = vrot.lane.b32.xlu0 %v1398, 16
          %v1766 = vpop.permute.xlu0 %1765
          %1767 = vrot.lane.b32.xlu0 %v1399, 16
          %v1768 = vpop.permute.xlu0 %1767
          %1769 = vrot.lane.b32.xlu0 %v1400, 16
          %v1770 = vpop.permute.xlu0 %1769
          %1771 = vrot.lane.b32.xlu0 %v1401, 16
          %v1772 = vpop.permute.xlu0 %1771
          %1773 = vrot.lane.b32.xlu0 %v1402, 16
          %v1774 = vpop.permute.xlu0 %1773
          %1775 = vrot.lane.b32.xlu0 %v1403, 16
          %v1776 = vpop.permute.xlu0 %1775
          %1777 = vrot.lane.b32.xlu0 %v1404, 16
          %v1778 = vpop.permute.xlu0 %1777
          %1779 = vrot.lane.b32.xlu0 %v1405, 16
          %v1780 = vpop.permute.xlu0 %1779
          %1781 = vrot.lane.b32.xlu0 %v1406, 16
          %v1782 = vpop.permute.xlu0 %1781
          %1783 = vrot.lane.b32.xlu0 %v1407, 16
          %v1784 = vpop.permute.xlu0 %1783
          %1785 = vrot.lane.b32.xlu0 %v1408, 16
          %v1786 = vpop.permute.xlu0 %1785
          %1787 = vrot.lane.b32.xlu0 %v1409, 16
          %v1788 = vpop.permute.xlu0 %1787
          %1789 = vrot.lane.b32.xlu0 %v1410, 16
          %v1790 = vpop.permute.xlu0 %1789
          %1823 = vrot.lane.b32.xlu0 %v1561, 20
          %v1824 = vpop.permute.xlu0 %1823
          %1825 = vrot.lane.b32.xlu0 %v1562, 20
          %v1826 = vpop.permute.xlu0 %1825
          %1827 = vrot.lane.b32.xlu0 %v1563, 20
          %v1828 = vpop.permute.xlu0 %1827
          %1829 = vrot.lane.b32.xlu0 %v1564, 20
          %v1830 = vpop.permute.xlu0 %1829
          %1831 = vrot.lane.b32.xlu0 %v1565, 20
          %v1832 = vpop.permute.xlu0 %1831
          %1833 = vrot.lane.b32.xlu0 %v1566, 20
          %v1834 = vpop.permute.xlu0 %1833
          %1835 = vrot.lane.b32.xlu0 %v1567, 20
          %v1836 = vpop.permute.xlu0 %1835
          %1837 = vrot.lane.b32.xlu0 %v1568, 20
          %v1838 = vpop.permute.xlu0 %1837
          %1839 = vrot.lane.b32.xlu0 %v1569, 20
          %v1840 = vpop.permute.xlu0 %1839
          %1841 = vrot.lane.b32.xlu0 %v1570, 20
          %v1842 = vpop.permute.xlu0 %1841
          %1843 = vrot.lane.b32.xlu0 %v1571, 20
          %v1844 = vpop.permute.xlu0 %1843
          %1845 = vrot.lane.b32.xlu0 %v1572, 20
          %v1846 = vpop.permute.xlu0 %1845
          %1847 = vrot.lane.b32.xlu0 %v1573, 20
          %v1848 = vpop.permute.xlu0 %1847
          %1849 = vrot.lane.b32.xlu0 %v1574, 20
          %v1850 = vpop.permute.xlu0 %1849
          %1851 = vrot.lane.b32.xlu0 %v1575, 20
          %v1852 = vpop.permute.xlu0 %1851
          %1853 = vrot.lane.b32.xlu0 %v1576, 20
          %v1854 = vpop.permute.xlu0 %1853
          %1887 = vrot.lane.b32.xlu0 %v1727, 24
          %v1888 = vpop.permute.xlu0 %1887
          %1889 = vrot.lane.b32.xlu0 %v1728, 24
          %v1890 = vpop.permute.xlu0 %1889
          %1891 = vrot.lane.b32.xlu0 %v1729, 24
          %v1892 = vpop.permute.xlu0 %1891
          %1893 = vrot.lane.b32.xlu0 %v1730, 24
          %v1894 = vpop.permute.xlu0 %1893
          %1895 = vrot.lane.b32.xlu0 %v1731, 24
          %v1896 = vpop.permute.xlu0 %1895
          %1897 = vrot.lane.b32.xlu0 %v1732, 24
          %v1898 = vpop.permute.xlu0 %1897
          %1899 = vrot.lane.b32.xlu0 %v1733, 24
          %v1900 = vpop.permute.xlu0 %1899
          %1901 = vrot.lane.b32.xlu0 %v1734, 24
          %v1902 = vpop.permute.xlu0 %1901
          %1903 = vrot.lane.b32.xlu0 %v1735, 24
          %v1904 = vpop.permute.xlu0 %1903
          %1905 = vrot.lane.b32.xlu0 %v1736, 24
          %v1906 = vpop.permute.xlu0 %1905
          %1907 = vrot.lane.b32.xlu0 %v1737, 24
          %v1908 = vpop.permute.xlu0 %1907
          %1909 = vrot.lane.b32.xlu0 %v1738, 24
          %v1910 = vpop.permute.xlu0 %1909
          %1911 = vrot.lane.b32.xlu0 %v1739, 24
          %v1912 = vpop.permute.xlu0 %1911
          %1913 = vrot.lane.b32.xlu0 %v1740, 24
          %v1914 = vpop.permute.xlu0 %1913
          %1915 = vrot.lane.b32.xlu0 %v1741, 24
          %v1916 = vpop.permute.xlu0 %1915
          %1917 = vrot.lane.b32.xlu0 %v1742, 24
          %v1918 = vpop.permute.xlu0 %1917
          %vm1935 = vcmask 130048
          %v1936 = vsel %vm1935, %v1229, %v1760
          %v1937 = vsel %vm1935, %v1230, %v1762
          %v1938 = vsel %vm1935, %v1231, %v1764
          %v1939 = vsel %vm1935, %v1232, %v1766
          %v1940 = vsel %vm1935, %v1233, %v1768
          %v1941 = vsel %vm1935, %v1234, %v1770
          %v1942 = vsel %vm1935, %v1235, %v1772
          %v1943 = vsel %vm1935, %v1236, %v1774
          %v1944 = vsel %vm1935, %v1237, %v1776
          %v1945 = vsel %vm1935, %v1238, %v1778
          %v1946 = vsel %vm1935, %v1239, %v1780
          %v1947 = vsel %vm1935, %v1240, %v1782
          %v1948 = vsel %vm1935, %v1241, %v1784
          %v1949 = vsel %vm1935, %v1242, %v1786
          %v1950 = vsel %vm1935, %v1243, %v1788
          %v1951 = vsel %vm1935, %v1244, %v1790
          %vm1952 = vcmask 162816
          %v1953 = vsel %vm1952, %v1936, %v1824
          %v1954 = vsel %vm1952, %v1937, %v1826
          %v1955 = vsel %vm1952, %v1938, %v1828
          %v1956 = vsel %vm1952, %v1939, %v1830
          %v1957 = vsel %vm1952, %v1940, %v1832
          %v1958 = vsel %vm1952, %v1941, %v1834
          %v1959 = vsel %vm1952, %v1942, %v1836
          %v1960 = vsel %vm1952, %v1943, %v1838
          %v1961 = vsel %vm1952, %v1944, %v1840
          %v1962 = vsel %vm1952, %v1945, %v1842
          %v1963 = vsel %vm1952, %v1946, %v1844
          %v1964 = vsel %vm1952, %v1947, %v1846
          %v1965 = vsel %vm1952, %v1948, %v1848
          %v1966 = vsel %vm1952, %v1949, %v1850
          %v1967 = vsel %vm1952, %v1950, %v1852
          %v1968 = vsel %vm1952, %v1951, %v1854
          %vm1969 = vcmask 195584
          %v1970 = vsel %vm1969, %v1953, %v1888
          %v1971 = vsel %vm1969, %v1954, %v1890
          %v1972 = vsel %vm1969, %v1955, %v1892
          %v1973 = vsel %vm1969, %v1956, %v1894
          %v1974 = vsel %vm1969, %v1957, %v1896
          %v1975 = vsel %vm1969, %v1958, %v1898
          %v1976 = vsel %vm1969, %v1959, %v1900
          %v1977 = vsel %vm1969, %v1960, %v1902
          %v1978 = vsel %vm1969, %v1961, %v1904
          %v1979 = vsel %vm1969, %v1962, %v1906
          %v1980 = vsel %vm1969, %v1963, %v1908
          %v1981 = vsel %vm1969, %v1964, %v1910
          %v1982 = vsel %vm1969, %v1965, %v1912
          %v1983 = vsel %vm1969, %v1966, %v1914
          %v1984 = vsel %vm1969, %v1967, %v1916
          %v1985 = vsel %vm1969, %v1968, %v1918
          %1986 = vrot.lane.b32.xlu0 %v876, 64
          %v1987 = vpop.permute.xlu0 %1986
          %1988 = vrot.lane.b32.xlu0 %v878, 64
          %v1989 = vpop.permute.xlu0 %1988
          %1990 = vrot.lane.b32.xlu0 %v1099, 64
          %v1991 = vpop.permute.xlu0 %1990
          %1992 = vrot.lane.b32.xlu0 %v1101, 64
          %v1993 = vpop.permute.xlu0 %1992
          %1994 = vrot.lane.b32.xlu0 %v1105, 64
          %v1995 = vpop.permute.xlu0 %1994
          %1996 = vrot.lane.b32.xlu0 %v1107, 64
          %v1997 = vpop.permute.xlu0 %1996
          %1998 = vrot.lane.b32.xlu0 %v1111, 64
          %v1999 = vpop.permute.xlu0 %1998
          %2000 = vrot.lane.b32.xlu0 %v1113, 64
          %v2001 = vpop.permute.xlu0 %2000
          %v2010 = vrot.slane %v1995, 4
          %v2011 = vsel %vm1117, %v2010, %v1987
          %v2012 = vrot.slane %v1987, 4
          %v2013 = vsel %vm1117, %v1995, %v2012
          %v2015 = vunpack.c.l.s4 1983009808
          %v2016 = vunpack.c.0.s8 %v2015
          %v2017 = vperm.slane %v2011, %v2016
          %v2019 = vunpack.c.l.s4 1983009808
          %v2020 = vunpack.c.0.s8 %v2019
          %v2021 = vperm.slane %v2013, %v2020
          %v2022 = vrot.slane %v1999, 4
          %v2023 = vsel %vm1117, %v2022, %v1991
          %v2024 = vrot.slane %v1991, 4
          %v2025 = vsel %vm1117, %v1999, %v2024
          %v2027 = vunpack.c.l.s4 1983009808
          %v2028 = vunpack.c.0.s8 %v2027
          %v2029 = vperm.slane %v2023, %v2028
          %v2031 = vunpack.c.l.s4 1983009808
          %v2032 = vunpack.c.0.s8 %v2031
          %v2033 = vperm.slane %v2025, %v2032
          %v2034 = vrot.slane %v2029, 4
          %v2035 = vsel %vm1117, %v2034, %v2017
          %v2036 = vrot.slane %v2017, 4
          %v2037 = vsel %vm1117, %v2029, %v2036
          %v2039 = vunpack.c.l.s4 1934713408
          %v2040 = vunpack.c.0.s8 %v2039
          %v2041 = vperm.slane %v2035, %v2040
          %v2043 = vunpack.c.l.s4 1934713408
          %v2044 = vunpack.c.0.s8 %v2043
          %v2045 = vperm.slane %v2037, %v2044
          %v2046 = vrot.slane %v2033, 4
          %v2047 = vsel %vm1117, %v2046, %v2021
          %v2048 = vrot.slane %v2021, 4
          %v2049 = vsel %vm1117, %v2033, %v2048
          %v2051 = vunpack.c.l.s4 1934713408
          %v2052 = vunpack.c.0.s8 %v2051
          %v2053 = vperm.slane %v2047, %v2052
          %v2055 = vunpack.c.l.s4 1934713408
          %v2056 = vunpack.c.0.s8 %v2055
          %v2057 = vperm.slane %v2049, %v2056
          %v2058 = vrot.slane %v2041, 4
          %v2059 = vsel %vm1117, 0.0, %v2058
          %v2060 = vrot.slane %v2045, 4
          %v2061 = vsel %vm1117, 0.0, %v2060
          %v2062 = vrot.slane %v2053, 4
          %v2063 = vsel %vm1117, 0.0, %v2062
          %v2064 = vrot.slane %v2057, 4
          %v2065 = vsel %vm1117, 0.0, %v2064
          %v2066 = vrot.slane %v1997, 4
          %v2067 = vsel %vm1117, %v2066, %v1989
          %v2068 = vrot.slane %v1989, 4
          %v2069 = vsel %vm1117, %v1997, %v2068
          %v2071 = vunpack.c.l.s4 1983009808
          %v2072 = vunpack.c.0.s8 %v2071
          %v2073 = vperm.slane %v2067, %v2072
          %v2075 = vunpack.c.l.s4 1983009808
          %v2076 = vunpack.c.0.s8 %v2075
          %v2077 = vperm.slane %v2069, %v2076
          %v2078 = vrot.slane %v2001, 4
          %v2079 = vsel %vm1117, %v2078, %v1993
          %v2080 = vrot.slane %v1993, 4
          %v2081 = vsel %vm1117, %v2001, %v2080
          %v2083 = vunpack.c.l.s4 1983009808
          %v2084 = vunpack.c.0.s8 %v2083
          %v2085 = vperm.slane %v2079, %v2084
          %v2087 = vunpack.c.l.s4 1983009808
          %v2088 = vunpack.c.0.s8 %v2087
          %v2089 = vperm.slane %v2081, %v2088
          %v2090 = vrot.slane %v2085, 4
          %v2091 = vsel %vm1117, %v2090, %v2073
          %v2092 = vrot.slane %v2073, 4
          %v2093 = vsel %vm1117, %v2085, %v2092
          %v2095 = vunpack.c.l.s4 1934713408
          %v2096 = vunpack.c.0.s8 %v2095
          %v2097 = vperm.slane %v2091, %v2096
          %v2099 = vunpack.c.l.s4 1934713408
          %v2100 = vunpack.c.0.s8 %v2099
          %v2101 = vperm.slane %v2093, %v2100
          %v2102 = vrot.slane %v2089, 4
          %v2103 = vsel %vm1117, %v2102, %v2077
          %v2104 = vrot.slane %v2077, 4
          %v2105 = vsel %vm1117, %v2089, %v2104
          %v2107 = vunpack.c.l.s4 1934713408
          %v2108 = vunpack.c.0.s8 %v2107
          %v2109 = vperm.slane %v2103, %v2108
          %v2111 = vunpack.c.l.s4 1934713408
          %v2112 = vunpack.c.0.s8 %v2111
          %v2113 = vperm.slane %v2105, %v2112
          %v2114 = vrot.slane %v2097, 4
          %v2115 = vsel %vm1117, 0.0, %v2114
          %v2116 = vrot.slane %v2101, 4
          %v2117 = vsel %vm1117, 0.0, %v2116
          %v2118 = vrot.slane %v2109, 4
          %v2119 = vsel %vm1117, 0.0, %v2118
          %v2120 = vrot.slane %v2113, 4
          %v2121 = vsel %vm1117, 0.0, %v2120
          %2122 = vrot.lane.b32.xlu0 %v962, 48
          %v2123 = vpop.permute.xlu0 %2122
          %2124 = vrot.lane.b32.xlu0 %v963, 48
          %v2125 = vpop.permute.xlu0 %2124
          %2126 = vrot.lane.b32.xlu0 %v1248, 48
          %v2127 = vpop.permute.xlu0 %2126
          %2128 = vrot.lane.b32.xlu0 %v1250, 48
          %v2129 = vpop.permute.xlu0 %2128
          %2130 = vrot.lane.b32.xlu0 %v1252, 48
          %v2131 = vpop.permute.xlu0 %2130
          %2132 = vrot.lane.b32.xlu0 %v1254, 48
          %v2133 = vpop.permute.xlu0 %2132
          %2134 = vrot.lane.b32.xlu0 %v1256, 48
          %v2135 = vpop.permute.xlu0 %2134
          %2136 = vrot.lane.b32.xlu0 %v1258, 48
          %v2137 = vpop.permute.xlu0 %2136
          %v2146 = vrot.slane %v2131, 4
          %v2147 = vsel %vm1117, %v2146, %v2123
          %v2148 = vrot.slane %v2123, 4
          %v2149 = vsel %vm1117, %v2131, %v2148
          %v2151 = vunpack.c.l.s4 1983009808
          %v2152 = vunpack.c.0.s8 %v2151
          %v2153 = vperm.slane %v2147, %v2152
          %v2155 = vunpack.c.l.s4 1983009808
          %v2156 = vunpack.c.0.s8 %v2155
          %v2157 = vperm.slane %v2149, %v2156
          %v2158 = vrot.slane %v2135, 4
          %v2159 = vsel %vm1117, %v2158, %v2127
          %v2160 = vrot.slane %v2127, 4
          %v2161 = vsel %vm1117, %v2135, %v2160
          %v2163 = vunpack.c.l.s4 1983009808
          %v2164 = vunpack.c.0.s8 %v2163
          %v2165 = vperm.slane %v2159, %v2164
          %v2167 = vunpack.c.l.s4 1983009808
          %v2168 = vunpack.c.0.s8 %v2167
          %v2169 = vperm.slane %v2161, %v2168
          %v2170 = vrot.slane %v2165, 4
          %v2171 = vsel %vm1117, %v2170, %v2153
          %v2172 = vrot.slane %v2153, 4
          %v2173 = vsel %vm1117, %v2165, %v2172
          %v2175 = vunpack.c.l.s4 1934713408
          %v2176 = vunpack.c.0.s8 %v2175
          %v2177 = vperm.slane %v2171, %v2176
          %v2179 = vunpack.c.l.s4 1934713408
          %v2180 = vunpack.c.0.s8 %v2179
          %v2181 = vperm.slane %v2173, %v2180
          %v2182 = vrot.slane %v2169, 4
          %v2183 = vsel %vm1117, %v2182, %v2157
          %v2184 = vrot.slane %v2157, 4
          %v2185 = vsel %vm1117, %v2169, %v2184
          %v2187 = vunpack.c.l.s4 1934713408
          %v2188 = vunpack.c.0.s8 %v2187
          %v2189 = vperm.slane %v2183, %v2188
          %v2191 = vunpack.c.l.s4 1934713408
          %v2192 = vunpack.c.0.s8 %v2191
          %v2193 = vperm.slane %v2185, %v2192
          %v2194 = vrot.slane %v2177, 4
          %v2195 = vsel %vm1117, 0.0, %v2194
          %v2196 = vrot.slane %v2181, 4
          %v2197 = vsel %vm1117, 0.0, %v2196
          %v2198 = vrot.slane %v2189, 4
          %v2199 = vsel %vm1117, 0.0, %v2198
          %v2200 = vrot.slane %v2193, 4
          %v2201 = vsel %vm1117, 0.0, %v2200
          %v2202 = vrot.slane %v2133, 4
          %v2203 = vsel %vm1117, %v2202, %v2125
          %v2204 = vrot.slane %v2125, 4
          %v2205 = vsel %vm1117, %v2133, %v2204
          %v2207 = vunpack.c.l.s4 1983009808
          %v2208 = vunpack.c.0.s8 %v2207
          %v2209 = vperm.slane %v2203, %v2208
          %v2211 = vunpack.c.l.s4 1983009808
          %v2212 = vunpack.c.0.s8 %v2211
          %v2213 = vperm.slane %v2205, %v2212
          %v2214 = vrot.slane %v2137, 4
          %v2215 = vsel %vm1117, %v2214, %v2129
          %v2216 = vrot.slane %v2129, 4
          %v2217 = vsel %vm1117, %v2137, %v2216
          %v2219 = vunpack.c.l.s4 1983009808
          %v2220 = vunpack.c.0.s8 %v2219
          %v2221 = vperm.slane %v2215, %v2220
          %v2223 = vunpack.c.l.s4 1983009808
          %v2224 = vunpack.c.0.s8 %v2223
          %v2225 = vperm.slane %v2217, %v2224
          %v2226 = vrot.slane %v2221, 4
          %v2227 = vsel %vm1117, %v2226, %v2209
          %v2228 = vrot.slane %v2209, 4
          %v2229 = vsel %vm1117, %v2221, %v2228
          %v2231 = vunpack.c.l.s4 1934713408
          %v2232 = vunpack.c.0.s8 %v2231
          %v2233 = vperm.slane %v2227, %v2232
          %v2235 = vunpack.c.l.s4 1934713408
          %v2236 = vunpack.c.0.s8 %v2235
          %v2237 = vperm.slane %v2229, %v2236
          %v2238 = vrot.slane %v2225, 4
          %v2239 = vsel %vm1117, %v2238, %v2213
          %v2240 = vrot.slane %v2213, 4
          %v2241 = vsel %vm1117, %v2225, %v2240
          %v2243 = vunpack.c.l.s4 1934713408
          %v2244 = vunpack.c.0.s8 %v2243
          %v2245 = vperm.slane %v2239, %v2244
          %v2247 = vunpack.c.l.s4 1934713408
          %v2248 = vunpack.c.0.s8 %v2247
          %v2249 = vperm.slane %v2241, %v2248
          %v2250 = vrot.slane %v2233, 4
          %v2251 = vsel %vm1117, 0.0, %v2250
          %v2252 = vrot.slane %v2237, 4
          %v2253 = vsel %vm1117, 0.0, %v2252
          %v2254 = vrot.slane %v2245, 4
          %v2255 = vsel %vm1117, 0.0, %v2254
          %v2256 = vrot.slane %v2249, 4
          %v2257 = vsel %vm1117, 0.0, %v2256
          %2258 = vrot.lane.b32.xlu0 %v1014, 48
          %v2259 = vpop.permute.xlu0 %2258
          %2260 = vrot.lane.b32.xlu0 %v1015, 48
          %v2261 = vpop.permute.xlu0 %2260
          %2262 = vrot.lane.b32.xlu0 %v1414, 48
          %v2263 = vpop.permute.xlu0 %2262
          %2264 = vrot.lane.b32.xlu0 %v1416, 48
          %v2265 = vpop.permute.xlu0 %2264
          %2266 = vrot.lane.b32.xlu0 %v1418, 48
          %v2267 = vpop.permute.xlu0 %2266
          %2268 = vrot.lane.b32.xlu0 %v1420, 48
          %v2269 = vpop.permute.xlu0 %2268
          %2270 = vrot.lane.b32.xlu0 %v1422, 48
          %v2271 = vpop.permute.xlu0 %2270
          %2272 = vrot.lane.b32.xlu0 %v1424, 48
          %v2273 = vpop.permute.xlu0 %2272
          %v2282 = vrot.slane %v2267, 4
          %v2283 = vsel %vm1117, %v2282, %v2259
          %v2284 = vrot.slane %v2259, 4
          %v2285 = vsel %vm1117, %v2267, %v2284
          %v2287 = vunpack.c.l.s4 1983009808
          %v2288 = vunpack.c.0.s8 %v2287
          %v2289 = vperm.slane %v2283, %v2288
          %v2291 = vunpack.c.l.s4 1983009808
          %v2292 = vunpack.c.0.s8 %v2291
          %v2293 = vperm.slane %v2285, %v2292
          %v2294 = vrot.slane %v2271, 4
          %v2295 = vsel %vm1117, %v2294, %v2263
          %v2296 = vrot.slane %v2263, 4
          %v2297 = vsel %vm1117, %v2271, %v2296
          %v2299 = vunpack.c.l.s4 1983009808
          %v2300 = vunpack.c.0.s8 %v2299
          %v2301 = vperm.slane %v2295, %v2300
          %v2303 = vunpack.c.l.s4 1983009808
          %v2304 = vunpack.c.0.s8 %v2303
          %v2305 = vperm.slane %v2297, %v2304
          %v2306 = vrot.slane %v2301, 4
          %v2307 = vsel %vm1117, %v2306, %v2289
          %v2308 = vrot.slane %v2289, 4
          %v2309 = vsel %vm1117, %v2301, %v2308
          %v2311 = vunpack.c.l.s4 1934713408
          %v2312 = vunpack.c.0.s8 %v2311
          %v2313 = vperm.slane %v2307, %v2312
          %v2315 = vunpack.c.l.s4 1934713408
          %v2316 = vunpack.c.0.s8 %v2315
          %v2317 = vperm.slane %v2309, %v2316
          %v2318 = vrot.slane %v2305, 4
          %v2319 = vsel %vm1117, %v2318, %v2293
          %v2320 = vrot.slane %v2293, 4
          %v2321 = vsel %vm1117, %v2305, %v2320
          %v2323 = vunpack.c.l.s4 1934713408
          %v2324 = vunpack.c.0.s8 %v2323
          %v2325 = vperm.slane %v2319, %v2324
          %v2327 = vunpack.c.l.s4 1934713408
          %v2328 = vunpack.c.0.s8 %v2327
          %v2329 = vperm.slane %v2321, %v2328
          %v2330 = vrot.slane %v2313, 4
          %v2331 = vsel %vm1117, 0.0, %v2330
          %v2332 = vrot.slane %v2317, 4
          %v2333 = vsel %vm1117, 0.0, %v2332
          %v2334 = vrot.slane %v2325, 4
          %v2335 = vsel %vm1117, 0.0, %v2334
          %v2336 = vrot.slane %v2329, 4
          %v2337 = vsel %vm1117, 0.0, %v2336
          %v2338 = vrot.slane %v2269, 4
          %v2339 = vsel %vm1117, %v2338, %v2261
          %v2340 = vrot.slane %v2261, 4
          %v2341 = vsel %vm1117, %v2269, %v2340
          %v2343 = vunpack.c.l.s4 1983009808
          %v2344 = vunpack.c.0.s8 %v2343
          %v2345 = vperm.slane %v2339, %v2344
          %v2347 = vunpack.c.l.s4 1983009808
          %v2348 = vunpack.c.0.s8 %v2347
          %v2349 = vperm.slane %v2341, %v2348
          %v2350 = vrot.slane %v2273, 4
          %v2351 = vsel %vm1117, %v2350, %v2265
          %v2352 = vrot.slane %v2265, 4
          %v2353 = vsel %vm1117, %v2273, %v2352
          %v2355 = vunpack.c.l.s4 1983009808
          %v2356 = vunpack.c.0.s8 %v2355
          %v2357 = vperm.slane %v2351, %v2356
          %v2359 = vunpack.c.l.s4 1983009808
          %v2360 = vunpack.c.0.s8 %v2359
          %v2361 = vperm.slane %v2353, %v2360
          %v2362 = vrot.slane %v2357, 4
          %v2363 = vsel %vm1117, %v2362, %v2345
          %v2364 = vrot.slane %v2345, 4
          %v2365 = vsel %vm1117, %v2357, %v2364
          %v2367 = vunpack.c.l.s4 1934713408
          %v2368 = vunpack.c.0.s8 %v2367
          %v2369 = vperm.slane %v2363, %v2368
          %v2371 = vunpack.c.l.s4 1934713408
          %v2372 = vunpack.c.0.s8 %v2371
          %v2373 = vperm.slane %v2365, %v2372
          %v2374 = vrot.slane %v2361, 4
          %v2375 = vsel %vm1117, %v2374, %v2349
          %v2376 = vrot.slane %v2349, 4
          %v2377 = vsel %vm1117, %v2361, %v2376
          %v2379 = vunpack.c.l.s4 1934713408
          %v2380 = vunpack.c.0.s8 %v2379
          %v2381 = vperm.slane %v2375, %v2380
          %v2383 = vunpack.c.l.s4 1934713408
          %v2384 = vunpack.c.0.s8 %v2383
          %v2385 = vperm.slane %v2377, %v2384
          %v2386 = vrot.slane %v2369, 4
          %v2387 = vsel %vm1117, 0.0, %v2386
          %v2388 = vrot.slane %v2373, 4
          %v2389 = vsel %vm1117, 0.0, %v2388
          %v2390 = vrot.slane %v2381, 4
          %v2391 = vsel %vm1117, 0.0, %v2390
          %v2392 = vrot.slane %v2385, 4
          %v2393 = vsel %vm1117, 0.0, %v2392
          %2394 = vrot.lane.b32.xlu0 %v1066, 48
          %v2395 = vpop.permute.xlu0 %2394
          %2396 = vrot.lane.b32.xlu0 %v1067, 48
          %v2397 = vpop.permute.xlu0 %2396
          %2398 = vrot.lane.b32.xlu0 %v1580, 48
          %v2399 = vpop.permute.xlu0 %2398
          %2400 = vrot.lane.b32.xlu0 %v1582, 48
          %v2401 = vpop.permute.xlu0 %2400
          %2402 = vrot.lane.b32.xlu0 %v1584, 48
          %v2403 = vpop.permute.xlu0 %2402
          %2404 = vrot.lane.b32.xlu0 %v1586, 48
          %v2405 = vpop.permute.xlu0 %2404
          %2406 = vrot.lane.b32.xlu0 %v1588, 48
          %v2407 = vpop.permute.xlu0 %2406
          %2408 = vrot.lane.b32.xlu0 %v1590, 48
          %v2409 = vpop.permute.xlu0 %2408
          %v2418 = vrot.slane %v2403, 4
          %v2419 = vsel %vm1117, %v2418, %v2395
          %v2420 = vrot.slane %v2395, 4
          %v2421 = vsel %vm1117, %v2403, %v2420
          %v2423 = vunpack.c.l.s4 1983009808
          %v2424 = vunpack.c.0.s8 %v2423
          %v2425 = vperm.slane %v2419, %v2424
          %v2427 = vunpack.c.l.s4 1983009808
          %v2428 = vunpack.c.0.s8 %v2427
          %v2429 = vperm.slane %v2421, %v2428
          %v2430 = vrot.slane %v2407, 4
          %v2431 = vsel %vm1117, %v2430, %v2399
          %v2432 = vrot.slane %v2399, 4
          %v2433 = vsel %vm1117, %v2407, %v2432
          %v2435 = vunpack.c.l.s4 1983009808
          %v2436 = vunpack.c.0.s8 %v2435
          %v2437 = vperm.slane %v2431, %v2436
          %v2439 = vunpack.c.l.s4 1983009808
          %v2440 = vunpack.c.0.s8 %v2439
          %v2441 = vperm.slane %v2433, %v2440
          %v2442 = vrot.slane %v2437, 4
          %v2443 = vsel %vm1117, %v2442, %v2425
          %v2444 = vrot.slane %v2425, 4
          %v2445 = vsel %vm1117, %v2437, %v2444
          %v2447 = vunpack.c.l.s4 1934713408
          %v2448 = vunpack.c.0.s8 %v2447
          %v2449 = vperm.slane %v2443, %v2448
          %v2451 = vunpack.c.l.s4 1934713408
          %v2452 = vunpack.c.0.s8 %v2451
          %v2453 = vperm.slane %v2445, %v2452
          %v2454 = vrot.slane %v2441, 4
          %v2455 = vsel %vm1117, %v2454, %v2429
          %v2456 = vrot.slane %v2429, 4
          %v2457 = vsel %vm1117, %v2441, %v2456
          %v2459 = vunpack.c.l.s4 1934713408
          %v2460 = vunpack.c.0.s8 %v2459
          %v2461 = vperm.slane %v2455, %v2460
          %v2463 = vunpack.c.l.s4 1934713408
          %v2464 = vunpack.c.0.s8 %v2463
          %v2465 = vperm.slane %v2457, %v2464
          %v2466 = vrot.slane %v2449, 4
          %v2467 = vsel %vm1117, 0.0, %v2466
          %v2468 = vrot.slane %v2453, 4
          %v2469 = vsel %vm1117, 0.0, %v2468
          %v2470 = vrot.slane %v2461, 4
          %v2471 = vsel %vm1117, 0.0, %v2470
          %v2472 = vrot.slane %v2465, 4
          %v2473 = vsel %vm1117, 0.0, %v2472
          %v2474 = vrot.slane %v2405, 4
          %v2475 = vsel %vm1117, %v2474, %v2397
          %v2476 = vrot.slane %v2397, 4
          %v2477 = vsel %vm1117, %v2405, %v2476
          %v2479 = vunpack.c.l.s4 1983009808
          %v2480 = vunpack.c.0.s8 %v2479
          %v2481 = vperm.slane %v2475, %v2480
          %v2483 = vunpack.c.l.s4 1983009808
          %v2484 = vunpack.c.0.s8 %v2483
          %v2485 = vperm.slane %v2477, %v2484
          %v2486 = vrot.slane %v2409, 4
          %v2487 = vsel %vm1117, %v2486, %v2401
          %v2488 = vrot.slane %v2401, 4
          %v2489 = vsel %vm1117, %v2409, %v2488
          %v2491 = vunpack.c.l.s4 1983009808
          %v2492 = vunpack.c.0.s8 %v2491
          %v2493 = vperm.slane %v2487, %v2492
          %v2495 = vunpack.c.l.s4 1983009808
          %v2496 = vunpack.c.0.s8 %v2495
          %v2497 = vperm.slane %v2489, %v2496
          %v2498 = vrot.slane %v2493, 4
          %v2499 = vsel %vm1117, %v2498, %v2481
          %v2500 = vrot.slane %v2481, 4
          %v2501 = vsel %vm1117, %v2493, %v2500
          %v2503 = vunpack.c.l.s4 1934713408
          %v2504 = vunpack.c.0.s8 %v2503
          %v2505 = vperm.slane %v2499, %v2504
          %v2507 = vunpack.c.l.s4 1934713408
          %v2508 = vunpack.c.0.s8 %v2507
          %v2509 = vperm.slane %v2501, %v2508
          %v2510 = vrot.slane %v2497, 4
          %v2511 = vsel %vm1117, %v2510, %v2485
          %v2512 = vrot.slane %v2485, 4
          %v2513 = vsel %vm1117, %v2497, %v2512
          %v2515 = vunpack.c.l.s4 1934713408
          %v2516 = vunpack.c.0.s8 %v2515
          %v2517 = vperm.slane %v2511, %v2516
          %v2519 = vunpack.c.l.s4 1934713408
          %v2520 = vunpack.c.0.s8 %v2519
          %v2521 = vperm.slane %v2513, %v2520
          %v2522 = vrot.slane %v2505, 4
          %v2523 = vsel %vm1117, 0.0, %v2522
          %v2524 = vrot.slane %v2509, 4
          %v2525 = vsel %vm1117, 0.0, %v2524
          %v2526 = vrot.slane %v2517, 4
          %v2527 = vsel %vm1117, 0.0, %v2526
          %v2528 = vrot.slane %v2521, 4
          %v2529 = vsel %vm1117, 0.0, %v2528
          %2546 = vrot.lane.b32.xlu0 %v2177, 16
          %v2547 = vpop.permute.xlu0 %2546
          %2548 = vrot.lane.b32.xlu0 %v2195, 16
          %v2549 = vpop.permute.xlu0 %2548
          %2550 = vrot.lane.b32.xlu0 %v2181, 16
          %v2551 = vpop.permute.xlu0 %2550
          %2552 = vrot.lane.b32.xlu0 %v2197, 16
          %v2553 = vpop.permute.xlu0 %2552
          %2554 = vrot.lane.b32.xlu0 %v2189, 16
          %v2555 = vpop.permute.xlu0 %2554
          %2556 = vrot.lane.b32.xlu0 %v2199, 16
          %v2557 = vpop.permute.xlu0 %2556
          %2558 = vrot.lane.b32.xlu0 %v2193, 16
          %v2559 = vpop.permute.xlu0 %2558
          %2560 = vrot.lane.b32.xlu0 %v2201, 16
          %v2561 = vpop.permute.xlu0 %2560
          %2562 = vrot.lane.b32.xlu0 %v2233, 16
          %v2563 = vpop.permute.xlu0 %2562
          %2564 = vrot.lane.b32.xlu0 %v2251, 16
          %v2565 = vpop.permute.xlu0 %2564
          %2566 = vrot.lane.b32.xlu0 %v2237, 16
          %v2567 = vpop.permute.xlu0 %2566
          %2568 = vrot.lane.b32.xlu0 %v2253, 16
          %v2569 = vpop.permute.xlu0 %2568
          %2570 = vrot.lane.b32.xlu0 %v2245, 16
          %v2571 = vpop.permute.xlu0 %2570
          %2572 = vrot.lane.b32.xlu0 %v2255, 16
          %v2573 = vpop.permute.xlu0 %2572
          %2574 = vrot.lane.b32.xlu0 %v2249, 16
          %v2575 = vpop.permute.xlu0 %2574
          %2576 = vrot.lane.b32.xlu0 %v2257, 16
          %v2577 = vpop.permute.xlu0 %2576
          %2610 = vrot.lane.b32.xlu0 %v2313, 20
          %v2611 = vpop.permute.xlu0 %2610
          %2612 = vrot.lane.b32.xlu0 %v2331, 20
          %v2613 = vpop.permute.xlu0 %2612
          %2614 = vrot.lane.b32.xlu0 %v2317, 20
          %v2615 = vpop.permute.xlu0 %2614
          %2616 = vrot.lane.b32.xlu0 %v2333, 20
          %v2617 = vpop.permute.xlu0 %2616
          %2618 = vrot.lane.b32.xlu0 %v2325, 20
          %v2619 = vpop.permute.xlu0 %2618
          %2620 = vrot.lane.b32.xlu0 %v2335, 20
          %v2621 = vpop.permute.xlu0 %2620
          %2622 = vrot.lane.b32.xlu0 %v2329, 20
          %v2623 = vpop.permute.xlu0 %2622
          %2624 = vrot.lane.b32.xlu0 %v2337, 20
          %v2625 = vpop.permute.xlu0 %2624
          %2626 = vrot.lane.b32.xlu0 %v2369, 20
          %v2627 = vpop.permute.xlu0 %2626
          %2628 = vrot.lane.b32.xlu0 %v2387, 20
          %v2629 = vpop.permute.xlu0 %2628
          %2630 = vrot.lane.b32.xlu0 %v2373, 20
          %v2631 = vpop.permute.xlu0 %2630
          %2632 = vrot.lane.b32.xlu0 %v2389, 20
          %v2633 = vpop.permute.xlu0 %2632
          %2634 = vrot.lane.b32.xlu0 %v2381, 20
          %v2635 = vpop.permute.xlu0 %2634
          %2636 = vrot.lane.b32.xlu0 %v2391, 20
          %v2637 = vpop.permute.xlu0 %2636
          %2638 = vrot.lane.b32.xlu0 %v2385, 20
          %v2639 = vpop.permute.xlu0 %2638
          %2640 = vrot.lane.b32.xlu0 %v2393, 20
          %v2641 = vpop.permute.xlu0 %2640
          %2674 = vrot.lane.b32.xlu0 %v2449, 24
          %v2675 = vpop.permute.xlu0 %2674
          %2676 = vrot.lane.b32.xlu0 %v2467, 24
          %v2677 = vpop.permute.xlu0 %2676
          %2678 = vrot.lane.b32.xlu0 %v2453, 24
          %v2679 = vpop.permute.xlu0 %2678
          %2680 = vrot.lane.b32.xlu0 %v2469, 24
          %v2681 = vpop.permute.xlu0 %2680
          %2682 = vrot.lane.b32.xlu0 %v2461, 24
          %v2683 = vpop.permute.xlu0 %2682
          %2684 = vrot.lane.b32.xlu0 %v2471, 24
          %v2685 = vpop.permute.xlu0 %2684
          %2686 = vrot.lane.b32.xlu0 %v2465, 24
          %v2687 = vpop.permute.xlu0 %2686
          %2688 = vrot.lane.b32.xlu0 %v2473, 24
          %v2689 = vpop.permute.xlu0 %2688
          %2690 = vrot.lane.b32.xlu0 %v2505, 24
          %v2691 = vpop.permute.xlu0 %2690
          %2692 = vrot.lane.b32.xlu0 %v2523, 24
          %v2693 = vpop.permute.xlu0 %2692
          %2694 = vrot.lane.b32.xlu0 %v2509, 24
          %v2695 = vpop.permute.xlu0 %2694
          %2696 = vrot.lane.b32.xlu0 %v2525, 24
          %v2697 = vpop.permute.xlu0 %2696
          %2698 = vrot.lane.b32.xlu0 %v2517, 24
          %v2699 = vpop.permute.xlu0 %2698
          %2700 = vrot.lane.b32.xlu0 %v2527, 24
          %v2701 = vpop.permute.xlu0 %2700
          %2702 = vrot.lane.b32.xlu0 %v2521, 24
          %v2703 = vpop.permute.xlu0 %2702
          %2704 = vrot.lane.b32.xlu0 %v2529, 24
          %v2705 = vpop.permute.xlu0 %2704
          %v2722 = vsel %vm1935, %v2041, %v2547
          %v2723 = vsel %vm1935, %v2059, %v2549
          %v2724 = vsel %vm1935, %v2045, %v2551
          %v2725 = vsel %vm1935, %v2061, %v2553
          %v2726 = vsel %vm1935, %v2053, %v2555
          %v2727 = vsel %vm1935, %v2063, %v2557
          %v2728 = vsel %vm1935, %v2057, %v2559
          %v2729 = vsel %vm1935, %v2065, %v2561
          %v2730 = vsel %vm1935, %v2097, %v2563
          %v2731 = vsel %vm1935, %v2115, %v2565
          %v2732 = vsel %vm1935, %v2101, %v2567
          %v2733 = vsel %vm1935, %v2117, %v2569
          %v2734 = vsel %vm1935, %v2109, %v2571
          %v2735 = vsel %vm1935, %v2119, %v2573
          %v2736 = vsel %vm1935, %v2113, %v2575
          %v2737 = vsel %vm1935, %v2121, %v2577
          %v2738 = vsel %vm1952, %v2722, %v2611
          %v2739 = vsel %vm1952, %v2723, %v2613
          %v2740 = vsel %vm1952, %v2724, %v2615
          %v2741 = vsel %vm1952, %v2725, %v2617
          %v2742 = vsel %vm1952, %v2726, %v2619
          %v2743 = vsel %vm1952, %v2727, %v2621
          %v2744 = vsel %vm1952, %v2728, %v2623
          %v2745 = vsel %vm1952, %v2729, %v2625
          %v2746 = vsel %vm1952, %v2730, %v2627
          %v2747 = vsel %vm1952, %v2731, %v2629
          %v2748 = vsel %vm1952, %v2732, %v2631
          %v2749 = vsel %vm1952, %v2733, %v2633
          %v2750 = vsel %vm1952, %v2734, %v2635
          %v2751 = vsel %vm1952, %v2735, %v2637
          %v2752 = vsel %vm1952, %v2736, %v2639
          %v2753 = vsel %vm1952, %v2737, %v2641
          %v2754 = vsel %vm1969, %v2738, %v2675
          %v2755 = vsel %vm1969, %v2739, %v2677
          %v2756 = vsel %vm1969, %v2740, %v2679
          %v2757 = vsel %vm1969, %v2741, %v2681
          %v2758 = vsel %vm1969, %v2742, %v2683
          %v2759 = vsel %vm1969, %v2743, %v2685
          %v2760 = vsel %vm1969, %v2744, %v2687
          %v2761 = vsel %vm1969, %v2745, %v2689
          %v2762 = vsel %vm1969, %v2746, %v2691
          %v2763 = vsel %vm1969, %v2747, %v2693
          %v2764 = vsel %vm1969, %v2748, %v2695
          %v2765 = vsel %vm1969, %v2749, %v2697
          %v2766 = vsel %vm1969, %v2750, %v2699
          %v2767 = vsel %vm1969, %v2751, %v2701
          %v2768 = vsel %vm1969, %v2752, %v2703
          %v2769 = vsel %vm1969, %v2753, %v2705
          %2772 = vrot.lane.b32.xlu0 %v890, 112
          %v2773 = vpop.permute.xlu0 %2772
          %2774 = vrot.lane.b32.xlu0 %v892, 112
          %v2775 = vpop.permute.xlu0 %2774
          %2778 = vrot.lane.b32.xlu0 %v890, 96
          %v2779 = vpop.permute.xlu0 %2778
          %2780 = vrot.lane.b32.xlu0 %v892, 96
          %v2781 = vpop.permute.xlu0 %2780
          %2784 = vrot.lane.b32.xlu0 %v890, 80
          %v2785 = vpop.permute.xlu0 %2784
          %2786 = vrot.lane.b32.xlu0 %v892, 80
          %v2787 = vpop.permute.xlu0 %2786
          %v2790 = vrot.slane %v2779, 4
          %v2791 = vsel %vm1117, %v2790, %v890
          %v2792 = vrot.slane %v890, 4
          %v2793 = vsel %vm1117, %v2779, %v2792
          %v2795 = vunpack.c.l.s4 1983009808
          %v2796 = vunpack.c.0.s8 %v2795
          %v2797 = vperm.slane %v2791, %v2796
          %v2799 = vunpack.c.l.s4 1983009808
          %v2800 = vunpack.c.0.s8 %v2799
          %v2801 = vperm.slane %v2793, %v2800
          %v2802 = vrot.slane %v2785, 4
          %v2803 = vsel %vm1117, %v2802, %v2773
          %v2804 = vrot.slane %v2773, 4
          %v2805 = vsel %vm1117, %v2785, %v2804
          %v2807 = vunpack.c.l.s4 1983009808
          %v2808 = vunpack.c.0.s8 %v2807
          %v2809 = vperm.slane %v2803, %v2808
          %v2811 = vunpack.c.l.s4 1983009808
          %v2812 = vunpack.c.0.s8 %v2811
          %v2813 = vperm.slane %v2805, %v2812
          %v2814 = vrot.slane %v2809, 4
          %v2815 = vsel %vm1117, %v2814, %v2797
          %v2816 = vrot.slane %v2797, 4
          %v2817 = vsel %vm1117, %v2809, %v2816
          %v2819 = vunpack.c.l.s4 1934713408
          %v2820 = vunpack.c.0.s8 %v2819
          %v2821 = vperm.slane %v2815, %v2820
          %v2823 = vunpack.c.l.s4 1934713408
          %v2824 = vunpack.c.0.s8 %v2823
          %v2825 = vperm.slane %v2817, %v2824
          %v2826 = vrot.slane %v2813, 4
          %v2827 = vsel %vm1117, %v2826, %v2801
          %v2828 = vrot.slane %v2801, 4
          %v2829 = vsel %vm1117, %v2813, %v2828
          %v2831 = vunpack.c.l.s4 1934713408
          %v2832 = vunpack.c.0.s8 %v2831
          %v2833 = vperm.slane %v2827, %v2832
          %v2835 = vunpack.c.l.s4 1934713408
          %v2836 = vunpack.c.0.s8 %v2835
          %v2837 = vperm.slane %v2829, %v2836
          %v2838 = vrot.slane %v2821, 4
          %v2839 = vsel %vm1117, 0.0, %v2838
          %v2840 = vrot.slane %v2825, 4
          %v2841 = vsel %vm1117, 0.0, %v2840
          %v2842 = vrot.slane %v2833, 4
          %v2843 = vsel %vm1117, 0.0, %v2842
          %v2844 = vrot.slane %v2837, 4
          %v2845 = vsel %vm1117, 0.0, %v2844
          %v2846 = vrot.slane %v2781, 4
          %v2847 = vsel %vm1117, %v2846, %v892
          %v2848 = vrot.slane %v892, 4
          %v2849 = vsel %vm1117, %v2781, %v2848
          %v2851 = vunpack.c.l.s4 1983009808
          %v2852 = vunpack.c.0.s8 %v2851
          %v2853 = vperm.slane %v2847, %v2852
          %v2855 = vunpack.c.l.s4 1983009808
          %v2856 = vunpack.c.0.s8 %v2855
          %v2857 = vperm.slane %v2849, %v2856
          %v2858 = vrot.slane %v2787, 4
          %v2859 = vsel %vm1117, %v2858, %v2775
          %v2860 = vrot.slane %v2775, 4
          %v2861 = vsel %vm1117, %v2787, %v2860
          %v2863 = vunpack.c.l.s4 1983009808
          %v2864 = vunpack.c.0.s8 %v2863
          %v2865 = vperm.slane %v2859, %v2864
          %v2867 = vunpack.c.l.s4 1983009808
          %v2868 = vunpack.c.0.s8 %v2867
          %v2869 = vperm.slane %v2861, %v2868
          %v2870 = vrot.slane %v2865, 4
          %v2871 = vsel %vm1117, %v2870, %v2853
          %v2872 = vrot.slane %v2853, 4
          %v2873 = vsel %vm1117, %v2865, %v2872
          %v2875 = vunpack.c.l.s4 1934713408
          %v2876 = vunpack.c.0.s8 %v2875
          %v2877 = vperm.slane %v2871, %v2876
          %v2879 = vunpack.c.l.s4 1934713408
          %v2880 = vunpack.c.0.s8 %v2879
          %v2881 = vperm.slane %v2873, %v2880
          %v2882 = vrot.slane %v2869, 4
          %v2883 = vsel %vm1117, %v2882, %v2857
          %v2884 = vrot.slane %v2857, 4
          %v2885 = vsel %vm1117, %v2869, %v2884
          %v2887 = vunpack.c.l.s4 1934713408
          %v2888 = vunpack.c.0.s8 %v2887
          %v2889 = vperm.slane %v2883, %v2888
          %v2891 = vunpack.c.l.s4 1934713408
          %v2892 = vunpack.c.0.s8 %v2891
          %v2893 = vperm.slane %v2885, %v2892
          %v2894 = vrot.slane %v2877, 4
          %v2895 = vsel %vm1117, 0.0, %v2894
          %v2896 = vrot.slane %v2881, 4
          %v2897 = vsel %vm1117, 0.0, %v2896
          %v2898 = vrot.slane %v2889, 4
          %v2899 = vsel %vm1117, 0.0, %v2898
          %v2900 = vrot.slane %v2893, 4
          %v2901 = vsel %vm1117, 0.0, %v2900
          %2902 = vrot.lane.b32.xlu0 %v962, 112
          %v2903 = vpop.permute.xlu0 %2902
          %2904 = vrot.lane.b32.xlu0 %v963, 112
          %v2905 = vpop.permute.xlu0 %2904
          %2906 = vrot.lane.b32.xlu0 %v962, 104
          %v2907 = vpop.permute.xlu0 %2906
          %2908 = vrot.lane.b32.xlu0 %v963, 104
          %v2909 = vpop.permute.xlu0 %2908
          %2910 = vrot.lane.b32.xlu0 %v962, 32
          %v2911 = vpop.permute.xlu0 %2910
          %2912 = vrot.lane.b32.xlu0 %v963, 32
          %v2913 = vpop.permute.xlu0 %2912
          %2914 = vrot.lane.b32.xlu0 %v1252, 32
          %v2915 = vpop.permute.xlu0 %2914
          %2916 = vrot.lane.b32.xlu0 %v1254, 32
          %v2917 = vpop.permute.xlu0 %2916
          %2918 = vrot.lane.b32.xlu0 %v2903, 32
          %v2919 = vpop.permute.xlu0 %2918
          %2920 = vrot.lane.b32.xlu0 %v2905, 32
          %v2921 = vpop.permute.xlu0 %2920
          %2922 = vrot.lane.b32.xlu0 %v2907, 32
          %v2923 = vpop.permute.xlu0 %2922
          %2924 = vrot.lane.b32.xlu0 %v2909, 32
          %v2925 = vpop.permute.xlu0 %2924
          %v2934 = vrot.slane %v2919, 4
          %v2935 = vsel %vm1117, %v2934, %v2911
          %v2936 = vrot.slane %v2911, 4
          %v2937 = vsel %vm1117, %v2919, %v2936
          %v2939 = vunpack.c.l.s4 1983009808
          %v2940 = vunpack.c.0.s8 %v2939
          %v2941 = vperm.slane %v2935, %v2940
          %v2943 = vunpack.c.l.s4 1983009808
          %v2944 = vunpack.c.0.s8 %v2943
          %v2945 = vperm.slane %v2937, %v2944
          %v2946 = vrot.slane %v2923, 4
          %v2947 = vsel %vm1117, %v2946, %v2915
          %v2948 = vrot.slane %v2915, 4
          %v2949 = vsel %vm1117, %v2923, %v2948
          %v2951 = vunpack.c.l.s4 1983009808
          %v2952 = vunpack.c.0.s8 %v2951
          %v2953 = vperm.slane %v2947, %v2952
          %v2955 = vunpack.c.l.s4 1983009808
          %v2956 = vunpack.c.0.s8 %v2955
          %v2957 = vperm.slane %v2949, %v2956
          %v2958 = vrot.slane %v2953, 4
          %v2959 = vsel %vm1117, %v2958, %v2941
          %v2960 = vrot.slane %v2941, 4
          %v2961 = vsel %vm1117, %v2953, %v2960
          %v2963 = vunpack.c.l.s4 1934713408
          %v2964 = vunpack.c.0.s8 %v2963
          %v2965 = vperm.slane %v2959, %v2964
          %v2967 = vunpack.c.l.s4 1934713408
          %v2968 = vunpack.c.0.s8 %v2967
          %v2969 = vperm.slane %v2961, %v2968
          %v2970 = vrot.slane %v2957, 4
          %v2971 = vsel %vm1117, %v2970, %v2945
          %v2972 = vrot.slane %v2945, 4
          %v2973 = vsel %vm1117, %v2957, %v2972
          %v2975 = vunpack.c.l.s4 1934713408
          %v2976 = vunpack.c.0.s8 %v2975
          %v2977 = vperm.slane %v2971, %v2976
          %v2979 = vunpack.c.l.s4 1934713408
          %v2980 = vunpack.c.0.s8 %v2979
          %v2981 = vperm.slane %v2973, %v2980
          %v2982 = vrot.slane %v2965, 4
          %v2983 = vsel %vm1117, 0.0, %v2982
          %v2984 = vrot.slane %v2969, 4
          %v2985 = vsel %vm1117, 0.0, %v2984
          %v2986 = vrot.slane %v2977, 4
          %v2987 = vsel %vm1117, 0.0, %v2986
          %v2988 = vrot.slane %v2981, 4
          %v2989 = vsel %vm1117, 0.0, %v2988
          %v2990 = vrot.slane %v2921, 4
          %v2991 = vsel %vm1117, %v2990, %v2913
          %v2992 = vrot.slane %v2913, 4
          %v2993 = vsel %vm1117, %v2921, %v2992
          %v2995 = vunpack.c.l.s4 1983009808
          %v2996 = vunpack.c.0.s8 %v2995
          %v2997 = vperm.slane %v2991, %v2996
          %v2999 = vunpack.c.l.s4 1983009808
          %v3000 = vunpack.c.0.s8 %v2999
          %v3001 = vperm.slane %v2993, %v3000
          %v3002 = vrot.slane %v2925, 4
          %v3003 = vsel %vm1117, %v3002, %v2917
          %v3004 = vrot.slane %v2917, 4
          %v3005 = vsel %vm1117, %v2925, %v3004
          %v3007 = vunpack.c.l.s4 1983009808
          %v3008 = vunpack.c.0.s8 %v3007
          %v3009 = vperm.slane %v3003, %v3008
          %v3011 = vunpack.c.l.s4 1983009808
          %v3012 = vunpack.c.0.s8 %v3011
          %v3013 = vperm.slane %v3005, %v3012
          %v3014 = vrot.slane %v3009, 4
          %v3015 = vsel %vm1117, %v3014, %v2997
          %v3016 = vrot.slane %v2997, 4
          %v3017 = vsel %vm1117, %v3009, %v3016
          %v3019 = vunpack.c.l.s4 1934713408
          %v3020 = vunpack.c.0.s8 %v3019
          %v3021 = vperm.slane %v3015, %v3020
          %v3023 = vunpack.c.l.s4 1934713408
          %v3024 = vunpack.c.0.s8 %v3023
          %v3025 = vperm.slane %v3017, %v3024
          %v3026 = vrot.slane %v3013, 4
          %v3027 = vsel %vm1117, %v3026, %v3001
          %v3028 = vrot.slane %v3001, 4
          %v3029 = vsel %vm1117, %v3013, %v3028
          %v3031 = vunpack.c.l.s4 1934713408
          %v3032 = vunpack.c.0.s8 %v3031
          %v3033 = vperm.slane %v3027, %v3032
          %v3035 = vunpack.c.l.s4 1934713408
          %v3036 = vunpack.c.0.s8 %v3035
          %v3037 = vperm.slane %v3029, %v3036
          %v3038 = vrot.slane %v3021, 4
          %v3039 = vsel %vm1117, 0.0, %v3038
          %v3040 = vrot.slane %v3025, 4
          %v3041 = vsel %vm1117, 0.0, %v3040
          %v3042 = vrot.slane %v3033, 4
          %v3043 = vsel %vm1117, 0.0, %v3042
          %v3044 = vrot.slane %v3037, 4
          %v3045 = vsel %vm1117, 0.0, %v3044
          %3046 = vrot.lane.b32.xlu0 %v1014, 112
          %v3047 = vpop.permute.xlu0 %3046
          %3048 = vrot.lane.b32.xlu0 %v1015, 112
          %v3049 = vpop.permute.xlu0 %3048
          %3050 = vrot.lane.b32.xlu0 %v1014, 104
          %v3051 = vpop.permute.xlu0 %3050
          %3052 = vrot.lane.b32.xlu0 %v1015, 104
          %v3053 = vpop.permute.xlu0 %3052
          %3054 = vrot.lane.b32.xlu0 %v1014, 32
          %v3055 = vpop.permute.xlu0 %3054
          %3056 = vrot.lane.b32.xlu0 %v1015, 32
          %v3057 = vpop.permute.xlu0 %3056
          %3058 = vrot.lane.b32.xlu0 %v1418, 32
          %v3059 = vpop.permute.xlu0 %3058
          %3060 = vrot.lane.b32.xlu0 %v1420, 32
          %v3061 = vpop.permute.xlu0 %3060
          %3062 = vrot.lane.b32.xlu0 %v3047, 32
          %v3063 = vpop.permute.xlu0 %3062
          %3064 = vrot.lane.b32.xlu0 %v3049, 32
          %v3065 = vpop.permute.xlu0 %3064
          %3066 = vrot.lane.b32.xlu0 %v3051, 32
          %v3067 = vpop.permute.xlu0 %3066
          %3068 = vrot.lane.b32.xlu0 %v3053, 32
          %v3069 = vpop.permute.xlu0 %3068
          %v3078 = vrot.slane %v3063, 4
          %v3079 = vsel %vm1117, %v3078, %v3055
          %v3080 = vrot.slane %v3055, 4
          %v3081 = vsel %vm1117, %v3063, %v3080
          %v3083 = vunpack.c.l.s4 1983009808
          %v3084 = vunpack.c.0.s8 %v3083
          %v3085 = vperm.slane %v3079, %v3084
          %v3087 = vunpack.c.l.s4 1983009808
          %v3088 = vunpack.c.0.s8 %v3087
          %v3089 = vperm.slane %v3081, %v3088
          %v3090 = vrot.slane %v3067, 4
          %v3091 = vsel %vm1117, %v3090, %v3059
          %v3092 = vrot.slane %v3059, 4
          %v3093 = vsel %vm1117, %v3067, %v3092
          %v3095 = vunpack.c.l.s4 1983009808
          %v3096 = vunpack.c.0.s8 %v3095
          %v3097 = vperm.slane %v3091, %v3096
          %v3099 = vunpack.c.l.s4 1983009808
          %v3100 = vunpack.c.0.s8 %v3099
          %v3101 = vperm.slane %v3093, %v3100
          %v3102 = vrot.slane %v3097, 4
          %v3103 = vsel %vm1117, %v3102, %v3085
          %v3104 = vrot.slane %v3085, 4
          %v3105 = vsel %vm1117, %v3097, %v3104
          %v3107 = vunpack.c.l.s4 1934713408
          %v3108 = vunpack.c.0.s8 %v3107
          %v3109 = vperm.slane %v3103, %v3108
          %v3111 = vunpack.c.l.s4 1934713408
          %v3112 = vunpack.c.0.s8 %v3111
          %v3113 = vperm.slane %v3105, %v3112
          %v3114 = vrot.slane %v3101, 4
          %v3115 = vsel %vm1117, %v3114, %v3089
          %v3116 = vrot.slane %v3089, 4
          %v3117 = vsel %vm1117, %v3101, %v3116
          %v3119 = vunpack.c.l.s4 1934713408
          %v3120 = vunpack.c.0.s8 %v3119
          %v3121 = vperm.slane %v3115, %v3120
          %v3123 = vunpack.c.l.s4 1934713408
          %v3124 = vunpack.c.0.s8 %v3123
          %v3125 = vperm.slane %v3117, %v3124
          %v3126 = vrot.slane %v3109, 4
          %v3127 = vsel %vm1117, 0.0, %v3126
          %v3128 = vrot.slane %v3113, 4
          %v3129 = vsel %vm1117, 0.0, %v3128
          %v3130 = vrot.slane %v3121, 4
          %v3131 = vsel %vm1117, 0.0, %v3130
          %v3132 = vrot.slane %v3125, 4
          %v3133 = vsel %vm1117, 0.0, %v3132
          %v3134 = vrot.slane %v3065, 4
          %v3135 = vsel %vm1117, %v3134, %v3057
          %v3136 = vrot.slane %v3057, 4
          %v3137 = vsel %vm1117, %v3065, %v3136
          %v3139 = vunpack.c.l.s4 1983009808
          %v3140 = vunpack.c.0.s8 %v3139
          %v3141 = vperm.slane %v3135, %v3140
          %v3143 = vunpack.c.l.s4 1983009808
          %v3144 = vunpack.c.0.s8 %v3143
          %v3145 = vperm.slane %v3137, %v3144
          %v3146 = vrot.slane %v3069, 4
          %v3147 = vsel %vm1117, %v3146, %v3061
          %v3148 = vrot.slane %v3061, 4
          %v3149 = vsel %vm1117, %v3069, %v3148
          %v3151 = vunpack.c.l.s4 1983009808
          %v3152 = vunpack.c.0.s8 %v3151
          %v3153 = vperm.slane %v3147, %v3152
          %v3155 = vunpack.c.l.s4 1983009808
          %v3156 = vunpack.c.0.s8 %v3155
          %v3157 = vperm.slane %v3149, %v3156
          %v3158 = vrot.slane %v3153, 4
          %v3159 = vsel %vm1117, %v3158, %v3141
          %v3160 = vrot.slane %v3141, 4
          %v3161 = vsel %vm1117, %v3153, %v3160
          %v3163 = vunpack.c.l.s4 1934713408
          %v3164 = vunpack.c.0.s8 %v3163
          %v3165 = vperm.slane %v3159, %v3164
          %v3167 = vunpack.c.l.s4 1934713408
          %v3168 = vunpack.c.0.s8 %v3167
          %v3169 = vperm.slane %v3161, %v3168
          %v3170 = vrot.slane %v3157, 4
          %v3171 = vsel %vm1117, %v3170, %v3145
          %v3172 = vrot.slane %v3145, 4
          %v3173 = vsel %vm1117, %v3157, %v3172
          %v3175 = vunpack.c.l.s4 1934713408
          %v3176 = vunpack.c.0.s8 %v3175
          %v3177 = vperm.slane %v3171, %v3176
          %v3179 = vunpack.c.l.s4 1934713408
          %v3180 = vunpack.c.0.s8 %v3179
          %v3181 = vperm.slane %v3173, %v3180
          %v3182 = vrot.slane %v3165, 4
          %v3183 = vsel %vm1117, 0.0, %v3182
          %v3184 = vrot.slane %v3169, 4
          %v3185 = vsel %vm1117, 0.0, %v3184
          %v3186 = vrot.slane %v3177, 4
          %v3187 = vsel %vm1117, 0.0, %v3186
          %v3188 = vrot.slane %v3181, 4
          %v3189 = vsel %vm1117, 0.0, %v3188
          %3190 = vrot.lane.b32.xlu0 %v1066, 112
          %v3191 = vpop.permute.xlu0 %3190
          %3192 = vrot.lane.b32.xlu0 %v1067, 112
          %v3193 = vpop.permute.xlu0 %3192
          %3194 = vrot.lane.b32.xlu0 %v1066, 104
          %v3195 = vpop.permute.xlu0 %3194
          %3196 = vrot.lane.b32.xlu0 %v1067, 104
          %v3197 = vpop.permute.xlu0 %3196
          %3198 = vrot.lane.b32.xlu0 %v1066, 32
          %v3199 = vpop.permute.xlu0 %3198
          %3200 = vrot.lane.b32.xlu0 %v1067, 32
          %v3201 = vpop.permute.xlu0 %3200
          %3202 = vrot.lane.b32.xlu0 %v1584, 32
          %v3203 = vpop.permute.xlu0 %3202
          %3204 = vrot.lane.b32.xlu0 %v1586, 32
          %v3205 = vpop.permute.xlu0 %3204
          %3206 = vrot.lane.b32.xlu0 %v3191, 32
          %v3207 = vpop.permute.xlu0 %3206
          %3208 = vrot.lane.b32.xlu0 %v3193, 32
          %v3209 = vpop.permute.xlu0 %3208
          %3210 = vrot.lane.b32.xlu0 %v3195, 32
          %v3211 = vpop.permute.xlu0 %3210
          %3212 = vrot.lane.b32.xlu0 %v3197, 32
          %v3213 = vpop.permute.xlu0 %3212
          %v3222 = vrot.slane %v3207, 4
          %v3223 = vsel %vm1117, %v3222, %v3199
          %v3224 = vrot.slane %v3199, 4
          %v3225 = vsel %vm1117, %v3207, %v3224
          %v3227 = vunpack.c.l.s4 1983009808
          %v3228 = vunpack.c.0.s8 %v3227
          %v3229 = vperm.slane %v3223, %v3228
          %v3231 = vunpack.c.l.s4 1983009808
          %v3232 = vunpack.c.0.s8 %v3231
          %v3233 = vperm.slane %v3225, %v3232
          %v3234 = vrot.slane %v3211, 4
          %v3235 = vsel %vm1117, %v3234, %v3203
          %v3236 = vrot.slane %v3203, 4
          %v3237 = vsel %vm1117, %v3211, %v3236
          %v3239 = vunpack.c.l.s4 1983009808
          %v3240 = vunpack.c.0.s8 %v3239
          %v3241 = vperm.slane %v3235, %v3240
          %v3243 = vunpack.c.l.s4 1983009808
          %v3244 = vunpack.c.0.s8 %v3243
          %v3245 = vperm.slane %v3237, %v3244
          %v3246 = vrot.slane %v3241, 4
          %v3247 = vsel %vm1117, %v3246, %v3229
          %v3248 = vrot.slane %v3229, 4
          %v3249 = vsel %vm1117, %v3241, %v3248
          %v3251 = vunpack.c.l.s4 1934713408
          %v3252 = vunpack.c.0.s8 %v3251
          %v3253 = vperm.slane %v3247, %v3252
          %v3255 = vunpack.c.l.s4 1934713408
          %v3256 = vunpack.c.0.s8 %v3255
          %v3257 = vperm.slane %v3249, %v3256
          %v3258 = vrot.slane %v3245, 4
          %v3259 = vsel %vm1117, %v3258, %v3233
          %v3260 = vrot.slane %v3233, 4
          %v3261 = vsel %vm1117, %v3245, %v3260
          %v3263 = vunpack.c.l.s4 1934713408
          %v3264 = vunpack.c.0.s8 %v3263
          %v3265 = vperm.slane %v3259, %v3264
          %v3267 = vunpack.c.l.s4 1934713408
          %v3268 = vunpack.c.0.s8 %v3267
          %v3269 = vperm.slane %v3261, %v3268
          %v3270 = vrot.slane %v3253, 4
          %v3271 = vsel %vm1117, 0.0, %v3270
          %v3272 = vrot.slane %v3257, 4
          %v3273 = vsel %vm1117, 0.0, %v3272
          %v3274 = vrot.slane %v3265, 4
          %v3275 = vsel %vm1117, 0.0, %v3274
          %v3276 = vrot.slane %v3269, 4
          %v3277 = vsel %vm1117, 0.0, %v3276
          %v3278 = vrot.slane %v3209, 4
          %v3279 = vsel %vm1117, %v3278, %v3201
          %v3280 = vrot.slane %v3201, 4
          %v3281 = vsel %vm1117, %v3209, %v3280
          %v3283 = vunpack.c.l.s4 1983009808
          %v3284 = vunpack.c.0.s8 %v3283
          %v3285 = vperm.slane %v3279, %v3284
          %v3287 = vunpack.c.l.s4 1983009808
          %v3288 = vunpack.c.0.s8 %v3287
          %v3289 = vperm.slane %v3281, %v3288
          %v3290 = vrot.slane %v3213, 4
          %v3291 = vsel %vm1117, %v3290, %v3205
          %v3292 = vrot.slane %v3205, 4
          %v3293 = vsel %vm1117, %v3213, %v3292
          %v3295 = vunpack.c.l.s4 1983009808
          %v3296 = vunpack.c.0.s8 %v3295
          %v3297 = vperm.slane %v3291, %v3296
          %v3299 = vunpack.c.l.s4 1983009808
          %v3300 = vunpack.c.0.s8 %v3299
          %v3301 = vperm.slane %v3293, %v3300
          %v3302 = vrot.slane %v3297, 4
          %v3303 = vsel %vm1117, %v3302, %v3285
          %v3304 = vrot.slane %v3285, 4
          %v3305 = vsel %vm1117, %v3297, %v3304
          %v3307 = vunpack.c.l.s4 1934713408
          %v3308 = vunpack.c.0.s8 %v3307
          %v3309 = vperm.slane %v3303, %v3308
          %v3311 = vunpack.c.l.s4 1934713408
          %v3312 = vunpack.c.0.s8 %v3311
          %v3313 = vperm.slane %v3305, %v3312
          %v3314 = vrot.slane %v3301, 4
          %v3315 = vsel %vm1117, %v3314, %v3289
          %v3316 = vrot.slane %v3289, 4
          %v3317 = vsel %vm1117, %v3301, %v3316
          %v3319 = vunpack.c.l.s4 1934713408
          %v3320 = vunpack.c.0.s8 %v3319
          %v3321 = vperm.slane %v3315, %v3320
          %v3323 = vunpack.c.l.s4 1934713408
          %v3324 = vunpack.c.0.s8 %v3323
          %v3325 = vperm.slane %v3317, %v3324
          %v3326 = vrot.slane %v3309, 4
          %v3327 = vsel %vm1117, 0.0, %v3326
          %v3328 = vrot.slane %v3313, 4
          %v3329 = vsel %vm1117, 0.0, %v3328
          %v3330 = vrot.slane %v3321, 4
          %v3331 = vsel %vm1117, 0.0, %v3330
          %v3332 = vrot.slane %v3325, 4
          %v3333 = vsel %vm1117, 0.0, %v3332
          %3350 = vrot.lane.b32.xlu0 %v2965, 16
          %v3351 = vpop.permute.xlu0 %3350
          %3352 = vrot.lane.b32.xlu0 %v2983, 16
          %v3353 = vpop.permute.xlu0 %3352
          %3354 = vrot.lane.b32.xlu0 %v2969, 16
          %v3355 = vpop.permute.xlu0 %3354
          %3356 = vrot.lane.b32.xlu0 %v2985, 16
          %v3357 = vpop.permute.xlu0 %3356
          %3358 = vrot.lane.b32.xlu0 %v2977, 16
          %v3359 = vpop.permute.xlu0 %3358
          %3360 = vrot.lane.b32.xlu0 %v2987, 16
          %v3361 = vpop.permute.xlu0 %3360
          %3362 = vrot.lane.b32.xlu0 %v2981, 16
          %v3363 = vpop.permute.xlu0 %3362
          %3364 = vrot.lane.b32.xlu0 %v2989, 16
          %v3365 = vpop.permute.xlu0 %3364
          %3366 = vrot.lane.b32.xlu0 %v3021, 16
          %v3367 = vpop.permute.xlu0 %3366
          %3368 = vrot.lane.b32.xlu0 %v3039, 16
          %v3369 = vpop.permute.xlu0 %3368
          %3370 = vrot.lane.b32.xlu0 %v3025, 16
          %v3371 = vpop.permute.xlu0 %3370
          %3372 = vrot.lane.b32.xlu0 %v3041, 16
          %v3373 = vpop.permute.xlu0 %3372
          %3374 = vrot.lane.b32.xlu0 %v3033, 16
          %v3375 = vpop.permute.xlu0 %3374
          %3376 = vrot.lane.b32.xlu0 %v3043, 16
          %v3377 = vpop.permute.xlu0 %3376
          %3378 = vrot.lane.b32.xlu0 %v3037, 16
          %v3379 = vpop.permute.xlu0 %3378
          %3380 = vrot.lane.b32.xlu0 %v3045, 16
          %v3381 = vpop.permute.xlu0 %3380
          %3414 = vrot.lane.b32.xlu0 %v3109, 24
          %v3415 = vpop.permute.xlu0 %3414
          %3416 = vrot.lane.b32.xlu0 %v3127, 24
          %v3417 = vpop.permute.xlu0 %3416
          %3418 = vrot.lane.b32.xlu0 %v3113, 24
          %v3419 = vpop.permute.xlu0 %3418
          %3420 = vrot.lane.b32.xlu0 %v3129, 24
          %v3421 = vpop.permute.xlu0 %3420
          %3422 = vrot.lane.b32.xlu0 %v3121, 24
          %v3423 = vpop.permute.xlu0 %3422
          %3424 = vrot.lane.b32.xlu0 %v3131, 24
          %v3425 = vpop.permute.xlu0 %3424
          %3426 = vrot.lane.b32.xlu0 %v3125, 24
          %v3427 = vpop.permute.xlu0 %3426
          %3428 = vrot.lane.b32.xlu0 %v3133, 24
          %v3429 = vpop.permute.xlu0 %3428
          %3430 = vrot.lane.b32.xlu0 %v3165, 24
          %v3431 = vpop.permute.xlu0 %3430
          %3432 = vrot.lane.b32.xlu0 %v3183, 24
          %v3433 = vpop.permute.xlu0 %3432
          %3434 = vrot.lane.b32.xlu0 %v3169, 24
          %v3435 = vpop.permute.xlu0 %3434
          %3436 = vrot.lane.b32.xlu0 %v3185, 24
          %v3437 = vpop.permute.xlu0 %3436
          %3438 = vrot.lane.b32.xlu0 %v3177, 24
          %v3439 = vpop.permute.xlu0 %3438
          %3440 = vrot.lane.b32.xlu0 %v3187, 24
          %v3441 = vpop.permute.xlu0 %3440
          %3442 = vrot.lane.b32.xlu0 %v3181, 24
          %v3443 = vpop.permute.xlu0 %3442
          %3444 = vrot.lane.b32.xlu0 %v3189, 24
          %v3445 = vpop.permute.xlu0 %3444
          %3478 = vrot.lane.b32.xlu0 %v3253, 32
          %v3479 = vpop.permute.xlu0 %3478
          %3480 = vrot.lane.b32.xlu0 %v3271, 32
          %v3481 = vpop.permute.xlu0 %3480
          %3482 = vrot.lane.b32.xlu0 %v3257, 32
          %v3483 = vpop.permute.xlu0 %3482
          %3484 = vrot.lane.b32.xlu0 %v3273, 32
          %v3485 = vpop.permute.xlu0 %3484
          %3486 = vrot.lane.b32.xlu0 %v3265, 32
          %v3487 = vpop.permute.xlu0 %3486
          %3488 = vrot.lane.b32.xlu0 %v3275, 32
          %v3489 = vpop.permute.xlu0 %3488
          %3490 = vrot.lane.b32.xlu0 %v3269, 32
          %v3491 = vpop.permute.xlu0 %3490
          %3492 = vrot.lane.b32.xlu0 %v3277, 32
          %v3493 = vpop.permute.xlu0 %3492
          %3494 = vrot.lane.b32.xlu0 %v3309, 32
          %v3495 = vpop.permute.xlu0 %3494
          %3496 = vrot.lane.b32.xlu0 %v3327, 32
          %v3497 = vpop.permute.xlu0 %3496
          %3498 = vrot.lane.b32.xlu0 %v3313, 32
          %v3499 = vpop.permute.xlu0 %3498
          %3500 = vrot.lane.b32.xlu0 %v3329, 32
          %v3501 = vpop.permute.xlu0 %3500
          %3502 = vrot.lane.b32.xlu0 %v3321, 32
          %v3503 = vpop.permute.xlu0 %3502
          %3504 = vrot.lane.b32.xlu0 %v3331, 32
          %v3505 = vpop.permute.xlu0 %3504
          %3506 = vrot.lane.b32.xlu0 %v3325, 32
          %v3507 = vpop.permute.xlu0 %3506
          %3508 = vrot.lane.b32.xlu0 %v3333, 32
          %v3509 = vpop.permute.xlu0 %3508
          %v3526 = vsel %vm1935, %v2821, %v3351
          %v3527 = vsel %vm1935, %v2839, %v3353
          %v3528 = vsel %vm1935, %v2825, %v3355
          %v3529 = vsel %vm1935, %v2841, %v3357
          %v3530 = vsel %vm1935, %v2833, %v3359
          %v3531 = vsel %vm1935, %v2843, %v3361
          %v3532 = vsel %vm1935, %v2837, %v3363
          %v3533 = vsel %vm1935, %v2845, %v3365
          %v3534 = vsel %vm1935, %v2877, %v3367
          %v3535 = vsel %vm1935, %v2895, %v3369
          %v3536 = vsel %vm1935, %v2881, %v3371
          %v3537 = vsel %vm1935, %v2897, %v3373
          %v3538 = vsel %vm1935, %v2889, %v3375
          %v3539 = vsel %vm1935, %v2899, %v3377
          %v3540 = vsel %vm1935, %v2893, %v3379
          %v3541 = vsel %vm1935, %v2901, %v3381
          %v3542 = vsel %vm1969, %v3526, %v3415
          %v3543 = vsel %vm1969, %v3527, %v3417
          %v3544 = vsel %vm1969, %v3528, %v3419
          %v3545 = vsel %vm1969, %v3529, %v3421
          %v3546 = vsel %vm1969, %v3530, %v3423
          %v3547 = vsel %vm1969, %v3531, %v3425
          %v3548 = vsel %vm1969, %v3532, %v3427
          %v3549 = vsel %vm1969, %v3533, %v3429
          %v3550 = vsel %vm1969, %v3534, %v3431
          %v3551 = vsel %vm1969, %v3535, %v3433
          %v3552 = vsel %vm1969, %v3536, %v3435
          %v3553 = vsel %vm1969, %v3537, %v3437
          %v3554 = vsel %vm1969, %v3538, %v3439
          %v3555 = vsel %vm1969, %v3539, %v3441
          %v3556 = vsel %vm1969, %v3540, %v3443
          %v3557 = vsel %vm1969, %v3541, %v3445
          %v3558 = vsel %vm862, %v3542, %v3479
          %v3559 = vsel %vm862, %v3543, %v3481
          %v3560 = vsel %vm862, %v3544, %v3483
          %v3561 = vsel %vm862, %v3545, %v3485
          %v3562 = vsel %vm862, %v3546, %v3487
          %v3563 = vsel %vm862, %v3547, %v3489
          %v3564 = vsel %vm862, %v3548, %v3491
          %v3565 = vsel %vm862, %v3549, %v3493
          %v3566 = vsel %vm862, %v3550, %v3495
          %v3567 = vsel %vm862, %v3551, %v3497
          %v3568 = vsel %vm862, %v3552, %v3499
          %v3569 = vsel %vm862, %v3553, %v3501
          %v3570 = vsel %vm862, %v3554, %v3503
          %v3571 = vsel %vm862, %v3555, %v3505
          %v3572 = vsel %vm862, %v3556, %v3507
          %v3573 = vsel %vm862, %v3557, %v3509
          %v3574 = vrot.slane %v1972, 4
          %v3575 = vsel %vm1117, %v3574, %v1970
          %v3577 = vunpack.c.l.s4 1983009808
          %v3578 = vunpack.c.0.s8 %v3577
          %v3579 = vperm.slane %v3575, %v3578
          %v3580 = vrot.slane %v1973, 4
          %v3581 = vsel %vm1117, %v3580, %v1971
          %v3583 = vunpack.c.l.s4 1983009808
          %v3584 = vunpack.c.0.s8 %v3583
          %v3585 = vperm.slane %v3581, %v3584
          %v3586 = vrot.slane %v1976, 4
          %v3587 = vsel %vm1117, %v3586, %v1974
          %v3589 = vunpack.c.l.s4 1983009808
          %v3590 = vunpack.c.0.s8 %v3589
          %v3591 = vperm.slane %v3587, %v3590
          %v3592 = vrot.slane %v1977, 4
          %v3593 = vsel %vm1117, %v3592, %v1975
          %v3595 = vunpack.c.l.s4 1983009808
          %v3596 = vunpack.c.0.s8 %v3595
          %v3597 = vperm.slane %v3593, %v3596
          %v3598 = vrot.slane %v3585, 4
          %v3599 = vsel %vm1117, %v3598, %v3579
          %v3600 = vrot.slane %v3579, 4
          %v3601 = vsel %vm1117, %v3585, %v3600
          %v3603 = vunpack.c.l.s4 1934713408
          %v3604 = vunpack.c.0.s8 %v3603
          %v3605 = vperm.slane %v3599, %v3604
          %v3607 = vunpack.c.l.s4 1934713408
          %v3608 = vunpack.c.0.s8 %v3607
          %v3609 = vperm.slane %v3601, %v3608
          %v3610 = vrot.slane %v3597, 4
          %v3611 = vsel %vm1117, %v3610, %v3591
          %v3612 = vrot.slane %v3591, 4
          %v3613 = vsel %vm1117, %v3597, %v3612
          %v3615 = vunpack.c.l.s4 1934713408
          %v3616 = vunpack.c.0.s8 %v3615
          %v3617 = vperm.slane %v3611, %v3616
          %v3619 = vunpack.c.l.s4 1934713408
          %v3620 = vunpack.c.0.s8 %v3619
          %v3621 = vperm.slane %v3613, %v3620
          %v3622 = vrot.slane %v3617, 4
          %v3623 = vsel %vm1117, %v3622, %v3605
          %v3624 = vrot.slane %v3605, 4
          %v3625 = vsel %vm1117, %v3617, %v3624
          %v3626 = vrot.slane %v3621, 4
          %v3627 = vsel %vm1117, %v3626, %v3609
          %v3628 = vrot.slane %v3609, 4
          %v3629 = vsel %vm1117, %v3621, %v3628
          %v3630 = vrot.slane %v1980, 4
          %v3631 = vsel %vm1117, %v3630, %v1978
          %v3633 = vunpack.c.l.s4 1983009808
          %v3634 = vunpack.c.0.s8 %v3633
          %v3635 = vperm.slane %v3631, %v3634
          %v3636 = vrot.slane %v1981, 4
          %v3637 = vsel %vm1117, %v3636, %v1979
          %v3639 = vunpack.c.l.s4 1983009808
          %v3640 = vunpack.c.0.s8 %v3639
          %v3641 = vperm.slane %v3637, %v3640
          %v3642 = vrot.slane %v1984, 4
          %v3643 = vsel %vm1117, %v3642, %v1982
          %v3645 = vunpack.c.l.s4 1983009808
          %v3646 = vunpack.c.0.s8 %v3645
          %v3647 = vperm.slane %v3643, %v3646
          %v3648 = vrot.slane %v1985, 4
          %v3649 = vsel %vm1117, %v3648, %v1983
          %v3651 = vunpack.c.l.s4 1983009808
          %v3652 = vunpack.c.0.s8 %v3651
          %v3653 = vperm.slane %v3649, %v3652
          %v3654 = vrot.slane %v3641, 4
          %v3655 = vsel %vm1117, %v3654, %v3635
          %v3656 = vrot.slane %v3635, 4
          %v3657 = vsel %vm1117, %v3641, %v3656
          %v3659 = vunpack.c.l.s4 1934713408
          %v3660 = vunpack.c.0.s8 %v3659
          %v3661 = vperm.slane %v3655, %v3660
          %v3663 = vunpack.c.l.s4 1934713408
          %v3664 = vunpack.c.0.s8 %v3663
          %v3665 = vperm.slane %v3657, %v3664
          %v3666 = vrot.slane %v3653, 4
          %v3667 = vsel %vm1117, %v3666, %v3647
          %v3668 = vrot.slane %v3647, 4
          %v3669 = vsel %vm1117, %v3653, %v3668
          %v3671 = vunpack.c.l.s4 1934713408
          %v3672 = vunpack.c.0.s8 %v3671
          %v3673 = vperm.slane %v3667, %v3672
          %v3675 = vunpack.c.l.s4 1934713408
          %v3676 = vunpack.c.0.s8 %v3675
          %v3677 = vperm.slane %v3669, %v3676
          %v3678 = vrot.slane %v3673, 4
          %v3679 = vsel %vm1117, %v3678, %v3661
          %v3680 = vrot.slane %v3661, 4
          %v3681 = vsel %vm1117, %v3673, %v3680
          %v3682 = vrot.slane %v3677, 4
          %v3683 = vsel %vm1117, %v3682, %v3665
          %v3684 = vrot.slane %v3665, 4
          %v3685 = vsel %vm1117, %v3677, %v3684
          %v3686 = vpack.c.bf16 %v3623, %v3623
          %v3687 = vpack.c.bf16 %v3679, %v3679
          %v3688 = vpack.c.bf16 %v3625, %v3625
          %v3689 = vpack.c.bf16 %v3681, %v3681
          %v3690 = vpack.c.bf16 %v3627, %v3627
          %v3691 = vpack.c.bf16 %v3683, %v3683
          %v3692 = vpack.c.bf16 %v3629, %v3629
          %v3693 = vpack.c.bf16 %v3685, %v3685
          %vm3694 = vcmask 224256
          %3695 = vst.msk [vmem:[#allocation2] sm:$0xf] %vm3694, %v3686
          %3696 = vst.msk [vmem:[#allocation2 + $0x4] sm:$0xf] %vm3694, %v3687
          %3697 = vst.msk [vmem:[#allocation2 + $0x8] sm:$0xf] %vm3694, %v3688
          %3698 = vst.msk [vmem:[#allocation2 + $0xc] sm:$0xf] %vm3694, %v3689
          %3699 = vst.msk [vmem:[#allocation2 + $0x10] sm:$0xf] %vm3694, %v3690
          %3700 = vst.msk [vmem:[#allocation2 + $0x14] sm:$0xf] %vm3694, %v3691
          %3701 = vst.msk [vmem:[#allocation2 + $0x18] sm:$0xf] %vm3694, %v3692
          %3702 = vst.msk [vmem:[#allocation2 + $0x1c] sm:$0xf] %vm3694, %v3693
          %v3703 = vrot.slane %v2756, 4
          %v3704 = vsel %vm1117, %v3703, %v2754
          %v3706 = vunpack.c.l.s4 1983009808
          %v3707 = vunpack.c.0.s8 %v3706
          %v3708 = vperm.slane %v3704, %v3707
          %v3709 = vrot.slane %v2757, 4
          %v3710 = vsel %vm1117, %v3709, %v2755
          %v3712 = vunpack.c.l.s4 1983009808
          %v3713 = vunpack.c.0.s8 %v3712
          %v3714 = vperm.slane %v3710, %v3713
          %v3715 = vrot.slane %v2760, 4
          %v3716 = vsel %vm1117, %v3715, %v2758
          %v3718 = vunpack.c.l.s4 1983009808
          %v3719 = vunpack.c.0.s8 %v3718
          %v3720 = vperm.slane %v3716, %v3719
          %v3721 = vrot.slane %v2761, 4
          %v3722 = vsel %vm1117, %v3721, %v2759
          %v3724 = vunpack.c.l.s4 1983009808
          %v3725 = vunpack.c.0.s8 %v3724
          %v3726 = vperm.slane %v3722, %v3725
          %v3727 = vrot.slane %v3714, 4
          %v3728 = vsel %vm1117, %v3727, %v3708
          %v3729 = vrot.slane %v3708, 4
          %v3730 = vsel %vm1117, %v3714, %v3729
          %v3732 = vunpack.c.l.s4 1934713408
          %v3733 = vunpack.c.0.s8 %v3732
          %v3734 = vperm.slane %v3728, %v3733
          %v3736 = vunpack.c.l.s4 1934713408
          %v3737 = vunpack.c.0.s8 %v3736
          %v3738 = vperm.slane %v3730, %v3737
          %v3739 = vrot.slane %v3726, 4
          %v3740 = vsel %vm1117, %v3739, %v3720
          %v3741 = vrot.slane %v3720, 4
          %v3742 = vsel %vm1117, %v3726, %v3741
          %v3744 = vunpack.c.l.s4 1934713408
          %v3745 = vunpack.c.0.s8 %v3744
          %v3746 = vperm.slane %v3740, %v3745
          %v3748 = vunpack.c.l.s4 1934713408
          %v3749 = vunpack.c.0.s8 %v3748
          %v3750 = vperm.slane %v3742, %v3749
          %v3751 = vrot.slane %v3746, 4
          %v3752 = vsel %vm1117, %v3751, %v3734
          %v3753 = vrot.slane %v3734, 4
          %v3754 = vsel %vm1117, %v3746, %v3753
          %v3755 = vrot.slane %v3750, 4
          %v3756 = vsel %vm1117, %v3755, %v3738
          %v3757 = vrot.slane %v3738, 4
          %v3758 = vsel %vm1117, %v3750, %v3757
          %v3759 = vrot.slane %v2764, 4
          %v3760 = vsel %vm1117, %v3759, %v2762
          %v3762 = vunpack.c.l.s4 1983009808
          %v3763 = vunpack.c.0.s8 %v3762
          %v3764 = vperm.slane %v3760, %v3763
          %v3765 = vrot.slane %v2765, 4
          %v3766 = vsel %vm1117, %v3765, %v2763
          %v3768 = vunpack.c.l.s4 1983009808
          %v3769 = vunpack.c.0.s8 %v3768
          %v3770 = vperm.slane %v3766, %v3769
          %v3771 = vrot.slane %v2768, 4
          %v3772 = vsel %vm1117, %v3771, %v2766
          %v3774 = vunpack.c.l.s4 1983009808
          %v3775 = vunpack.c.0.s8 %v3774
          %v3776 = vperm.slane %v3772, %v3775
          %v3777 = vrot.slane %v2769, 4
          %v3778 = vsel %vm1117, %v3777, %v2767
          %v3780 = vunpack.c.l.s4 1983009808
          %v3781 = vunpack.c.0.s8 %v3780
          %v3782 = vperm.slane %v3778, %v3781
          %v3783 = vrot.slane %v3770, 4
          %v3784 = vsel %vm1117, %v3783, %v3764
          %v3785 = vrot.slane %v3764, 4
          %v3786 = vsel %vm1117, %v3770, %v3785
          %v3788 = vunpack.c.l.s4 1934713408
          %v3789 = vunpack.c.0.s8 %v3788
          %v3790 = vperm.slane %v3784, %v3789
          %v3792 = vunpack.c.l.s4 1934713408
          %v3793 = vunpack.c.0.s8 %v3792
          %v3794 = vperm.slane %v3786, %v3793
          %v3795 = vrot.slane %v3782, 4
          %v3796 = vsel %vm1117, %v3795, %v3776
          %v3797 = vrot.slane %v3776, 4
          %v3798 = vsel %vm1117, %v3782, %v3797
          %v3800 = vunpack.c.l.s4 1934713408
          %v3801 = vunpack.c.0.s8 %v3800
          %v3802 = vperm.slane %v3796, %v3801
          %v3804 = vunpack.c.l.s4 1934713408
          %v3805 = vunpack.c.0.s8 %v3804
          %v3806 = vperm.slane %v3798, %v3805
          %v3807 = vrot.slane %v3802, 4
          %v3808 = vsel %vm1117, %v3807, %v3790
          %v3809 = vrot.slane %v3790, 4
          %v3810 = vsel %vm1117, %v3802, %v3809
          %v3811 = vrot.slane %v3806, 4
          %v3812 = vsel %vm1117, %v3811, %v3794
          %v3813 = vrot.slane %v3794, 4
          %v3814 = vsel %vm1117, %v3806, %v3813
          %v3815 = vpack.c.bf16 %v3752, %v3752
          %v3816 = vpack.c.bf16 %v3808, %v3808
          %v3817 = vpack.c.bf16 %v3754, %v3754
          %v3818 = vpack.c.bf16 %v3810, %v3810
          %v3819 = vpack.c.bf16 %v3756, %v3756
          %v3820 = vpack.c.bf16 %v3812, %v3812
          %v3821 = vpack.c.bf16 %v3758, %v3758
          %v3822 = vpack.c.bf16 %v3814, %v3814
          %3823 = vst.msk [vmem:[#allocation3] sm:$0xf] %vm3694, %v3815
          %3824 = vst.msk [vmem:[#allocation3 + $0x4] sm:$0xf] %vm3694, %v3816
          %3825 = vst.msk [vmem:[#allocation3 + $0x8] sm:$0xf] %vm3694, %v3817
          %3826 = vst.msk [vmem:[#allocation3 + $0xc] sm:$0xf] %vm3694, %v3818
          %3827 = vst.msk [vmem:[#allocation3 + $0x10] sm:$0xf] %vm3694, %v3819
          %3828 = vst.msk [vmem:[#allocation3 + $0x14] sm:$0xf] %vm3694, %v3820
          %3829 = vst.msk [vmem:[#allocation3 + $0x18] sm:$0xf] %vm3694, %v3821
          %3830 = vst.msk [vmem:[#allocation3 + $0x1c] sm:$0xf] %vm3694, %v3822
          %v3831 = vrot.slane %v3560, 4
          %v3832 = vsel %vm1117, %v3831, %v3558
          %v3834 = vunpack.c.l.s4 1983009808
          %v3835 = vunpack.c.0.s8 %v3834
          %v3836 = vperm.slane %v3832, %v3835
          %v3837 = vrot.slane %v3561, 4
          %v3838 = vsel %vm1117, %v3837, %v3559
          %v3840 = vunpack.c.l.s4 1983009808
          %v3841 = vunpack.c.0.s8 %v3840
          %v3842 = vperm.slane %v3838, %v3841
          %v3843 = vrot.slane %v3564, 4
          %v3844 = vsel %vm1117, %v3843, %v3562
          %v3846 = vunpack.c.l.s4 1983009808
          %v3847 = vunpack.c.0.s8 %v3846
          %v3848 = vperm.slane %v3844, %v3847
          %v3849 = vrot.slane %v3565, 4
          %v3850 = vsel %vm1117, %v3849, %v3563
          %v3852 = vunpack.c.l.s4 1983009808
          %v3853 = vunpack.c.0.s8 %v3852
          %v3854 = vperm.slane %v3850, %v3853
          %v3855 = vrot.slane %v3842, 4
          %v3856 = vsel %vm1117, %v3855, %v3836
          %v3857 = vrot.slane %v3836, 4
          %v3858 = vsel %vm1117, %v3842, %v3857
          %v3860 = vunpack.c.l.s4 1934713408
          %v3861 = vunpack.c.0.s8 %v3860
          %v3862 = vperm.slane %v3856, %v3861
          %v3864 = vunpack.c.l.s4 1934713408
          %v3865 = vunpack.c.0.s8 %v3864
          %v3866 = vperm.slane %v3858, %v3865
          %v3867 = vrot.slane %v3854, 4
          %v3868 = vsel %vm1117, %v3867, %v3848
          %v3869 = vrot.slane %v3848, 4
          %v3870 = vsel %vm1117, %v3854, %v3869
          %v3872 = vunpack.c.l.s4 1934713408
          %v3873 = vunpack.c.0.s8 %v3872
          %v3874 = vperm.slane %v3868, %v3873
          %v3876 = vunpack.c.l.s4 1934713408
          %v3877 = vunpack.c.0.s8 %v3876
          %v3878 = vperm.slane %v3870, %v3877
          %v3879 = vrot.slane %v3874, 4
          %v3880 = vsel %vm1117, %v3879, %v3862
          %v3881 = vrot.slane %v3862, 4
          %v3882 = vsel %vm1117, %v3874, %v3881
          %v3883 = vrot.slane %v3878, 4
          %v3884 = vsel %vm1117, %v3883, %v3866
          %v3885 = vrot.slane %v3866, 4
          %v3886 = vsel %vm1117, %v3878, %v3885
          %v3887 = vrot.slane %v3568, 4
          %v3888 = vsel %vm1117, %v3887, %v3566
          %v3890 = vunpack.c.l.s4 1983009808
          %v3891 = vunpack.c.0.s8 %v3890
          %v3892 = vperm.slane %v3888, %v3891
          %v3893 = vrot.slane %v3569, 4
          %v3894 = vsel %vm1117, %v3893, %v3567
          %v3896 = vunpack.c.l.s4 1983009808
          %v3897 = vunpack.c.0.s8 %v3896
          %v3898 = vperm.slane %v3894, %v3897
          %v3899 = vrot.slane %v3572, 4
          %v3900 = vsel %vm1117, %v3899, %v3570
          %v3902 = vunpack.c.l.s4 1983009808
          %v3903 = vunpack.c.0.s8 %v3902
          %v3904 = vperm.slane %v3900, %v3903
          %v3905 = vrot.slane %v3573, 4
          %v3906 = vsel %vm1117, %v3905, %v3571
          %v3908 = vunpack.c.l.s4 1983009808
          %v3909 = vunpack.c.0.s8 %v3908
          %v3910 = vperm.slane %v3906, %v3909
          %v3911 = vrot.slane %v3898, 4
          %v3912 = vsel %vm1117, %v3911, %v3892
          %v3913 = vrot.slane %v3892, 4
          %v3914 = vsel %vm1117, %v3898, %v3913
          %v3916 = vunpack.c.l.s4 1934713408
          %v3917 = vunpack.c.0.s8 %v3916
          %v3918 = vperm.slane %v3912, %v3917
          %v3920 = vunpack.c.l.s4 1934713408
          %v3921 = vunpack.c.0.s8 %v3920
          %v3922 = vperm.slane %v3914, %v3921
          %v3923 = vrot.slane %v3910, 4
          %v3924 = vsel %vm1117, %v3923, %v3904
          %v3925 = vrot.slane %v3904, 4
          %v3926 = vsel %vm1117, %v3910, %v3925
          %v3928 = vunpack.c.l.s4 1934713408
          %v3929 = vunpack.c.0.s8 %v3928
          %v3930 = vperm.slane %v3924, %v3929
          %v3932 = vunpack.c.l.s4 1934713408
          %v3933 = vunpack.c.0.s8 %v3932
          %v3934 = vperm.slane %v3926, %v3933
          %v3935 = vrot.slane %v3930, 4
          %v3936 = vsel %vm1117, %v3935, %v3918
          %v3937 = vrot.slane %v3918, 4
          %v3938 = vsel %vm1117, %v3930, %v3937
          %v3939 = vrot.slane %v3934, 4
          %v3940 = vsel %vm1117, %v3939, %v3922
          %v3941 = vrot.slane %v3922, 4
          %v3942 = vsel %vm1117, %v3934, %v3941
          %v3943 = vpack.c.bf16 %v3880, %v3880
          %v3944 = vpack.c.bf16 %v3936, %v3936
          %v3945 = vpack.c.bf16 %v3882, %v3882
          %v3946 = vpack.c.bf16 %v3938, %v3938
          %v3947 = vpack.c.bf16 %v3884, %v3884
          %v3948 = vpack.c.bf16 %v3940, %v3940
          %v3949 = vpack.c.bf16 %v3886, %v3886
          %v3950 = vpack.c.bf16 %v3942, %v3942
          %vm3951 = vcmask 322560
          %3952 = vst.msk [vmem:[#allocation4] sm:$0xf] %vm3951, %v3943
          %3953 = vst.msk [vmem:[#allocation4 + $0x4] sm:$0xf] %vm3951, %v3944
          %3954 = vst.msk [vmem:[#allocation4 + $0x8] sm:$0xf] %vm3951, %v3945
          %3955 = vst.msk [vmem:[#allocation4 + $0xc] sm:$0xf] %vm3951, %v3946
          %3956 = vst.msk [vmem:[#allocation4 + $0x10] sm:$0xf] %vm3951, %v3947
          %3957 = vst.msk [vmem:[#allocation4 + $0x14] sm:$0xf] %vm3951, %v3948
          %3958 = vst.msk [vmem:[#allocation4 + $0x18] sm:$0xf] %vm3951, %v3949
          %3959 = vst.msk [vmem:[#allocation4 + $0x1c] sm:$0xf] %vm3951, %v3950
          %v3960 = vmul.f32 %v962, %v962
          %v3961 = vmul.f32 %v963, %v963
          %v3962 = vmul.f32 %v1014, %v1014
          %v3963 = vmul.f32 %v1015, %v1015
          %v3964 = vadd.f32 %v3960, %v3962
          %v3965 = vadd.f32 %v3961, %v3963
          %v3966 = vmul.f32 %v1066, %v1066
          %v3967 = vmul.f32 %v1067, %v1067
          %v3968 = vadd.f32 %v3964, %v3966
          %v3969 = vadd.f32 %v3965, %v3967
          %3972 = vrot.lane.b32.xlu0 %v3968, 124
          %v3973 = vpop.permute.xlu0 %3972
          %3974 = vrot.lane.b32.xlu0 %v3969, 124
          %v3975 = vpop.permute.xlu0 %3974
          %3976 = vrot.lane.b32.xlu0 %v3968, 120
          %v3977 = vpop.permute.xlu0 %3976
          %3978 = vrot.lane.b32.xlu0 %v3969, 120
          %v3979 = vpop.permute.xlu0 %3978
          %3980 = vrot.lane.b32.xlu0 %v3968, 116
          %v3981 = vpop.permute.xlu0 %3980
          %3982 = vrot.lane.b32.xlu0 %v3969, 116
          %v3983 = vpop.permute.xlu0 %3982
          %3984 = vrot.lane.b32.xlu0 %v3968, 48
          %v3985 = vpop.permute.xlu0 %3984
          %3986 = vrot.lane.b32.xlu0 %v3969, 48
          %v3987 = vpop.permute.xlu0 %3986
          %3988 = vrot.lane.b32.xlu0 %v3973, 48
          %v3989 = vpop.permute.xlu0 %3988
          %3990 = vrot.lane.b32.xlu0 %v3975, 48
          %v3991 = vpop.permute.xlu0 %3990
          %3992 = vrot.lane.b32.xlu0 %v3977, 48
          %v3993 = vpop.permute.xlu0 %3992
          %3994 = vrot.lane.b32.xlu0 %v3979, 48
          %v3995 = vpop.permute.xlu0 %3994
          %3996 = vrot.lane.b32.xlu0 %v3981, 48
          %v3997 = vpop.permute.xlu0 %3996
          %3998 = vrot.lane.b32.xlu0 %v3983, 48
          %v3999 = vpop.permute.xlu0 %3998
          %v4008 = vrot.slane %v3993, 4
          %v4009 = vsel %vm1117, %v4008, %v3985
          %v4010 = vrot.slane %v3985, 4
          %v4011 = vsel %vm1117, %v3993, %v4010
          %v4013 = vunpack.c.l.s4 1983009808
          %v4014 = vunpack.c.0.s8 %v4013
          %v4015 = vperm.slane %v4009, %v4014
          %v4017 = vunpack.c.l.s4 1983009808
          %v4018 = vunpack.c.0.s8 %v4017
          %v4019 = vperm.slane %v4011, %v4018
          %v4020 = vrot.slane %v3997, 4
          %v4021 = vsel %vm1117, %v4020, %v3989
          %v4022 = vrot.slane %v3989, 4
          %v4023 = vsel %vm1117, %v3997, %v4022
          %v4025 = vunpack.c.l.s4 1983009808
          %v4026 = vunpack.c.0.s8 %v4025
          %v4027 = vperm.slane %v4021, %v4026
          %v4029 = vunpack.c.l.s4 1983009808
          %v4030 = vunpack.c.0.s8 %v4029
          %v4031 = vperm.slane %v4023, %v4030
          %v4032 = vrot.slane %v4027, 4
          %v4033 = vsel %vm1117, %v4032, %v4015
          %v4034 = vrot.slane %v4015, 4
          %v4035 = vsel %vm1117, %v4027, %v4034
          %v4037 = vunpack.c.l.s4 1934713408
          %v4038 = vunpack.c.0.s8 %v4037
          %v4039 = vperm.slane %v4033, %v4038
          %v4041 = vunpack.c.l.s4 1934713408
          %v4042 = vunpack.c.0.s8 %v4041
          %v4043 = vperm.slane %v4035, %v4042
          %v4044 = vrot.slane %v4031, 4
          %v4045 = vsel %vm1117, %v4044, %v4019
          %v4046 = vrot.slane %v4019, 4
          %v4047 = vsel %vm1117, %v4031, %v4046
          %v4049 = vunpack.c.l.s4 1934713408
          %v4050 = vunpack.c.0.s8 %v4049
          %v4051 = vperm.slane %v4045, %v4050
          %v4053 = vunpack.c.l.s4 1934713408
          %v4054 = vunpack.c.0.s8 %v4053
          %v4055 = vperm.slane %v4047, %v4054
          %v4056 = vrot.slane %v4039, 4
          %v4057 = vsel %vm1117, 0.0, %v4056
          %v4058 = vrot.slane %v4043, 4
          %v4059 = vsel %vm1117, 0.0, %v4058
          %v4060 = vrot.slane %v4051, 4
          %v4061 = vsel %vm1117, 0.0, %v4060
          %v4062 = vrot.slane %v4055, 4
          %v4063 = vsel %vm1117, 0.0, %v4062
          %v4064 = vrot.slane %v3995, 4
          %v4065 = vsel %vm1117, %v4064, %v3987
          %v4066 = vrot.slane %v3987, 4
          %v4067 = vsel %vm1117, %v3995, %v4066
          %v4069 = vunpack.c.l.s4 1983009808
          %v4070 = vunpack.c.0.s8 %v4069
          %v4071 = vperm.slane %v4065, %v4070
          %v4073 = vunpack.c.l.s4 1983009808
          %v4074 = vunpack.c.0.s8 %v4073
          %v4075 = vperm.slane %v4067, %v4074
          %v4076 = vrot.slane %v3999, 4
          %v4077 = vsel %vm1117, %v4076, %v3991
          %v4078 = vrot.slane %v3991, 4
          %v4079 = vsel %vm1117, %v3999, %v4078
          %v4081 = vunpack.c.l.s4 1983009808
          %v4082 = vunpack.c.0.s8 %v4081
          %v4083 = vperm.slane %v4077, %v4082
          %v4085 = vunpack.c.l.s4 1983009808
          %v4086 = vunpack.c.0.s8 %v4085
          %v4087 = vperm.slane %v4079, %v4086
          %v4088 = vrot.slane %v4083, 4
          %v4089 = vsel %vm1117, %v4088, %v4071
          %v4090 = vrot.slane %v4071, 4
          %v4091 = vsel %vm1117, %v4083, %v4090
          %v4093 = vunpack.c.l.s4 1934713408
          %v4094 = vunpack.c.0.s8 %v4093
          %v4095 = vperm.slane %v4089, %v4094
          %v4097 = vunpack.c.l.s4 1934713408
          %v4098 = vunpack.c.0.s8 %v4097
          %v4099 = vperm.slane %v4091, %v4098
          %v4100 = vrot.slane %v4087, 4
          %v4101 = vsel %vm1117, %v4100, %v4075
          %v4102 = vrot.slane %v4075, 4
          %v4103 = vsel %vm1117, %v4087, %v4102
          %v4105 = vunpack.c.l.s4 1934713408
          %v4106 = vunpack.c.0.s8 %v4105
          %v4107 = vperm.slane %v4101, %v4106
          %v4109 = vunpack.c.l.s4 1934713408
          %v4110 = vunpack.c.0.s8 %v4109
          %v4111 = vperm.slane %v4103, %v4110
          %v4112 = vrot.slane %v4095, 4
          %v4113 = vsel %vm1117, 0.0, %v4112
          %v4114 = vrot.slane %v4099, 4
          %v4115 = vsel %vm1117, 0.0, %v4114
          %v4116 = vrot.slane %v4107, 4
          %v4117 = vsel %vm1117, 0.0, %v4116
          %v4118 = vrot.slane %v4111, 4
          %v4119 = vsel %vm1117, 0.0, %v4118
          %vm4120 = vcmask 27648
          %v4121 = vsel %vm4120, %v4039, 0.0
          %4122 = vadd.xlane.f32.xlu0 %v4121
          %v4123 = vpop.xlane.xlu0 %4122
          %v4124 = vsel %vm4120, %v4057, 0.0
          %4125 = vadd.xlane.f32.xlu0 %v4124
          %v4126 = vpop.xlane.xlu0 %4125
          %v4127 = vsel %vm4120, %v4043, 0.0
          %4128 = vadd.xlane.f32.xlu0 %v4127
          %v4129 = vpop.xlane.xlu0 %4128
          %v4130 = vsel %vm4120, %v4059, 0.0
          %4131 = vadd.xlane.f32.xlu0 %v4130
          %v4132 = vpop.xlane.xlu0 %4131
          %v4133 = vsel %vm4120, %v4051, 0.0
          %4134 = vadd.xlane.f32.xlu0 %v4133
          %v4135 = vpop.xlane.xlu0 %4134
          %v4136 = vsel %vm4120, %v4061, 0.0
          %4137 = vadd.xlane.f32.xlu0 %v4136
          %v4138 = vpop.xlane.xlu0 %4137
          %v4139 = vsel %vm4120, %v4055, 0.0
          %4140 = vadd.xlane.f32.xlu0 %v4139
          %v4141 = vpop.xlane.xlu0 %4140
          %v4142 = vsel %vm4120, %v4063, 0.0
          %4143 = vadd.xlane.f32.xlu0 %v4142
          %v4144 = vpop.xlane.xlu0 %4143
          %v4145 = vsel %vm4120, %v4095, 0.0
          %4146 = vadd.xlane.f32.xlu0 %v4145
          %v4147 = vpop.xlane.xlu0 %4146
          %v4148 = vsel %vm4120, %v4113, 0.0
          %4149 = vadd.xlane.f32.xlu0 %v4148
          %v4150 = vpop.xlane.xlu0 %4149
          %v4151 = vsel %vm4120, %v4099, 0.0
          %4152 = vadd.xlane.f32.xlu0 %v4151
          %v4153 = vpop.xlane.xlu0 %4152
          %v4154 = vsel %vm4120, %v4115, 0.0
          %4155 = vadd.xlane.f32.xlu0 %v4154
          %v4156 = vpop.xlane.xlu0 %4155
          %v4157 = vsel %vm4120, %v4107, 0.0
          %4158 = vadd.xlane.f32.xlu0 %v4157
          %v4159 = vpop.xlane.xlu0 %4158
          %v4160 = vsel %vm4120, %v4117, 0.0
          %4161 = vadd.xlane.f32.xlu0 %v4160
          %v4162 = vpop.xlane.xlu0 %4161
          %v4163 = vsel %vm4120, %v4111, 0.0
          %4164 = vadd.xlane.f32.xlu0 %v4163
          %v4165 = vpop.xlane.xlu0 %4164
          %v4166 = vsel %vm4120, %v4119, 0.0
          %4167 = vadd.xlane.f32.xlu0 %v4166
          %v4168 = vpop.xlane.xlu0 %4167
          %v4170 = vperm.slane %v1087, 0
          %v4171 = vlaneseq
          %v4172 = vshrl.u32 %v4171, 7
          %4174 = vset.pattern.permute.xlu0 %v4172
          %4175 = vperm.xlu0 %4174, %v4170
          %v4176 = vpop.permute.xlu0 %4175
          %v4178 = vmul.f32 %v4123, %v4176
          %v4179 = vmul.f32 %v4126, %v4176
          %v4180 = vmul.f32 %v4129, %v4176
          %v4181 = vmul.f32 %v4132, %v4176
          %v4182 = vmul.f32 %v4135, %v4176
          %v4183 = vmul.f32 %v4138, %v4176
          %v4184 = vmul.f32 %v4141, %v4176
          %v4185 = vmul.f32 %v4144, %v4176
          %v4186 = vmul.f32 %v4147, %v4176
          %v4187 = vmul.f32 %v4150, %v4176
          %v4188 = vmul.f32 %v4153, %v4176
          %v4189 = vmul.f32 %v4156, %v4176
          %v4190 = vmul.f32 %v4159, %v4176
          %v4191 = vmul.f32 %v4162, %v4176
          %v4192 = vmul.f32 %v4165, %v4176
          %v4193 = vmul.f32 %v4168, %v4176
          %4210 = vset.pattern.permute.xlu0 0
          %4211 = vperm.xlu0 %4210, %v4178
          %v4212 = vpop.permute.xlu0 %4211
          %4213 = vset.pattern.permute.xlu0 0
          %4214 = vperm.xlu0 %4213, %v4179
          %v4215 = vpop.permute.xlu0 %4214
          %4216 = vset.pattern.permute.xlu0 0
          %4217 = vperm.xlu0 %4216, %v4180
          %v4218 = vpop.permute.xlu0 %4217
          %4219 = vset.pattern.permute.xlu0 0
          %4220 = vperm.xlu0 %4219, %v4181
          %v4221 = vpop.permute.xlu0 %4220
          %4222 = vset.pattern.permute.xlu0 0
          %4223 = vperm.xlu0 %4222, %v4182
          %v4224 = vpop.permute.xlu0 %4223
          %4225 = vset.pattern.permute.xlu0 0
          %4226 = vperm.xlu0 %4225, %v4183
          %v4227 = vpop.permute.xlu0 %4226
          %4228 = vset.pattern.permute.xlu0 0
          %4229 = vperm.xlu0 %4228, %v4184
          %v4230 = vpop.permute.xlu0 %4229
          %4231 = vset.pattern.permute.xlu0 0
          %4232 = vperm.xlu0 %4231, %v4185
          %v4233 = vpop.permute.xlu0 %4232
          %4234 = vset.pattern.permute.xlu0 0
          %4235 = vperm.xlu0 %4234, %v4186
          %v4236 = vpop.permute.xlu0 %4235
          %4237 = vset.pattern.permute.xlu0 0
          %4238 = vperm.xlu0 %4237, %v4187
          %v4239 = vpop.permute.xlu0 %4238
          %4240 = vset.pattern.permute.xlu0 0
          %4241 = vperm.xlu0 %4240, %v4188
          %v4242 = vpop.permute.xlu0 %4241
          %4243 = vset.pattern.permute.xlu0 0
          %4244 = vperm.xlu0 %4243, %v4189
          %v4245 = vpop.permute.xlu0 %4244
          %4246 = vset.pattern.permute.xlu0 0
          %4247 = vperm.xlu0 %4246, %v4190
          %v4248 = vpop.permute.xlu0 %4247
          %4249 = vset.pattern.permute.xlu0 0
          %4250 = vperm.xlu0 %4249, %v4191
          %v4251 = vpop.permute.xlu0 %4250
          %4252 = vset.pattern.permute.xlu0 0
          %4253 = vperm.xlu0 %4252, %v4192
          %v4254 = vpop.permute.xlu0 %4253
          %4255 = vset.pattern.permute.xlu0 0
          %4256 = vperm.xlu0 %4255, %v4193
          %v4257 = vpop.permute.xlu0 %4256
          %v4258 = vlaneseq
          %v4259 = vand.u32 %v4258, 127
          %v4260 = vperm.slane %v4212, %v4259
          %v4261 = vperm.slane %v4215, %v4259
          %v4262 = vperm.slane %v4218, %v4259
          %v4263 = vperm.slane %v4221, %v4259
          %v4264 = vperm.slane %v4224, %v4259
          %v4265 = vperm.slane %v4227, %v4259
          %v4266 = vperm.slane %v4230, %v4259
          %v4267 = vperm.slane %v4233, %v4259
          %v4268 = vperm.slane %v4236, %v4259
          %v4269 = vperm.slane %v4239, %v4259
          %v4270 = vperm.slane %v4242, %v4259
          %v4271 = vperm.slane %v4245, %v4259
          %v4272 = vperm.slane %v4248, %v4259
          %v4273 = vperm.slane %v4251, %v4259
          %v4274 = vperm.slane %v4254, %v4259
          %v4275 = vperm.slane %v4257, %v4259
          %vm4276 = vcmask 1041409
          %v4277 = vsel %vm4276, %v4261, %v4260
          %vm4278 = vcmask 1042434
          %v4279 = vsel %vm4278, %v4262, %v4277
          %vm4280 = vcmask 1043459
          %v4281 = vsel %vm4280, %v4263, %v4279
          %vm4282 = vcmask 1044484
          %v4283 = vsel %vm4282, %v4264, %v4281
          %vm4284 = vcmask 1045509
          %v4285 = vsel %vm4284, %v4265, %v4283
          %vm4286 = vcmask 1046534
          %v4287 = vsel %vm4286, %v4266, %v4285
          %vm4288 = vcmask 1047559
          %v4289 = vsel %vm4288, %v4267, %v4287
          %v4290 = vsel %vm4276, %v4269, %v4268
          %v4291 = vsel %vm4278, %v4270, %v4290
          %v4292 = vsel %vm4280, %v4271, %v4291
          %v4293 = vsel %vm4282, %v4272, %v4292
          %v4294 = vsel %vm4284, %v4273, %v4293
          %v4295 = vsel %vm4286, %v4274, %v4294
          %v4296 = vsel %vm4288, %v4275, %v4295
          %4299 = vxpose.xlu0.b32.start [1/16] %v4289, 128
          %4300 = vxpose.xlu0.b32.cont [2/16] %v4296, 128
          %4301 = vxpose.xlu0.b32.cont [3/16] 0.0, 128
          %4302 = vxpose.xlu0.b32.cont [4/16] 0.0, 128
          %4303 = vxpose.xlu0.b32.cont [5/16] 0.0, 128
          %4304 = vxpose.xlu0.b32.cont [6/16] 0.0, 128
          %4305 = vxpose.xlu0.b32.cont [7/16] 0.0, 128
          %4306 = vxpose.xlu0.b32.cont [8/16] 0.0, 128
          %4307 = vxpose.xlu0.b32.cont [9/16] 0.0, 128
          %4308 = vxpose.xlu0.b32.cont [10/16] 0.0, 128
          %4309 = vxpose.xlu0.b32.cont [11/16] 0.0, 128
          %4310 = vxpose.xlu0.b32.cont [12/16] 0.0, 128
          %4311 = vxpose.xlu0.b32.cont [13/16] 0.0, 128
          %4312 = vxpose.xlu0.b32.cont [14/16] 0.0, 128
          %4313 = vxpose.xlu0.b32.cont [15/16] 0.0, 128
          %4314 = vxpose.xlu0.b32.end [16/16] 0.0, 128
          %v4315 = vpop.trf.xlu0
          %v4316 = vpop.trf.xlu0
          %v4317 = vpop.trf.xlu0
          %v4318 = vpop.trf.xlu0
          %v4319 = vpop.trf.xlu0
          %v4320 = vpop.trf.xlu0
          %v4321 = vpop.trf.xlu0
          %v4322 = vpop.trf.xlu0
          %v4323 = vpop.trf.xlu0
          %v4324 = vpop.trf.xlu0
          %v4325 = vpop.trf.xlu0
          %v4326 = vpop.trf.xlu0
          %v4327 = vpop.trf.xlu0
          %v4328 = vpop.trf.xlu0
          %v4329 = vpop.trf.xlu0
          %v4330 = vpop.trf.xlu0
          %v4331 = vperm.slane %v4315, 0
          %v4332 = vlaneseq
          %v4333 = vshrl.u32 %v4332, 7
          %4335 = vset.pattern.permute.xlu0 %v4333
          %4336 = vperm.xlu0 %4335, %v4331
          %v4337 = vpop.permute.xlu0 %4336
          %v4338 = vlaneseq
          %v4339 = vshrl.u32 %v4338, 7
          %v4340 = vadd.s32 %v4339, 8
          %4341 = vset.pattern.permute.xlu0 %v4340
          %4342 = vperm.xlu0 %4341, %v4331
          %v4343 = vpop.permute.xlu0 %4342
          %v4344 = vperm.slane %v4315, 1
          %v4345 = vlaneseq
          %v4346 = vshrl.u32 %v4345, 7
          %4348 = vset.pattern.permute.xlu0 %v4346
          %4349 = vperm.xlu0 %4348, %v4344
          %v4350 = vpop.permute.xlu0 %4349
          %v4351 = vlaneseq
          %v4352 = vshrl.u32 %v4351, 7
          %v4353 = vadd.s32 %v4352, 8
          %4354 = vset.pattern.permute.xlu0 %v4353
          %4355 = vperm.xlu0 %4354, %v4344
          %v4356 = vpop.permute.xlu0 %4355
          %v4357 = vperm.slane %v4315, 2
          %v4358 = vlaneseq
          %v4359 = vshrl.u32 %v4358, 7
          %4361 = vset.pattern.permute.xlu0 %v4359
          %4362 = vperm.xlu0 %4361, %v4357
          %v4363 = vpop.permute.xlu0 %4362
          %v4364 = vlaneseq
          %v4365 = vshrl.u32 %v4364, 7
          %v4366 = vadd.s32 %v4365, 8
          %4367 = vset.pattern.permute.xlu0 %v4366
          %4368 = vperm.xlu0 %4367, %v4357
          %v4369 = vpop.permute.xlu0 %4368
          %v4370 = vperm.slane %v4315, 3
          %v4371 = vlaneseq
          %v4372 = vshrl.u32 %v4371, 7
          %4374 = vset.pattern.permute.xlu0 %v4372
          %4375 = vperm.xlu0 %4374, %v4370
          %v4376 = vpop.permute.xlu0 %4375
          %v4377 = vlaneseq
          %v4378 = vshrl.u32 %v4377, 7
          %v4379 = vadd.s32 %v4378, 8
          %4380 = vset.pattern.permute.xlu0 %v4379
          %4381 = vperm.xlu0 %4380, %v4370
          %v4382 = vpop.permute.xlu0 %4381
          %vm4383 = vcmask 7168
          %4384 = vst.msk [vmem:[#allocation5] sm:$0xff] %vm4383, %v4337
          %4385 = vst.msk [vmem:[#allocation5 + $0x8] sm:$0xff] %vm4383, %v4343
          %4386 = vst.msk [vmem:[#allocation5 + $0x10] sm:$0xff] %vm4383, %v4350
          %4387 = vst.msk [vmem:[#allocation5 + $0x18] sm:$0xff] %vm4383, %v4356
          %4388 = vst.msk [vmem:[#allocation5 + $0x20] sm:$0xff] %vm4383, %v4363
          %4389 = vst.msk [vmem:[#allocation5 + $0x28] sm:$0xff] %vm4383, %v4369
          %4390 = vst.msk [vmem:[#allocation5 + $0x30] sm:$0xff] %vm4383, %v4376
          %4391 = vst.msk [vmem:[#allocation5 + $0x38] sm:$0xff] %vm4383, %v4382
          %4392 = vst.msk [vmem:[#allocation6] sm:$0xff] %vm4383, -1e+30
          %4393 = vst.msk [vmem:[#allocation6 + $0x8] sm:$0xff] %vm4383, -1e+30
          %4394 = vst.msk [vmem:[#allocation6 + $0x10] sm:$0xff] %vm4383, -1e+30
          %4395 = vst.msk [vmem:[#allocation6 + $0x18] sm:$0xff] %vm4383, -1e+30
          %4396 = vst.msk [vmem:[#allocation6 + $0x20] sm:$0xff] %vm4383, -1e+30
          %4397 = vst.msk [vmem:[#allocation6 + $0x28] sm:$0xff] %vm4383, -1e+30
          %4398 = vst.msk [vmem:[#allocation6 + $0x30] sm:$0xff] %vm4383, -1e+30
          %4399 = vst.msk [vmem:[#allocation6 + $0x38] sm:$0xff] %vm4383, -1e+30
          %4400 = vst.msk [vmem:[#allocation7] sm:$0xff] %vm4383, 0.0
          %4401 = vst.msk [vmem:[#allocation7 + $0x8] sm:$0xff] %vm4383, 0.0
          %4402 = vst.msk [vmem:[#allocation7 + $0x10] sm:$0xff] %vm4383, 0.0
          %4403 = vst.msk [vmem:[#allocation7 + $0x18] sm:$0xff] %vm4383, 0.0
          %4404 = vst.msk [vmem:[#allocation7 + $0x20] sm:$0xff] %vm4383, 0.0
          %4405 = vst.msk [vmem:[#allocation7 + $0x28] sm:$0xff] %vm4383, 0.0
          %4406 = vst.msk [vmem:[#allocation7 + $0x30] sm:$0xff] %vm4383, 0.0
          %4407 = vst.msk [vmem:[#allocation7 + $0x38] sm:$0xff] %vm4383, 0.0
          %vm4408 = vcmask 326656
          %4409 = vst.msk [vmem:[#allocation8] sm:$0xff] %vm4408, 0.0
          %4410 = vst.msk [vmem:[#allocation8 + $0x8] sm:$0xff] %vm4408, 0.0
          %4411 = vst.msk [vmem:[#allocation8 + $0x10] sm:$0xff] %vm4408, 0.0
          %4412 = vst.msk [vmem:[#allocation8 + $0x18] sm:$0xff] %vm4408, 0.0
          %4413 = vst.msk [vmem:[#allocation8 + $0x20] sm:$0xff] %vm4408, 0.0
          %4414 = vst.msk [vmem:[#allocation8 + $0x28] sm:$0xff] %vm4408, 0.0
          %4415 = vst.msk [vmem:[#allocation8 + $0x30] sm:$0xff] %vm4408, 0.0
          %4416 = vst.msk [vmem:[#allocation8 + $0x38] sm:$0xff] %vm4408, 0.0
          %vm4417 = vcmask 125952
          %4418 = vst.msk [vmem:[#allocation9] sm:$0xf] %vm4417, 0.0
          %4419 = vst.msk [vmem:[#allocation9 + $0x4] sm:$0xf] %vm4417, 0.0
          %4420 = vst.msk [vmem:[#allocation9 + $0x8] sm:$0xf] %vm4417, 0.0
          %4421 = vst.msk [vmem:[#allocation9 + $0xc] sm:$0xf] %vm4417, 0.0
          %4422 = vst.msk [vmem:[#allocation9 + $0x10] sm:$0xf] %vm4417, 0.0
          %4423 = vst.msk [vmem:[#allocation9 + $0x14] sm:$0xf] %vm4417, 0.0
          %4424 = vst.msk [vmem:[#allocation9 + $0x18] sm:$0xf] %vm4417, 0.0
          %4425 = vst.msk [vmem:[#allocation9 + $0x1c] sm:$0xf] %vm4417, 0.0
          %4426 = vst.msk [vmem:[#allocation9 + $0x20] sm:$0xf] %vm4417, 0.0
          %4427 = vst.msk [vmem:[#allocation9 + $0x24] sm:$0xf] %vm4417, 0.0
          %4428 = vst.msk [vmem:[#allocation9 + $0x28] sm:$0xf] %vm4417, 0.0
          %4429 = vst.msk [vmem:[#allocation9 + $0x2c] sm:$0xf] %vm4417, 0.0
          %4430 = vst.msk [vmem:[#allocation9 + $0x30] sm:$0xf] %vm4417, 0.0
          %4431 = vst.msk [vmem:[#allocation9 + $0x34] sm:$0xf] %vm4417, 0.0
          %4432 = vst.msk [vmem:[#allocation9 + $0x38] sm:$0xf] %vm4417, 0.0
          %4433 = vst.msk [vmem:[#allocation9 + $0x3c] sm:$0xf] %vm4417, 0.0
        $region141: #{structure_net_forward.2} parent=132 // pred_fallthru
          _
        %s4434 = smul.u32 %s35, 8
        %v4435 = vld [vmem:[%s704] sm:$0xf]
        %v4436 = vld [vmem:[%s704 + $0x4] sm:$0xf]
        %v4437 = vld [vmem:[%s704 + $0x8] sm:$0xf]
        %v4438 = vld [vmem:[%s704 + $0xc] sm:$0xf]
        %v4439 = vld [vmem:[%s704 + $0x10] sm:$0xf]
        %v4440 = vld [vmem:[%s704 + $0x14] sm:$0xf]
        %v4441 = vld [vmem:[%s704 + $0x18] sm:$0xf]
        %v4442 = vld [vmem:[%s704 + $0x1c] sm:$0xf]
        %v4443 = vld [vmem:[%s704 + $0x20] sm:$0xf]
        %v4444 = vld [vmem:[%s704 + $0x24] sm:$0xf]
        %v4445 = vld [vmem:[%s704 + $0x28] sm:$0xf]
        %v4446 = vld [vmem:[%s704 + $0x2c] sm:$0xf]
        %v4447 = vld [vmem:[%s704 + $0x30] sm:$0xf]
        %v4448 = vld [vmem:[%s704 + $0x34] sm:$0xf]
        %v4449 = vld [vmem:[%s704 + $0x38] sm:$0xf]
        %v4450 = vld [vmem:[%s704 + $0x3c] sm:$0xf]
        %s4451 = sshra.s32 %s4434, 3
        %s4452 = sand.u32 %s4434, 7
        %s4453 = smul.addr %s4451, 4
        %s4454 = scalar_lea.vmem [#allocation3], %s4453
        %v4455 = vld [vmem:[%s4454] sm:$0xf]
        %v4456 = vld [vmem:[%s4454 + $0x8] sm:$0xf]
        %v4457 = vld [vmem:[%s4454 + $0x10] sm:$0xf]
        %v4458 = vld [vmem:[%s4454 + $0x18] sm:$0xf]
        %s4459 = smul.addr %s4451, 4
        %s4460 = scalar_lea.vmem [#allocation4], %s4459
        %v4461 = vld [vmem:[%s4460] sm:$0xf]
        %v4462 = vld [vmem:[%s4460 + $0x8] sm:$0xf]
        %v4463 = vld [vmem:[%s4460 + $0x10] sm:$0xf]
        %v4464 = vld [vmem:[%s4460 + $0x18] sm:$0xf]
        %v4465 = vld [vmem:[#allocation2] sm:$0xf]
        %v4466 = vld [vmem:[#allocation2 + $0x4] sm:$0xf]
        %v4467 = vld [vmem:[#allocation2 + $0x8] sm:$0xf]
        %v4468 = vld [vmem:[#allocation2 + $0xc] sm:$0xf]
        %v4469 = vld [vmem:[#allocation2 + $0x10] sm:$0xf]
        %v4470 = vld [vmem:[#allocation2 + $0x14] sm:$0xf]
        %v4471 = vld [vmem:[#allocation2 + $0x18] sm:$0xf]
        %v4472 = vld [vmem:[#allocation2 + $0x1c] sm:$0xf]
        %v4473 = vld [vmem:[%s7] sm:$0x3]
        %vm4474 = vcmask 1047556
        %v4475 = vsel %vm4474, 0.0, 0.0
        %v4476 = vsel %vm4474, 0.0, 0.0
        %v4478 = vunpack.c.l.s4 1983009808
        %v4479 = vunpack.c.0.s8 %v4478
        %v4480 = vperm.slane %v4475, %v4479
        %v4482 = vunpack.c.l.s4 1983009808
        %v4483 = vunpack.c.0.s8 %v4482
        %v4484 = vperm.slane %v4476, %v4483
        %v4485 = vrot.slane %v4480, 4
        %v4486 = vsel %vm4474, %v4485, %v4480
        %v4487 = vsel %vm4474, %v4480, %v4485
        %v4489 = vunpack.c.l.s4 1934713408
        %v4490 = vunpack.c.0.s8 %v4489
        %v4491 = vperm.slane %v4486, %v4490
        %v4493 = vunpack.c.l.s4 1934713408
        %v4494 = vunpack.c.0.s8 %v4493
        %v4495 = vperm.slane %v4487, %v4494
        %v4496 = vrot.slane %v4484, 4
        %v4497 = vsel %vm4474, %v4496, %v4484
        %v4498 = vsel %vm4474, %v4484, %v4496
        %v4500 = vunpack.c.l.s4 1934713408
        %v4501 = vunpack.c.0.s8 %v4500
        %v4502 = vperm.slane %v4497, %v4501
        %v4504 = vunpack.c.l.s4 1934713408
        %v4505 = vunpack.c.0.s8 %v4504
        %v4506 = vperm.slane %v4498, %v4505
        %v4507 = vrot.slane %v4491, 4
        %v4508 = vsel %vm4474, 0.0, %v4507
        %v4509 = vrot.slane %v4495, 4
        %v4510 = vsel %vm4474, 0.0, %v4509
        %v4511 = vrot.slane %v4502, 4
        %v4512 = vsel %vm4474, 0.0, %v4511
        %v4513 = vrot.slane %v4506, 4
        %v4514 = vsel %vm4474, 0.0, %v4513
        %4516 = vrot.lane.b32.xlu0 %v4508, 8
        %v4517 = vpop.permute.xlu0 %4516
        %4520 = vrot.lane.b32.xlu0 %v4495, 16
        %v4521 = vpop.permute.xlu0 %4520
        %4524 = vrot.lane.b32.xlu0 %v4510, 24
        %v4525 = vpop.permute.xlu0 %4524
        %4528 = vrot.lane.b32.xlu0 %v4502, 32
        %v4529 = vpop.permute.xlu0 %4528
        %4532 = vrot.lane.b32.xlu0 %v4512, 40
        %v4533 = vpop.permute.xlu0 %4532
        %4536 = vrot.lane.b32.xlu0 %v4506, 48
        %v4537 = vpop.permute.xlu0 %4536
        %4540 = vrot.lane.b32.xlu0 %v4514, 56
        %v4541 = vpop.permute.xlu0 %4540
        %4544 = vrot.lane.b32.xlu0 %v4491, 64
        %v4545 = vpop.permute.xlu0 %4544
        %4547 = vrot.lane.b32.xlu0 %v4508, 72
        %v4548 = vpop.permute.xlu0 %4547
        %4550 = vrot.lane.b32.xlu0 %v4495, 80
        %v4551 = vpop.permute.xlu0 %4550
        %4553 = vrot.lane.b32.xlu0 %v4510, 88
        %v4554 = vpop.permute.xlu0 %4553
        %4556 = vrot.lane.b32.xlu0 %v4502, 96
        %v4557 = vpop.permute.xlu0 %4556
        %4559 = vrot.lane.b32.xlu0 %v4512, 104
        %v4560 = vpop.permute.xlu0 %4559
        %4562 = vrot.lane.b32.xlu0 %v4506, 112
        %v4563 = vpop.permute.xlu0 %4562
        %4565 = vrot.lane.b32.xlu0 %v4514, 120
        %v4566 = vpop.permute.xlu0 %4565
        %vm4568 = vcmask 64512
        %v4569 = vsel %vm4568, %v4491, %v4517
        %vm4570 = vcmask 130048
        %v4571 = vsel %vm4570, %v4569, %v4521
        %vm4572 = vcmask 195584
        %v4573 = vsel %vm4572, %v4571, %v4525
        %vm4574 = vcmask 261120
        %v4575 = vsel %vm4574, %v4573, %v4529
        %vm4576 = vcmask 326656
        %v4577 = vsel %vm4576, %v4575, %v4533
        %vm4578 = vcmask 392192
        %v4579 = vsel %vm4578, %v4577, %v4537
        %vm4580 = vcmask 457728
        %v4581 = vsel %vm4580, %v4579, %v4541
        %vm4582 = vcmask 523264
        %v4583 = vsel %vm4582, %v4581, %v4545
        %vm4584 = vcmask 588800
        %v4585 = vsel %vm4584, %v4583, %v4548
        %vm4586 = vcmask 654336
        %v4587 = vsel %vm4586, %v4585, %v4551
        %vm4588 = vcmask 719872
        %v4589 = vsel %vm4588, %v4587, %v4554
        %vm4590 = vcmask 785408
        %v4591 = vsel %vm4590, %v4589, %v4557
        %vm4592 = vcmask 850944
        %v4593 = vsel %vm4592, %v4591, %v4560
        %vm4594 = vcmask 916480
        %v4595 = vsel %vm4594, %v4593, %v4563
        %vm4596 = vcmask 982016
        %v4597 = vsel %vm4596, %v4595, %v4566
        %v4614 = vunpack.c.l.b16 %v4435
        %v4615 = vunpack.c.l.b16 %v4436
        %v4616 = vunpack.c.l.b16 %v4437
        %v4617 = vunpack.c.l.b16 %v4438
        %v4618 = vunpack.c.l.b16 %v4439
        %v4619 = vunpack.c.l.b16 %v4440
        %v4620 = vunpack.c.l.b16 %v4441
        %v4621 = vunpack.c.l.b16 %v4442
        %v4622 = vunpack.c.l.b16 %v4443
        %v4623 = vunpack.c.l.b16 %v4444
        %v4624 = vunpack.c.l.b16 %v4445
        %v4625 = vunpack.c.l.b16 %v4446
        %v4626 = vunpack.c.l.b16 %v4447
        %v4627 = vunpack.c.l.b16 %v4448
        %v4628 = vunpack.c.l.b16 %v4449
        %v4629 = vunpack.c.l.b16 %v4450
        %v4630 = vpack.c.b16 %v4615, %v4614
        %v4631 = vpack.c.b16 %v4617, %v4616
        %v4632 = vpack.c.b16 %v4619, %v4618
        %v4633 = vpack.c.b16 %v4621, %v4620
        %v4634 = vpack.c.b16 %v4623, %v4622
        %v4635 = vpack.c.b16 %v4625, %v4624
        %v4636 = vpack.c.b16 %v4627, %v4626
        %v4637 = vpack.c.b16 %v4629, %v4628
        %v4639 = vsel %vm4570, %v4473, 0
        %v4642 = vsel %vm4570, %v4630, 0
        %v4645 = vsel %vm4570, %v4631, 0
        %v4648 = vsel %vm4570, %v4632, 0
        %v4651 = vsel %vm4570, %v4633, 0
        %v4654 = vsel %vm4570, %v4634, 0
        %v4657 = vsel %vm4570, %v4635, 0
        %v4660 = vsel %vm4570, %v4636, 0
        %v4663 = vsel %vm4570, %v4637, 0
        %4665 = vmatpush.bf16.xpose.msra.mxu0 %v4663
        %4666 = vmatpush.bf16.xpose.msra.mxu0 %v4660
        %4667 = vmatpush.bf16.xpose.msra.mxu0 %v4657
        %4668 = vmatpush.bf16.xpose.msra.mxu0 %v4654
        %4669 = vmatpush.bf16.xpose.msra.mxu0 %v4651
        %4670 = vmatpush.bf16.xpose.msra.mxu0 %v4648
        %4671 = vmatpush.bf16.xpose.msra.mxu0 %v4645
        %4672 = vmatpush.bf16.xpose.msra.mxu0 %v4642
        %4673 = vmatmul.bf16.gmra.mxu0 %v4639
        %v4674 = vpop.f32.mrf.mxu0
        %v4675 = vadd.f32 %v4597, %v4674
        %v4676 = vpop.f32.mrf.mxu0
        %4677 = vdwg.mxu0
        %4679 = vrot.lane.b32.xlu0 %v4675, 120
        %v4680 = vpop.permute.xlu0 %4679
        %4682 = vrot.lane.b32.xlu0 %v4675, 112
        %v4683 = vpop.permute.xlu0 %4682
        %4685 = vrot.lane.b32.xlu0 %v4675, 104
        %v4686 = vpop.permute.xlu0 %4685
        %4688 = vrot.lane.b32.xlu0 %v4675, 96
        %v4689 = vpop.permute.xlu0 %4688
        %4691 = vrot.lane.b32.xlu0 %v4675, 88
        %v4692 = vpop.permute.xlu0 %4691
        %4694 = vrot.lane.b32.xlu0 %v4675, 80
        %v4695 = vpop.permute.xlu0 %4694
        %4697 = vrot.lane.b32.xlu0 %v4675, 72
        %v4698 = vpop.permute.xlu0 %4697
        %4700 = vrot.lane.b32.xlu0 %v4675, 64
        %v4701 = vpop.permute.xlu0 %4700
        %4703 = vrot.lane.b32.xlu0 %v4675, 56
        %v4704 = vpop.permute.xlu0 %4703
        %4706 = vrot.lane.b32.xlu0 %v4675, 48
        %v4707 = vpop.permute.xlu0 %4706
        %4709 = vrot.lane.b32.xlu0 %v4675, 40
        %v4710 = vpop.permute.xlu0 %4709
        %4712 = vrot.lane.b32.xlu0 %v4675, 32
        %v4713 = vpop.permute.xlu0 %4712
        %4715 = vrot.lane.b32.xlu0 %v4675, 24
        %v4716 = vpop.permute.xlu0 %4715
        %4718 = vrot.lane.b32.xlu0 %v4675, 16
        %v4719 = vpop.permute.xlu0 %4718
        %4721 = vrot.lane.b32.xlu0 %v4675, 8
        %v4722 = vpop.permute.xlu0 %4721
        %v4724 = vrot.slane %v4683, 4
        %v4725 = vsel %vm4474, %v4724, %v4675
        %v4727 = vunpack.c.l.s4 1983009808
        %v4728 = vunpack.c.0.s8 %v4727
        %v4729 = vperm.slane %v4725, %v4728
        %v4730 = vrot.slane %v4686, 4
        %v4731 = vsel %vm4474, %v4730, %v4680
        %v4733 = vunpack.c.l.s4 1983009808
        %v4734 = vunpack.c.0.s8 %v4733
        %v4735 = vperm.slane %v4731, %v4734
        %v4736 = vrot.slane %v4695, 4
        %v4737 = vsel %vm4474, %v4736, %v4689
        %v4739 = vunpack.c.l.s4 1983009808
        %v4740 = vunpack.c.0.s8 %v4739
        %v4741 = vperm.slane %v4737, %v4740
        %v4742 = vrot.slane %v4698, 4
        %v4743 = vsel %vm4474, %v4742, %v4692
        %v4745 = vunpack.c.l.s4 1983009808
        %v4746 = vunpack.c.0.s8 %v4745
        %v4747 = vperm.slane %v4743, %v4746
        %v4748 = vrot.slane %v4735, 4
        %v4749 = vsel %vm4474, %v4748, %v4729
        %v4750 = vrot.slane %v4729, 4
        %v4751 = vsel %vm4474, %v4735, %v4750
        %v4753 = vunpack.c.l.s4 1934713408
        %v4754 = vunpack.c.0.s8 %v4753
        %v4755 = vperm.slane %v4749, %v4754
        %v4757 = vunpack.c.l.s4 1934713408
        %v4758 = vunpack.c.0.s8 %v4757
        %v4759 = vperm.slane %v4751, %v4758
        %v4760 = vrot.slane %v4747, 4
        %v4761 = vsel %vm4474, %v4760, %v4741
        %v4762 = vrot.slane %v4741, 4
        %v4763 = vsel %vm4474, %v4747, %v4762
        %v4765 = vunpack.c.l.s4 1934713408
        %v4766 = vunpack.c.0.s8 %v4765
        %v4767 = vperm.slane %v4761, %v4766
        %v4769 = vunpack.c.l.s4 1934713408
        %v4770 = vunpack.c.0.s8 %v4769
        %v4771 = vperm.slane %v4763, %v4770
        %v4772 = vrot.slane %v4767, 4
        %v4773 = vsel %vm4474, %v4772, %v4755
        %v4774 = vrot.slane %v4755, 4
        %v4775 = vsel %vm4474, %v4767, %v4774
        %v4776 = vrot.slane %v4771, 4
        %v4777 = vsel %vm4474, %v4776, %v4759
        %v4778 = vrot.slane %v4759, 4
        %v4779 = vsel %vm4474, %v4771, %v4778
        %v4780 = vrot.slane %v4707, 4
        %v4781 = vsel %vm4474, %v4780, %v4701
        %v4783 = vunpack.c.l.s4 1983009808
        %v4784 = vunpack.c.0.s8 %v4783
        %v4785 = vperm.slane %v4781, %v4784
        %v4786 = vrot.slane %v4710, 4
        %v4787 = vsel %vm4474, %v4786, %v4704
        %v4789 = vunpack.c.l.s4 1983009808
        %v4790 = vunpack.c.0.s8 %v4789
        %v4791 = vperm.slane %v4787, %v4790
        %v4792 = vrot.slane %v4719, 4
        %v4793 = vsel %vm4474, %v4792, %v4713
        %v4795 = vunpack.c.l.s4 1983009808
        %v4796 = vunpack.c.0.s8 %v4795
        %v4797 = vperm.slane %v4793, %v4796
        %v4798 = vrot.slane %v4722, 4
        %v4799 = vsel %vm4474, %v4798, %v4716
        %v4801 = vunpack.c.l.s4 1983009808
        %v4802 = vunpack.c.0.s8 %v4801
        %v4803 = vperm.slane %v4799, %v4802
        %v4804 = vrot.slane %v4791, 4
        %v4805 = vsel %vm4474, %v4804, %v4785
        %v4806 = vrot.slane %v4785, 4
        %v4807 = vsel %vm4474, %v4791, %v4806
        %v4809 = vunpack.c.l.s4 1934713408
        %v4810 = vunpack.c.0.s8 %v4809
        %v4811 = vperm.slane %v4805, %v4810
        %v4813 = vunpack.c.l.s4 1934713408
        %v4814 = vunpack.c.0.s8 %v4813
        %v4815 = vperm.slane %v4807, %v4814
        %v4816 = vrot.slane %v4803, 4
        %v4817 = vsel %vm4474, %v4816, %v4797
        %v4818 = vrot.slane %v4797, 4
        %v4819 = vsel %vm4474, %v4803, %v4818
        %v4821 = vunpack.c.l.s4 1934713408
        %v4822 = vunpack.c.0.s8 %v4821
        %v4823 = vperm.slane %v4817, %v4822
        %v4825 = vunpack.c.l.s4 1934713408
        %v4826 = vunpack.c.0.s8 %v4825
        %v4827 = vperm.slane %v4819, %v4826
        %v4828 = vrot.slane %v4823, 4
        %v4829 = vsel %vm4474, %v4828, %v4811
        %v4830 = vrot.slane %v4811, 4
        %v4831 = vsel %vm4474, %v4823, %v4830
        %v4832 = vrot.slane %v4827, 4
        %v4833 = vsel %vm4474, %v4832, %v4815
        %v4834 = vrot.slane %v4815, 4
        %v4835 = vsel %vm4474, %v4827, %v4834
        %v4836 = vmul.f32 %v4773, 0.57735026
        %v4837 = vmul.f32 %v4829, 0.57735026
        %v4838 = vmul.f32 %v4775, 0.57735026
        %v4839 = vmul.f32 %v4831, 0.57735026
        %v4840 = vmul.f32 %v4777, 0.57735026
        %v4841 = vmul.f32 %v4833, 0.57735026
        %v4842 = vmul.f32 %v4779, 0.57735026
        %v4843 = vmul.f32 %v4835, 0.57735026
        %v4846 = vunpack.c.l.b16 %v4465
        %v4847 = vunpack.c.l.b16 %v4466
        %v4848 = vpack.c.b16 %v4847, %v4846
        %vm4849 = vcmask 228352
        %v4851 = vsel %vm4849, %v4848, 0
        %v4854 = vsel %vm4849, %v4455, 0
        %4856 = vmatpush.bf16.xpose.msra.mxu0 0
        %4857 = vmatpush.bf16.xpose.msra.mxu0 0
        %4858 = vmatpush.bf16.xpose.msra.mxu0 0
        %4859 = vmatpush.bf16.xpose.msra.mxu0 0
        %4860 = vmatpush.bf16.xpose.msra.mxu0 0
        %4861 = vmatpush.bf16.xpose.msra.mxu0 0
        %4862 = vmatpush.bf16.xpose.msra.mxu0 0
        %4863 = vmatpush.bf16.xpose.msra.mxu0 %v4854
        %4864 = vmatmul.bf16.gmra.mxu0 %v4851
        %v4865 = vpop.f32.mrf.mxu0
        %v4866 = vadd.f32 %v4836, %v4865
        %v4867 = vpop.f32.mrf.mxu0
        %v4868 = vadd.f32 %v4837, %v4867
        %4869 = vdwg.mxu0
        %v4872 = vunpack.c.l.b16 %v4467
        %v4873 = vunpack.c.l.b16 %v4468
        %v4874 = vpack.c.b16 %v4873, %v4872
        %v4876 = vsel %vm4849, %v4874, 0
        %v4879 = vsel %vm4849, %v4456, 0
        %4881 = vmatpush.bf16.xpose.msra.mxu0 0
        %4882 = vmatpush.bf16.xpose.msra.mxu0 0
        %4883 = vmatpush.bf16.xpose.msra.mxu0 0
        %4884 = vmatpush.bf16.xpose.msra.mxu0 0
        %4885 = vmatpush.bf16.xpose.msra.mxu0 0
        %4886 = vmatpush.bf16.xpose.msra.mxu0 0
        %4887 = vmatpush.bf16.xpose.msra.mxu0 0
        %4888 = vmatpush.bf16.xpose.msra.mxu0 %v4879
        %4889 = vmatmul.bf16.gmra.mxu0 %v4876
        %v4890 = vpop.f32.mrf.mxu0
        %v4891 = vadd.f32 %v4838, %v4890
        %v4892 = vpop.f32.mrf.mxu0
        %v4893 = vadd.f32 %v4839, %v4892
        %4894 = vdwg.mxu0
        %v4897 = vunpack.c.l.b16 %v4469
        %v4898 = vunpack.c.l.b16 %v4470
        %v4899 = vpack.c.b16 %v4898, %v4897
        %v4901 = vsel %vm4849, %v4899, 0
        %v4904 = vsel %vm4849, %v4457, 0
        %4906 = vmatpush.bf16.xpose.msra.mxu0 0
        %4907 = vmatpush.bf16.xpose.msra.mxu0 0
        %4908 = vmatpush.bf16.xpose.msra.mxu0 0
        %4909 = vmatpush.bf16.xpose.msra.mxu0 0
        %4910 = vmatpush.bf16.xpose.msra.mxu0 0
        %4911 = vmatpush.bf16.xpose.msra.mxu0 0
        %4912 = vmatpush.bf16.xpose.msra.mxu0 0
        %4913 = vmatpush.bf16.xpose.msra.mxu0 %v4904
        %4914 = vmatmul.bf16.gmra.mxu0 %v4901
        %v4915 = vpop.f32.mrf.mxu0
        %v4916 = vadd.f32 %v4840, %v4915
        %v4917 = vpop.f32.mrf.mxu0
        %v4918 = vadd.f32 %v4841, %v4917
        %4919 = vdwg.mxu0
        %v4922 = vunpack.c.l.b16 %v4471
        %v4923 = vunpack.c.l.b16 %v4472
        %v4924 = vpack.c.b16 %v4923, %v4922
        %v4926 = vsel %vm4849, %v4924, 0
        %v4929 = vsel %vm4849, %v4458, 0
        %4931 = vmatpush.bf16.xpose.msra.mxu0 0
        %4932 = vmatpush.bf16.xpose.msra.mxu0 0
        %4933 = vmatpush.bf16.xpose.msra.mxu0 0
        %4934 = vmatpush.bf16.xpose.msra.mxu0 0
        %4935 = vmatpush.bf16.xpose.msra.mxu0 0
        %4936 = vmatpush.bf16.xpose.msra.mxu0 0
        %4937 = vmatpush.bf16.xpose.msra.mxu0 0
        %4938 = vmatpush.bf16.xpose.msra.mxu0 %v4929
        %4939 = vmatmul.bf16.gmra.mxu0 %v4926
        %v4940 = vpop.f32.mrf.mxu0
        %v4941 = vadd.f32 %v4842, %v4940
        %v4942 = vpop.f32.mrf.mxu0
        %v4943 = vadd.f32 %v4843, %v4942
        %4944 = vdwg.mxu0
        %s4945 = scalar_lea.vmem [#allocation5], %s4434
        %v4946 = vld [vmem:[%s4945] sm:$0xff]
        %v4947 = vld [vmem:[%s4945 + $0x10] sm:$0xff]
        %v4948 = vld [vmem:[%s4945 + $0x20] sm:$0xff]
        %v4949 = vld [vmem:[%s4945 + $0x30] sm:$0xff]
        %4950 = vxpose.xlu0.b32.start [1/16] %v4946, 128
        %4951 = vxpose.xlu0.b32.cont [2/16] 0.0, 128
        %4952 = vxpose.xlu0.b32.cont [3/16] 0.0, 128
        %4953 = vxpose.xlu0.b32.cont [4/16] 0.0, 128
        %4954 = vxpose.xlu0.b32.cont [5/16] 0.0, 128
        %4955 = vxpose.xlu0.b32.cont [6/16] 0.0, 128
        %4956 = vxpose.xlu0.b32.cont [7/16] 0.0, 128
        %4957 = vxpose.xlu0.b32.cont [8/16] 0.0, 128
        %4958 = vxpose.xlu0.b32.cont [9/16] 0.0, 128
        %4959 = vxpose.xlu0.b32.cont [10/16] 0.0, 128
        %4960 = vxpose.xlu0.b32.cont [11/16] 0.0, 128
        %4961 = vxpose.xlu0.b32.cont [12/16] 0.0, 128
        %4962 = vxpose.xlu0.b32.cont [13/16] 0.0, 128
        %4963 = vxpose.xlu0.b32.cont [14/16] 0.0, 128
        %4964 = vxpose.xlu0.b32.cont [15/16] 0.0, 128
        %4965 = vxpose.xlu0.b32.end [16/16] 0.0, 128
        %v4966 = vpop.trf.xlu0
        %v4967 = vpop.trf.xlu0
        %v4968 = vpop.trf.xlu0
        %v4969 = vpop.trf.xlu0
        %v4970 = vpop.trf.xlu0
        %v4971 = vpop.trf.xlu0
        %v4972 = vpop.trf.xlu0
        %v4973 = vpop.trf.xlu0
        %v4974 = vpop.trf.xlu0
        %v4975 = vpop.trf.xlu0
        %v4976 = vpop.trf.xlu0
        %v4977 = vpop.trf.xlu0
        %v4978 = vpop.trf.xlu0
        %v4979 = vpop.trf.xlu0
        %v4980 = vpop.trf.xlu0
        %v4981 = vpop.trf.xlu0
        %4982 = vxpose.xlu0.b32.start [1/16] %v4947, 128
        %4983 = vxpose.xlu0.b32.cont [2/16] 0.0, 128
        %4984 = vxpose.xlu0.b32.cont [3/16] 0.0, 128
        %4985 = vxpose.xlu0.b32.cont [4/16] 0.0, 128
        %4986 = vxpose.xlu0.b32.cont [5/16] 0.0, 128
        %4987 = vxpose.xlu0.b32.cont [6/16] 0.0, 128
        %4988 = vxpose.xlu0.b32.cont [7/16] 0.0, 128
        %4989 = vxpose.xlu0.b32.cont [8/16] 0.0, 128
        %4990 = vxpose.xlu0.b32.cont [9/16] 0.0, 128
        %4991 = vxpose.xlu0.b32.cont [10/16] 0.0, 128
        %4992 = vxpose.xlu0.b32.cont [11/16] 0.0, 128
        %4993 = vxpose.xlu0.b32.cont [12/16] 0.0, 128
        %4994 = vxpose.xlu0.b32.cont [13/16] 0.0, 128
        %4995 = vxpose.xlu0.b32.cont [14/16] 0.0, 128
        %4996 = vxpose.xlu0.b32.cont [15/16] 0.0, 128
        %4997 = vxpose.xlu0.b32.end [16/16] 0.0, 128
        %v4998 = vpop.trf.xlu0
        %v4999 = vpop.trf.xlu0
        %v5000 = vpop.trf.xlu0
        %v5001 = vpop.trf.xlu0
        %v5002 = vpop.trf.xlu0
        %v5003 = vpop.trf.xlu0
        %v5004 = vpop.trf.xlu0
        %v5005 = vpop.trf.xlu0
        %v5006 = vpop.trf.xlu0
        %v5007 = vpop.trf.xlu0
        %v5008 = vpop.trf.xlu0
        %v5009 = vpop.trf.xlu0
        %v5010 = vpop.trf.xlu0
        %v5011 = vpop.trf.xlu0
        %v5012 = vpop.trf.xlu0
        %v5013 = vpop.trf.xlu0
        %5014 = vxpose.xlu0.b32.start [1/16] %v4948, 128
        %5015 = vxpose.xlu0.b32.cont [2/16] 0.0, 128
        %5016 = vxpose.xlu0.b32.cont [3/16] 0.0, 128
        %5017 = vxpose.xlu0.b32.cont [4/16] 0.0, 128
        %5018 = vxpose.xlu0.b32.cont [5/16] 0.0, 128
        %5019 = vxpose.xlu0.b32.cont [6/16] 0.0, 128
        %5020 = vxpose.xlu0.b32.cont [7/16] 0.0, 128
        %5021 = vxpose.xlu0.b32.cont [8/16] 0.0, 128
        %5022 = vxpose.xlu0.b32.cont [9/16] 0.0, 128
        %5023 = vxpose.xlu0.b32.cont [10/16] 0.0, 128
        %5024 = vxpose.xlu0.b32.cont [11/16] 0.0, 128
        %5025 = vxpose.xlu0.b32.cont [12/16] 0.0, 128
        %5026 = vxpose.xlu0.b32.cont [13/16] 0.0, 128
        %5027 = vxpose.xlu0.b32.cont [14/16] 0.0, 128
        %5028 = vxpose.xlu0.b32.cont [15/16] 0.0, 128
        %5029 = vxpose.xlu0.b32.end [16/16] 0.0, 128
        %v5030 = vpop.trf.xlu0
        %v5031 = vpop.trf.xlu0
        %v5032 = vpop.trf.xlu0
        %v5033 = vpop.trf.xlu0
        %v5034 = vpop.trf.xlu0
        %v5035 = vpop.trf.xlu0
        %v5036 = vpop.trf.xlu0
        %v5037 = vpop.trf.xlu0
        %v5038 = vpop.trf.xlu0
        %v5039 = vpop.trf.xlu0
        %v5040 = vpop.trf.xlu0
        %v5041 = vpop.trf.xlu0
        %v5042 = vpop.trf.xlu0
        %v5043 = vpop.trf.xlu0
        %v5044 = vpop.trf.xlu0
        %v5045 = vpop.trf.xlu0
        %5046 = vxpose.xlu0.b32.start [1/16] %v4949, 128
        %5047 = vxpose.xlu0.b32.cont [2/16] 0.0, 128
        %5048 = vxpose.xlu0.b32.cont [3/16] 0.0, 128
        %5049 = vxpose.xlu0.b32.cont [4/16] 0.0, 128
        %5050 = vxpose.xlu0.b32.cont [5/16] 0.0, 128
        %5051 = vxpose.xlu0.b32.cont [6/16] 0.0, 128
        %5052 = vxpose.xlu0.b32.cont [7/16] 0.0, 128
        %5053 = vxpose.xlu0.b32.cont [8/16] 0.0, 128
        %5054 = vxpose.xlu0.b32.cont [9/16] 0.0, 128
        %5055 = vxpose.xlu0.b32.cont [10/16] 0.0, 128
        %5056 = vxpose.xlu0.b32.cont [11/16] 0.0, 128
        %5057 = vxpose.xlu0.b32.cont [12/16] 0.0, 128
        %5058 = vxpose.xlu0.b32.cont [13/16] 0.0, 128
        %5059 = vxpose.xlu0.b32.cont [14/16] 0.0, 128
        %5060 = vxpose.xlu0.b32.cont [15/16] 0.0, 128
        %5061 = vxpose.xlu0.b32.end [16/16] 0.0, 128
        %v5062 = vpop.trf.xlu0
        %v5063 = vpop.trf.xlu0
        %v5064 = vpop.trf.xlu0
        %v5065 = vpop.trf.xlu0
        %v5066 = vpop.trf.xlu0
        %v5067 = vpop.trf.xlu0
        %v5068 = vpop.trf.xlu0
        %v5069 = vpop.trf.xlu0
        %v5070 = vpop.trf.xlu0
        %v5071 = vpop.trf.xlu0
        %v5072 = vpop.trf.xlu0
        %v5073 = vpop.trf.xlu0
        %v5074 = vpop.trf.xlu0
        %v5075 = vpop.trf.xlu0
        %v5076 = vpop.trf.xlu0
        %v5077 = vpop.trf.xlu0
        %v5078 = vperm.slane %v4966, 0
        %v5079 = vperm.slane %v4998, 0
        %v5080 = vperm.slane %v5030, 0
        %v5081 = vperm.slane %v5062, 0
        %v5082 = vadd.f32 %v4866, %v5078
        %v5083 = vadd.f32 %v4868, %v5078
        %v5084 = vadd.f32 %v4891, %v5079
        %v5085 = vadd.f32 %v4893, %v5079
        %v5086 = vadd.f32 %v4916, %v5080
        %v5087 = vadd.f32 %v4918, %v5080
        %v5088 = vadd.f32 %v4941, %v5081
        %v5089 = vadd.f32 %v4943, %v5081
        %v5090 = vld [vmem:[%s796] sm:$0xff]
        %v5091 = vld [vmem:[%s796 + $0x8] sm:$0xff]
        %s5092 = scalar_lea.vmem %s796, %s4434
        %v5093 = vld [vmem:[%s5092] sm:$0xff]
        %5094 = vxpose.xlu0.b32.start [1/16] %v5093, 128
        %5095 = vxpose.xlu0.b32.cont [2/16] 0.0, 128
        %5096 = vxpose.xlu0.b32.cont [3/16] 0.0, 128
        %5097 = vxpose.xlu0.b32.cont [4/16] 0.0, 128
        %5098 = vxpose.xlu0.b32.cont [5/16] 0.0, 128
        %5099 = vxpose.xlu0.b32.cont [6/16] 0.0, 128
        %5100 = vxpose.xlu0.b32.cont [7/16] 0.0, 128
        %5101 = vxpose.xlu0.b32.cont [8/16] 0.0, 128
        %5102 = vxpose.xlu0.b32.cont [9/16] 0.0, 128
        %5103 = vxpose.xlu0.b32.cont [10/16] 0.0, 128
        %5104 = vxpose.xlu0.b32.cont [11/16] 0.0, 128
        %5105 = vxpose.xlu0.b32.cont [12/16] 0.0, 128
        %5106 = vxpose.xlu0.b32.cont [13/16] 0.0, 128
        %5107 = vxpose.xlu0.b32.cont [14/16] 0.0, 128
        %5108 = vxpose.xlu0.b32.cont [15/16] 0.0, 128
        %5109 = vxpose.xlu0.b32.end [16/16] 0.0, 128
        %v5110 = vpop.trf.xlu0
        %v5111 = vpop.trf.xlu0
        %v5112 = vpop.trf.xlu0
        %v5113 = vpop.trf.xlu0
        %v5114 = vpop.trf.xlu0
        %v5115 = vpop.trf.xlu0
        %v5116 = vpop.trf.xlu0
        %v5117 = vpop.trf.xlu0
        %v5118 = vpop.trf.xlu0
        %v5119 = vpop.trf.xlu0
        %v5120 = vpop.trf.xlu0
        %v5121 = vpop.trf.xlu0
        %v5122 = vpop.trf.xlu0
        %v5123 = vpop.trf.xlu0
        %v5124 = vpop.trf.xlu0
        %v5125 = vpop.trf.xlu0
        %5127 = vset.pattern.permute.xlu0 0
        %5128 = vperm.xlu0 %5127, %v5090
        %v5129 = vpop.permute.xlu0 %5128
        %5132 = vset.pattern.permute.xlu0 0
        %5133 = vperm.xlu0 %5132, %v5091
        %v5134 = vpop.permute.xlu0 %5133
        %v5136 = vperm.slane %v5110, 0
        %v5137 = vmul.f32 %v5129, %v5136
        %v5138 = vmul.f32 %v5134, %v5136
        %v5139 = vsub.f32 %v5137, 1.0
        %v5140 = vsub.f32 %v5138, 1.0
        %v5141 = vmul.f32 %v5139, 100000.0
        %v5142 = vmul.f32 %v5140, 100000.0
        %v5143 = vadd.f32 %v5082, %v5141
        %v5144 = vadd.f32 %v5083, %v5142
        %v5145 = vadd.f32 %v5084, %v5141
        %v5146 = vadd.f32 %v5085, %v5142
        %v5147 = vadd.f32 %v5086, %v5141
        %v5148 = vadd.f32 %v5087, %v5142
        %v5149 = vadd.f32 %v5088, %v5141
        %v5150 = vadd.f32 %v5089, %v5142
        %v5151 = vld [vmem:[#allocation6] sm:$0xff]
        %v5152 = vld [vmem:[#allocation6 + $0x8] sm:$0xff]
        %v5153 = vld [vmem:[#allocation6 + $0x10] sm:$0xff]
        %v5154 = vld [vmem:[#allocation6 + $0x18] sm:$0xff]
        %v5155 = vld [vmem:[#allocation6 + $0x20] sm:$0xff]
        %v5156 = vld [vmem:[#allocation6 + $0x28] sm:$0xff]
        %v5157 = vld [vmem:[#allocation6 + $0x30] sm:$0xff]
        %v5158 = vld [vmem:[#allocation6 + $0x38] sm:$0xff]
        %v5159 = vsel %vm4568, %v5143, -inf
        %5160 = vmax.xlane.f32.xlu0 %v5159
        %v5161 = vpop.xlane.xlu0 %5160
        %v5162 = vsel %vm4568, %v5144, -inf
        %5163 = vmax.xlane.f32.xlu0 %v5162
        %v5164 = vpop.xlane.xlu0 %5163
        %v5165 = vsel %vm4568, %v5145, -inf
        %5166 = vmax.xlane.f32.xlu0 %v5165
        %v5167 = vpop.xlane.xlu0 %5166
        %v5168 = vsel %vm4568, %v5146, -inf
        %5169 = vmax.xlane.f32.xlu0 %v5168
        %v5170 = vpop.xlane.xlu0 %5169
        %v5171 = vsel %vm4568, %v5147, -inf
        %5172 = vmax.xlane.f32.xlu0 %v5171
        %v5173 = vpop.xlane.xlu0 %5172
        %v5174 = vsel %vm4568, %v5148, -inf
        %5175 = vmax.xlane.f32.xlu0 %v5174
        %v5176 = vpop.xlane.xlu0 %5175
        %v5177 = vsel %vm4568, %v5149, -inf
        %5178 = vmax.xlane.f32.xlu0 %v5177
        %v5179 = vpop.xlane.xlu0 %5178
        %v5180 = vsel %vm4568, %v5150, -inf
        %5181 = vmax.xlane.f32.xlu0 %v5180
        %v5182 = vpop.xlane.xlu0 %5181
        %v5183 = vmax.f32 %v5151, %v5161
        %v5184 = vmax.f32 %v5152, %v5164
        %v5185 = vmax.f32 %v5153, %v5167
        %v5186 = vmax.f32 %v5154, %v5170
        %v5187 = vmax.f32 %v5155, %v5173
        %v5188 = vmax.f32 %v5156, %v5176
        %v5189 = vmax.f32 %v5157, %v5179
        %v5190 = vmax.f32 %v5158, %v5182
        %v5191 = vsub.f32 %v5151, %v5183
        %v5192 = vsub.f32 %v5152, %v5184
        %v5193 = vsub.f32 %v5153, %v5185
        %v5194 = vsub.f32 %v5154, %v5186
        %v5195 = vsub.f32 %v5155, %v5187
        %v5196 = vsub.f32 %v5156, %v5188
        %v5197 = vsub.f32 %v5157, %v5189
        %v5198 = vsub.f32 %v5158, %v5190
        %v5199 = vmul.f32 %v5191, 1.442695
        %v5200 = vpow.pop %v5199
        %v5201 = vmul.f32 %v5192, 1.442695
        %v5202 = vpow.pop %v5201
        %v5203 = vmul.f32 %v5193, 1.442695
        %v5204 = vpow.pop %v5203
        %v5205 = vmul.f32 %v5194, 1.442695
        %v5206 = vpow.pop %v5205
        %v5207 = vmul.f32 %v5195, 1.442695
        %v5208 = vpow.pop %v5207
        %v5209 = vmul.f32 %v5196, 1.442695
        %v5210 = vpow.pop %v5209
        %v5211 = vmul.f32 %v5197, 1.442695
        %v5212 = vpow.pop %v5211
        %v5213 = vmul.f32 %v5198, 1.442695
        %v5214 = vpow.pop %v5213
        %5216 = vset.pattern.permute.xlu0 0
        %5217 = vperm.xlu0 %5216, %v5183
        %v5218 = vpop.permute.xlu0 %5217
        %5221 = vset.pattern.permute.xlu0 0
        %5222 = vperm.xlu0 %5221, %v5184
        %v5223 = vpop.permute.xlu0 %5222
        %5226 = vset.pattern.permute.xlu0 0
        %5227 = vperm.xlu0 %5226, %v5185
        %v5228 = vpop.permute.xlu0 %5227
        %5231 = vset.pattern.permute.xlu0 0
        %5232 = vperm.xlu0 %5231, %v5186
        %v5233 = vpop.permute.xlu0 %5232
        %5236 = vset.pattern.permute.xlu0 0
        %5237 = vperm.xlu0 %5236, %v5187
        %v5238 = vpop.permute.xlu0 %5237
        %5241 = vset.pattern.permute.xlu0 0
        %5242 = vperm.xlu0 %5241, %v5188
        %v5243 = vpop.permute.xlu0 %5242
        %5246 = vset.pattern.permute.xlu0 0
        %5247 = vperm.xlu0 %5246, %v5189
        %v5248 = vpop.permute.xlu0 %5247
        %5251 = vset.pattern.permute.xlu0 0
        %5252 = vperm.xlu0 %5251, %v5190
        %v5253 = vpop.permute.xlu0 %5252
        %v5255 = vsub.f32 %v5143, %v5218
        %v5256 = vsub.f32 %v5144, %v5223
        %v5257 = vsub.f32 %v5145, %v5228
        %v5258 = vsub.f32 %v5146, %v5233
        %v5259 = vsub.f32 %v5147, %v5238
        %v5260 = vsub.f32 %v5148, %v5243
        %v5261 = vsub.f32 %v5149, %v5248
        %v5262 = vsub.f32 %v5150, %v5253
        %v5263 = vmul.f32 %v5255, 1.442695
        %v5264 = vpow.pop %v5263
        %v5265 = vmul.f32 %v5256, 1.442695
        %v5266 = vpow.pop %v5265
        %v5267 = vmul.f32 %v5257, 1.442695
        %v5268 = vpow.pop %v5267
        %v5269 = vmul.f32 %v5258, 1.442695
        %v5270 = vpow.pop %v5269
        %v5271 = vmul.f32 %v5259, 1.442695
        %v5272 = vpow.pop %v5271
        %v5273 = vmul.f32 %v5260, 1.442695
        %v5274 = vpow.pop %v5273
        %v5275 = vmul.f32 %v5261, 1.442695
        %v5276 = vpow.pop %v5275
        %v5277 = vmul.f32 %v5262, 1.442695
        %v5278 = vpow.pop %v5277
        %v5279 = vld [vmem:[#allocation7] sm:$0xff]
        %v5280 = vld [vmem:[#allocation7 + $0x8] sm:$0xff]
        %v5281 = vld [vmem:[#allocation7 + $0x10] sm:$0xff]
        %v5282 = vld [vmem:[#allocation7 + $0x18] sm:$0xff]
        %v5283 = vld [vmem:[#allocation7 + $0x20] sm:$0xff]
        %v5284 = vld [vmem:[#allocation7 + $0x28] sm:$0xff]
        %v5285 = vld [vmem:[#allocation7 + $0x30] sm:$0xff]
        %v5286 = vld [vmem:[#allocation7 + $0x38] sm:$0xff]
        %v5287 = vmul.f32 %v5200, %v5279
        %v5288 = vmul.f32 %v5202, %v5280
        %v5289 = vmul.f32 %v5204, %v5281
        %v5290 = vmul.f32 %v5206, %v5282
        %v5291 = vmul.f32 %v5208, %v5283
        %v5292 = vmul.f32 %v5210, %v5284
        %v5293 = vmul.f32 %v5212, %v5285
        %v5294 = vmul.f32 %v5214, %v5286
        %v5295 = vsel %vm4568, %v5264, 0.0
        %5296 = vadd.xlane.f32.xlu0 %v5295
        %v5297 = vpop.xlane.xlu0 %5296
        %v5298 = vsel %vm4568, %v5266, 0.0
        %5299 = vadd.xlane.f32.xlu0 %v5298
        %v5300 = vpop.xlane.xlu0 %5299
        %v5301 = vsel %vm4568, %v5268, 0.0
        %5302 = vadd.xlane.f32.xlu0 %v5301
        %v5303 = vpop.xlane.xlu0 %5302
        %v5304 = vsel %vm4568, %v5270, 0.0
        %5305 = vadd.xlane.f32.xlu0 %v5304
        %v5306 = vpop.xlane.xlu0 %5305
        %v5307 = vsel %vm4568, %v5272, 0.0
        %5308 = vadd.xlane.f32.xlu0 %v5307
        %v5309 = vpop.xlane.xlu0 %5308
        %v5310 = vsel %vm4568, %v5274, 0.0
        %5311 = vadd.xlane.f32.xlu0 %v5310
        %v5312 = vpop.xlane.xlu0 %5311
        %v5313 = vsel %vm4568, %v5276, 0.0
        %5314 = vadd.xlane.f32.xlu0 %v5313
        %v5315 = vpop.xlane.xlu0 %5314
        %v5316 = vsel %vm4568, %v5278, 0.0
        %5317 = vadd.xlane.f32.xlu0 %v5316
        %v5318 = vpop.xlane.xlu0 %5317
        %v5319 = vadd.f32 %v5287, %v5297
        %v5320 = vadd.f32 %v5288, %v5300
        %v5321 = vadd.f32 %v5289, %v5303
        %v5322 = vadd.f32 %v5290, %v5306
        %v5323 = vadd.f32 %v5291, %v5309
        %v5324 = vadd.f32 %v5292, %v5312
        %v5325 = vadd.f32 %v5293, %v5315
        %v5326 = vadd.f32 %v5294, %v5318
        %vm5327 = vcmask 7168
        %5328 = vst.msk [vmem:[#allocation7] sm:$0xff] %vm5327, %v5319
        %5329 = vst.msk [vmem:[#allocation7 + $0x8] sm:$0xff] %vm5327, %v5320
        %5330 = vst.msk [vmem:[#allocation7 + $0x10] sm:$0xff] %vm5327, %v5321
        %5331 = vst.msk [vmem:[#allocation7 + $0x18] sm:$0xff] %vm5327, %v5322
        %5332 = vst.msk [vmem:[#allocation7 + $0x20] sm:$0xff] %vm5327, %v5323
        %5333 = vst.msk [vmem:[#allocation7 + $0x28] sm:$0xff] %vm5327, %v5324
        %5334 = vst.msk [vmem:[#allocation7 + $0x30] sm:$0xff] %vm5327, %v5325
        %5335 = vst.msk [vmem:[#allocation7 + $0x38] sm:$0xff] %vm5327, %v5326
        %v5336 = vpack.c.bf16 %v5264, %v5264
        %v5337 = vpack.c.bf16 %v5266, %v5266
        %v5338 = vpack.c.bf16 %v5268, %v5268
        %v5339 = vpack.c.bf16 %v5270, %v5270
        %v5340 = vpack.c.bf16 %v5272, %v5272
        %v5341 = vpack.c.bf16 %v5274, %v5274
        %v5342 = vpack.c.bf16 %v5276, %v5276
        %v5343 = vpack.c.bf16 %v5278, %v5278
        %v5344 = vld [vmem:[#allocation8] sm:$0xff]
        %v5345 = vld [vmem:[#allocation8 + $0x8] sm:$0xff]
        %v5346 = vld [vmem:[#allocation8 + $0x10] sm:$0xff]
        %v5347 = vld [vmem:[#allocation8 + $0x18] sm:$0xff]
        %v5348 = vld [vmem:[#allocation8 + $0x20] sm:$0xff]
        %v5349 = vld [vmem:[#allocation8 + $0x28] sm:$0xff]
        %v5350 = vld [vmem:[#allocation8 + $0x30] sm:$0xff]
        %v5351 = vld [vmem:[#allocation8 + $0x38] sm:$0xff]
        %5353 = vset.pattern.permute.xlu0 0
        %5354 = vperm.xlu0 %5353, %v5200
        %v5355 = vpop.permute.xlu0 %5354
        %5358 = vset.pattern.permute.xlu0 0
        %5359 = vperm.xlu0 %5358, %v5202
        %v5360 = vpop.permute.xlu0 %5359
        %5363 = vset.pattern.permute.xlu0 0
        %5364 = vperm.xlu0 %5363, %v5204
        %v5365 = vpop.permute.xlu0 %5364
        %5368 = vset.pattern.permute.xlu0 0
        %5369 = vperm.xlu0 %5368, %v5206
        %v5370 = vpop.permute.xlu0 %5369
        %5373 = vset.pattern.permute.xlu0 0
        %5374 = vperm.xlu0 %5373, %v5208
        %v5375 = vpop.permute.xlu0 %5374
        %5378 = vset.pattern.permute.xlu0 0
        %5379 = vperm.xlu0 %5378, %v5210
        %v5380 = vpop.permute.xlu0 %5379
        %5383 = vset.pattern.permute.xlu0 0
        %5384 = vperm.xlu0 %5383, %v5212
        %v5385 = vpop.permute.xlu0 %5384
        %5388 = vset.pattern.permute.xlu0 0
        %5389 = vperm.xlu0 %5388, %v5214
        %v5390 = vpop.permute.xlu0 %5389
        %v5392 = vmul.f32 %v5355, %v5344
        %v5393 = vmul.f32 %v5360, %v5345
        %v5394 = vmul.f32 %v5365, %v5346
        %v5395 = vmul.f32 %v5370, %v5347
        %v5396 = vmul.f32 %v5375, %v5348
        %v5397 = vmul.f32 %v5380, %v5349
        %v5398 = vmul.f32 %v5385, %v5350
        %v5399 = vmul.f32 %v5390, %v5351
        %v5402 = vunpack.c.l.b16 %v5336
        %v5403 = vunpack.c.l.b16 %v5337
        %v5404 = vpack.c.b16 %v5403, %v5402
        %v5406 = vsel %vm4568, %v5404, 0
        %vm5408 = vcmask 1043456
        %v5410 = vsel %vm5408, %v4461, 0
        %5412 = vmatpush.bf16.msra.mxu0 0
        %5413 = vmatpush.bf16.msra.mxu0 0
        %5414 = vmatpush.bf16.msra.mxu0 0
        %5415 = vmatpush.bf16.msra.mxu0 0
        %5416 = vmatpush.bf16.msra.mxu0 0
        %5417 = vmatpush.bf16.msra.mxu0 0
        %5418 = vmatpush.bf16.msra.mxu0 0
        %5419 = vmatpush.bf16.msra.mxu0 %v5410
        %5420 = vmatmul.bf16.gmra.mxu0 %v5406
        %v5421 = vpop.f32.mrf.mxu0
        %v5422 = vadd.f32 0.0, %v5421
        %v5423 = vpop.f32.mrf.mxu0
        %v5424 = vadd.f32 0.0, %v5423
        %5425 = vdwg.mxu0
        %v5428 = vunpack.c.l.b16 %v5338
        %v5429 = vunpack.c.l.b16 %v5339
        %v5430 = vpack.c.b16 %v5429, %v5428
        %v5432 = vsel %vm4568, %v5430, 0
        %v5435 = vsel %vm5408, %v4462, 0
        %5437 = vmatpush.bf16.msra.mxu0 0
        %5438 = vmatpush.bf16.msra.mxu0 0
        %5439 = vmatpush.bf16.msra.mxu0 0
        %5440 = vmatpush.bf16.msra.mxu0 0
        %5441 = vmatpush.bf16.msra.mxu0 0
        %5442 = vmatpush.bf16.msra.mxu0 0
        %5443 = vmatpush.bf16.msra.mxu0 0
        %5444 = vmatpush.bf16.msra.mxu0 %v5435
        %5445 = vmatmul.bf16.gmra.mxu0 %v5432
        %v5446 = vpop.f32.mrf.mxu0
        %v5447 = vadd.f32 0.0, %v5446
        %v5448 = vpop.f32.mrf.mxu0
        %v5449 = vadd.f32 0.0, %v5448
        %5450 = vdwg.mxu0
        %v5453 = vunpack.c.l.b16 %v5340
        %v5454 = vunpack.c.l.b16 %v5341
        %v5455 = vpack.c.b16 %v5454, %v5453
        %v5457 = vsel %vm4568, %v5455, 0
        %v5460 = vsel %vm5408, %v4463, 0
        %5462 = vmatpush.bf16.msra.mxu0 0
        %5463 = vmatpush.bf16.msra.mxu0 0
        %5464 = vmatpush.bf16.msra.mxu0 0
        %5465 = vmatpush.bf16.msra.mxu0 0
        %5466 = vmatpush.bf16.msra.mxu0 0
        %5467 = vmatpush.bf16.msra.mxu0 0
        %5468 = vmatpush.bf16.msra.mxu0 0
        %5469 = vmatpush.bf16.msra.mxu0 %v5460
        %5470 = vmatmul.bf16.gmra.mxu0 %v5457
        %v5471 = vpop.f32.mrf.mxu0
        %v5472 = vadd.f32 0.0, %v5471
        %v5473 = vpop.f32.mrf.mxu0
        %v5474 = vadd.f32 0.0, %v5473
        %5475 = vdwg.mxu0
        %v5478 = vunpack.c.l.b16 %v5342
        %v5479 = vunpack.c.l.b16 %v5343
        %v5480 = vpack.c.b16 %v5479, %v5478
        %v5482 = vsel %vm4568, %v5480, 0
        %v5485 = vsel %vm5408, %v4464, 0
        %5487 = vmatpush.bf16.msra.mxu0 0
        %5488 = vmatpush.bf16.msra.mxu0 0
        %5489 = vmatpush.bf16.msra.mxu0 0
        %5490 = vmatpush.bf16.msra.mxu0 0
        %5491 = vmatpush.bf16.msra.mxu0 0
        %5492 = vmatpush.bf16.msra.mxu0 0
        %5493 = vmatpush.bf16.msra.mxu0 0
        %5494 = vmatpush.bf16.msra.mxu0 %v5485
        %5495 = vmatmul.bf16.gmra.mxu0 %v5482
        %v5496 = vpop.f32.mrf.mxu0
        %v5497 = vadd.f32 0.0, %v5496
        %v5498 = vpop.f32.mrf.mxu0
        %v5499 = vadd.f32 0.0, %v5498
        %5500 = vdwg.mxu0
        %v5501 = vadd.f32 %v5392, %v5422
        %v5502 = vadd.f32 %v5393, %v5424
        %v5503 = vadd.f32 %v5394, %v5447
        %v5504 = vadd.f32 %v5395, %v5449
        %v5505 = vadd.f32 %v5396, %v5472
        %v5506 = vadd.f32 %v5397, %v5474
        %v5507 = vadd.f32 %v5398, %v5497
        %v5508 = vadd.f32 %v5399, %v5499
        %5509 = vst.msk [vmem:[#allocation8] sm:$0xff] %vm4576, %v5501
        %5510 = vst.msk [vmem:[#allocation8 + $0x8] sm:$0xff] %vm4576, %v5502
        %5511 = vst.msk [vmem:[#allocation8 + $0x10] sm:$0xff] %vm4576, %v5503
        %5512 = vst.msk [vmem:[#allocation8 + $0x18] sm:$0xff] %vm4576, %v5504
        %5513 = vst.msk [vmem:[#allocation8 + $0x20] sm:$0xff] %vm4576, %v5505
        %5514 = vst.msk [vmem:[#allocation8 + $0x28] sm:$0xff] %vm4576, %v5506
        %5515 = vst.msk [vmem:[#allocation8 + $0x30] sm:$0xff] %vm4576, %v5507
        %5516 = vst.msk [vmem:[#allocation8 + $0x38] sm:$0xff] %vm4576, %v5508
        %v5517 = vrot.slane %v5208, 4
        %v5518 = vsel %vm4474, %v5517, %v5200
        %v5519 = vrot.slane %v5200, 4
        %v5520 = vsel %vm4474, %v5208, %v5519
        %v5522 = vunpack.c.l.s4 1983009808
        %v5523 = vunpack.c.0.s8 %v5522
        %v5524 = vperm.slane %v5518, %v5523
        %v5526 = vunpack.c.l.s4 1983009808
        %v5527 = vunpack.c.0.s8 %v5526
        %v5528 = vperm.slane %v5520, %v5527
        %v5529 = vrot.slane %v5212, 4
        %v5530 = vsel %vm4474, %v5529, %v5204
        %v5531 = vrot.slane %v5204, 4
        %v5532 = vsel %vm4474, %v5212, %v5531
        %v5534 = vunpack.c.l.s4 1983009808
        %v5535 = vunpack.c.0.s8 %v5534
        %v5536 = vperm.slane %v5530, %v5535
        %v5538 = vunpack.c.l.s4 1983009808
        %v5539 = vunpack.c.0.s8 %v5538
        %v5540 = vperm.slane %v5532, %v5539
        %v5541 = vrot.slane %v5536, 4
        %v5542 = vsel %vm4474, %v5541, %v5524
        %v5543 = vrot.slane %v5524, 4
        %v5544 = vsel %vm4474, %v5536, %v5543
        %v5546 = vunpack.c.l.s4 1934713408
        %v5547 = vunpack.c.0.s8 %v5546
        %v5548 = vperm.slane %v5542, %v5547
        %v5550 = vunpack.c.l.s4 1934713408
        %v5551 = vunpack.c.0.s8 %v5550
        %v5552 = vperm.slane %v5544, %v5551
        %v5553 = vrot.slane %v5540, 4
        %v5554 = vsel %vm4474, %v5553, %v5528
        %v5555 = vrot.slane %v5528, 4
        %v5556 = vsel %vm4474, %v5540, %v5555
        %v5558 = vunpack.c.l.s4 1934713408
        %v5559 = vunpack.c.0.s8 %v5558
        %v5560 = vperm.slane %v5554, %v5559
        %v5562 = vunpack.c.l.s4 1934713408
        %v5563 = vunpack.c.0.s8 %v5562
        %v5564 = vperm.slane %v5556, %v5563
        %v5565 = vrot.slane %v5548, 4
        %v5566 = vsel %vm4474, 0.0, %v5565
        %v5567 = vrot.slane %v5552, 4
        %v5568 = vsel %vm4474, 0.0, %v5567
        %v5569 = vrot.slane %v5560, 4
        %v5570 = vsel %vm4474, 0.0, %v5569
        %v5571 = vrot.slane %v5564, 4
        %v5572 = vsel %vm4474, 0.0, %v5571
        %v5573 = vrot.slane %v5210, 4
        %v5574 = vsel %vm4474, %v5573, %v5202
        %v5575 = vrot.slane %v5202, 4
        %v5576 = vsel %vm4474, %v5210, %v5575
        %v5578 = vunpack.c.l.s4 1983009808
        %v5579 = vunpack.c.0.s8 %v5578
        %v5580 = vperm.slane %v5574, %v5579
        %v5582 = vunpack.c.l.s4 1983009808
        %v5583 = vunpack.c.0.s8 %v5582
        %v5584 = vperm.slane %v5576, %v5583
        %v5585 = vrot.slane %v5214, 4
        %v5586 = vsel %vm4474, %v5585, %v5206
        %v5587 = vrot.slane %v5206, 4
        %v5588 = vsel %vm4474, %v5214, %v5587
        %v5590 = vunpack.c.l.s4 1983009808
        %v5591 = vunpack.c.0.s8 %v5590
        %v5592 = vperm.slane %v5586, %v5591
        %v5594 = vunpack.c.l.s4 1983009808
        %v5595 = vunpack.c.0.s8 %v5594
        %v5596 = vperm.slane %v5588, %v5595
        %v5597 = vrot.slane %v5592, 4
        %v5598 = vsel %vm4474, %v5597, %v5580
        %v5599 = vrot.slane %v5580, 4
        %v5600 = vsel %vm4474, %v5592, %v5599
        %v5602 = vunpack.c.l.s4 1934713408
        %v5603 = vunpack.c.0.s8 %v5602
        %v5604 = vperm.slane %v5598, %v5603
        %v5606 = vunpack.c.l.s4 1934713408
        %v5607 = vunpack.c.0.s8 %v5606
        %v5608 = vperm.slane %v5600, %v5607
        %v5609 = vrot.slane %v5596, 4
        %v5610 = vsel %vm4474, %v5609, %v5584
        %v5611 = vrot.slane %v5584, 4
        %v5612 = vsel %vm4474, %v5596, %v5611
        %v5614 = vunpack.c.l.s4 1934713408
        %v5615 = vunpack.c.0.s8 %v5614
        %v5616 = vperm.slane %v5610, %v5615
        %v5618 = vunpack.c.l.s4 1934713408
        %v5619 = vunpack.c.0.s8 %v5618
        %v5620 = vperm.slane %v5612, %v5619
        %v5621 = vrot.slane %v5604, 4
        %v5622 = vsel %vm4474, 0.0, %v5621
        %v5623 = vrot.slane %v5608, 4
        %v5624 = vsel %vm4474, 0.0, %v5623
        %v5625 = vrot.slane %v5616, 4
        %v5626 = vsel %vm4474, 0.0, %v5625
        %v5627 = vrot.slane %v5620, 4
        %v5628 = vsel %vm4474, 0.0, %v5627
        %v5629 = vld [vmem:[#allocation9] sm:$0xf]
        %v5630 = vld [vmem:[#allocation9 + $0x4] sm:$0xf]
        %v5631 = vld [vmem:[#allocation9 + $0x8] sm:$0xf]
        %v5632 = vld [vmem:[#allocation9 + $0xc] sm:$0xf]
        %v5633 = vld [vmem:[#allocation9 + $0x10] sm:$0xf]
        %v5634 = vld [vmem:[#allocation9 + $0x14] sm:$0xf]
        %v5635 = vld [vmem:[#allocation9 + $0x18] sm:$0xf]
        %v5636 = vld [vmem:[#allocation9 + $0x1c] sm:$0xf]
        %v5637 = vld [vmem:[#allocation9 + $0x20] sm:$0xf]
        %v5638 = vld [vmem:[#allocation9 + $0x24] sm:$0xf]
        %v5639 = vld [vmem:[#allocation9 + $0x28] sm:$0xf]
        %v5640 = vld [vmem:[#allocation9 + $0x2c] sm:$0xf]
        %v5641 = vld [vmem:[#allocation9 + $0x30] sm:$0xf]
        %v5642 = vld [vmem:[#allocation9 + $0x34] sm:$0xf]
        %v5643 = vld [vmem:[#allocation9 + $0x38] sm:$0xf]
        %v5644 = vld [vmem:[#allocation9 + $0x3c] sm:$0xf]
        %5646 = vset.pattern.permute.xlu0 0
        %5647 = vperm.xlu0 %5646, %v5548
        %v5648 = vpop.permute.xlu0 %5647
        %5651 = vset.pattern.permute.xlu0 0
        %5652 = vperm.xlu0 %5651, %v5566
        %v5653 = vpop.permute.xlu0 %5652
        %5656 = vset.pattern.permute.xlu0 0
        %5657 = vperm.xlu0 %5656, %v5552
        %v5658 = vpop.permute.xlu0 %5657
        %5661 = vset.pattern.permute.xlu0 0
        %5662 = vperm.xlu0 %5661, %v5568
        %v5663 = vpop.permute.xlu0 %5662
        %5666 = vset.pattern.permute.xlu0 0
        %5667 = vperm.xlu0 %5666, %v5560
        %v5668 = vpop.permute.xlu0 %5667
        %5671 = vset.pattern.permute.xlu0 0
        %5672 = vperm.xlu0 %5671, %v5570
        %v5673 = vpop.permute.xlu0 %5672
        %5676 = vset.pattern.permute.xlu0 0
        %5677 = vperm.xlu0 %5676, %v5564
        %v5678 = vpop.permute.xlu0 %5677
        %5681 = vset.pattern.permute.xlu0 0
        %5682 = vperm.xlu0 %5681, %v5572
        %v5683 = vpop.permute.xlu0 %5682
        %5686 = vset.pattern.permute.xlu0 0
        %5687 = vperm.xlu0 %5686, %v5604
        %v5688 = vpop.permute.xlu0 %5687
        %5691 = vset.pattern.permute.xlu0 0
        %5692 = vperm.xlu0 %5691, %v5622
        %v5693 = vpop.permute.xlu0 %5692
        %5696 = vset.pattern.permute.xlu0 0
        %5697 = vperm.xlu0 %5696, %v5608
        %v5698 = vpop.permute.xlu0 %5697
        %5701 = vset.pattern.permute.xlu0 0
        %5702 = vperm.xlu0 %5701, %v5624
        %v5703 = vpop.permute.xlu0 %5702
        %5706 = vset.pattern.permute.xlu0 0
        %5707 = vperm.xlu0 %5706, %v5616
        %v5708 = vpop.permute.xlu0 %5707
        %5711 = vset.pattern.permute.xlu0 0
        %5712 = vperm.xlu0 %5711, %v5626
        %v5713 = vpop.permute.xlu0 %5712
        %5716 = vset.pattern.permute.xlu0 0
        %5717 = vperm.xlu0 %5716, %v5620
        %v5718 = vpop.permute.xlu0 %5717
        %5721 = vset.pattern.permute.xlu0 0
        %5722 = vperm.xlu0 %5721, %v5628
        %v5723 = vpop.permute.xlu0 %5722
        %v5725 = vmul.f32 %v5648, %v5629
        %v5726 = vmul.f32 %v5653, %v5630
        %v5727 = vmul.f32 %v5658, %v5631
        %v5728 = vmul.f32 %v5663, %v5632
        %v5729 = vmul.f32 %v5668, %v5633
        %v5730 = vmul.f32 %v5673, %v5634
        %v5731 = vmul.f32 %v5678, %v5635
        %v5732 = vmul.f32 %v5683, %v5636
        %v5733 = vmul.f32 %v5688, %v5637
        %v5734 = vmul.f32 %v5693, %v5638
        %v5735 = vmul.f32 %v5698, %v5639
        %v5736 = vmul.f32 %v5703, %v5640
        %v5737 = vmul.f32 %v5708, %v5641
        %v5738 = vmul.f32 %v5713, %v5642
        %v5739 = vmul.f32 %v5718, %v5643
        %v5740 = vmul.f32 %v5723, %v5644
        %v5743 = vpack.i.b16 %v5338, %v5336
        %v5744 = vshrl.u32 %v5336, 16
        %v5745 = vshrl.u32 %v5338, 16
        %v5746 = vpack.i.b16 %v5745, %v5744
        %v5749 = vpack.i.b16 %v5342, %v5340
        %v5750 = vshrl.u32 %v5340, 16
        %v5751 = vshrl.u32 %v5342, 16
        %v5752 = vpack.i.b16 %v5751, %v5750
        %v5755 = vpack.i.b16 %v5339, %v5337
        %v5756 = vshrl.u32 %v5337, 16
        %v5757 = vshrl.u32 %v5339, 16
        %v5758 = vpack.i.b16 %v5757, %v5756
        %v5761 = vpack.i.b16 %v5343, %v5341
        %v5762 = vshrl.u32 %v5341, 16
        %v5763 = vshrl.u32 %v5343, 16
        %v5764 = vpack.i.b16 %v5763, %v5762
        %v5767 = vunpack.c.l.s4 1983009808
        %v5768 = vunpack.c.0.s8 %v5767
        %v5769 = vperm.slane %v5743, %v5768
        %v5772 = vunpack.c.l.s4 1983009808
        %v5773 = vunpack.c.0.s8 %v5772
        %v5774 = vperm.slane %v5749, %v5773
        %v5775 = vrot.slane %v5774, 4
        %vm5776 = vcmask 1047556
        %v5777 = vsel %vm5776, %v5775, %v5769
        %v5778 = vrot.slane %v5769, 4
        %v5779 = vsel %vm5776, %v5774, %v5778
        %v5781 = vunpack.c.l.s4 1934713408
        %v5782 = vunpack.c.0.s8 %v5781
        %v5783 = vperm.slane %v5777, %v5782
        %v5785 = vunpack.c.l.s4 1934713408
        %v5786 = vunpack.c.0.s8 %v5785
        %v5787 = vperm.slane %v5779, %v5786
        %v5788 = vrot.slane %v5783, 4
        %v5789 = vsel %vm5776, 0, %v5788
        %v5790 = vrot.slane %v5787, 4
        %v5791 = vsel %vm5776, 0, %v5790
        %v5794 = vunpack.c.l.s4 1983009808
        %v5795 = vunpack.c.0.s8 %v5794
        %v5796 = vperm.slane %v5746, %v5795
        %v5799 = vunpack.c.l.s4 1983009808
        %v5800 = vunpack.c.0.s8 %v5799
        %v5801 = vperm.slane %v5752, %v5800
        %v5802 = vrot.slane %v5801, 4
        %v5803 = vsel %vm5776, %v5802, %v5796
        %v5804 = vrot.slane %v5796, 4
        %v5805 = vsel %vm5776, %v5801, %v5804
        %v5807 = vunpack.c.l.s4 1934713408
        %v5808 = vunpack.c.0.s8 %v5807
        %v5809 = vperm.slane %v5803, %v5808
        %v5811 = vunpack.c.l.s4 1934713408
        %v5812 = vunpack.c.0.s8 %v5811
        %v5813 = vperm.slane %v5805, %v5812
        %v5814 = vrot.slane %v5809, 4
        %v5815 = vsel %vm5776, 0, %v5814
        %v5816 = vrot.slane %v5813, 4
        %v5817 = vsel %vm5776, 0, %v5816
        %v5820 = vunpack.c.l.s4 1983009808
        %v5821 = vunpack.c.0.s8 %v5820
        %v5822 = vperm.slane %v5755, %v5821
        %v5825 = vunpack.c.l.s4 1983009808
        %v5826 = vunpack.c.0.s8 %v5825
        %v5827 = vperm.slane %v5761, %v5826
        %v5828 = vrot.slane %v5827, 4
        %v5829 = vsel %vm5776, %v5828, %v5822
        %v5830 = vrot.slane %v5822, 4
        %v5831 = vsel %vm5776, %v5827, %v5830
        %v5833 = vunpack.c.l.s4 1934713408
        %v5834 = vunpack.c.0.s8 %v5833
        %v5835 = vperm.slane %v5829, %v5834
        %v5837 = vunpack.c.l.s4 1934713408
        %v5838 = vunpack.c.0.s8 %v5837
        %v5839 = vperm.slane %v5831, %v5838
        %v5840 = vrot.slane %v5835, 4
        %v5841 = vsel %vm5776, 0, %v5840
        %v5842 = vrot.slane %v5839, 4
        %v5843 = vsel %vm5776, 0, %v5842
        %v5846 = vunpack.c.l.s4 1983009808
        %v5847 = vunpack.c.0.s8 %v5846
        %v5848 = vperm.slane %v5758, %v5847
        %v5851 = vunpack.c.l.s4 1983009808
        %v5852 = vunpack.c.0.s8 %v5851
        %v5853 = vperm.slane %v5764, %v5852
        %v5854 = vrot.slane %v5853, 4
        %v5855 = vsel %vm5776, %v5854, %v5848
        %v5856 = vrot.slane %v5848, 4
        %v5857 = vsel %vm5776, %v5853, %v5856
        %v5859 = vunpack.c.l.s4 1934713408
        %v5860 = vunpack.c.0.s8 %v5859
        %v5861 = vperm.slane %v5855, %v5860
        %v5863 = vunpack.c.l.s4 1934713408
        %v5864 = vunpack.c.0.s8 %v5863
        %v5865 = vperm.slane %v5857, %v5864
        %v5866 = vrot.slane %v5861, 4
        %v5867 = vsel %vm5776, 0, %v5866
        %v5868 = vrot.slane %v5865, 4
        %v5869 = vsel %vm5776, 0, %v5868
        %v5871 = vsel %vm4568, %v5783, 0
        %v5874 = vsel %vm5408, %v4435, 0
        %5876 = vmatpush.bf16.msra.mxu0 0
        %5877 = vmatpush.bf16.msra.mxu0 0
        %5878 = vmatpush.bf16.msra.mxu0 0
        %5879 = vmatpush.bf16.msra.mxu0 0
        %5880 = vmatpush.bf16.msra.mxu0 0
        %5881 = vmatpush.bf16.msra.mxu0 0
        %5882 = vmatpush.bf16.msra.mxu0 0
        %5883 = vmatpush.bf16.msra.mxu0 %v5874
        %5884 = vmatmul.bf16.gmra.mxu0 %v5871
        %v5885 = vpop.f32.mrf.mxu0
        %v5886 = vadd.f32 0.0, %v5885
        %v5887 = vpop.f32.mrf.mxu0
        %5888 = vdwg.mxu0
        %v5890 = vsel %vm4568, %v5809, 0
        %v5893 = vsel %vm5408, %v4436, 0
        %5895 = vmatpush.bf16.msra.mxu0 0
        %5896 = vmatpush.bf16.msra.mxu0 0
        %5897 = vmatpush.bf16.msra.mxu0 0
        %5898 = vmatpush.bf16.msra.mxu0 0
        %5899 = vmatpush.bf16.msra.mxu0 0
        %5900 = vmatpush.bf16.msra.mxu0 0
        %5901 = vmatpush.bf16.msra.mxu0 0
        %5902 = vmatpush.bf16.msra.mxu0 %v5893
        %5903 = vmatmul.bf16.gmra.mxu0 %v5890
        %v5904 = vpop.f32.mrf.mxu0
        %v5905 = vadd.f32 0.0, %v5904
        %v5906 = vpop.f32.mrf.mxu0
        %5907 = vdwg.mxu0
        %v5909 = vsel %vm4568, %v5789, 0
        %v5912 = vsel %vm5408, %v4437, 0
        %5914 = vmatpush.bf16.msra.mxu0 0
        %5915 = vmatpush.bf16.msra.mxu0 0
        %5916 = vmatpush.bf16.msra.mxu0 0
        %5917 = vmatpush.bf16.msra.mxu0 0
        %5918 = vmatpush.bf16.msra.mxu0 0
        %5919 = vmatpush.bf16.msra.mxu0 0
        %5920 = vmatpush.bf16.msra.mxu0 0
        %5921 = vmatpush.bf16.msra.mxu0 %v5912
        %5922 = vmatmul.bf16.gmra.mxu0 %v5909
        %v5923 = vpop.f32.mrf.mxu0
        %v5924 = vadd.f32 0.0, %v5923
        %v5925 = vpop.f32.mrf.mxu0
        %5926 = vdwg.mxu0
        %v5928 = vsel %vm4568, %v5815, 0
        %v5931 = vsel %vm5408, %v4438, 0
        %5933 = vmatpush.bf16.msra.mxu0 0
        %5934 = vmatpush.bf16.msra.mxu0 0
        %5935 = vmatpush.bf16.msra.mxu0 0
        %5936 = vmatpush.bf16.msra.mxu0 0
        %5937 = vmatpush.bf16.msra.mxu0 0
        %5938 = vmatpush.bf16.msra.mxu0 0
        %5939 = vmatpush.bf16.msra.mxu0 0
        %5940 = vmatpush.bf16.msra.mxu0 %v5931
        %5941 = vmatmul.bf16.gmra.mxu0 %v5928
        %v5942 = vpop.f32.mrf.mxu0
        %v5943 = vadd.f32 0.0, %v5942
        %v5944 = vpop.f32.mrf.mxu0
        %5945 = vdwg.mxu0
        %v5947 = vsel %vm4568, %v5787, 0
        %v5950 = vsel %vm5408, %v4439, 0
        %5952 = vmatpush.bf16.msra.mxu0 0
        %5953 = vmatpush.bf16.msra.mxu0 0
        %5954 = vmatpush.bf16.msra.mxu0 0
        %5955 = vmatpush.bf16.msra.mxu0 0
        %5956 = vmatpush.bf16.msra.mxu0 0
        %5957 = vmatpush.bf16.msra.mxu0 0
        %5958 = vmatpush.bf16.msra.mxu0 0
        %5959 = vmatpush.bf16.msra.mxu0 %v5950
        %5960 = vmatmul.bf16.gmra.mxu0 %v5947
        %v5961 = vpop.f32.mrf.mxu0
        %v5962 = vadd.f32 0.0, %v5961
        %v5963 = vpop.f32.mrf.mxu0
        %5964 = vdwg.mxu0
        %v5966 = vsel %vm4568, %v5813, 0
        %v5969 = vsel %vm5408, %v4440, 0
        %5971 = vmatpush.bf16.msra.mxu0 0
        %5972 = vmatpush.bf16.msra.mxu0 0
        %5973 = vmatpush.bf16.msra.mxu0 0
        %5974 = vmatpush.bf16.msra.mxu0 0
        %5975 = vmatpush.bf16.msra.mxu0 0
        %5976 = vmatpush.bf16.msra.mxu0 0
        %5977 = vmatpush.bf16.msra.mxu0 0
        %5978 = vmatpush.bf16.msra.mxu0 %v5969
        %5979 = vmatmul.bf16.gmra.mxu0 %v5966
        %v5980 = vpop.f32.mrf.mxu0
        %v5981 = vadd.f32 0.0, %v5980
        %v5982 = vpop.f32.mrf.mxu0
        %5983 = vdwg.mxu0
        %v5985 = vsel %vm4568, %v5791, 0
        %v5988 = vsel %vm5408, %v4441, 0
        %5990 = vmatpush.bf16.msra.mxu0 0
        %5991 = vmatpush.bf16.msra.mxu0 0
        %5992 = vmatpush.bf16.msra.mxu0 0
        %5993 = vmatpush.bf16.msra.mxu0 0
        %5994 = vmatpush.bf16.msra.mxu0 0
        %5995 = vmatpush.bf16.msra.mxu0 0
        %5996 = vmatpush.bf16.msra.mxu0 0
        %5997 = vmatpush.bf16.msra.mxu0 %v5988
        %5998 = vmatmul.bf16.gmra.mxu0 %v5985
        %v5999 = vpop.f32.mrf.mxu0
        %v6000 = vadd.f32 0.0, %v5999
        %v6001 = vpop.f32.mrf.mxu0
        %6002 = vdwg.mxu0
        %v6004 = vsel %vm4568, %v5817, 0
        %v6007 = vsel %vm5408, %v4442, 0
        %6009 = vmatpush.bf16.msra.mxu0 0
        %6010 = vmatpush.bf16.msra.mxu0 0
        %6011 = vmatpush.bf16.msra.mxu0 0
        %6012 = vmatpush.bf16.msra.mxu0 0
        %6013 = vmatpush.bf16.msra.mxu0 0
        %6014 = vmatpush.bf16.msra.mxu0 0
        %6015 = vmatpush.bf16.msra.mxu0 0
        %6016 = vmatpush.bf16.msra.mxu0 %v6007
        %6017 = vmatmul.bf16.gmra.mxu0 %v6004
        %v6018 = vpop.f32.mrf.mxu0
        %v6019 = vadd.f32 0.0, %v6018
        %v6020 = vpop.f32.mrf.mxu0
        %6021 = vdwg.mxu0
        %v6023 = vsel %vm4568, %v5835, 0
        %v6026 = vsel %vm5408, %v4443, 0
        %6028 = vmatpush.bf16.msra.mxu0 0
        %6029 = vmatpush.bf16.msra.mxu0 0
        %6030 = vmatpush.bf16.msra.mxu0 0
        %6031 = vmatpush.bf16.msra.mxu0 0
        %6032 = vmatpush.bf16.msra.mxu0 0
        %6033 = vmatpush.bf16.msra.mxu0 0
        %6034 = vmatpush.bf16.msra.mxu0 0
        %6035 = vmatpush.bf16.msra.mxu0 %v6026
        %6036 = vmatmul.bf16.gmra.mxu0 %v6023
        %v6037 = vpop.f32.mrf.mxu0
        %v6038 = vadd.f32 0.0, %v6037
        %v6039 = vpop.f32.mrf.mxu0
        %6040 = vdwg.mxu0
        %v6042 = vsel %vm4568, %v5861, 0
        %v6045 = vsel %vm5408, %v4444, 0
        %6047 = vmatpush.bf16.msra.mxu0 0
        %6048 = vmatpush.bf16.msra.mxu0 0
        %6049 = vmatpush.bf16.msra.mxu0 0
        %6050 = vmatpush.bf16.msra.mxu0 0
        %6051 = vmatpush.bf16.msra.mxu0 0
        %6052 = vmatpush.bf16.msra.mxu0 0
        %6053 = vmatpush.bf16.msra.mxu0 0
        %6054 = vmatpush.bf16.msra.mxu0 %v6045
        %6055 = vmatmul.bf16.gmra.mxu0 %v6042
        %v6056 = vpop.f32.mrf.mxu0
        %v6057 = vadd.f32 0.0, %v6056
        %v6058 = vpop.f32.mrf.mxu0
        %6059 = vdwg.mxu0
        %v6061 = vsel %vm4568, %v5841, 0
        %v6064 = vsel %vm5408, %v4445, 0
        %6066 = vmatpush.bf16.msra.mxu0 0
        %6067 = vmatpush.bf16.msra.mxu0 0
        %6068 = vmatpush.bf16.msra.mxu0 0
        %6069 = vmatpush.bf16.msra.mxu0 0
        %6070 = vmatpush.bf16.msra.mxu0 0
        %6071 = vmatpush.bf16.msra.mxu0 0
        %6072 = vmatpush.bf16.msra.mxu0 0
        %6073 = vmatpush.bf16.msra.mxu0 %v6064
        %6074 = vmatmul.bf16.gmra.mxu0 %v6061
        %v6075 = vpop.f32.mrf.mxu0
        %v6076 = vadd.f32 0.0, %v6075
        %v6077 = vpop.f32.mrf.mxu0
        %6078 = vdwg.mxu0
        %v6080 = vsel %vm4568, %v5867, 0
        %v6083 = vsel %vm5408, %v4446, 0
        %6085 = vmatpush.bf16.msra.mxu0 0
        %6086 = vmatpush.bf16.msra.mxu0 0
        %6087 = vmatpush.bf16.msra.mxu0 0
        %6088 = vmatpush.bf16.msra.mxu0 0
        %6089 = vmatpush.bf16.msra.mxu0 0
        %6090 = vmatpush.bf16.msra.mxu0 0
        %6091 = vmatpush.bf16.msra.mxu0 0
        %6092 = vmatpush.bf16.msra.mxu0 %v6083
        %6093 = vmatmul.bf16.gmra.mxu0 %v6080
        %v6094 = vpop.f32.mrf.mxu0
        %v6095 = vadd.f32 0.0, %v6094
        %v6096 = vpop.f32.mrf.mxu0
        %6097 = vdwg.mxu0
        %v6099 = vsel %vm4568, %v5839, 0
        %v6102 = vsel %vm5408, %v4447, 0
        %6104 = vmatpush.bf16.msra.mxu0 0
        %6105 = vmatpush.bf16.msra.mxu0 0
        %6106 = vmatpush.bf16.msra.mxu0 0
        %6107 = vmatpush.bf16.msra.mxu0 0
        %6108 = vmatpush.bf16.msra.mxu0 0
        %6109 = vmatpush.bf16.msra.mxu0 0
        %6110 = vmatpush.bf16.msra.mxu0 0
        %6111 = vmatpush.bf16.msra.mxu0 %v6102
        %6112 = vmatmul.bf16.gmra.mxu0 %v6099
        %v6113 = vpop.f32.mrf.mxu0
        %v6114 = vadd.f32 0.0, %v6113
        %v6115 = vpop.f32.mrf.mxu0
        %6116 = vdwg.mxu0
        %v6118 = vsel %vm4568, %v5865, 0
        %v6121 = vsel %vm5408, %v4448, 0
        %6123 = vmatpush.bf16.msra.mxu0 0
        %6124 = vmatpush.bf16.msra.mxu0 0
        %6125 = vmatpush.bf16.msra.mxu0 0
        %6126 = vmatpush.bf16.msra.mxu0 0
        %6127 = vmatpush.bf16.msra.mxu0 0
        %6128 = vmatpush.bf16.msra.mxu0 0
        %6129 = vmatpush.bf16.msra.mxu0 0
        %6130 = vmatpush.bf16.msra.mxu0 %v6121
        %6131 = vmatmul.bf16.gmra.mxu0 %v6118
        %v6132 = vpop.f32.mrf.mxu0
        %v6133 = vadd.f32 0.0, %v6132
        %v6134 = vpop.f32.mrf.mxu0
        %6135 = vdwg.mxu0
        %v6137 = vsel %vm4568, %v5843, 0
        %v6140 = vsel %vm5408, %v4449, 0
        %6142 = vmatpush.bf16.msra.mxu0 0
        %6143 = vmatpush.bf16.msra.mxu0 0
        %6144 = vmatpush.bf16.msra.mxu0 0
        %6145 = vmatpush.bf16.msra.mxu0 0
        %6146 = vmatpush.bf16.msra.mxu0 0
        %6147 = vmatpush.bf16.msra.mxu0 0
        %6148 = vmatpush.bf16.msra.mxu0 0
        %6149 = vmatpush.bf16.msra.mxu0 %v6140
        %6150 = vmatmul.bf16.gmra.mxu0 %v6137
        %v6151 = vpop.f32.mrf.mxu0
        %v6152 = vadd.f32 0.0, %v6151
        %v6153 = vpop.f32.mrf.mxu0
        %6154 = vdwg.mxu0
        %v6156 = vsel %vm4568, %v5869, 0
        %v6159 = vsel %vm5408, %v4450, 0
        %6161 = vmatpush.bf16.msra.mxu0 0
        %6162 = vmatpush.bf16.msra.mxu0 0
        %6163 = vmatpush.bf16.msra.mxu0 0
        %6164 = vmatpush.bf16.msra.mxu0 0
        %6165 = vmatpush.bf16.msra.mxu0 0
        %6166 = vmatpush.bf16.msra.mxu0 0
        %6167 = vmatpush.bf16.msra.mxu0 0
        %6168 = vmatpush.bf16.msra.mxu0 %v6159
        %6169 = vmatmul.bf16.gmra.mxu0 %v6156
        %v6170 = vpop.f32.mrf.mxu0
        %v6171 = vadd.f32 0.0, %v6170
        %v6172 = vpop.f32.mrf.mxu0
        %6173 = vdwg.mxu0
        %v6174 = vadd.f32 %v5725, %v5886
        %v6175 = vadd.f32 %v5726, %v5905
        %v6176 = vadd.f32 %v5727, %v5924
        %v6177 = vadd.f32 %v5728, %v5943
        %v6178 = vadd.f32 %v5729, %v5962
        %v6179 = vadd.f32 %v5730, %v5981
        %v6180 = vadd.f32 %v5731, %v6000
        %v6181 = vadd.f32 %v5732, %v6019
        %v6182 = vadd.f32 %v5733, %v6038
        %v6183 = vadd.f32 %v5734, %v6057
        %v6184 = vadd.f32 %v5735, %v6076
        %v6185 = vadd.f32 %v5736, %v6095
        %v6186 = vadd.f32 %v5737, %v6114
        %v6187 = vadd.f32 %v5738, %v6133
        %v6188 = vadd.f32 %v5739, %v6152
        %v6189 = vadd.f32 %v5740, %v6171
        %vm6190 = vcmask 125952
        %6191 = vst.msk [vmem:[#allocation9] sm:$0xf] %vm6190, %v6174
        %6192 = vst.msk [vmem:[#allocation9 + $0x4] sm:$0xf] %vm6190, %v6175
        %6193 = vst.msk [vmem:[#allocation9 + $0x8] sm:$0xf] %vm6190, %v6176
        %6194 = vst.msk [vmem:[#allocation9 + $0xc] sm:$0xf] %vm6190, %v6177
        %6195 = vst.msk [vmem:[#allocation9 + $0x10] sm:$0xf] %vm6190, %v6178
        %6196 = vst.msk [vmem:[#allocation9 + $0x14] sm:$0xf] %vm6190, %v6179
        %6197 = vst.msk [vmem:[#allocation9 + $0x18] sm:$0xf] %vm6190, %v6180
        %6198 = vst.msk [vmem:[#allocation9 + $0x1c] sm:$0xf] %vm6190, %v6181
        %6199 = vst.msk [vmem:[#allocation9 + $0x20] sm:$0xf] %vm6190, %v6182
        %6200 = vst.msk [vmem:[#allocation9 + $0x24] sm:$0xf] %vm6190, %v6183
        %6201 = vst.msk [vmem:[#allocation9 + $0x28] sm:$0xf] %vm6190, %v6184
        %6202 = vst.msk [vmem:[#allocation9 + $0x2c] sm:$0xf] %vm6190, %v6185
        %6203 = vst.msk [vmem:[#allocation9 + $0x30] sm:$0xf] %vm6190, %v6186
        %6204 = vst.msk [vmem:[#allocation9 + $0x34] sm:$0xf] %vm6190, %v6187
        %6205 = vst.msk [vmem:[#allocation9 + $0x38] sm:$0xf] %vm6190, %v6188
        %6206 = vst.msk [vmem:[#allocation9 + $0x3c] sm:$0xf] %vm6190, %v6189
        %6207 = vst.msk [vmem:[#allocation6] sm:$0xff] %vm5327, %v5183
        %6208 = vst.msk [vmem:[#allocation6 + $0x8] sm:$0xff] %vm5327, %v5184
        %6209 = vst.msk [vmem:[#allocation6 + $0x10] sm:$0xff] %vm5327, %v5185
        %6210 = vst.msk [vmem:[#allocation6 + $0x18] sm:$0xff] %vm5327, %v5186
        %6211 = vst.msk [vmem:[#allocation6 + $0x20] sm:$0xff] %vm5327, %v5187
        %6212 = vst.msk [vmem:[#allocation6 + $0x28] sm:$0xff] %vm5327, %v5188
        %6213 = vst.msk [vmem:[#allocation6 + $0x30] sm:$0xff] %vm5327, %v5189
        %6214 = vst.msk [vmem:[#allocation6 + $0x38] sm:$0xff] %vm5327, %v5190
        %p6215 = scmp.eq.s32.totalorder %s35, 1
        // Predicated region
        $region142: #{structure_net_forward.2} parent=132 // pred_check
          %p6216 = pneg %p6215
        $region143: #{structure_net_forward.2} parent=132 // pred_check_branch
          %6218 = sbr.rel (%p6216) target = $region145
        $region144: #{structure_net_forward.2} parent=132 // pred_region
          %v6219 = vld [vmem:[%s781] sm:$0xff]
          %v6220 = vld [vmem:[%s781 + $0x8] sm:$0xff]
          %v6221 = vld [vmem:[%s786] sm:$0xff]
          %v6222 = vld [vmem:[%s786 + $0x8] sm:$0xff]
          %v6223 = vld [vmem:[%s791] sm:$0xff]
          %v6224 = vld [vmem:[%s791 + $0x8] sm:$0xff]
          %v6225 = vld [vmem:[#allocation7] sm:$0xff]
          %v6226 = vld [vmem:[#allocation7 + $0x8] sm:$0xff]
          %v6227 = vld [vmem:[#allocation7 + $0x10] sm:$0xff]
          %v6228 = vld [vmem:[#allocation7 + $0x18] sm:$0xff]
          %v6229 = vld [vmem:[#allocation7 + $0x20] sm:$0xff]
          %v6230 = vld [vmem:[#allocation7 + $0x28] sm:$0xff]
          %v6231 = vld [vmem:[#allocation7 + $0x30] sm:$0xff]
          %v6232 = vld [vmem:[#allocation7 + $0x38] sm:$0xff]
          %v6233 = vrcp.pop %v6225
          %v6234 = vrcp.pop %v6226
          %v6235 = vrcp.pop %v6227
          %v6236 = vrcp.pop %v6228
          %v6237 = vrcp.pop %v6229
          %v6238 = vrcp.pop %v6230
          %v6239 = vrcp.pop %v6231
          %v6240 = vrcp.pop %v6232
          %v6241 = vld [vmem:[#allocation8] sm:$0xff]
          %v6242 = vld [vmem:[#allocation8 + $0x8] sm:$0xff]
          %v6243 = vld [vmem:[#allocation8 + $0x10] sm:$0xff]
          %v6244 = vld [vmem:[#allocation8 + $0x18] sm:$0xff]
          %v6245 = vld [vmem:[#allocation8 + $0x20] sm:$0xff]
          %v6246 = vld [vmem:[#allocation8 + $0x28] sm:$0xff]
          %v6247 = vld [vmem:[#allocation8 + $0x30] sm:$0xff]
          %v6248 = vld [vmem:[#allocation8 + $0x38] sm:$0xff]
          %6250 = vset.pattern.permute.xlu0 0
          %6251 = vperm.xlu0 %6250, %v6233
          %v6252 = vpop.permute.xlu0 %6251
          %6255 = vset.pattern.permute.xlu0 0
          %6256 = vperm.xlu0 %6255, %v6234
          %v6257 = vpop.permute.xlu0 %6256
          %6260 = vset.pattern.permute.xlu0 0
          %6261 = vperm.xlu0 %6260, %v6235
          %v6262 = vpop.permute.xlu0 %6261
          %6265 = vset.pattern.permute.xlu0 0
          %6266 = vperm.xlu0 %6265, %v6236
          %v6267 = vpop.permute.xlu0 %6266
          %6270 = vset.pattern.permute.xlu0 0
          %6271 = vperm.xlu0 %6270, %v6237
          %v6272 = vpop.permute.xlu0 %6271
          %6275 = vset.pattern.permute.xlu0 0
          %6276 = vperm.xlu0 %6275, %v6238
          %v6277 = vpop.permute.xlu0 %6276
          %6280 = vset.pattern.permute.xlu0 0
          %6281 = vperm.xlu0 %6280, %v6239
          %v6282 = vpop.permute.xlu0 %6281
          %6285 = vset.pattern.permute.xlu0 0
          %6286 = vperm.xlu0 %6285, %v6240
          %v6287 = vpop.permute.xlu0 %6286
          %v6289 = vmul.f32 %v6241, %v6252
          %v6290 = vmul.f32 %v6242, %v6257
          %v6291 = vmul.f32 %v6243, %v6262
          %v6292 = vmul.f32 %v6244, %v6267
          %v6293 = vmul.f32 %v6245, %v6272
          %v6294 = vmul.f32 %v6246, %v6277
          %v6295 = vmul.f32 %v6247, %v6282
          %v6296 = vmul.f32 %v6248, %v6287
          %v6297 = vrot.slane %v6293, 4
          %v6298 = vsel %vm4474, %v6297, %v6289
          %v6299 = vrot.slane %v6289, 4
          %v6300 = vsel %vm4474, %v6293, %v6299
          %v6302 = vunpack.c.l.s4 1983009808
          %v6303 = vunpack.c.0.s8 %v6302
          %v6304 = vperm.slane %v6298, %v6303
          %v6306 = vunpack.c.l.s4 1983009808
          %v6307 = vunpack.c.0.s8 %v6306
          %v6308 = vperm.slane %v6300, %v6307
          %v6309 = vrot.slane %v6295, 4
          %v6310 = vsel %vm4474, %v6309, %v6291
          %v6311 = vrot.slane %v6291, 4
          %v6312 = vsel %vm4474, %v6295, %v6311
          %v6314 = vunpack.c.l.s4 1983009808
          %v6315 = vunpack.c.0.s8 %v6314
          %v6316 = vperm.slane %v6310, %v6315
          %v6318 = vunpack.c.l.s4 1983009808
          %v6319 = vunpack.c.0.s8 %v6318
          %v6320 = vperm.slane %v6312, %v6319
          %v6321 = vrot.slane %v6316, 4
          %v6322 = vsel %vm4474, %v6321, %v6304
          %v6323 = vrot.slane %v6304, 4
          %v6324 = vsel %vm4474, %v6316, %v6323
          %v6326 = vunpack.c.l.s4 1934713408
          %v6327 = vunpack.c.0.s8 %v6326
          %v6328 = vperm.slane %v6322, %v6327
          %v6330 = vunpack.c.l.s4 1934713408
          %v6331 = vunpack.c.0.s8 %v6330
          %v6332 = vperm.slane %v6324, %v6331
          %v6333 = vrot.slane %v6320, 4
          %v6334 = vsel %vm4474, %v6333, %v6308
          %v6335 = vrot.slane %v6308, 4
          %v6336 = vsel %vm4474, %v6320, %v6335
          %v6338 = vunpack.c.l.s4 1934713408
          %v6339 = vunpack.c.0.s8 %v6338
          %v6340 = vperm.slane %v6334, %v6339
          %v6342 = vunpack.c.l.s4 1934713408
          %v6343 = vunpack.c.0.s8 %v6342
          %v6344 = vperm.slane %v6336, %v6343
          %v6345 = vrot.slane %v6328, 4
          %v6346 = vsel %vm4474, 0.0, %v6345
          %v6347 = vrot.slane %v6332, 4
          %v6348 = vsel %vm4474, 0.0, %v6347
          %v6349 = vrot.slane %v6340, 4
          %v6350 = vsel %vm4474, 0.0, %v6349
          %v6351 = vrot.slane %v6344, 4
          %v6352 = vsel %vm4474, 0.0, %v6351
          %v6353 = vrot.slane %v6294, 4
          %v6354 = vsel %vm4474, %v6353, %v6290
          %v6355 = vrot.slane %v6290, 4
          %v6356 = vsel %vm4474, %v6294, %v6355
          %v6358 = vunpack.c.l.s4 1983009808
          %v6359 = vunpack.c.0.s8 %v6358
          %v6360 = vperm.slane %v6354, %v6359
          %v6362 = vunpack.c.l.s4 1983009808
          %v6363 = vunpack.c.0.s8 %v6362
          %v6364 = vperm.slane %v6356, %v6363
          %v6365 = vrot.slane %v6296, 4
          %v6366 = vsel %vm4474, %v6365, %v6292
          %v6367 = vrot.slane %v6292, 4
          %v6368 = vsel %vm4474, %v6296, %v6367
          %v6370 = vunpack.c.l.s4 1983009808
          %v6371 = vunpack.c.0.s8 %v6370
          %v6372 = vperm.slane %v6366, %v6371
          %v6374 = vunpack.c.l.s4 1983009808
          %v6375 = vunpack.c.0.s8 %v6374
          %v6376 = vperm.slane %v6368, %v6375
          %v6377 = vrot.slane %v6372, 4
          %v6378 = vsel %vm4474, %v6377, %v6360
          %v6379 = vrot.slane %v6360, 4
          %v6380 = vsel %vm4474, %v6372, %v6379
          %v6382 = vunpack.c.l.s4 1934713408
          %v6383 = vunpack.c.0.s8 %v6382
          %v6384 = vperm.slane %v6378, %v6383
          %v6386 = vunpack.c.l.s4 1934713408
          %v6387 = vunpack.c.0.s8 %v6386
          %v6388 = vperm.slane %v6380, %v6387
          %v6389 = vrot.slane %v6376, 4
          %v6390 = vsel %vm4474, %v6389, %v6364
          %v6391 = vrot.slane %v6364, 4
          %v6392 = vsel %vm4474, %v6376, %v6391
          %v6394 = vunpack.c.l.s4 1934713408
          %v6395 = vunpack.c.0.s8 %v6394
          %v6396 = vperm.slane %v6390, %v6395
          %v6398 = vunpack.c.l.s4 1934713408
          %v6399 = vunpack.c.0.s8 %v6398
          %v6400 = vperm.slane %v6392, %v6399
          %v6401 = vrot.slane %v6384, 4
          %v6402 = vsel %vm4474, 0.0, %v6401
          %v6403 = vrot.slane %v6388, 4
          %v6404 = vsel %vm4474, 0.0, %v6403
          %v6405 = vrot.slane %v6396, 4
          %v6406 = vsel %vm4474, 0.0, %v6405
          %v6407 = vrot.slane %v6400, 4
          %v6408 = vsel %vm4474, 0.0, %v6407
          %v6409 = vsel %vm4474, %v6347, %v6328
          %v6411 = vunpack.c.l.s4 1983009808
          %v6412 = vunpack.c.0.s8 %v6411
          %v6413 = vperm.slane %v6409, %v6412
          %v6414 = vrot.slane %v6348, 4
          %v6415 = vsel %vm4474, %v6414, %v6346
          %v6417 = vunpack.c.l.s4 1983009808
          %v6418 = vunpack.c.0.s8 %v6417
          %v6419 = vperm.slane %v6415, %v6418
          %v6420 = vsel %vm4474, %v6351, %v6340
          %v6422 = vunpack.c.l.s4 1983009808
          %v6423 = vunpack.c.0.s8 %v6422
          %v6424 = vperm.slane %v6420, %v6423
          %v6425 = vrot.slane %v6352, 4
          %v6426 = vsel %vm4474, %v6425, %v6350
          %v6428 = vunpack.c.l.s4 1983009808
          %v6429 = vunpack.c.0.s8 %v6428
          %v6430 = vperm.slane %v6426, %v6429
          %v6431 = vrot.slane %v6419, 4
          %v6432 = vsel %vm4474, %v6431, %v6413
          %v6433 = vrot.slane %v6413, 4
          %v6434 = vsel %vm4474, %v6419, %v6433
          %v6436 = vunpack.c.l.s4 1934713408
          %v6437 = vunpack.c.0.s8 %v6436
          %v6438 = vperm.slane %v6432, %v6437
          %v6440 = vunpack.c.l.s4 1934713408
          %v6441 = vunpack.c.0.s8 %v6440
          %v6442 = vperm.slane %v6434, %v6441
          %v6443 = vrot.slane %v6430, 4
          %v6444 = vsel %vm4474, %v6443, %v6424
          %v6445 = vrot.slane %v6424, 4
          %v6446 = vsel %vm4474, %v6430, %v6445
          %v6448 = vunpack.c.l.s4 1934713408
          %v6449 = vunpack.c.0.s8 %v6448
          %v6450 = vperm.slane %v6444, %v6449
          %v6452 = vunpack.c.l.s4 1934713408
          %v6453 = vunpack.c.0.s8 %v6452
          %v6454 = vperm.slane %v6446, %v6453
          %v6455 = vrot.slane %v6450, 4
          %v6456 = vsel %vm4474, %v6455, %v6438
          %v6457 = vrot.slane %v6438, 4
          %v6458 = vsel %vm4474, %v6450, %v6457
          %v6459 = vrot.slane %v6454, 4
          %v6460 = vsel %vm4474, %v6459, %v6442
          %v6461 = vrot.slane %v6442, 4
          %v6462 = vsel %vm4474, %v6454, %v6461
          %v6463 = vsel %vm4474, %v6403, %v6384
          %v6465 = vunpack.c.l.s4 1983009808
          %v6466 = vunpack.c.0.s8 %v6465
          %v6467 = vperm.slane %v6463, %v6466
          %v6468 = vrot.slane %v6404, 4
          %v6469 = vsel %vm4474, %v6468, %v6402
          %v6471 = vunpack.c.l.s4 1983009808
          %v6472 = vunpack.c.0.s8 %v6471
          %v6473 = vperm.slane %v6469, %v6472
          %v6474 = vsel %vm4474, %v6407, %v6396
          %v6476 = vunpack.c.l.s4 1983009808
          %v6477 = vunpack.c.0.s8 %v6476
          %v6478 = vperm.slane %v6474, %v6477
          %v6479 = vrot.slane %v6408, 4
          %v6480 = vsel %vm4474, %v6479, %v6406
          %v6482 = vunpack.c.l.s4 1983009808
          %v6483 = vunpack.c.0.s8 %v6482
          %v6484 = vperm.slane %v6480, %v6483
          %v6485 = vrot.slane %v6473, 4
          %v6486 = vsel %vm4474, %v6485, %v6467
          %v6487 = vrot.slane %v6467, 4
          %v6488 = vsel %vm4474, %v6473, %v6487
          %v6490 = vunpack.c.l.s4 1934713408
          %v6491 = vunpack.c.0.s8 %v6490
          %v6492 = vperm.slane %v6486, %v6491
          %v6494 = vunpack.c.l.s4 1934713408
          %v6495 = vunpack.c.0.s8 %v6494
          %v6496 = vperm.slane %v6488, %v6495
          %v6497 = vrot.slane %v6484, 4
          %v6498 = vsel %vm4474, %v6497, %v6478
          %v6499 = vrot.slane %v6478, 4
          %v6500 = vsel %vm4474, %v6484, %v6499
          %v6502 = vunpack.c.l.s4 1934713408
          %v6503 = vunpack.c.0.s8 %v6502
          %v6504 = vperm.slane %v6498, %v6503
          %v6506 = vunpack.c.l.s4 1934713408
          %v6507 = vunpack.c.0.s8 %v6506
          %v6508 = vperm.slane %v6500, %v6507
          %v6509 = vrot.slane %v6504, 4
          %v6510 = vsel %vm4474, %v6509, %v6492
          %v6511 = vrot.slane %v6492, 4
          %v6512 = vsel %vm4474, %v6504, %v6511
          %v6513 = vrot.slane %v6508, 4
          %v6514 = vsel %vm4474, %v6513, %v6496
          %v6515 = vrot.slane %v6496, 4
          %v6516 = vsel %vm4474, %v6508, %v6515
          %6519 = vrot.lane.b32.xlu0 %v6458, 16
          %v6520 = vpop.permute.xlu0 %6519
          %6521 = vrot.lane.b32.xlu0 %v6512, 16
          %v6522 = vpop.permute.xlu0 %6521
          %6527 = vrot.lane.b32.xlu0 %v6460, 32
          %v6528 = vpop.permute.xlu0 %6527
          %6529 = vrot.lane.b32.xlu0 %v6514, 32
          %v6530 = vpop.permute.xlu0 %6529
          %6535 = vrot.lane.b32.xlu0 %v6462, 48
          %v6536 = vpop.permute.xlu0 %6535
          %6537 = vrot.lane.b32.xlu0 %v6516, 48
          %v6538 = vpop.permute.xlu0 %6537
          %v6541 = vsel %vm4570, %v6456, %v6520
          %v6542 = vsel %vm4570, %v6510, %v6522
          %v6543 = vsel %vm4574, %v6541, %v6528
          %v6544 = vsel %vm4574, %v6542, %v6530
          %v6545 = vsel %vm4578, %v6543, %v6536
          %v6546 = vsel %vm4578, %v6544, %v6538
          %v6547 = vld [vmem:[#allocation9] sm:$0xf]
          %v6548 = vld [vmem:[#allocation9 + $0x4] sm:$0xf]
          %v6549 = vld [vmem:[#allocation9 + $0x8] sm:$0xf]
          %v6550 = vld [vmem:[#allocation9 + $0xc] sm:$0xf]
          %v6551 = vld [vmem:[#allocation9 + $0x10] sm:$0xf]
          %v6552 = vld [vmem:[#allocation9 + $0x14] sm:$0xf]
          %v6553 = vld [vmem:[#allocation9 + $0x18] sm:$0xf]
          %v6554 = vld [vmem:[#allocation9 + $0x1c] sm:$0xf]
          %v6555 = vld [vmem:[#allocation9 + $0x20] sm:$0xf]
          %v6556 = vld [vmem:[#allocation9 + $0x24] sm:$0xf]
          %v6557 = vld [vmem:[#allocation9 + $0x28] sm:$0xf]
          %v6558 = vld [vmem:[#allocation9 + $0x2c] sm:$0xf]
          %v6559 = vld [vmem:[#allocation9 + $0x30] sm:$0xf]
          %v6560 = vld [vmem:[#allocation9 + $0x34] sm:$0xf]
          %v6561 = vld [vmem:[#allocation9 + $0x38] sm:$0xf]
          %v6562 = vld [vmem:[#allocation9 + $0x3c] sm:$0xf]
          %v6563 = vrot.slane %v6237, 4
          %v6564 = vsel %vm4474, %v6563, %v6233
          %v6565 = vrot.slane %v6233, 4
          %v6566 = vsel %vm4474, %v6237, %v6565
          %v6568 = vunpack.c.l.s4 1983009808
          %v6569 = vunpack.c.0.s8 %v6568
          %v6570 = vperm.slane %v6564, %v6569
          %v6572 = vunpack.c.l.s4 1983009808
          %v6573 = vunpack.c.0.s8 %v6572
          %v6574 = vperm.slane %v6566, %v6573
          %v6575 = vrot.slane %v6239, 4
          %v6576 = vsel %vm4474, %v6575, %v6235
          %v6577 = vrot.slane %v6235, 4
          %v6578 = vsel %vm4474, %v6239, %v6577
          %v6580 = vunpack.c.l.s4 1983009808
          %v6581 = vunpack.c.0.s8 %v6580
          %v6582 = vperm.slane %v6576, %v6581
          %v6584 = vunpack.c.l.s4 1983009808
          %v6585 = vunpack.c.0.s8 %v6584
          %v6586 = vperm.slane %v6578, %v6585
          %v6587 = vrot.slane %v6582, 4
          %v6588 = vsel %vm4474, %v6587, %v6570
          %v6589 = vrot.slane %v6570, 4
          %v6590 = vsel %vm4474, %v6582, %v6589
          %v6592 = vunpack.c.l.s4 1934713408
          %v6593 = vunpack.c.0.s8 %v6592
          %v6594 = vperm.slane %v6588, %v6593
          %v6596 = vunpack.c.l.s4 1934713408
          %v6597 = vunpack.c.0.s8 %v6596
          %v6598 = vperm.slane %v6590, %v6597
          %v6599 = vrot.slane %v6586, 4
          %v6600 = vsel %vm4474, %v6599, %v6574
          %v6601 = vrot.slane %v6574, 4
          %v6602 = vsel %vm4474, %v6586, %v6601
          %v6604 = vunpack.c.l.s4 1934713408
          %v6605 = vunpack.c.0.s8 %v6604
          %v6606 = vperm.slane %v6600, %v6605
          %v6608 = vunpack.c.l.s4 1934713408
          %v6609 = vunpack.c.0.s8 %v6608
          %v6610 = vperm.slane %v6602, %v6609
          %v6611 = vrot.slane %v6594, 4
          %v6612 = vsel %vm4474, 0.0, %v6611
          %v6613 = vrot.slane %v6598, 4
          %v6614 = vsel %vm4474, 0.0, %v6613
          %v6615 = vrot.slane %v6606, 4
          %v6616 = vsel %vm4474, 0.0, %v6615
          %v6617 = vrot.slane %v6610, 4
          %v6618 = vsel %vm4474, 0.0, %v6617
          %v6619 = vrot.slane %v6238, 4
          %v6620 = vsel %vm4474, %v6619, %v6234
          %v6621 = vrot.slane %v6234, 4
          %v6622 = vsel %vm4474, %v6238, %v6621
          %v6624 = vunpack.c.l.s4 1983009808
          %v6625 = vunpack.c.0.s8 %v6624
          %v6626 = vperm.slane %v6620, %v6625
          %v6628 = vunpack.c.l.s4 1983009808
          %v6629 = vunpack.c.0.s8 %v6628
          %v6630 = vperm.slane %v6622, %v6629
          %v6631 = vrot.slane %v6240, 4
          %v6632 = vsel %vm4474, %v6631, %v6236
          %v6633 = vrot.slane %v6236, 4
          %v6634 = vsel %vm4474, %v6240, %v6633
          %v6636 = vunpack.c.l.s4 1983009808
          %v6637 = vunpack.c.0.s8 %v6636
          %v6638 = vperm.slane %v6632, %v6637
          %v6640 = vunpack.c.l.s4 1983009808
          %v6641 = vunpack.c.0.s8 %v6640
          %v6642 = vperm.slane %v6634, %v6641
          %v6643 = vrot.slane %v6638, 4
          %v6644 = vsel %vm4474, %v6643, %v6626
          %v6645 = vrot.slane %v6626, 4
          %v6646 = vsel %vm4474, %v6638, %v6645
          %v6648 = vunpack.c.l.s4 1934713408
          %v6649 = vunpack.c.0.s8 %v6648
          %v6650 = vperm.slane %v6644, %v6649
          %v6652 = vunpack.c.l.s4 1934713408
          %v6653 = vunpack.c.0.s8 %v6652
          %v6654 = vperm.slane %v6646, %v6653
          %v6655 = vrot.slane %v6642, 4
          %v6656 = vsel %vm4474, %v6655, %v6630
          %v6657 = vrot.slane %v6630, 4
          %v6658 = vsel %vm4474, %v6642, %v6657
          %v6660 = vunpack.c.l.s4 1934713408
          %v6661 = vunpack.c.0.s8 %v6660
          %v6662 = vperm.slane %v6656, %v6661
          %v6664 = vunpack.c.l.s4 1934713408
          %v6665 = vunpack.c.0.s8 %v6664
          %v6666 = vperm.slane %v6658, %v6665
          %v6667 = vrot.slane %v6650, 4
          %v6668 = vsel %vm4474, 0.0, %v6667
          %v6669 = vrot.slane %v6654, 4
          %v6670 = vsel %vm4474, 0.0, %v6669
          %v6671 = vrot.slane %v6662, 4
          %v6672 = vsel %vm4474, 0.0, %v6671
          %v6673 = vrot.slane %v6666, 4
          %v6674 = vsel %vm4474, 0.0, %v6673
          %6676 = vset.pattern.permute.xlu0 0
          %6677 = vperm.xlu0 %6676, %v6594
          %v6678 = vpop.permute.xlu0 %6677
          %6681 = vset.pattern.permute.xlu0 0
          %6682 = vperm.xlu0 %6681, %v6612
          %v6683 = vpop.permute.xlu0 %6682
          %6686 = vset.pattern.permute.xlu0 0
          %6687 = vperm.xlu0 %6686, %v6598
          %v6688 = vpop.permute.xlu0 %6687
          %6691 = vset.pattern.permute.xlu0 0
          %6692 = vperm.xlu0 %6691, %v6614
          %v6693 = vpop.permute.xlu0 %6692
          %6696 = vset.pattern.permute.xlu0 0
          %6697 = vperm.xlu0 %6696, %v6606
          %v6698 = vpop.permute.xlu0 %6697
          %6701 = vset.pattern.permute.xlu0 0
          %6702 = vperm.xlu0 %6701, %v6616
          %v6703 = vpop.permute.xlu0 %6702
          %6706 = vset.pattern.permute.xlu0 0
          %6707 = vperm.xlu0 %6706, %v6610
          %v6708 = vpop.permute.xlu0 %6707
          %6711 = vset.pattern.permute.xlu0 0
          %6712 = vperm.xlu0 %6711, %v6618
          %v6713 = vpop.permute.xlu0 %6712
          %6716 = vset.pattern.permute.xlu0 0
          %6717 = vperm.xlu0 %6716, %v6650
          %v6718 = vpop.permute.xlu0 %6717
          %6721 = vset.pattern.permute.xlu0 0
          %6722 = vperm.xlu0 %6721, %v6668
          %v6723 = vpop.permute.xlu0 %6722
          %6726 = vset.pattern.permute.xlu0 0
          %6727 = vperm.xlu0 %6726, %v6654
          %v6728 = vpop.permute.xlu0 %6727
          %6731 = vset.pattern.permute.xlu0 0
          %6732 = vperm.xlu0 %6731, %v6670
          %v6733 = vpop.permute.xlu0 %6732
          %6736 = vset.pattern.permute.xlu0 0
          %6737 = vperm.xlu0 %6736, %v6662
          %v6738 = vpop.permute.xlu0 %6737
          %6741 = vset.pattern.permute.xlu0 0
          %6742 = vperm.xlu0 %6741, %v6672
          %v6743 = vpop.permute.xlu0 %6742
          %6746 = vset.pattern.permute.xlu0 0
          %6747 = vperm.xlu0 %6746, %v6666
          %v6748 = vpop.permute.xlu0 %6747
          %6751 = vset.pattern.permute.xlu0 0
          %6752 = vperm.xlu0 %6751, %v6674
          %v6753 = vpop.permute.xlu0 %6752
          %v6755 = vmul.f32 %v6547, %v6678
          %v6756 = vmul.f32 %v6548, %v6683
          %v6757 = vmul.f32 %v6549, %v6688
          %v6758 = vmul.f32 %v6550, %v6693
          %v6759 = vmul.f32 %v6551, %v6698
          %v6760 = vmul.f32 %v6552, %v6703
          %v6761 = vmul.f32 %v6553, %v6708
          %v6762 = vmul.f32 %v6554, %v6713
          %v6763 = vmul.f32 %v6555, %v6718
          %v6764 = vmul.f32 %v6556, %v6723
          %v6765 = vmul.f32 %v6557, %v6728
          %v6766 = vmul.f32 %v6558, %v6733
          %v6767 = vmul.f32 %v6559, %v6738
          %v6768 = vmul.f32 %v6560, %v6743
          %v6769 = vmul.f32 %v6561, %v6748
          %v6770 = vmul.f32 %v6562, %v6753
          %v6773 = vrot.slane %v6223, 1
          %v6774 = vrot.slane %v6223, 2
          %v6775 = vrot.slane %v6223, 3
          %v6776 = vrot.slane %v6223, 4
          %v6777 = vrot.slane %v6223, 5
          %v6778 = vrot.slane %v6223, 6
          %v6779 = vrot.slane %v6223, 7
          %v6780 = vrot.slane %v6224, 1
          %v6781 = vrot.slane %v6224, 2
          %v6782 = vrot.slane %v6224, 3
          %v6783 = vrot.slane %v6224, 4
          %v6784 = vrot.slane %v6224, 5
          %v6785 = vrot.slane %v6224, 6
          %v6786 = vrot.slane %v6224, 7
          %v6787 = vperm.slane %v6223, 0
          %v6788 = vperm.slane %v6773, 0
          %v6789 = vperm.slane %v6774, 0
          %v6790 = vperm.slane %v6775, 0
          %v6791 = vperm.slane %v6776, 0
          %v6792 = vperm.slane %v6777, 0
          %v6793 = vperm.slane %v6778, 0
          %v6794 = vperm.slane %v6779, 0
          %v6795 = vperm.slane %v6224, 0
          %v6796 = vperm.slane %v6780, 0
          %v6797 = vperm.slane %v6781, 0
          %v6798 = vperm.slane %v6782, 0
          %v6799 = vperm.slane %v6783, 0
          %v6800 = vperm.slane %v6784, 0
          %v6801 = vperm.slane %v6785, 0
          %v6802 = vperm.slane %v6786, 0
          %6803 = vset.pattern.permute.xlu0 0
          %6804 = vperm.xlu0 %6803, %v6787
          %v6805 = vpop.permute.xlu0 %6804
          %6807 = vset.pattern.permute.xlu0 0
          %6808 = vperm.xlu0 %6807, %v6788
          %v6809 = vpop.permute.xlu0 %6808
          %6811 = vset.pattern.permute.xlu0 0
          %6812 = vperm.xlu0 %6811, %v6789
          %v6813 = vpop.permute.xlu0 %6812
          %6815 = vset.pattern.permute.xlu0 0
          %6816 = vperm.xlu0 %6815, %v6790
          %v6817 = vpop.permute.xlu0 %6816
          %6819 = vset.pattern.permute.xlu0 0
          %6820 = vperm.xlu0 %6819, %v6791
          %v6821 = vpop.permute.xlu0 %6820
          %6823 = vset.pattern.permute.xlu0 0
          %6824 = vperm.xlu0 %6823, %v6792
          %v6825 = vpop.permute.xlu0 %6824
          %6827 = vset.pattern.permute.xlu0 0
          %6828 = vperm.xlu0 %6827, %v6793
          %v6829 = vpop.permute.xlu0 %6828
          %6831 = vset.pattern.permute.xlu0 0
          %6832 = vperm.xlu0 %6831, %v6794
          %v6833 = vpop.permute.xlu0 %6832
          %6835 = vset.pattern.permute.xlu0 0
          %6836 = vperm.xlu0 %6835, %v6795
          %v6837 = vpop.permute.xlu0 %6836
          %6839 = vset.pattern.permute.xlu0 0
          %6840 = vperm.xlu0 %6839, %v6796
          %v6841 = vpop.permute.xlu0 %6840
          %6843 = vset.pattern.permute.xlu0 0
          %6844 = vperm.xlu0 %6843, %v6797
          %v6845 = vpop.permute.xlu0 %6844
          %6847 = vset.pattern.permute.xlu0 0
          %6848 = vperm.xlu0 %6847, %v6798
          %v6849 = vpop.permute.xlu0 %6848
          %6851 = vset.pattern.permute.xlu0 0
          %6852 = vperm.xlu0 %6851, %v6799
          %v6853 = vpop.permute.xlu0 %6852
          %6855 = vset.pattern.permute.xlu0 0
          %6856 = vperm.xlu0 %6855, %v6800
          %v6857 = vpop.permute.xlu0 %6856
          %6859 = vset.pattern.permute.xlu0 0
          %6860 = vperm.xlu0 %6859, %v6801
          %v6861 = vpop.permute.xlu0 %6860
          %6863 = vset.pattern.permute.xlu0 0
          %6864 = vperm.xlu0 %6863, %v6802
          %v6865 = vpop.permute.xlu0 %6864
          %v6867 = vsub.f32 %v6328, %v6805
          %v6868 = vsub.f32 %v6346, %v6809
          %v6869 = vsub.f32 %v6332, %v6813
          %v6870 = vsub.f32 %v6348, %v6817
          %v6871 = vsub.f32 %v6340, %v6821
          %v6872 = vsub.f32 %v6350, %v6825
          %v6873 = vsub.f32 %v6344, %v6829
          %v6874 = vsub.f32 %v6352, %v6833
          %v6875 = vsub.f32 %v6384, %v6837
          %v6876 = vsub.f32 %v6402, %v6841
          %v6877 = vsub.f32 %v6388, %v6845
          %v6878 = vsub.f32 %v6404, %v6849
          %v6879 = vsub.f32 %v6396, %v6853
          %v6880 = vsub.f32 %v6406, %v6857
          %v6881 = vsub.f32 %v6400, %v6861
          %v6882 = vsub.f32 %v6408, %v6865
          %6883 = vset.pattern.permute.xlu0 1
          %6884 = vperm.xlu0 %6883, %v6787
          %v6885 = vpop.permute.xlu0 %6884
          %6887 = vset.pattern.permute.xlu0 1
          %6888 = vperm.xlu0 %6887, %v6788
          %v6889 = vpop.permute.xlu0 %6888
          %6891 = vset.pattern.permute.xlu0 1
          %6892 = vperm.xlu0 %6891, %v6789
          %v6893 = vpop.permute.xlu0 %6892
          %6895 = vset.pattern.permute.xlu0 1
          %6896 = vperm.xlu0 %6895, %v6790
          %v6897 = vpop.permute.xlu0 %6896
          %6899 = vset.pattern.permute.xlu0 1
          %6900 = vperm.xlu0 %6899, %v6791
          %v6901 = vpop.permute.xlu0 %6900
          %6903 = vset.pattern.permute.xlu0 1
          %6904 = vperm.xlu0 %6903, %v6792
          %v6905 = vpop.permute.xlu0 %6904
          %6907 = vset.pattern.permute.xlu0 1
          %6908 = vperm.xlu0 %6907, %v6793
          %v6909 = vpop.permute.xlu0 %6908
          %6911 = vset.pattern.permute.xlu0 1
          %6912 = vperm.xlu0 %6911, %v6794
          %v6913 = vpop.permute.xlu0 %6912
          %6915 = vset.pattern.permute.xlu0 1
          %6916 = vperm.xlu0 %6915, %v6795
          %v6917 = vpop.permute.xlu0 %6916
          %6919 = vset.pattern.permute.xlu0 1
          %6920 = vperm.xlu0 %6919, %v6796
          %v6921 = vpop.permute.xlu0 %6920
          %6923 = vset.pattern.permute.xlu0 1
          %6924 = vperm.xlu0 %6923, %v6797
          %v6925 = vpop.permute.xlu0 %6924
          %6927 = vset.pattern.permute.xlu0 1
          %6928 = vperm.xlu0 %6927, %v6798
          %v6929 = vpop.permute.xlu0 %6928
          %6931 = vset.pattern.permute.xlu0 1
          %6932 = vperm.xlu0 %6931, %v6799
          %v6933 = vpop.permute.xlu0 %6932
          %6935 = vset.pattern.permute.xlu0 1
          %6936 = vperm.xlu0 %6935, %v6800
          %v6937 = vpop.permute.xlu0 %6936
          %6939 = vset.pattern.permute.xlu0 1
          %6940 = vperm.xlu0 %6939, %v6801
          %v6941 = vpop.permute.xlu0 %6940
          %6943 = vset.pattern.permute.xlu0 1
          %6944 = vperm.xlu0 %6943, %v6802
          %v6945 = vpop.permute.xlu0 %6944
          %v6947 = vsub.f32 %v6328, %v6885
          %v6948 = vsub.f32 %v6346, %v6889
          %v6949 = vsub.f32 %v6332, %v6893
          %v6950 = vsub.f32 %v6348, %v6897
          %v6951 = vsub.f32 %v6340, %v6901
          %v6952 = vsub.f32 %v6350, %v6905
          %v6953 = vsub.f32 %v6344, %v6909
          %v6954 = vsub.f32 %v6352, %v6913
          %v6955 = vsub.f32 %v6384, %v6917
          %v6956 = vsub.f32 %v6402, %v6921
          %v6957 = vsub.f32 %v6388, %v6925
          %v6958 = vsub.f32 %v6404, %v6929
          %v6959 = vsub.f32 %v6396, %v6933
          %v6960 = vsub.f32 %v6406, %v6937
          %v6961 = vsub.f32 %v6400, %v6941
          %v6962 = vsub.f32 %v6408, %v6945
          %6963 = vset.pattern.permute.xlu0 2
          %6964 = vperm.xlu0 %6963, %v6787
          %v6965 = vpop.permute.xlu0 %6964
          %6967 = vset.pattern.permute.xlu0 2
          %6968 = vperm.xlu0 %6967, %v6788
          %v6969 = vpop.permute.xlu0 %6968
          %6971 = vset.pattern.permute.xlu0 2
          %6972 = vperm.xlu0 %6971, %v6789
          %v6973 = vpop.permute.xlu0 %6972
          %6975 = vset.pattern.permute.xlu0 2
          %6976 = vperm.xlu0 %6975, %v6790
          %v6977 = vpop.permute.xlu0 %6976
          %6979 = vset.pattern.permute.xlu0 2
          %6980 = vperm.xlu0 %6979, %v6791
          %v6981 = vpop.permute.xlu0 %6980
          %6983 = vset.pattern.permute.xlu0 2
          %6984 = vperm.xlu0 %6983, %v6792
          %v6985 = vpop.permute.xlu0 %6984
          %6987 = vset.pattern.permute.xlu0 2
          %6988 = vperm.xlu0 %6987, %v6793
          %v6989 = vpop.permute.xlu0 %6988
          %6991 = vset.pattern.permute.xlu0 2
          %6992 = vperm.xlu0 %6991, %v6794
          %v6993 = vpop.permute.xlu0 %6992
          %6995 = vset.pattern.permute.xlu0 2
          %6996 = vperm.xlu0 %6995, %v6795
          %v6997 = vpop.permute.xlu0 %6996
          %6999 = vset.pattern.permute.xlu0 2
          %7000 = vperm.xlu0 %6999, %v6796
          %v7001 = vpop.permute.xlu0 %7000
          %7003 = vset.pattern.permute.xlu0 2
          %7004 = vperm.xlu0 %7003, %v6797
          %v7005 = vpop.permute.xlu0 %7004
          %7007 = vset.pattern.permute.xlu0 2
          %7008 = vperm.xlu0 %7007, %v6798
          %v7009 = vpop.permute.xlu0 %7008
          %7011 = vset.pattern.permute.xlu0 2
          %7012 = vperm.xlu0 %7011, %v6799
          %v7013 = vpop.permute.xlu0 %7012
          %7015 = vset.pattern.permute.xlu0 2
          %7016 = vperm.xlu0 %7015, %v6800
          %v7017 = vpop.permute.xlu0 %7016
          %7019 = vset.pattern.permute.xlu0 2
          %7020 = vperm.xlu0 %7019, %v6801
          %v7021 = vpop.permute.xlu0 %7020
          %7023 = vset.pattern.permute.xlu0 2
          %7024 = vperm.xlu0 %7023, %v6802
          %v7025 = vpop.permute.xlu0 %7024
          %v7027 = vsub.f32 %v6328, %v6965
          %v7028 = vsub.f32 %v6346, %v6969
          %v7029 = vsub.f32 %v6332, %v6973
          %v7030 = vsub.f32 %v6348, %v6977
          %v7031 = vsub.f32 %v6340, %v6981
          %v7032 = vsub.f32 %v6350, %v6985
          %v7033 = vsub.f32 %v6344, %v6989
          %v7034 = vsub.f32 %v6352, %v6993
          %v7035 = vsub.f32 %v6384, %v6997
          %v7036 = vsub.f32 %v6402, %v7001
          %v7037 = vsub.f32 %v6388, %v7005
          %v7038 = vsub.f32 %v6404, %v7009
          %v7039 = vsub.f32 %v6396, %v7013
          %v7040 = vsub.f32 %v6406, %v7017
          %v7041 = vsub.f32 %v6400, %v7021
          %v7042 = vsub.f32 %v6408, %v7025
          %v7045 = vrot.slane %v6221, 1
          %v7046 = vrot.slane %v6221, 2
          %v7047 = vrot.slane %v6221, 3
          %v7048 = vrot.slane %v6221, 4
          %v7049 = vrot.slane %v6221, 5
          %v7050 = vrot.slane %v6221, 6
          %v7051 = vrot.slane %v6221, 7
          %v7052 = vrot.slane %v6222, 1
          %v7053 = vrot.slane %v6222, 2
          %v7054 = vrot.slane %v6222, 3
          %v7055 = vrot.slane %v6222, 4
          %v7056 = vrot.slane %v6222, 5
          %v7057 = vrot.slane %v6222, 6
          %v7058 = vrot.slane %v6222, 7
          %v7059 = vperm.slane %v6221, 0
          %v7060 = vperm.slane %v7045, 0
          %v7061 = vperm.slane %v7046, 0
          %v7062 = vperm.slane %v7047, 0
          %v7063 = vperm.slane %v7048, 0
          %v7064 = vperm.slane %v7049, 0
          %v7065 = vperm.slane %v7050, 0
          %v7066 = vperm.slane %v7051, 0
          %v7067 = vperm.slane %v6222, 0
          %v7068 = vperm.slane %v7052, 0
          %v7069 = vperm.slane %v7053, 0
          %v7070 = vperm.slane %v7054, 0
          %v7071 = vperm.slane %v7055, 0
          %v7072 = vperm.slane %v7056, 0
          %v7073 = vperm.slane %v7057, 0
          %v7074 = vperm.slane %v7058, 0
          %7075 = vset.pattern.permute.xlu0 0
          %7076 = vperm.xlu0 %7075, %v7059
          %v7077 = vpop.permute.xlu0 %7076
          %7079 = vset.pattern.permute.xlu0 0
          %7080 = vperm.xlu0 %7079, %v7060
          %v7081 = vpop.permute.xlu0 %7080
          %7083 = vset.pattern.permute.xlu0 0
          %7084 = vperm.xlu0 %7083, %v7061
          %v7085 = vpop.permute.xlu0 %7084
          %7087 = vset.pattern.permute.xlu0 0
          %7088 = vperm.xlu0 %7087, %v7062
          %v7089 = vpop.permute.xlu0 %7088
          %7091 = vset.pattern.permute.xlu0 0
          %7092 = vperm.xlu0 %7091, %v7063
          %v7093 = vpop.permute.xlu0 %7092
          %7095 = vset.pattern.permute.xlu0 0
          %7096 = vperm.xlu0 %7095, %v7064
          %v7097 = vpop.permute.xlu0 %7096
          %7099 = vset.pattern.permute.xlu0 0
          %7100 = vperm.xlu0 %7099, %v7065
          %v7101 = vpop.permute.xlu0 %7100
          %7103 = vset.pattern.permute.xlu0 0
          %7104 = vperm.xlu0 %7103, %v7066
          %v7105 = vpop.permute.xlu0 %7104
          %7107 = vset.pattern.permute.xlu0 0
          %7108 = vperm.xlu0 %7107, %v7067
          %v7109 = vpop.permute.xlu0 %7108
          %7111 = vset.pattern.permute.xlu0 0
          %7112 = vperm.xlu0 %7111, %v7068
          %v7113 = vpop.permute.xlu0 %7112
          %7115 = vset.pattern.permute.xlu0 0
          %7116 = vperm.xlu0 %7115, %v7069
          %v7117 = vpop.permute.xlu0 %7116
          %7119 = vset.pattern.permute.xlu0 0
          %7120 = vperm.xlu0 %7119, %v7070
          %v7121 = vpop.permute.xlu0 %7120
          %7123 = vset.pattern.permute.xlu0 0
          %7124 = vperm.xlu0 %7123, %v7071
          %v7125 = vpop.permute.xlu0 %7124
          %7127 = vset.pattern.permute.xlu0 0
          %7128 = vperm.xlu0 %7127, %v7072
          %v7129 = vpop.permute.xlu0 %7128
          %7131 = vset.pattern.permute.xlu0 0
          %7132 = vperm.xlu0 %7131, %v7073
          %v7133 = vpop.permute.xlu0 %7132
          %7135 = vset.pattern.permute.xlu0 0
          %7136 = vperm.xlu0 %7135, %v7074
          %v7137 = vpop.permute.xlu0 %7136
          %v7139 = vmul.f32 %v7077, %v6867
          %v7140 = vmul.f32 %v7081, %v6868
          %v7141 = vmul.f32 %v7085, %v6869
          %v7142 = vmul.f32 %v7089, %v6870
          %v7143 = vmul.f32 %v7093, %v6871
          %v7144 = vmul.f32 %v7097, %v6872
          %v7145 = vmul.f32 %v7101, %v6873
          %v7146 = vmul.f32 %v7105, %v6874
          %v7147 = vmul.f32 %v7109, %v6875
          %v7148 = vmul.f32 %v7113, %v6876
          %v7149 = vmul.f32 %v7117, %v6877
          %v7150 = vmul.f32 %v7121, %v6878
          %v7151 = vmul.f32 %v7125, %v6879
          %v7152 = vmul.f32 %v7129, %v6880
          %v7153 = vmul.f32 %v7133, %v6881
          %v7154 = vmul.f32 %v7137, %v6882
          %7155 = vset.pattern.permute.xlu0 3
          %7156 = vperm.xlu0 %7155, %v7059
          %v7157 = vpop.permute.xlu0 %7156
          %7159 = vset.pattern.permute.xlu0 3
          %7160 = vperm.xlu0 %7159, %v7060
          %v7161 = vpop.permute.xlu0 %7160
          %7163 = vset.pattern.permute.xlu0 3
          %7164 = vperm.xlu0 %7163, %v7061
          %v7165 = vpop.permute.xlu0 %7164
          %7167 = vset.pattern.permute.xlu0 3
          %7168 = vperm.xlu0 %7167, %v7062
          %v7169 = vpop.permute.xlu0 %7168
          %7171 = vset.pattern.permute.xlu0 3
          %7172 = vperm.xlu0 %7171, %v7063
          %v7173 = vpop.permute.xlu0 %7172
          %7175 = vset.pattern.permute.xlu0 3
          %7176 = vperm.xlu0 %7175, %v7064
          %v7177 = vpop.permute.xlu0 %7176
          %7179 = vset.pattern.permute.xlu0 3
          %7180 = vperm.xlu0 %7179, %v7065
          %v7181 = vpop.permute.xlu0 %7180
          %7183 = vset.pattern.permute.xlu0 3
          %7184 = vperm.xlu0 %7183, %v7066
          %v7185 = vpop.permute.xlu0 %7184
          %7187 = vset.pattern.permute.xlu0 3
          %7188 = vperm.xlu0 %7187, %v7067
          %v7189 = vpop.permute.xlu0 %7188
          %7191 = vset.pattern.permute.xlu0 3
          %7192 = vperm.xlu0 %7191, %v7068
          %v7193 = vpop.permute.xlu0 %7192
          %7195 = vset.pattern.permute.xlu0 3
          %7196 = vperm.xlu0 %7195, %v7069
          %v7197 = vpop.permute.xlu0 %7196
          %7199 = vset.pattern.permute.xlu0 3
          %7200 = vperm.xlu0 %7199, %v7070
          %v7201 = vpop.permute.xlu0 %7200
          %7203 = vset.pattern.permute.xlu0 3
          %7204 = vperm.xlu0 %7203, %v7071
          %v7205 = vpop.permute.xlu0 %7204
          %7207 = vset.pattern.permute.xlu0 3
          %7208 = vperm.xlu0 %7207, %v7072
          %v7209 = vpop.permute.xlu0 %7208
          %7211 = vset.pattern.permute.xlu0 3
          %7212 = vperm.xlu0 %7211, %v7073
          %v7213 = vpop.permute.xlu0 %7212
          %7215 = vset.pattern.permute.xlu0 3
          %7216 = vperm.xlu0 %7215, %v7074
          %v7217 = vpop.permute.xlu0 %7216
          %v7219 = vmul.f32 %v7157, %v6947
          %v7220 = vmul.f32 %v7161, %v6948
          %v7221 = vmul.f32 %v7165, %v6949
          %v7222 = vmul.f32 %v7169, %v6950
          %v7223 = vmul.f32 %v7173, %v6951
          %v7224 = vmul.f32 %v7177, %v6952
          %v7225 = vmul.f32 %v7181, %v6953
          %v7226 = vmul.f32 %v7185, %v6954
          %v7227 = vmul.f32 %v7189, %v6955
          %v7228 = vmul.f32 %v7193, %v6956
          %v7229 = vmul.f32 %v7197, %v6957
          %v7230 = vmul.f32 %v7201, %v6958
          %v7231 = vmul.f32 %v7205, %v6959
          %v7232 = vmul.f32 %v7209, %v6960
          %v7233 = vmul.f32 %v7213, %v6961
          %v7234 = vmul.f32 %v7217, %v6962
          %7251 = vrot.lane.b32.xlu0 %v7219, 120
          %v7252 = vpop.permute.xlu0 %7251
          %7253 = vrot.lane.b32.xlu0 %v7220, 120
          %v7254 = vpop.permute.xlu0 %7253
          %7255 = vrot.lane.b32.xlu0 %v7221, 120
          %v7256 = vpop.permute.xlu0 %7255
          %7257 = vrot.lane.b32.xlu0 %v7222, 120
          %v7258 = vpop.permute.xlu0 %7257
          %7259 = vrot.lane.b32.xlu0 %v7223, 120
          %v7260 = vpop.permute.xlu0 %7259
          %7261 = vrot.lane.b32.xlu0 %v7224, 120
          %v7262 = vpop.permute.xlu0 %7261
          %7263 = vrot.lane.b32.xlu0 %v7225, 120
          %v7264 = vpop.permute.xlu0 %7263
          %7265 = vrot.lane.b32.xlu0 %v7226, 120
          %v7266 = vpop.permute.xlu0 %7265
          %7267 = vrot.lane.b32.xlu0 %v7227, 120
          %v7268 = vpop.permute.xlu0 %7267
          %7269 = vrot.lane.b32.xlu0 %v7228, 120
          %v7270 = vpop.permute.xlu0 %7269
          %7271 = vrot.lane.b32.xlu0 %v7229, 120
          %v7272 = vpop.permute.xlu0 %7271
          %7273 = vrot.lane.b32.xlu0 %v7230, 120
          %v7274 = vpop.permute.xlu0 %7273
          %7275 = vrot.lane.b32.xlu0 %v7231, 120
          %v7276 = vpop.permute.xlu0 %7275
          %7277 = vrot.lane.b32.xlu0 %v7232, 120
          %v7278 = vpop.permute.xlu0 %7277
          %7279 = vrot.lane.b32.xlu0 %v7233, 120
          %v7280 = vpop.permute.xlu0 %7279
          %7281 = vrot.lane.b32.xlu0 %v7234, 120
          %v7282 = vpop.permute.xlu0 %7281
          %v7299 = vadd.f32 %v7139, %v7252
          %v7300 = vadd.f32 %v7140, %v7254
          %v7301 = vadd.f32 %v7141, %v7256
          %v7302 = vadd.f32 %v7142, %v7258
          %v7303 = vadd.f32 %v7143, %v7260
          %v7304 = vadd.f32 %v7144, %v7262
          %v7305 = vadd.f32 %v7145, %v7264
          %v7306 = vadd.f32 %v7146, %v7266
          %v7307 = vadd.f32 %v7147, %v7268
          %v7308 = vadd.f32 %v7148, %v7270
          %v7309 = vadd.f32 %v7149, %v7272
          %v7310 = vadd.f32 %v7150, %v7274
          %v7311 = vadd.f32 %v7151, %v7276
          %v7312 = vadd.f32 %v7152, %v7278
          %v7313 = vadd.f32 %v7153, %v7280
          %v7314 = vadd.f32 %v7154, %v7282
          %7315 = vset.pattern.permute.xlu0 6
          %7316 = vperm.xlu0 %7315, %v7059
          %v7317 = vpop.permute.xlu0 %7316
          %7319 = vset.pattern.permute.xlu0 6
          %7320 = vperm.xlu0 %7319, %v7060
          %v7321 = vpop.permute.xlu0 %7320
          %7323 = vset.pattern.permute.xlu0 6
          %7324 = vperm.xlu0 %7323, %v7061
          %v7325 = vpop.permute.xlu0 %7324
          %7327 = vset.pattern.permute.xlu0 6
          %7328 = vperm.xlu0 %7327, %v7062
          %v7329 = vpop.permute.xlu0 %7328
          %7331 = vset.pattern.permute.xlu0 6
          %7332 = vperm.xlu0 %7331, %v7063
          %v7333 = vpop.permute.xlu0 %7332
          %7335 = vset.pattern.permute.xlu0 6
          %7336 = vperm.xlu0 %7335, %v7064
          %v7337 = vpop.permute.xlu0 %7336
          %7339 = vset.pattern.permute.xlu0 6
          %7340 = vperm.xlu0 %7339, %v7065
          %v7341 = vpop.permute.xlu0 %7340
          %7343 = vset.pattern.permute.xlu0 6
          %7344 = vperm.xlu0 %7343, %v7066
          %v7345 = vpop.permute.xlu0 %7344
          %7347 = vset.pattern.permute.xlu0 6
          %7348 = vperm.xlu0 %7347, %v7067
          %v7349 = vpop.permute.xlu0 %7348
          %7351 = vset.pattern.permute.xlu0 6
          %7352 = vperm.xlu0 %7351, %v7068
          %v7353 = vpop.permute.xlu0 %7352
          %7355 = vset.pattern.permute.xlu0 6
          %7356 = vperm.xlu0 %7355, %v7069
          %v7357 = vpop.permute.xlu0 %7356
          %7359 = vset.pattern.permute.xlu0 6
          %7360 = vperm.xlu0 %7359, %v7070
          %v7361 = vpop.permute.xlu0 %7360
          %7363 = vset.pattern.permute.xlu0 6
          %7364 = vperm.xlu0 %7363, %v7071
          %v7365 = vpop.permute.xlu0 %7364
          %7367 = vset.pattern.permute.xlu0 6
          %7368 = vperm.xlu0 %7367, %v7072
          %v7369 = vpop.permute.xlu0 %7368
          %7371 = vset.pattern.permute.xlu0 6
          %7372 = vperm.xlu0 %7371, %v7073
          %v7373 = vpop.permute.xlu0 %7372
          %7375 = vset.pattern.permute.xlu0 6
          %7376 = vperm.xlu0 %7375, %v7074
          %v7377 = vpop.permute.xlu0 %7376
          %v7379 = vmul.f32 %v7317, %v7027
          %v7380 = vmul.f32 %v7321, %v7028
          %v7381 = vmul.f32 %v7325, %v7029
          %v7382 = vmul.f32 %v7329, %v7030
          %v7383 = vmul.f32 %v7333, %v7031
          %v7384 = vmul.f32 %v7337, %v7032
          %v7385 = vmul.f32 %v7341, %v7033
          %v7386 = vmul.f32 %v7345, %v7034
          %v7387 = vmul.f32 %v7349, %v7035
          %v7388 = vmul.f32 %v7353, %v7036
          %v7389 = vmul.f32 %v7357, %v7037
          %v7390 = vmul.f32 %v7361, %v7038
          %v7391 = vmul.f32 %v7365, %v7039
          %v7392 = vmul.f32 %v7369, %v7040
          %v7393 = vmul.f32 %v7373, %v7041
          %v7394 = vmul.f32 %v7377, %v7042
          %7411 = vrot.lane.b32.xlu0 %v7379, 112
          %v7412 = vpop.permute.xlu0 %7411
          %7413 = vrot.lane.b32.xlu0 %v7380, 112
          %v7414 = vpop.permute.xlu0 %7413
          %7415 = vrot.lane.b32.xlu0 %v7381, 112
          %v7416 = vpop.permute.xlu0 %7415
          %7417 = vrot.lane.b32.xlu0 %v7382, 112
          %v7418 = vpop.permute.xlu0 %7417
          %7419 = vrot.lane.b32.xlu0 %v7383, 112
          %v7420 = vpop.permute.xlu0 %7419
          %7421 = vrot.lane.b32.xlu0 %v7384, 112
          %v7422 = vpop.permute.xlu0 %7421
          %7423 = vrot.lane.b32.xlu0 %v7385, 112
          %v7424 = vpop.permute.xlu0 %7423
          %7425 = vrot.lane.b32.xlu0 %v7386, 112
          %v7426 = vpop.permute.xlu0 %7425
          %7427 = vrot.lane.b32.xlu0 %v7387, 112
          %v7428 = vpop.permute.xlu0 %7427
          %7429 = vrot.lane.b32.xlu0 %v7388, 112
          %v7430 = vpop.permute.xlu0 %7429
          %7431 = vrot.lane.b32.xlu0 %v7389, 112
          %v7432 = vpop.permute.xlu0 %7431
          %7433 = vrot.lane.b32.xlu0 %v7390, 112
          %v7434 = vpop.permute.xlu0 %7433
          %7435 = vrot.lane.b32.xlu0 %v7391, 112
          %v7436 = vpop.permute.xlu0 %7435
          %7437 = vrot.lane.b32.xlu0 %v7392, 112
          %v7438 = vpop.permute.xlu0 %7437
          %7439 = vrot.lane.b32.xlu0 %v7393, 112
          %v7440 = vpop.permute.xlu0 %7439
          %7441 = vrot.lane.b32.xlu0 %v7394, 112
          %v7442 = vpop.permute.xlu0 %7441
          %v7459 = vadd.f32 %v7299, %v7412
          %v7460 = vadd.f32 %v7300, %v7414
          %v7461 = vadd.f32 %v7301, %v7416
          %v7462 = vadd.f32 %v7302, %v7418
          %v7463 = vadd.f32 %v7303, %v7420
          %v7464 = vadd.f32 %v7304, %v7422
          %v7465 = vadd.f32 %v7305, %v7424
          %v7466 = vadd.f32 %v7306, %v7426
          %v7467 = vadd.f32 %v7307, %v7428
          %v7468 = vadd.f32 %v7308, %v7430
          %v7469 = vadd.f32 %v7309, %v7432
          %v7470 = vadd.f32 %v7310, %v7434
          %v7471 = vadd.f32 %v7311, %v7436
          %v7472 = vadd.f32 %v7312, %v7438
          %v7473 = vadd.f32 %v7313, %v7440
          %v7474 = vadd.f32 %v7314, %v7442
          %7475 = vset.pattern.permute.xlu0 1
          %7476 = vperm.xlu0 %7475, %v7059
          %v7477 = vpop.permute.xlu0 %7476
          %7479 = vset.pattern.permute.xlu0 1
          %7480 = vperm.xlu0 %7479, %v7060
          %v7481 = vpop.permute.xlu0 %7480
          %7483 = vset.pattern.permute.xlu0 1
          %7484 = vperm.xlu0 %7483, %v7061
          %v7485 = vpop.permute.xlu0 %7484
          %7487 = vset.pattern.permute.xlu0 1
          %7488 = vperm.xlu0 %7487, %v7062
          %v7489 = vpop.permute.xlu0 %7488
          %7491 = vset.pattern.permute.xlu0 1
          %7492 = vperm.xlu0 %7491, %v7063
          %v7493 = vpop.permute.xlu0 %7492
          %7495 = vset.pattern.permute.xlu0 1
          %7496 = vperm.xlu0 %7495, %v7064
          %v7497 = vpop.permute.xlu0 %7496
          %7499 = vset.pattern.permute.xlu0 1
          %7500 = vperm.xlu0 %7499, %v7065
          %v7501 = vpop.permute.xlu0 %7500
          %7503 = vset.pattern.permute.xlu0 1
          %7504 = vperm.xlu0 %7503, %v7066
          %v7505 = vpop.permute.xlu0 %7504
          %7507 = vset.pattern.permute.xlu0 1
          %7508 = vperm.xlu0 %7507, %v7067
          %v7509 = vpop.permute.xlu0 %7508
          %7511 = vset.pattern.permute.xlu0 1
          %7512 = vperm.xlu0 %7511, %v7068
          %v7513 = vpop.permute.xlu0 %7512
          %7515 = vset.pattern.permute.xlu0 1
          %7516 = vperm.xlu0 %7515, %v7069
          %v7517 = vpop.permute.xlu0 %7516
          %7519 = vset.pattern.permute.xlu0 1
          %7520 = vperm.xlu0 %7519, %v7070
          %v7521 = vpop.permute.xlu0 %7520
          %7523 = vset.pattern.permute.xlu0 1
          %7524 = vperm.xlu0 %7523, %v7071
          %v7525 = vpop.permute.xlu0 %7524
          %7527 = vset.pattern.permute.xlu0 1
          %7528 = vperm.xlu0 %7527, %v7072
          %v7529 = vpop.permute.xlu0 %7528
          %7531 = vset.pattern.permute.xlu0 1
          %7532 = vperm.xlu0 %7531, %v7073
          %v7533 = vpop.permute.xlu0 %7532
          %7535 = vset.pattern.permute.xlu0 1
          %7536 = vperm.xlu0 %7535, %v7074
          %v7537 = vpop.permute.xlu0 %7536
          %v7539 = vmul.f32 %v7477, %v6867
          %v7540 = vmul.f32 %v7481, %v6868
          %v7541 = vmul.f32 %v7485, %v6869
          %v7542 = vmul.f32 %v7489, %v6870
          %v7543 = vmul.f32 %v7493, %v6871
          %v7544 = vmul.f32 %v7497, %v6872
          %v7545 = vmul.f32 %v7501, %v6873
          %v7546 = vmul.f32 %v7505, %v6874
          %v7547 = vmul.f32 %v7509, %v6875
          %v7548 = vmul.f32 %v7513, %v6876
          %v7549 = vmul.f32 %v7517, %v6877
          %v7550 = vmul.f32 %v7521, %v6878
          %v7551 = vmul.f32 %v7525, %v6879
          %v7552 = vmul.f32 %v7529, %v6880
          %v7553 = vmul.f32 %v7533, %v6881
          %v7554 = vmul.f32 %v7537, %v6882
          %7555 = vset.pattern.permute.xlu0 4
          %7556 = vperm.xlu0 %7555, %v7059
          %v7557 = vpop.permute.xlu0 %7556
          %7559 = vset.pattern.permute.xlu0 4
          %7560 = vperm.xlu0 %7559, %v7060
          %v7561 = vpop.permute.xlu0 %7560
          %7563 = vset.pattern.permute.xlu0 4
          %7564 = vperm.xlu0 %7563, %v7061
          %v7565 = vpop.permute.xlu0 %7564
          %7567 = vset.pattern.permute.xlu0 4
          %7568 = vperm.xlu0 %7567, %v7062
          %v7569 = vpop.permute.xlu0 %7568
          %7571 = vset.pattern.permute.xlu0 4
          %7572 = vperm.xlu0 %7571, %v7063
          %v7573 = vpop.permute.xlu0 %7572
          %7575 = vset.pattern.permute.xlu0 4
          %7576 = vperm.xlu0 %7575, %v7064
          %v7577 = vpop.permute.xlu0 %7576
          %7579 = vset.pattern.permute.xlu0 4
          %7580 = vperm.xlu0 %7579, %v7065
          %v7581 = vpop.permute.xlu0 %7580
          %7583 = vset.pattern.permute.xlu0 4
          %7584 = vperm.xlu0 %7583, %v7066
          %v7585 = vpop.permute.xlu0 %7584
          %7587 = vset.pattern.permute.xlu0 4
          %7588 = vperm.xlu0 %7587, %v7067
          %v7589 = vpop.permute.xlu0 %7588
          %7591 = vset.pattern.permute.xlu0 4
          %7592 = vperm.xlu0 %7591, %v7068
          %v7593 = vpop.permute.xlu0 %7592
          %7595 = vset.pattern.permute.xlu0 4
          %7596 = vperm.xlu0 %7595, %v7069
          %v7597 = vpop.permute.xlu0 %7596
          %7599 = vset.pattern.permute.xlu0 4
          %7600 = vperm.xlu0 %7599, %v7070
          %v7601 = vpop.permute.xlu0 %7600
          %7603 = vset.pattern.permute.xlu0 4
          %7604 = vperm.xlu0 %7603, %v7071
          %v7605 = vpop.permute.xlu0 %7604
          %7607 = vset.pattern.permute.xlu0 4
          %7608 = vperm.xlu0 %7607, %v7072
          %v7609 = vpop.permute.xlu0 %7608
          %7611 = vset.pattern.permute.xlu0 4
          %7612 = vperm.xlu0 %7611, %v7073
          %v7613 = vpop.permute.xlu0 %7612
          %7615 = vset.pattern.permute.xlu0 4
          %7616 = vperm.xlu0 %7615, %v7074
          %v7617 = vpop.permute.xlu0 %7616
          %v7619 = vmul.f32 %v7557, %v6947
          %v7620 = vmul.f32 %v7561, %v6948
          %v7621 = vmul.f32 %v7565, %v6949
          %v7622 = vmul.f32 %v7569, %v6950
          %v7623 = vmul.f32 %v7573, %v6951
          %v7624 = vmul.f32 %v7577, %v6952
          %v7625 = vmul.f32 %v7581, %v6953
          %v7626 = vmul.f32 %v7585, %v6954
          %v7627 = vmul.f32 %v7589, %v6955
          %v7628 = vmul.f32 %v7593, %v6956
          %v7629 = vmul.f32 %v7597, %v6957
          %v7630 = vmul.f32 %v7601, %v6958
          %v7631 = vmul.f32 %v7605, %v6959
          %v7632 = vmul.f32 %v7609, %v6960
          %v7633 = vmul.f32 %v7613, %v6961
          %v7634 = vmul.f32 %v7617, %v6962
          %7651 = vrot.lane.b32.xlu0 %v7619, 120
          %v7652 = vpop.permute.xlu0 %7651
          %7653 = vrot.lane.b32.xlu0 %v7620, 120
          %v7654 = vpop.permute.xlu0 %7653
          %7655 = vrot.lane.b32.xlu0 %v7621, 120
          %v7656 = vpop.permute.xlu0 %7655
          %7657 = vrot.lane.b32.xlu0 %v7622, 120
          %v7658 = vpop.permute.xlu0 %7657
          %7659 = vrot.lane.b32.xlu0 %v7623, 120
          %v7660 = vpop.permute.xlu0 %7659
          %7661 = vrot.lane.b32.xlu0 %v7624, 120
          %v7662 = vpop.permute.xlu0 %7661
          %7663 = vrot.lane.b32.xlu0 %v7625, 120
          %v7664 = vpop.permute.xlu0 %7663
          %7665 = vrot.lane.b32.xlu0 %v7626, 120
          %v7666 = vpop.permute.xlu0 %7665
          %7667 = vrot.lane.b32.xlu0 %v7627, 120
          %v7668 = vpop.permute.xlu0 %7667
          %7669 = vrot.lane.b32.xlu0 %v7628, 120
          %v7670 = vpop.permute.xlu0 %7669
          %7671 = vrot.lane.b32.xlu0 %v7629, 120
          %v7672 = vpop.permute.xlu0 %7671
          %7673 = vrot.lane.b32.xlu0 %v7630, 120
          %v7674 = vpop.permute.xlu0 %7673
          %7675 = vrot.lane.b32.xlu0 %v7631, 120
          %v7676 = vpop.permute.xlu0 %7675
          %7677 = vrot.lane.b32.xlu0 %v7632, 120
          %v7678 = vpop.permute.xlu0 %7677
          %7679 = vrot.lane.b32.xlu0 %v7633, 120
          %v7680 = vpop.permute.xlu0 %7679
          %7681 = vrot.lane.b32.xlu0 %v7634, 120
          %v7682 = vpop.permute.xlu0 %7681
          %v7699 = vadd.f32 %v7539, %v7652
          %v7700 = vadd.f32 %v7540, %v7654
          %v7701 = vadd.f32 %v7541, %v7656
          %v7702 = vadd.f32 %v7542, %v7658
          %v7703 = vadd.f32 %v7543, %v7660
          %v7704 = vadd.f32 %v7544, %v7662
          %v7705 = vadd.f32 %v7545, %v7664
          %v7706 = vadd.f32 %v7546, %v7666
          %v7707 = vadd.f32 %v7547, %v7668
          %v7708 = vadd.f32 %v7548, %v7670
          %v7709 = vadd.f32 %v7549, %v7672
          %v7710 = vadd.f32 %v7550, %v7674
          %v7711 = vadd.f32 %v7551, %v7676
          %v7712 = vadd.f32 %v7552, %v7678
          %v7713 = vadd.f32 %v7553, %v7680
          %v7714 = vadd.f32 %v7554, %v7682
          %7715 = vset.pattern.permute.xlu0 7
          %7716 = vperm.xlu0 %7715, %v7059
          %v7717 = vpop.permute.xlu0 %7716
          %7719 = vset.pattern.permute.xlu0 7
          %7720 = vperm.xlu0 %7719, %v7060
          %v7721 = vpop.permute.xlu0 %7720
          %7723 = vset.pattern.permute.xlu0 7
          %7724 = vperm.xlu0 %7723, %v7061
          %v7725 = vpop.permute.xlu0 %7724
          %7727 = vset.pattern.permute.xlu0 7
          %7728 = vperm.xlu0 %7727, %v7062
          %v7729 = vpop.permute.xlu0 %7728
          %7731 = vset.pattern.permute.xlu0 7
          %7732 = vperm.xlu0 %7731, %v7063
          %v7733 = vpop.permute.xlu0 %7732
          %7735 = vset.pattern.permute.xlu0 7
          %7736 = vperm.xlu0 %7735, %v7064
          %v7737 = vpop.permute.xlu0 %7736
          %7739 = vset.pattern.permute.xlu0 7
          %7740 = vperm.xlu0 %7739, %v7065
          %v7741 = vpop.permute.xlu0 %7740
          %7743 = vset.pattern.permute.xlu0 7
          %7744 = vperm.xlu0 %7743, %v7066
          %v7745 = vpop.permute.xlu0 %7744
          %7747 = vset.pattern.permute.xlu0 7
          %7748 = vperm.xlu0 %7747, %v7067
          %v7749 = vpop.permute.xlu0 %7748
          %7751 = vset.pattern.permute.xlu0 7
          %7752 = vperm.xlu0 %7751, %v7068
          %v7753 = vpop.permute.xlu0 %7752
          %7755 = vset.pattern.permute.xlu0 7
          %7756 = vperm.xlu0 %7755, %v7069
          %v7757 = vpop.permute.xlu0 %7756
          %7759 = vset.pattern.permute.xlu0 7
          %7760 = vperm.xlu0 %7759, %v7070
          %v7761 = vpop.permute.xlu0 %7760
          %7763 = vset.pattern.permute.xlu0 7
          %7764 = vperm.xlu0 %7763, %v7071
          %v7765 = vpop.permute.xlu0 %7764
          %7767 = vset.pattern.permute.xlu0 7
          %7768 = vperm.xlu0 %7767, %v7072
          %v7769 = vpop.permute.xlu0 %7768
          %7771 = vset.pattern.permute.xlu0 7
          %7772 = vperm.xlu0 %7771, %v7073
          %v7773 = vpop.permute.xlu0 %7772
          %7775 = vset.pattern.permute.xlu0 7
          %7776 = vperm.xlu0 %7775, %v7074
          %v7777 = vpop.permute.xlu0 %7776
          %v7779 = vmul.f32 %v7717, %v7027
          %v7780 = vmul.f32 %v7721, %v7028
          %v7781 = vmul.f32 %v7725, %v7029
          %v7782 = vmul.f32 %v7729, %v7030
          %v7783 = vmul.f32 %v7733, %v7031
          %v7784 = vmul.f32 %v7737, %v7032
          %v7785 = vmul.f32 %v7741, %v7033
          %v7786 = vmul.f32 %v7745, %v7034
          %v7787 = vmul.f32 %v7749, %v7035
          %v7788 = vmul.f32 %v7753, %v7036
          %v7789 = vmul.f32 %v7757, %v7037
          %v7790 = vmul.f32 %v7761, %v7038
          %v7791 = vmul.f32 %v7765, %v7039
          %v7792 = vmul.f32 %v7769, %v7040
          %v7793 = vmul.f32 %v7773, %v7041
          %v7794 = vmul.f32 %v7777, %v7042
          %7811 = vrot.lane.b32.xlu0 %v7779, 112
          %v7812 = vpop.permute.xlu0 %7811
          %7813 = vrot.lane.b32.xlu0 %v7780, 112
          %v7814 = vpop.permute.xlu0 %7813
          %7815 = vrot.lane.b32.xlu0 %v7781, 112
          %v7816 = vpop.permute.xlu0 %7815
          %7817 = vrot.lane.b32.xlu0 %v7782, 112
          %v7818 = vpop.permute.xlu0 %7817
          %7819 = vrot.lane.b32.xlu0 %v7783, 112
          %v7820 = vpop.permute.xlu0 %7819
          %7821 = vrot.lane.b32.xlu0 %v7784, 112
          %v7822 = vpop.permute.xlu0 %7821
          %7823 = vrot.lane.b32.xlu0 %v7785, 112
          %v7824 = vpop.permute.xlu0 %7823
          %7825 = vrot.lane.b32.xlu0 %v7786, 112
          %v7826 = vpop.permute.xlu0 %7825
          %7827 = vrot.lane.b32.xlu0 %v7787, 112
          %v7828 = vpop.permute.xlu0 %7827
          %7829 = vrot.lane.b32.xlu0 %v7788, 112
          %v7830 = vpop.permute.xlu0 %7829
          %7831 = vrot.lane.b32.xlu0 %v7789, 112
          %v7832 = vpop.permute.xlu0 %7831
          %7833 = vrot.lane.b32.xlu0 %v7790, 112
          %v7834 = vpop.permute.xlu0 %7833
          %7835 = vrot.lane.b32.xlu0 %v7791, 112
          %v7836 = vpop.permute.xlu0 %7835
          %7837 = vrot.lane.b32.xlu0 %v7792, 112
          %v7838 = vpop.permute.xlu0 %7837
          %7839 = vrot.lane.b32.xlu0 %v7793, 112
          %v7840 = vpop.permute.xlu0 %7839
          %7841 = vrot.lane.b32.xlu0 %v7794, 112
          %v7842 = vpop.permute.xlu0 %7841
          %v7859 = vadd.f32 %v7699, %v7812
          %v7860 = vadd.f32 %v7700, %v7814
          %v7861 = vadd.f32 %v7701, %v7816
          %v7862 = vadd.f32 %v7702, %v7818
          %v7863 = vadd.f32 %v7703, %v7820
          %v7864 = vadd.f32 %v7704, %v7822
          %v7865 = vadd.f32 %v7705, %v7824
          %v7866 = vadd.f32 %v7706, %v7826
          %v7867 = vadd.f32 %v7707, %v7828
          %v7868 = vadd.f32 %v7708, %v7830
          %v7869 = vadd.f32 %v7709, %v7832
          %v7870 = vadd.f32 %v7710, %v7834
          %v7871 = vadd.f32 %v7711, %v7836
          %v7872 = vadd.f32 %v7712, %v7838
          %v7873 = vadd.f32 %v7713, %v7840
          %v7874 = vadd.f32 %v7714, %v7842
          %7875 = vset.pattern.permute.xlu0 2
          %7876 = vperm.xlu0 %7875, %v7059
          %v7877 = vpop.permute.xlu0 %7876
          %7879 = vset.pattern.permute.xlu0 2
          %7880 = vperm.xlu0 %7879, %v7060
          %v7881 = vpop.permute.xlu0 %7880
          %7883 = vset.pattern.permute.xlu0 2
          %7884 = vperm.xlu0 %7883, %v7061
          %v7885 = vpop.permute.xlu0 %7884
          %7887 = vset.pattern.permute.xlu0 2
          %7888 = vperm.xlu0 %7887, %v7062
          %v7889 = vpop.permute.xlu0 %7888
          %7891 = vset.pattern.permute.xlu0 2
          %7892 = vperm.xlu0 %7891, %v7063
          %v7893 = vpop.permute.xlu0 %7892
          %7895 = vset.pattern.permute.xlu0 2
          %7896 = vperm.xlu0 %7895, %v7064
          %v7897 = vpop.permute.xlu0 %7896
          %7899 = vset.pattern.permute.xlu0 2
          %7900 = vperm.xlu0 %7899, %v7065
          %v7901 = vpop.permute.xlu0 %7900
          %7903 = vset.pattern.permute.xlu0 2
          %7904 = vperm.xlu0 %7903, %v7066
          %v7905 = vpop.permute.xlu0 %7904
          %7907 = vset.pattern.permute.xlu0 2
          %7908 = vperm.xlu0 %7907, %v7067
          %v7909 = vpop.permute.xlu0 %7908
          %7911 = vset.pattern.permute.xlu0 2
          %7912 = vperm.xlu0 %7911, %v7068
          %v7913 = vpop.permute.xlu0 %7912
          %7915 = vset.pattern.permute.xlu0 2
          %7916 = vperm.xlu0 %7915, %v7069
          %v7917 = vpop.permute.xlu0 %7916
          %7919 = vset.pattern.permute.xlu0 2
          %7920 = vperm.xlu0 %7919, %v7070
          %v7921 = vpop.permute.xlu0 %7920
          %7923 = vset.pattern.permute.xlu0 2
          %7924 = vperm.xlu0 %7923, %v7071
          %v7925 = vpop.permute.xlu0 %7924
          %7927 = vset.pattern.permute.xlu0 2
          %7928 = vperm.xlu0 %7927, %v7072
          %v7929 = vpop.permute.xlu0 %7928
          %7931 = vset.pattern.permute.xlu0 2
          %7932 = vperm.xlu0 %7931, %v7073
          %v7933 = vpop.permute.xlu0 %7932
          %7935 = vset.pattern.permute.xlu0 2
          %7936 = vperm.xlu0 %7935, %v7074
          %v7937 = vpop.permute.xlu0 %7936
          %v7939 = vmul.f32 %v7877, %v6867
          %v7940 = vmul.f32 %v7881, %v6868
          %v7941 = vmul.f32 %v7885, %v6869
          %v7942 = vmul.f32 %v7889, %v6870
          %v7943 = vmul.f32 %v7893, %v6871
          %v7944 = vmul.f32 %v7897, %v6872
          %v7945 = vmul.f32 %v7901, %v6873
          %v7946 = vmul.f32 %v7905, %v6874
          %v7947 = vmul.f32 %v7909, %v6875
          %v7948 = vmul.f32 %v7913, %v6876
          %v7949 = vmul.f32 %v7917, %v6877
          %v7950 = vmul.f32 %v7921, %v6878
          %v7951 = vmul.f32 %v7925, %v6879
          %v7952 = vmul.f32 %v7929, %v6880
          %v7953 = vmul.f32 %v7933, %v6881
          %v7954 = vmul.f32 %v7937, %v6882
          %7955 = vset.pattern.permute.xlu0 5
          %7956 = vperm.xlu0 %7955, %v7059
          %v7957 = vpop.permute.xlu0 %7956
          %7959 = vset.pattern.permute.xlu0 5
          %7960 = vperm.xlu0 %7959, %v7060
          %v7961 = vpop.permute.xlu0 %7960
          %7963 = vset.pattern.permute.xlu0 5
          %7964 = vperm.xlu0 %7963, %v7061
          %v7965 = vpop.permute.xlu0 %7964
          %7967 = vset.pattern.permute.xlu0 5
          %7968 = vperm.xlu0 %7967, %v7062
          %v7969 = vpop.permute.xlu0 %7968
          %7971 = vset.pattern.permute.xlu0 5
          %7972 = vperm.xlu0 %7971, %v7063
          %v7973 = vpop.permute.xlu0 %7972
          %7975 = vset.pattern.permute.xlu0 5
          %7976 = vperm.xlu0 %7975, %v7064
          %v7977 = vpop.permute.xlu0 %7976
          %7979 = vset.pattern.permute.xlu0 5
          %7980 = vperm.xlu0 %7979, %v7065
          %v7981 = vpop.permute.xlu0 %7980
          %7983 = vset.pattern.permute.xlu0 5
          %7984 = vperm.xlu0 %7983, %v7066
          %v7985 = vpop.permute.xlu0 %7984
          %7987 = vset.pattern.permute.xlu0 5
          %7988 = vperm.xlu0 %7987, %v7067
          %v7989 = vpop.permute.xlu0 %7988
          %7991 = vset.pattern.permute.xlu0 5
          %7992 = vperm.xlu0 %7991, %v7068
          %v7993 = vpop.permute.xlu0 %7992
          %7995 = vset.pattern.permute.xlu0 5
          %7996 = vperm.xlu0 %7995, %v7069
          %v7997 = vpop.permute.xlu0 %7996
          %7999 = vset.pattern.permute.xlu0 5
          %8000 = vperm.xlu0 %7999, %v7070
          %v8001 = vpop.permute.xlu0 %8000
          %8003 = vset.pattern.permute.xlu0 5
          %8004 = vperm.xlu0 %8003, %v7071
          %v8005 = vpop.permute.xlu0 %8004
          %8007 = vset.pattern.permute.xlu0 5
          %8008 = vperm.xlu0 %8007, %v7072
          %v8009 = vpop.permute.xlu0 %8008
          %8011 = vset.pattern.permute.xlu0 5
          %8012 = vperm.xlu0 %8011, %v7073
          %v8013 = vpop.permute.xlu0 %8012
          %8015 = vset.pattern.permute.xlu0 5
          %8016 = vperm.xlu0 %8015, %v7074
          %v8017 = vpop.permute.xlu0 %8016
          %v8019 = vmul.f32 %v7957, %v6947
          %v8020 = vmul.f32 %v7961, %v6948
          %v8021 = vmul.f32 %v7965, %v6949
          %v8022 = vmul.f32 %v7969, %v6950
          %v8023 = vmul.f32 %v7973, %v6951
          %v8024 = vmul.f32 %v7977, %v6952
          %v8025 = vmul.f32 %v7981, %v6953
          %v8026 = vmul.f32 %v7985, %v6954
          %v8027 = vmul.f32 %v7989, %v6955
          %v8028 = vmul.f32 %v7993, %v6956
          %v8029 = vmul.f32 %v7997, %v6957
          %v8030 = vmul.f32 %v8001, %v6958
          %v8031 = vmul.f32 %v8005, %v6959
          %v8032 = vmul.f32 %v8009, %v6960
          %v8033 = vmul.f32 %v8013, %v6961
          %v8034 = vmul.f32 %v8017, %v6962
          %8051 = vrot.lane.b32.xlu0 %v8019, 120
          %v8052 = vpop.permute.xlu0 %8051
          %8053 = vrot.lane.b32.xlu0 %v8020, 120
          %v8054 = vpop.permute.xlu0 %8053
          %8055 = vrot.lane.b32.xlu0 %v8021, 120
          %v8056 = vpop.permute.xlu0 %8055
          %8057 = vrot.lane.b32.xlu0 %v8022, 120
          %v8058 = vpop.permute.xlu0 %8057
          %8059 = vrot.lane.b32.xlu0 %v8023, 120
          %v8060 = vpop.permute.xlu0 %8059
          %8061 = vrot.lane.b32.xlu0 %v8024, 120
          %v8062 = vpop.permute.xlu0 %8061
          %8063 = vrot.lane.b32.xlu0 %v8025, 120
          %v8064 = vpop.permute.xlu0 %8063
          %8065 = vrot.lane.b32.xlu0 %v8026, 120
          %v8066 = vpop.permute.xlu0 %8065
          %8067 = vrot.lane.b32.xlu0 %v8027, 120
          %v8068 = vpop.permute.xlu0 %8067
          %8069 = vrot.lane.b32.xlu0 %v8028, 120
          %v8070 = vpop.permute.xlu0 %8069
          %8071 = vrot.lane.b32.xlu0 %v8029, 120
          %v8072 = vpop.permute.xlu0 %8071
          %8073 = vrot.lane.b32.xlu0 %v8030, 120
          %v8074 = vpop.permute.xlu0 %8073
          %8075 = vrot.lane.b32.xlu0 %v8031, 120
          %v8076 = vpop.permute.xlu0 %8075
          %8077 = vrot.lane.b32.xlu0 %v8032, 120
          %v8078 = vpop.permute.xlu0 %8077
          %8079 = vrot.lane.b32.xlu0 %v8033, 120
          %v8080 = vpop.permute.xlu0 %8079
          %8081 = vrot.lane.b32.xlu0 %v8034, 120
          %v8082 = vpop.permute.xlu0 %8081
          %v8099 = vadd.f32 %v7939, %v8052
          %v8100 = vadd.f32 %v7940, %v8054
          %v8101 = vadd.f32 %v7941, %v8056
          %v8102 = vadd.f32 %v7942, %v8058
          %v8103 = vadd.f32 %v7943, %v8060
          %v8104 = vadd.f32 %v7944, %v8062
          %v8105 = vadd.f32 %v7945, %v8064
          %v8106 = vadd.f32 %v7946, %v8066
          %v8107 = vadd.f32 %v7947, %v8068
          %v8108 = vadd.f32 %v7948, %v8070
          %v8109 = vadd.f32 %v7949, %v8072
          %v8110 = vadd.f32 %v7950, %v8074
          %v8111 = vadd.f32 %v7951, %v8076
          %v8112 = vadd.f32 %v7952, %v8078
          %v8113 = vadd.f32 %v7953, %v8080
          %v8114 = vadd.f32 %v7954, %v8082
          %8115 = vset.pattern.permute.xlu0 8
          %8116 = vperm.xlu0 %8115, %v7059
          %v8117 = vpop.permute.xlu0 %8116
          %8119 = vset.pattern.permute.xlu0 8
          %8120 = vperm.xlu0 %8119, %v7060
          %v8121 = vpop.permute.xlu0 %8120
          %8123 = vset.pattern.permute.xlu0 8
          %8124 = vperm.xlu0 %8123, %v7061
          %v8125 = vpop.permute.xlu0 %8124
          %8127 = vset.pattern.permute.xlu0 8
          %8128 = vperm.xlu0 %8127, %v7062
          %v8129 = vpop.permute.xlu0 %8128
          %8131 = vset.pattern.permute.xlu0 8
          %8132 = vperm.xlu0 %8131, %v7063
          %v8133 = vpop.permute.xlu0 %8132
          %8135 = vset.pattern.permute.xlu0 8
          %8136 = vperm.xlu0 %8135, %v7064
          %v8137 = vpop.permute.xlu0 %8136
          %8139 = vset.pattern.permute.xlu0 8
          %8140 = vperm.xlu0 %8139, %v7065
          %v8141 = vpop.permute.xlu0 %8140
          %8143 = vset.pattern.permute.xlu0 8
          %8144 = vperm.xlu0 %8143, %v7066
          %v8145 = vpop.permute.xlu0 %8144
          %8147 = vset.pattern.permute.xlu0 8
          %8148 = vperm.xlu0 %8147, %v7067
          %v8149 = vpop.permute.xlu0 %8148
          %8151 = vset.pattern.permute.xlu0 8
          %8152 = vperm.xlu0 %8151, %v7068
          %v8153 = vpop.permute.xlu0 %8152
          %8155 = vset.pattern.permute.xlu0 8
          %8156 = vperm.xlu0 %8155, %v7069
          %v8157 = vpop.permute.xlu0 %8156
          %8159 = vset.pattern.permute.xlu0 8
          %8160 = vperm.xlu0 %8159, %v7070
          %v8161 = vpop.permute.xlu0 %8160
          %8163 = vset.pattern.permute.xlu0 8
          %8164 = vperm.xlu0 %8163, %v7071
          %v8165 = vpop.permute.xlu0 %8164
          %8167 = vset.pattern.permute.xlu0 8
          %8168 = vperm.xlu0 %8167, %v7072
          %v8169 = vpop.permute.xlu0 %8168
          %8171 = vset.pattern.permute.xlu0 8
          %8172 = vperm.xlu0 %8171, %v7073
          %v8173 = vpop.permute.xlu0 %8172
          %8175 = vset.pattern.permute.xlu0 8
          %8176 = vperm.xlu0 %8175, %v7074
          %v8177 = vpop.permute.xlu0 %8176
          %v8179 = vmul.f32 %v8117, %v7027
          %v8180 = vmul.f32 %v8121, %v7028
          %v8181 = vmul.f32 %v8125, %v7029
          %v8182 = vmul.f32 %v8129, %v7030
          %v8183 = vmul.f32 %v8133, %v7031
          %v8184 = vmul.f32 %v8137, %v7032
          %v8185 = vmul.f32 %v8141, %v7033
          %v8186 = vmul.f32 %v8145, %v7034
          %v8187 = vmul.f32 %v8149, %v7035
          %v8188 = vmul.f32 %v8153, %v7036
          %v8189 = vmul.f32 %v8157, %v7037
          %v8190 = vmul.f32 %v8161, %v7038
          %v8191 = vmul.f32 %v8165, %v7039
          %v8192 = vmul.f32 %v8169, %v7040
          %v8193 = vmul.f32 %v8173, %v7041
          %v8194 = vmul.f32 %v8177, %v7042
          %8211 = vrot.lane.b32.xlu0 %v8179, 112
          %v8212 = vpop.permute.xlu0 %8211
          %8213 = vrot.lane.b32.xlu0 %v8180, 112
          %v8214 = vpop.permute.xlu0 %8213
          %8215 = vrot.lane.b32.xlu0 %v8181, 112
          %v8216 = vpop.permute.xlu0 %8215
          %8217 = vrot.lane.b32.xlu0 %v8182, 112
          %v8218 = vpop.permute.xlu0 %8217
          %8219 = vrot.lane.b32.xlu0 %v8183, 112
          %v8220 = vpop.permute.xlu0 %8219
          %8221 = vrot.lane.b32.xlu0 %v8184, 112
          %v8222 = vpop.permute.xlu0 %8221
          %8223 = vrot.lane.b32.xlu0 %v8185, 112
          %v8224 = vpop.permute.xlu0 %8223
          %8225 = vrot.lane.b32.xlu0 %v8186, 112
          %v8226 = vpop.permute.xlu0 %8225
          %8227 = vrot.lane.b32.xlu0 %v8187, 112
          %v8228 = vpop.permute.xlu0 %8227
          %8229 = vrot.lane.b32.xlu0 %v8188, 112
          %v8230 = vpop.permute.xlu0 %8229
          %8231 = vrot.lane.b32.xlu0 %v8189, 112
          %v8232 = vpop.permute.xlu0 %8231
          %8233 = vrot.lane.b32.xlu0 %v8190, 112
          %v8234 = vpop.permute.xlu0 %8233
          %8235 = vrot.lane.b32.xlu0 %v8191, 112
          %v8236 = vpop.permute.xlu0 %8235
          %8237 = vrot.lane.b32.xlu0 %v8192, 112
          %v8238 = vpop.permute.xlu0 %8237
          %8239 = vrot.lane.b32.xlu0 %v8193, 112
          %v8240 = vpop.permute.xlu0 %8239
          %8241 = vrot.lane.b32.xlu0 %v8194, 112
          %v8242 = vpop.permute.xlu0 %8241
          %v8259 = vadd.f32 %v8099, %v8212
          %v8260 = vadd.f32 %v8100, %v8214
          %v8261 = vadd.f32 %v8101, %v8216
          %v8262 = vadd.f32 %v8102, %v8218
          %v8263 = vadd.f32 %v8103, %v8220
          %v8264 = vadd.f32 %v8104, %v8222
          %v8265 = vadd.f32 %v8105, %v8224
          %v8266 = vadd.f32 %v8106, %v8226
          %v8267 = vadd.f32 %v8107, %v8228
          %v8268 = vadd.f32 %v8108, %v8230
          %v8269 = vadd.f32 %v8109, %v8232
          %v8270 = vadd.f32 %v8110, %v8234
          %v8271 = vadd.f32 %v8111, %v8236
          %v8272 = vadd.f32 %v8112, %v8238
          %v8273 = vadd.f32 %v8113, %v8240
          %v8274 = vadd.f32 %v8114, %v8242
          %v8275 = vmul.f32 %v7459, %v7459
          %v8276 = vmul.f32 %v7460, %v7460
          %v8277 = vmul.f32 %v7461, %v7461
          %v8278 = vmul.f32 %v7462, %v7462
          %v8279 = vmul.f32 %v7463, %v7463
          %v8280 = vmul.f32 %v7464, %v7464
          %v8281 = vmul.f32 %v7465, %v7465
          %v8282 = vmul.f32 %v7466, %v7466
          %v8283 = vmul.f32 %v7467, %v7467
          %v8284 = vmul.f32 %v7468, %v7468
          %v8285 = vmul.f32 %v7469, %v7469
          %v8286 = vmul.f32 %v7470, %v7470
          %v8287 = vmul.f32 %v7471, %v7471
          %v8288 = vmul.f32 %v7472, %v7472
          %v8289 = vmul.f32 %v7473, %v7473
          %v8290 = vmul.f32 %v7474, %v7474
          %v8291 = vmul.f32 %v7859, %v7859
          %v8292 = vmul.f32 %v7860, %v7860
          %v8293 = vmul.f32 %v7861, %v7861
          %v8294 = vmul.f32 %v7862, %v7862
          %v8295 = vmul.f32 %v7863, %v7863
          %v8296 = vmul.f32 %v7864, %v7864
          %v8297 = vmul.f32 %v7865, %v7865
          %v8298 = vmul.f32 %v7866, %v7866
          %v8299 = vmul.f32 %v7867, %v7867
          %v8300 = vmul.f32 %v7868, %v7868
          %v8301 = vmul.f32 %v7869, %v7869
          %v8302 = vmul.f32 %v7870, %v7870
          %v8303 = vmul.f32 %v7871, %v7871
          %v8304 = vmul.f32 %v7872, %v7872
          %v8305 = vmul.f32 %v7873, %v7873
          %v8306 = vmul.f32 %v7874, %v7874
          %v8307 = vadd.f32 %v8275, %v8291
          %v8308 = vadd.f32 %v8276, %v8292
          %v8309 = vadd.f32 %v8277, %v8293
          %v8310 = vadd.f32 %v8278, %v8294
          %v8311 = vadd.f32 %v8279, %v8295
          %v8312 = vadd.f32 %v8280, %v8296
          %v8313 = vadd.f32 %v8281, %v8297
          %v8314 = vadd.f32 %v8282, %v8298
          %v8315 = vadd.f32 %v8283, %v8299
          %v8316 = vadd.f32 %v8284, %v8300
          %v8317 = vadd.f32 %v8285, %v8301
          %v8318 = vadd.f32 %v8286, %v8302
          %v8319 = vadd.f32 %v8287, %v8303
          %v8320 = vadd.f32 %v8288, %v8304
          %v8321 = vadd.f32 %v8289, %v8305
          %v8322 = vadd.f32 %v8290, %v8306
          %v8323 = vmul.f32 %v8259, %v8259
          %v8324 = vmul.f32 %v8260, %v8260
          %v8325 = vmul.f32 %v8261, %v8261
          %v8326 = vmul.f32 %v8262, %v8262
          %v8327 = vmul.f32 %v8263, %v8263
          %v8328 = vmul.f32 %v8264, %v8264
          %v8329 = vmul.f32 %v8265, %v8265
          %v8330 = vmul.f32 %v8266, %v8266
          %v8331 = vmul.f32 %v8267, %v8267
          %v8332 = vmul.f32 %v8268, %v8268
          %v8333 = vmul.f32 %v8269, %v8269
          %v8334 = vmul.f32 %v8270, %v8270
          %v8335 = vmul.f32 %v8271, %v8271
          %v8336 = vmul.f32 %v8272, %v8272
          %v8337 = vmul.f32 %v8273, %v8273
          %v8338 = vmul.f32 %v8274, %v8274
          %v8339 = vadd.f32 %v8307, %v8323
          %v8340 = vadd.f32 %v8308, %v8324
          %v8341 = vadd.f32 %v8309, %v8325
          %v8342 = vadd.f32 %v8310, %v8326
          %v8343 = vadd.f32 %v8311, %v8327
          %v8344 = vadd.f32 %v8312, %v8328
          %v8345 = vadd.f32 %v8313, %v8329
          %v8346 = vadd.f32 %v8314, %v8330
          %v8347 = vadd.f32 %v8315, %v8331
          %v8348 = vadd.f32 %v8316, %v8332
          %v8349 = vadd.f32 %v8317, %v8333
          %v8350 = vadd.f32 %v8318, %v8334
          %v8351 = vadd.f32 %v8319, %v8335
          %v8352 = vadd.f32 %v8320, %v8336
          %v8353 = vadd.f32 %v8321, %v8337
          %v8354 = vadd.f32 %v8322, %v8338
          %v8355 = vadd.f32 %v8339, 1e-08
          %v8356 = vadd.f32 %v8340, 1e-08
          %v8357 = vadd.f32 %v8341, 1e-08
          %v8358 = vadd.f32 %v8342, 1e-08
          %v8359 = vadd.f32 %v8343, 1e-08
          %v8360 = vadd.f32 %v8344, 1e-08
          %v8361 = vadd.f32 %v8345, 1e-08
          %v8362 = vadd.f32 %v8346, 1e-08
          %v8363 = vadd.f32 %v8347, 1e-08
          %v8364 = vadd.f32 %v8348, 1e-08
          %v8365 = vadd.f32 %v8349, 1e-08
          %v8366 = vadd.f32 %v8350, 1e-08
          %v8367 = vadd.f32 %v8351, 1e-08
          %v8368 = vadd.f32 %v8352, 1e-08
          %v8369 = vadd.f32 %v8353, 1e-08
          %v8370 = vadd.f32 %v8354, 1e-08
          %v8371 = vrsqrt.pop %v8355
          %v8372 = vmul.f32 %v8371, %v8355
          %v8373 = vmul.f32 %v8372, %v8371
          %v8374 = vmul.f32 0.5, %v8373
          %v8375 = vsub.f32 1.5, %v8374
          %v8376 = vmul.f32 %v8371, %v8375
          %v8377 = vmul.f32 %v8355, %v8376
          %vm8378 = vcmp.eq.f32.partialorder %v8355, inf
          %v8379 = vsel %vm8378, %v8355, %v8377
          %vm8380 = vcmp.eq.f32.partialorder %v8355, 0.0
          %v8381 = vand.u32 %v8355, 2147483648
          %v8382 = vsel %vm8380, %v8381, %v8379
          %v8383 = vrsqrt.pop %v8356
          %v8384 = vmul.f32 %v8383, %v8356
          %v8385 = vmul.f32 %v8384, %v8383
          %v8386 = vmul.f32 0.5, %v8385
          %v8387 = vsub.f32 1.5, %v8386
          %v8388 = vmul.f32 %v8383, %v8387
          %v8389 = vmul.f32 %v8356, %v8388
          %vm8390 = vcmp.eq.f32.partialorder %v8356, inf
          %v8391 = vsel %vm8390, %v8356, %v8389
          %vm8392 = vcmp.eq.f32.partialorder %v8356, 0.0
          %v8393 = vand.u32 %v8356, 2147483648
          %v8394 = vsel %vm8392, %v8393, %v8391
          %v8395 = vrsqrt.pop %v8357
          %v8396 = vmul.f32 %v8395, %v8357
          %v8397 = vmul.f32 %v8396, %v8395
          %v8398 = vmul.f32 0.5, %v8397
          %v8399 = vsub.f32 1.5, %v8398
          %v8400 = vmul.f32 %v8395, %v8399
          %v8401 = vmul.f32 %v8357, %v8400
          %vm8402 = vcmp.eq.f32.partialorder %v8357, inf
          %v8403 = vsel %vm8402, %v8357, %v8401
          %vm8404 = vcmp.eq.f32.partialorder %v8357, 0.0
          %v8405 = vand.u32 %v8357, 2147483648
          %v8406 = vsel %vm8404, %v8405, %v8403
          %v8407 = vrsqrt.pop %v8358
          %v8408 = vmul.f32 %v8407, %v8358
          %v8409 = vmul.f32 %v8408, %v8407
          %v8410 = vmul.f32 0.5, %v8409
          %v8411 = vsub.f32 1.5, %v8410
          %v8412 = vmul.f32 %v8407, %v8411
          %v8413 = vmul.f32 %v8358, %v8412
          %vm8414 = vcmp.eq.f32.partialorder %v8358, inf
          %v8415 = vsel %vm8414, %v8358, %v8413
          %vm8416 = vcmp.eq.f32.partialorder %v8358, 0.0
          %v8417 = vand.u32 %v8358, 2147483648
          %v8418 = vsel %vm8416, %v8417, %v8415
          %v8419 = vrsqrt.pop %v8359
          %v8420 = vmul.f32 %v8419, %v8359
          %v8421 = vmul.f32 %v8420, %v8419
          %v8422 = vmul.f32 0.5, %v8421
          %v8423 = vsub.f32 1.5, %v8422
          %v8424 = vmul.f32 %v8419, %v8423
          %v8425 = vmul.f32 %v8359, %v8424
          %vm8426 = vcmp.eq.f32.partialorder %v8359, inf
          %v8427 = vsel %vm8426, %v8359, %v8425
          %vm8428 = vcmp.eq.f32.partialorder %v8359, 0.0
          %v8429 = vand.u32 %v8359, 2147483648
          %v8430 = vsel %vm8428, %v8429, %v8427
          %v8431 = vrsqrt.pop %v8360
          %v8432 = vmul.f32 %v8431, %v8360
          %v8433 = vmul.f32 %v8432, %v8431
          %v8434 = vmul.f32 0.5, %v8433
          %v8435 = vsub.f32 1.5, %v8434
          %v8436 = vmul.f32 %v8431, %v8435
          %v8437 = vmul.f32 %v8360, %v8436
          %vm8438 = vcmp.eq.f32.partialorder %v8360, inf
          %v8439 = vsel %vm8438, %v8360, %v8437
          %vm8440 = vcmp.eq.f32.partialorder %v8360, 0.0
          %v8441 = vand.u32 %v8360, 2147483648
          %v8442 = vsel %vm8440, %v8441, %v8439
          %v8443 = vrsqrt.pop %v8361
          %v8444 = vmul.f32 %v8443, %v8361
          %v8445 = vmul.f32 %v8444, %v8443
          %v8446 = vmul.f32 0.5, %v8445
          %v8447 = vsub.f32 1.5, %v8446
          %v8448 = vmul.f32 %v8443, %v8447
          %v8449 = vmul.f32 %v8361, %v8448
          %vm8450 = vcmp.eq.f32.partialorder %v8361, inf
          %v8451 = vsel %vm8450, %v8361, %v8449
          %vm8452 = vcmp.eq.f32.partialorder %v8361, 0.0
          %v8453 = vand.u32 %v8361, 2147483648
          %v8454 = vsel %vm8452, %v8453, %v8451
          %v8455 = vrsqrt.pop %v8362
          %v8456 = vmul.f32 %v8455, %v8362
          %v8457 = vmul.f32 %v8456, %v8455
          %v8458 = vmul.f32 0.5, %v8457
          %v8459 = vsub.f32 1.5, %v8458
          %v8460 = vmul.f32 %v8455, %v8459
          %v8461 = vmul.f32 %v8362, %v8460
          %vm8462 = vcmp.eq.f32.partialorder %v8362, inf
          %v8463 = vsel %vm8462, %v8362, %v8461
          %vm8464 = vcmp.eq.f32.partialorder %v8362, 0.0
          %v8465 = vand.u32 %v8362, 2147483648
          %v8466 = vsel %vm8464, %v8465, %v8463
          %v8467 = vrsqrt.pop %v8363
          %v8468 = vmul.f32 %v8467, %v8363
          %v8469 = vmul.f32 %v8468, %v8467
          %v8470 = vmul.f32 0.5, %v8469
          %v8471 = vsub.f32 1.5, %v8470
          %v8472 = vmul.f32 %v8467, %v8471
          %v8473 = vmul.f32 %v8363, %v8472
          %vm8474 = vcmp.eq.f32.partialorder %v8363, inf
          %v8475 = vsel %vm8474, %v8363, %v8473
          %vm8476 = vcmp.eq.f32.partialorder %v8363, 0.0
          %v8477 = vand.u32 %v8363, 2147483648
          %v8478 = vsel %vm8476, %v8477, %v8475
          %v8479 = vrsqrt.pop %v8364
          %v8480 = vmul.f32 %v8479, %v8364
          %v8481 = vmul.f32 %v8480, %v8479
          %v8482 = vmul.f32 0.5, %v8481
          %v8483 = vsub.f32 1.5, %v8482
          %v8484 = vmul.f32 %v8479, %v8483
          %v8485 = vmul.f32 %v8364, %v8484
          %vm8486 = vcmp.eq.f32.partialorder %v8364, inf
          %v8487 = vsel %vm8486, %v8364, %v8485
          %vm8488 = vcmp.eq.f32.partialorder %v8364, 0.0
          %v8489 = vand.u32 %v8364, 2147483648
          %v8490 = vsel %vm8488, %v8489, %v8487
          %v8491 = vrsqrt.pop %v8365
          %v8492 = vmul.f32 %v8491, %v8365
          %v8493 = vmul.f32 %v8492, %v8491
          %v8494 = vmul.f32 0.5, %v8493
          %v8495 = vsub.f32 1.5, %v8494
          %v8496 = vmul.f32 %v8491, %v8495
          %v8497 = vmul.f32 %v8365, %v8496
          %vm8498 = vcmp.eq.f32.partialorder %v8365, inf
          %v8499 = vsel %vm8498, %v8365, %v8497
          %vm8500 = vcmp.eq.f32.partialorder %v8365, 0.0
          %v8501 = vand.u32 %v8365, 2147483648
          %v8502 = vsel %vm8500, %v8501, %v8499
          %v8503 = vrsqrt.pop %v8366
          %v8504 = vmul.f32 %v8503, %v8366
          %v8505 = vmul.f32 %v8504, %v8503
          %v8506 = vmul.f32 0.5, %v8505
          %v8507 = vsub.f32 1.5, %v8506
          %v8508 = vmul.f32 %v8503, %v8507
          %v8509 = vmul.f32 %v8366, %v8508
          %vm8510 = vcmp.eq.f32.partialorder %v8366, inf
          %v8511 = vsel %vm8510, %v8366, %v8509
          %vm8512 = vcmp.eq.f32.partialorder %v8366, 0.0
          %v8513 = vand.u32 %v8366, 2147483648
          %v8514 = vsel %vm8512, %v8513, %v8511
          %v8515 = vrsqrt.pop %v8367
          %v8516 = vmul.f32 %v8515, %v8367
          %v8517 = vmul.f32 %v8516, %v8515
          %v8518 = vmul.f32 0.5, %v8517
          %v8519 = vsub.f32 1.5, %v8518
          %v8520 = vmul.f32 %v8515, %v8519
          %v8521 = vmul.f32 %v8367, %v8520
          %vm8522 = vcmp.eq.f32.partialorder %v8367, inf
          %v8523 = vsel %vm8522, %v8367, %v8521
          %vm8524 = vcmp.eq.f32.partialorder %v8367, 0.0
          %v8525 = vand.u32 %v8367, 2147483648
          %v8526 = vsel %vm8524, %v8525, %v8523
          %v8527 = vrsqrt.pop %v8368
          %v8528 = vmul.f32 %v8527, %v8368
          %v8529 = vmul.f32 %v8528, %v8527
          %v8530 = vmul.f32 0.5, %v8529
          %v8531 = vsub.f32 1.5, %v8530
          %v8532 = vmul.f32 %v8527, %v8531
          %v8533 = vmul.f32 %v8368, %v8532
          %vm8534 = vcmp.eq.f32.partialorder %v8368, inf
          %v8535 = vsel %vm8534, %v8368, %v8533
          %vm8536 = vcmp.eq.f32.partialorder %v8368, 0.0
          %v8537 = vand.u32 %v8368, 2147483648
          %v8538 = vsel %vm8536, %v8537, %v8535
          %v8539 = vrsqrt.pop %v8369
          %v8540 = vmul.f32 %v8539, %v8369
          %v8541 = vmul.f32 %v8540, %v8539
          %v8542 = vmul.f32 0.5, %v8541
          %v8543 = vsub.f32 1.5, %v8542
          %v8544 = vmul.f32 %v8539, %v8543
          %v8545 = vmul.f32 %v8369, %v8544
          %vm8546 = vcmp.eq.f32.partialorder %v8369, inf
          %v8547 = vsel %vm8546, %v8369, %v8545
          %vm8548 = vcmp.eq.f32.partialorder %v8369, 0.0
          %v8549 = vand.u32 %v8369, 2147483648
          %v8550 = vsel %vm8548, %v8549, %v8547
          %v8551 = vrsqrt.pop %v8370
          %v8552 = vmul.f32 %v8551, %v8370
          %v8553 = vmul.f32 %v8552, %v8551
          %v8554 = vmul.f32 0.5, %v8553
          %v8555 = vsub.f32 1.5, %v8554
          %v8556 = vmul.f32 %v8551, %v8555
          %v8557 = vmul.f32 %v8370, %v8556
          %vm8558 = vcmp.eq.f32.partialorder %v8370, inf
          %v8559 = vsel %vm8558, %v8370, %v8557
          %vm8560 = vcmp.eq.f32.partialorder %v8370, 0.0
          %v8561 = vand.u32 %v8370, 2147483648
          %v8562 = vsel %vm8560, %v8561, %v8559
          %8579 = vrot.lane.b32.xlu0 %v7459, 112
          %v8580 = vpop.permute.xlu0 %8579
          %8581 = vrot.lane.b32.xlu0 %v7460, 112
          %v8582 = vpop.permute.xlu0 %8581
          %8583 = vrot.lane.b32.xlu0 %v7461, 112
          %v8584 = vpop.permute.xlu0 %8583
          %8585 = vrot.lane.b32.xlu0 %v7462, 112
          %v8586 = vpop.permute.xlu0 %8585
          %8587 = vrot.lane.b32.xlu0 %v7463, 112
          %v8588 = vpop.permute.xlu0 %8587
          %8589 = vrot.lane.b32.xlu0 %v7464, 112
          %v8590 = vpop.permute.xlu0 %8589
          %8591 = vrot.lane.b32.xlu0 %v7465, 112
          %v8592 = vpop.permute.xlu0 %8591
          %8593 = vrot.lane.b32.xlu0 %v7466, 112
          %v8594 = vpop.permute.xlu0 %8593
          %8595 = vrot.lane.b32.xlu0 %v7467, 112
          %v8596 = vpop.permute.xlu0 %8595
          %8597 = vrot.lane.b32.xlu0 %v7468, 112
          %v8598 = vpop.permute.xlu0 %8597
          %8599 = vrot.lane.b32.xlu0 %v7469, 112
          %v8600 = vpop.permute.xlu0 %8599
          %8601 = vrot.lane.b32.xlu0 %v7470, 112
          %v8602 = vpop.permute.xlu0 %8601
          %8603 = vrot.lane.b32.xlu0 %v7471, 112
          %v8604 = vpop.permute.xlu0 %8603
          %8605 = vrot.lane.b32.xlu0 %v7472, 112
          %v8606 = vpop.permute.xlu0 %8605
          %8607 = vrot.lane.b32.xlu0 %v7473, 112
          %v8608 = vpop.permute.xlu0 %8607
          %8609 = vrot.lane.b32.xlu0 %v7474, 112
          %v8610 = vpop.permute.xlu0 %8609
          %v8627 = vrot.slane %v8584, 4
          %v8628 = vsel %vm4474, %v8627, %v8580
          %v8630 = vunpack.c.l.s4 1983009808
          %v8631 = vunpack.c.0.s8 %v8630
          %v8632 = vperm.slane %v8628, %v8631
          %v8633 = vrot.slane %v8586, 4
          %v8634 = vsel %vm4474, %v8633, %v8582
          %v8636 = vunpack.c.l.s4 1983009808
          %v8637 = vunpack.c.0.s8 %v8636
          %v8638 = vperm.slane %v8634, %v8637
          %v8639 = vrot.slane %v8592, 4
          %v8640 = vsel %vm4474, %v8639, %v8588
          %v8642 = vunpack.c.l.s4 1983009808
          %v8643 = vunpack.c.0.s8 %v8642
          %v8644 = vperm.slane %v8640, %v8643
          %v8645 = vrot.slane %v8594, 4
          %v8646 = vsel %vm4474, %v8645, %v8590
          %v8648 = vunpack.c.l.s4 1983009808
          %v8649 = vunpack.c.0.s8 %v8648
          %v8650 = vperm.slane %v8646, %v8649
          %v8651 = vrot.slane %v8638, 4
          %v8652 = vsel %vm4474, %v8651, %v8632
          %v8653 = vrot.slane %v8632, 4
          %v8654 = vsel %vm4474, %v8638, %v8653
          %v8656 = vunpack.c.l.s4 1934713408
          %v8657 = vunpack.c.0.s8 %v8656
          %v8658 = vperm.slane %v8652, %v8657
          %v8660 = vunpack.c.l.s4 1934713408
          %v8661 = vunpack.c.0.s8 %v8660
          %v8662 = vperm.slane %v8654, %v8661
          %v8663 = vrot.slane %v8650, 4
          %v8664 = vsel %vm4474, %v8663, %v8644
          %v8665 = vrot.slane %v8644, 4
          %v8666 = vsel %vm4474, %v8650, %v8665
          %v8668 = vunpack.c.l.s4 1934713408
          %v8669 = vunpack.c.0.s8 %v8668
          %v8670 = vperm.slane %v8664, %v8669
          %v8672 = vunpack.c.l.s4 1934713408
          %v8673 = vunpack.c.0.s8 %v8672
          %v8674 = vperm.slane %v8666, %v8673
          %v8675 = vrot.slane %v8670, 4
          %v8676 = vsel %vm4474, %v8675, %v8658
          %v8677 = vrot.slane %v8658, 4
          %v8678 = vsel %vm4474, %v8670, %v8677
          %v8679 = vrot.slane %v8674, 4
          %v8680 = vsel %vm4474, %v8679, %v8662
          %v8681 = vrot.slane %v8662, 4
          %v8682 = vsel %vm4474, %v8674, %v8681
          %v8683 = vrot.slane %v8600, 4
          %v8684 = vsel %vm4474, %v8683, %v8596
          %v8686 = vunpack.c.l.s4 1983009808
          %v8687 = vunpack.c.0.s8 %v8686
          %v8688 = vperm.slane %v8684, %v8687
          %v8689 = vrot.slane %v8602, 4
          %v8690 = vsel %vm4474, %v8689, %v8598
          %v8692 = vunpack.c.l.s4 1983009808
          %v8693 = vunpack.c.0.s8 %v8692
          %v8694 = vperm.slane %v8690, %v8693
          %v8695 = vrot.slane %v8608, 4
          %v8696 = vsel %vm4474, %v8695, %v8604
          %v8698 = vunpack.c.l.s4 1983009808
          %v8699 = vunpack.c.0.s8 %v8698
          %v8700 = vperm.slane %v8696, %v8699
          %v8701 = vrot.slane %v8610, 4
          %v8702 = vsel %vm4474, %v8701, %v8606
          %v8704 = vunpack.c.l.s4 1983009808
          %v8705 = vunpack.c.0.s8 %v8704
          %v8706 = vperm.slane %v8702, %v8705
          %v8707 = vrot.slane %v8694, 4
          %v8708 = vsel %vm4474, %v8707, %v8688
          %v8709 = vrot.slane %v8688, 4
          %v8710 = vsel %vm4474, %v8694, %v8709
          %v8712 = vunpack.c.l.s4 1934713408
          %v8713 = vunpack.c.0.s8 %v8712
          %v8714 = vperm.slane %v8708, %v8713
          %v8716 = vunpack.c.l.s4 1934713408
          %v8717 = vunpack.c.0.s8 %v8716
          %v8718 = vperm.slane %v8710, %v8717
          %v8719 = vrot.slane %v8706, 4
          %v8720 = vsel %vm4474, %v8719, %v8700
          %v8721 = vrot.slane %v8700, 4
          %v8722 = vsel %vm4474, %v8706, %v8721
          %v8724 = vunpack.c.l.s4 1934713408
          %v8725 = vunpack.c.0.s8 %v8724
          %v8726 = vperm.slane %v8720, %v8725
          %v8728 = vunpack.c.l.s4 1934713408
          %v8729 = vunpack.c.0.s8 %v8728
          %v8730 = vperm.slane %v8722, %v8729
          %v8731 = vrot.slane %v8726, 4
          %v8732 = vsel %vm4474, %v8731, %v8714
          %v8733 = vrot.slane %v8714, 4
          %v8734 = vsel %vm4474, %v8726, %v8733
          %v8735 = vrot.slane %v8730, 4
          %v8736 = vsel %vm4474, %v8735, %v8718
          %v8737 = vrot.slane %v8718, 4
          %v8738 = vsel %vm4474, %v8730, %v8737
          %8741 = vrot.lane.b32.xlu0 %v8678, 8
          %v8742 = vpop.permute.xlu0 %8741
          %8743 = vrot.lane.b32.xlu0 %v8734, 8
          %v8744 = vpop.permute.xlu0 %8743
          %8749 = vrot.lane.b32.xlu0 %v8680, 16
          %v8750 = vpop.permute.xlu0 %8749
          %8751 = vrot.lane.b32.xlu0 %v8736, 16
          %v8752 = vpop.permute.xlu0 %8751
          %8757 = vrot.lane.b32.xlu0 %v8682, 24
          %v8758 = vpop.permute.xlu0 %8757
          %8759 = vrot.lane.b32.xlu0 %v8738, 24
          %v8760 = vpop.permute.xlu0 %8759
          %v8763 = vsel %vm4568, %v8676, %v8742
          %v8764 = vsel %vm4568, %v8732, %v8744
          %v8765 = vsel %vm4570, %v8763, %v8750
          %v8766 = vsel %vm4570, %v8764, %v8752
          %v8767 = vsel %vm4572, %v8765, %v8758
          %v8768 = vsel %vm4572, %v8766, %v8760
          %8785 = vrot.lane.b32.xlu0 %v7859, 112
          %v8786 = vpop.permute.xlu0 %8785
          %8787 = vrot.lane.b32.xlu0 %v7860, 112
          %v8788 = vpop.permute.xlu0 %8787
          %8789 = vrot.lane.b32.xlu0 %v7861, 112
          %v8790 = vpop.permute.xlu0 %8789
          %8791 = vrot.lane.b32.xlu0 %v7862, 112
          %v8792 = vpop.permute.xlu0 %8791
          %8793 = vrot.lane.b32.xlu0 %v7863, 112
          %v8794 = vpop.permute.xlu0 %8793
          %8795 = vrot.lane.b32.xlu0 %v7864, 112
          %v8796 = vpop.permute.xlu0 %8795
          %8797 = vrot.lane.b32.xlu0 %v7865, 112
          %v8798 = vpop.permute.xlu0 %8797
          %8799 = vrot.lane.b32.xlu0 %v7866, 112
          %v8800 = vpop.permute.xlu0 %8799
          %8801 = vrot.lane.b32.xlu0 %v7867, 112
          %v8802 = vpop.permute.xlu0 %8801
          %8803 = vrot.lane.b32.xlu0 %v7868, 112
          %v8804 = vpop.permute.xlu0 %8803
          %8805 = vrot.lane.b32.xlu0 %v7869, 112
          %v8806 = vpop.permute.xlu0 %8805
          %8807 = vrot.lane.b32.xlu0 %v7870, 112
          %v8808 = vpop.permute.xlu0 %8807
          %8809 = vrot.lane.b32.xlu0 %v7871, 112
          %v8810 = vpop.permute.xlu0 %8809
          %8811 = vrot.lane.b32.xlu0 %v7872, 112
          %v8812 = vpop.permute.xlu0 %8811
          %8813 = vrot.lane.b32.xlu0 %v7873, 112
          %v8814 = vpop.permute.xlu0 %8813
          %8815 = vrot.lane.b32.xlu0 %v7874, 112
          %v8816 = vpop.permute.xlu0 %8815
          %v8833 = vrot.slane %v8790, 4
          %v8834 = vsel %vm4474, %v8833, %v8786
          %v8836 = vunpack.c.l.s4 1983009808
          %v8837 = vunpack.c.0.s8 %v8836
          %v8838 = vperm.slane %v8834, %v8837
          %v8839 = vrot.slane %v8792, 4
          %v8840 = vsel %vm4474, %v8839, %v8788
          %v8842 = vunpack.c.l.s4 1983009808
          %v8843 = vunpack.c.0.s8 %v8842
          %v8844 = vperm.slane %v8840, %v8843
          %v8845 = vrot.slane %v8798, 4
          %v8846 = vsel %vm4474, %v8845, %v8794
          %v8848 = vunpack.c.l.s4 1983009808
          %v8849 = vunpack.c.0.s8 %v8848
          %v8850 = vperm.slane %v8846, %v8849
          %v8851 = vrot.slane %v8800, 4
          %v8852 = vsel %vm4474, %v8851, %v8796
          %v8854 = vunpack.c.l.s4 1983009808
          %v8855 = vunpack.c.0.s8 %v8854
          %v8856 = vperm.slane %v8852, %v8855
          %v8857 = vrot.slane %v8844, 4
          %v8858 = vsel %vm4474, %v8857, %v8838
          %v8859 = vrot.slane %v8838, 4
          %v8860 = vsel %vm4474, %v8844, %v8859
          %v8862 = vunpack.c.l.s4 1934713408
          %v8863 = vunpack.c.0.s8 %v8862
          %v8864 = vperm.slane %v8858, %v8863
          %v8866 = vunpack.c.l.s4 1934713408
          %v8867 = vunpack.c.0.s8 %v8866
          %v8868 = vperm.slane %v8860, %v8867
          %v8869 = vrot.slane %v8856, 4
          %v8870 = vsel %vm4474, %v8869, %v8850
          %v8871 = vrot.slane %v8850, 4
          %v8872 = vsel %vm4474, %v8856, %v8871
          %v8874 = vunpack.c.l.s4 1934713408
          %v8875 = vunpack.c.0.s8 %v8874
          %v8876 = vperm.slane %v8870, %v8875
          %v8878 = vunpack.c.l.s4 1934713408
          %v8879 = vunpack.c.0.s8 %v8878
          %v8880 = vperm.slane %v8872, %v8879
          %v8881 = vrot.slane %v8876, 4
          %v8882 = vsel %vm4474, %v8881, %v8864
          %v8883 = vrot.slane %v8864, 4
          %v8884 = vsel %vm4474, %v8876, %v8883
          %v8885 = vrot.slane %v8880, 4
          %v8886 = vsel %vm4474, %v8885, %v8868
          %v8887 = vrot.slane %v8868, 4
          %v8888 = vsel %vm4474, %v8880, %v8887
          %v8889 = vrot.slane %v8806, 4
          %v8890 = vsel %vm4474, %v8889, %v8802
          %v8892 = vunpack.c.l.s4 1983009808
          %v8893 = vunpack.c.0.s8 %v8892
          %v8894 = vperm.slane %v8890, %v8893
          %v8895 = vrot.slane %v8808, 4
          %v8896 = vsel %vm4474, %v8895, %v8804
          %v8898 = vunpack.c.l.s4 1983009808
          %v8899 = vunpack.c.0.s8 %v8898
          %v8900 = vperm.slane %v8896, %v8899
          %v8901 = vrot.slane %v8814, 4
          %v8902 = vsel %vm4474, %v8901, %v8810
          %v8904 = vunpack.c.l.s4 1983009808
          %v8905 = vunpack.c.0.s8 %v8904
          %v8906 = vperm.slane %v8902, %v8905
          %v8907 = vrot.slane %v8816, 4
          %v8908 = vsel %vm4474, %v8907, %v8812
          %v8910 = vunpack.c.l.s4 1983009808
          %v8911 = vunpack.c.0.s8 %v8910
          %v8912 = vperm.slane %v8908, %v8911
          %v8913 = vrot.slane %v8900, 4
          %v8914 = vsel %vm4474, %v8913, %v8894
          %v8915 = vrot.slane %v8894, 4
          %v8916 = vsel %vm4474, %v8900, %v8915
          %v8918 = vunpack.c.l.s4 1934713408
          %v8919 = vunpack.c.0.s8 %v8918
          %v8920 = vperm.slane %v8914, %v8919
          %v8922 = vunpack.c.l.s4 1934713408
          %v8923 = vunpack.c.0.s8 %v8922
          %v8924 = vperm.slane %v8916, %v8923
          %v8925 = vrot.slane %v8912, 4
          %v8926 = vsel %vm4474, %v8925, %v8906
          %v8927 = vrot.slane %v8906, 4
          %v8928 = vsel %vm4474, %v8912, %v8927
          %v8930 = vunpack.c.l.s4 1934713408
          %v8931 = vunpack.c.0.s8 %v8930
          %v8932 = vperm.slane %v8926, %v8931
          %v8934 = vunpack.c.l.s4 1934713408
          %v8935 = vunpack.c.0.s8 %v8934
          %v8936 = vperm.slane %v8928, %v8935
          %v8937 = vrot.slane %v8932, 4
          %v8938 = vsel %vm4474, %v8937, %v8920
          %v8939 = vrot.slane %v8920, 4
          %v8940 = vsel %vm4474, %v8932, %v8939
          %v8941 = vrot.slane %v8936, 4
          %v8942 = vsel %vm4474, %v8941, %v8924
          %v8943 = vrot.slane %v8924, 4
          %v8944 = vsel %vm4474, %v8936, %v8943
          %8947 = vrot.lane.b32.xlu0 %v8884, 8
          %v8948 = vpop.permute.xlu0 %8947
          %8949 = vrot.lane.b32.xlu0 %v8940, 8
          %v8950 = vpop.permute.xlu0 %8949
          %8955 = vrot.lane.b32.xlu0 %v8886, 16
          %v8956 = vpop.permute.xlu0 %8955
          %8957 = vrot.lane.b32.xlu0 %v8942, 16
          %v8958 = vpop.permute.xlu0 %8957
          %8963 = vrot.lane.b32.xlu0 %v8888, 24
          %v8964 = vpop.permute.xlu0 %8963
          %8965 = vrot.lane.b32.xlu0 %v8944, 24
          %v8966 = vpop.permute.xlu0 %8965
          %v8969 = vsel %vm4568, %v8882, %v8948
          %v8970 = vsel %vm4568, %v8938, %v8950
          %v8971 = vsel %vm4570, %v8969, %v8956
          %v8972 = vsel %vm4570, %v8970, %v8958
          %v8973 = vsel %vm4572, %v8971, %v8964
          %v8974 = vsel %vm4572, %v8972, %v8966
          %8991 = vrot.lane.b32.xlu0 %v8259, 112
          %v8992 = vpop.permute.xlu0 %8991
          %8993 = vrot.lane.b32.xlu0 %v8260, 112
          %v8994 = vpop.permute.xlu0 %8993
          %8995 = vrot.lane.b32.xlu0 %v8261, 112
          %v8996 = vpop.permute.xlu0 %8995
          %8997 = vrot.lane.b32.xlu0 %v8262, 112
          %v8998 = vpop.permute.xlu0 %8997
          %8999 = vrot.lane.b32.xlu0 %v8263, 112
          %v9000 = vpop.permute.xlu0 %8999
          %9001 = vrot.lane.b32.xlu0 %v8264, 112
          %v9002 = vpop.permute.xlu0 %9001
          %9003 = vrot.lane.b32.xlu0 %v8265, 112
          %v9004 = vpop.permute.xlu0 %9003
          %9005 = vrot.lane.b32.xlu0 %v8266, 112
          %v9006 = vpop.permute.xlu0 %9005
          %9007 = vrot.lane.b32.xlu0 %v8267, 112
          %v9008 = vpop.permute.xlu0 %9007
          %9009 = vrot.lane.b32.xlu0 %v8268, 112
          %v9010 = vpop.permute.xlu0 %9009
          %9011 = vrot.lane.b32.xlu0 %v8269, 112
          %v9012 = vpop.permute.xlu0 %9011
          %9013 = vrot.lane.b32.xlu0 %v8270, 112
          %v9014 = vpop.permute.xlu0 %9013
          %9015 = vrot.lane.b32.xlu0 %v8271, 112
          %v9016 = vpop.permute.xlu0 %9015
          %9017 = vrot.lane.b32.xlu0 %v8272, 112
          %v9018 = vpop.permute.xlu0 %9017
          %9019 = vrot.lane.b32.xlu0 %v8273, 112
          %v9020 = vpop.permute.xlu0 %9019
          %9021 = vrot.lane.b32.xlu0 %v8274, 112
          %v9022 = vpop.permute.xlu0 %9021
          %v9039 = vrot.slane %v8996, 4
          %v9040 = vsel %vm4474, %v9039, %v8992
          %v9042 = vunpack.c.l.s4 1983009808
          %v9043 = vunpack.c.0.s8 %v9042
          %v9044 = vperm.slane %v9040, %v9043
          %v9045 = vrot.slane %v8998, 4
          %v9046 = vsel %vm4474, %v9045, %v8994
          %v9048 = vunpack.c.l.s4 1983009808
          %v9049 = vunpack.c.0.s8 %v9048
          %v9050 = vperm.slane %v9046, %v9049
          %v9051 = vrot.slane %v9004, 4
          %v9052 = vsel %vm4474, %v9051, %v9000
          %v9054 = vunpack.c.l.s4 1983009808
          %v9055 = vunpack.c.0.s8 %v9054
          %v9056 = vperm.slane %v9052, %v9055
          %v9057 = vrot.slane %v9006, 4
          %v9058 = vsel %vm4474, %v9057, %v9002
          %v9060 = vunpack.c.l.s4 1983009808
          %v9061 = vunpack.c.0.s8 %v9060
          %v9062 = vperm.slane %v9058, %v9061
          %v9063 = vrot.slane %v9050, 4
          %v9064 = vsel %vm4474, %v9063, %v9044
          %v9065 = vrot.slane %v9044, 4
          %v9066 = vsel %vm4474, %v9050, %v9065
          %v9068 = vunpack.c.l.s4 1934713408
          %v9069 = vunpack.c.0.s8 %v9068
          %v9070 = vperm.slane %v9064, %v9069
          %v9072 = vunpack.c.l.s4 1934713408
          %v9073 = vunpack.c.0.s8 %v9072
          %v9074 = vperm.slane %v9066, %v9073
          %v9075 = vrot.slane %v9062, 4
          %v9076 = vsel %vm4474, %v9075, %v9056
          %v9077 = vrot.slane %v9056, 4
          %v9078 = vsel %vm4474, %v9062, %v9077
          %v9080 = vunpack.c.l.s4 1934713408
          %v9081 = vunpack.c.0.s8 %v9080
          %v9082 = vperm.slane %v9076, %v9081
          %v9084 = vunpack.c.l.s4 1934713408
          %v9085 = vunpack.c.0.s8 %v9084
          %v9086 = vperm.slane %v9078, %v9085
          %v9087 = vrot.slane %v9082, 4
          %v9088 = vsel %vm4474, %v9087, %v9070
          %v9089 = vrot.slane %v9070, 4
          %v9090 = vsel %vm4474, %v9082, %v9089
          %v9091 = vrot.slane %v9086, 4
          %v9092 = vsel %vm4474, %v9091, %v9074
          %v9093 = vrot.slane %v9074, 4
          %v9094 = vsel %vm4474, %v9086, %v9093
          %v9095 = vrot.slane %v9012, 4
          %v9096 = vsel %vm4474, %v9095, %v9008
          %v9098 = vunpack.c.l.s4 1983009808
          %v9099 = vunpack.c.0.s8 %v9098
          %v9100 = vperm.slane %v9096, %v9099
          %v9101 = vrot.slane %v9014, 4
          %v9102 = vsel %vm4474, %v9101, %v9010
          %v9104 = vunpack.c.l.s4 1983009808
          %v9105 = vunpack.c.0.s8 %v9104
          %v9106 = vperm.slane %v9102, %v9105
          %v9107 = vrot.slane %v9020, 4
          %v9108 = vsel %vm4474, %v9107, %v9016
          %v9110 = vunpack.c.l.s4 1983009808
          %v9111 = vunpack.c.0.s8 %v9110
          %v9112 = vperm.slane %v9108, %v9111
          %v9113 = vrot.slane %v9022, 4
          %v9114 = vsel %vm4474, %v9113, %v9018
          %v9116 = vunpack.c.l.s4 1983009808
          %v9117 = vunpack.c.0.s8 %v9116
          %v9118 = vperm.slane %v9114, %v9117
          %v9119 = vrot.slane %v9106, 4
          %v9120 = vsel %vm4474, %v9119, %v9100
          %v9121 = vrot.slane %v9100, 4
          %v9122 = vsel %vm4474, %v9106, %v9121
          %v9124 = vunpack.c.l.s4 1934713408
          %v9125 = vunpack.c.0.s8 %v9124
          %v9126 = vperm.slane %v9120, %v9125
          %v9128 = vunpack.c.l.s4 1934713408
          %v9129 = vunpack.c.0.s8 %v9128
          %v9130 = vperm.slane %v9122, %v9129
          %v9131 = vrot.slane %v9118, 4
          %v9132 = vsel %vm4474, %v9131, %v9112
          %v9133 = vrot.slane %v9112, 4
          %v9134 = vsel %vm4474, %v9118, %v9133
          %v9136 = vunpack.c.l.s4 1934713408
          %v9137 = vunpack.c.0.s8 %v9136
          %v9138 = vperm.slane %v9132, %v9137
          %v9140 = vunpack.c.l.s4 1934713408
          %v9141 = vunpack.c.0.s8 %v9140
          %v9142 = vperm.slane %v9134, %v9141
          %v9143 = vrot.slane %v9138, 4
          %v9144 = vsel %vm4474, %v9143, %v9126
          %v9145 = vrot.slane %v9126, 4
          %v9146 = vsel %vm4474, %v9138, %v9145
          %v9147 = vrot.slane %v9142, 4
          %v9148 = vsel %vm4474, %v9147, %v9130
          %v9149 = vrot.slane %v9130, 4
          %v9150 = vsel %vm4474, %v9142, %v9149
          %9153 = vrot.lane.b32.xlu0 %v9090, 8
          %v9154 = vpop.permute.xlu0 %9153
          %9155 = vrot.lane.b32.xlu0 %v9146, 8
          %v9156 = vpop.permute.xlu0 %9155
          %9161 = vrot.lane.b32.xlu0 %v9092, 16
          %v9162 = vpop.permute.xlu0 %9161
          %9163 = vrot.lane.b32.xlu0 %v9148, 16
          %v9164 = vpop.permute.xlu0 %9163
          %9169 = vrot.lane.b32.xlu0 %v9094, 24
          %v9170 = vpop.permute.xlu0 %9169
          %9171 = vrot.lane.b32.xlu0 %v9150, 24
          %v9172 = vpop.permute.xlu0 %9171
          %v9175 = vsel %vm4568, %v9088, %v9154
          %v9176 = vsel %vm4568, %v9144, %v9156
          %v9177 = vsel %vm4570, %v9175, %v9162
          %v9178 = vsel %vm4570, %v9176, %v9164
          %v9179 = vsel %vm4572, %v9177, %v9170
          %v9180 = vsel %vm4572, %v9178, %v9172
          %9197 = vrot.lane.b32.xlu0 %v8382, 112
          %v9198 = vpop.permute.xlu0 %9197
          %9199 = vrot.lane.b32.xlu0 %v8394, 112
          %v9200 = vpop.permute.xlu0 %9199
          %9201 = vrot.lane.b32.xlu0 %v8406, 112
          %v9202 = vpop.permute.xlu0 %9201
          %9203 = vrot.lane.b32.xlu0 %v8418, 112
          %v9204 = vpop.permute.xlu0 %9203
          %9205 = vrot.lane.b32.xlu0 %v8430, 112
          %v9206 = vpop.permute.xlu0 %9205
          %9207 = vrot.lane.b32.xlu0 %v8442, 112
          %v9208 = vpop.permute.xlu0 %9207
          %9209 = vrot.lane.b32.xlu0 %v8454, 112
          %v9210 = vpop.permute.xlu0 %9209
          %9211 = vrot.lane.b32.xlu0 %v8466, 112
          %v9212 = vpop.permute.xlu0 %9211
          %9213 = vrot.lane.b32.xlu0 %v8478, 112
          %v9214 = vpop.permute.xlu0 %9213
          %9215 = vrot.lane.b32.xlu0 %v8490, 112
          %v9216 = vpop.permute.xlu0 %9215
          %9217 = vrot.lane.b32.xlu0 %v8502, 112
          %v9218 = vpop.permute.xlu0 %9217
          %9219 = vrot.lane.b32.xlu0 %v8514, 112
          %v9220 = vpop.permute.xlu0 %9219
          %9221 = vrot.lane.b32.xlu0 %v8526, 112
          %v9222 = vpop.permute.xlu0 %9221
          %9223 = vrot.lane.b32.xlu0 %v8538, 112
          %v9224 = vpop.permute.xlu0 %9223
          %9225 = vrot.lane.b32.xlu0 %v8550, 112
          %v9226 = vpop.permute.xlu0 %9225
          %9227 = vrot.lane.b32.xlu0 %v8562, 112
          %v9228 = vpop.permute.xlu0 %9227
          %v9245 = vrot.slane %v9202, 4
          %v9246 = vsel %vm4474, %v9245, %v9198
          %v9248 = vunpack.c.l.s4 1983009808
          %v9249 = vunpack.c.0.s8 %v9248
          %v9250 = vperm.slane %v9246, %v9249
          %v9251 = vrot.slane %v9204, 4
          %v9252 = vsel %vm4474, %v9251, %v9200
          %v9254 = vunpack.c.l.s4 1983009808
          %v9255 = vunpack.c.0.s8 %v9254
          %v9256 = vperm.slane %v9252, %v9255
          %v9257 = vrot.slane %v9210, 4
          %v9258 = vsel %vm4474, %v9257, %v9206
          %v9260 = vunpack.c.l.s4 1983009808
          %v9261 = vunpack.c.0.s8 %v9260
          %v9262 = vperm.slane %v9258, %v9261
          %v9263 = vrot.slane %v9212, 4
          %v9264 = vsel %vm4474, %v9263, %v9208
          %v9266 = vunpack.c.l.s4 1983009808
          %v9267 = vunpack.c.0.s8 %v9266
          %v9268 = vperm.slane %v9264, %v9267
          %v9269 = vrot.slane %v9256, 4
          %v9270 = vsel %vm4474, %v9269, %v9250
          %v9271 = vrot.slane %v9250, 4
          %v9272 = vsel %vm4474, %v9256, %v9271
          %v9274 = vunpack.c.l.s4 1934713408
          %v9275 = vunpack.c.0.s8 %v9274
          %v9276 = vperm.slane %v9270, %v9275
          %v9278 = vunpack.c.l.s4 1934713408
          %v9279 = vunpack.c.0.s8 %v9278
          %v9280 = vperm.slane %v9272, %v9279
          %v9281 = vrot.slane %v9268, 4
          %v9282 = vsel %vm4474, %v9281, %v9262
          %v9283 = vrot.slane %v9262, 4
          %v9284 = vsel %vm4474, %v9268, %v9283
          %v9286 = vunpack.c.l.s4 1934713408
          %v9287 = vunpack.c.0.s8 %v9286
          %v9288 = vperm.slane %v9282, %v9287
          %v9290 = vunpack.c.l.s4 1934713408
          %v9291 = vunpack.c.0.s8 %v9290
          %v9292 = vperm.slane %v9284, %v9291
          %v9293 = vrot.slane %v9288, 4
          %v9294 = vsel %vm4474, %v9293, %v9276
          %v9295 = vrot.slane %v9276, 4
          %v9296 = vsel %vm4474, %v9288, %v9295
          %v9297 = vrot.slane %v9292, 4
          %v9298 = vsel %vm4474, %v9297, %v9280
          %v9299 = vrot.slane %v9280, 4
          %v9300 = vsel %vm4474, %v9292, %v9299
          %v9301 = vrot.slane %v9218, 4
          %v9302 = vsel %vm4474, %v9301, %v9214
          %v9304 = vunpack.c.l.s4 1983009808
          %v9305 = vunpack.c.0.s8 %v9304
          %v9306 = vperm.slane %v9302, %v9305
          %v9307 = vrot.slane %v9220, 4
          %v9308 = vsel %vm4474, %v9307, %v9216
          %v9310 = vunpack.c.l.s4 1983009808
          %v9311 = vunpack.c.0.s8 %v9310
          %v9312 = vperm.slane %v9308, %v9311
          %v9313 = vrot.slane %v9226, 4
          %v9314 = vsel %vm4474, %v9313, %v9222
          %v9316 = vunpack.c.l.s4 1983009808
          %v9317 = vunpack.c.0.s8 %v9316
          %v9318 = vperm.slane %v9314, %v9317
          %v9319 = vrot.slane %v9228, 4
          %v9320 = vsel %vm4474, %v9319, %v9224
          %v9322 = vunpack.c.l.s4 1983009808
          %v9323 = vunpack.c.0.s8 %v9322
          %v9324 = vperm.slane %v9320, %v9323
          %v9325 = vrot.slane %v9312, 4
          %v9326 = vsel %vm4474, %v9325, %v9306
          %v9327 = vrot.slane %v9306, 4
          %v9328 = vsel %vm4474, %v9312, %v9327
          %v9330 = vunpack.c.l.s4 1934713408
          %v9331 = vunpack.c.0.s8 %v9330
          %v9332 = vperm.slane %v9326, %v9331
          %v9334 = vunpack.c.l.s4 1934713408
          %v9335 = vunpack.c.0.s8 %v9334
          %v9336 = vperm.slane %v9328, %v9335
          %v9337 = vrot.slane %v9324, 4
          %v9338 = vsel %vm4474, %v9337, %v9318
          %v9339 = vrot.slane %v9318, 4
          %v9340 = vsel %vm4474, %v9324, %v9339
          %v9342 = vunpack.c.l.s4 1934713408
          %v9343 = vunpack.c.0.s8 %v9342
          %v9344 = vperm.slane %v9338, %v9343
          %v9346 = vunpack.c.l.s4 1934713408
          %v9347 = vunpack.c.0.s8 %v9346
          %v9348 = vperm.slane %v9340, %v9347
          %v9349 = vrot.slane %v9344, 4
          %v9350 = vsel %vm4474, %v9349, %v9332
          %v9351 = vrot.slane %v9332, 4
          %v9352 = vsel %vm4474, %v9344, %v9351
          %v9353 = vrot.slane %v9348, 4
          %v9354 = vsel %vm4474, %v9353, %v9336
          %v9355 = vrot.slane %v9336, 4
          %v9356 = vsel %vm4474, %v9348, %v9355
          %9359 = vrot.lane.b32.xlu0 %v9296, 8
          %v9360 = vpop.permute.xlu0 %9359
          %9361 = vrot.lane.b32.xlu0 %v9352, 8
          %v9362 = vpop.permute.xlu0 %9361
          %9367 = vrot.lane.b32.xlu0 %v9298, 16
          %v9368 = vpop.permute.xlu0 %9367
          %9369 = vrot.lane.b32.xlu0 %v9354, 16
          %v9370 = vpop.permute.xlu0 %9369
          %9375 = vrot.lane.b32.xlu0 %v9300, 24
          %v9376 = vpop.permute.xlu0 %9375
          %9377 = vrot.lane.b32.xlu0 %v9356, 24
          %v9378 = vpop.permute.xlu0 %9377
          %v9381 = vsel %vm4568, %v9294, %v9360
          %v9382 = vsel %vm4568, %v9350, %v9362
          %v9383 = vsel %vm4570, %v9381, %v9368
          %v9384 = vsel %vm4570, %v9382, %v9370
          %v9385 = vsel %vm4572, %v9383, %v9376
          %v9386 = vsel %vm4572, %v9384, %v9378
          %v9387 = vrot.slane %v6757, 4
          %v9388 = vsel %vm4474, %v9387, %v6755
          %v9390 = vunpack.c.l.s4 1983009808
          %v9391 = vunpack.c.0.s8 %v9390
          %v9392 = vperm.slane %v9388, %v9391
          %v9393 = vrot.slane %v6758, 4
          %v9394 = vsel %vm4474, %v9393, %v6756
          %v9396 = vunpack.c.l.s4 1983009808
          %v9397 = vunpack.c.0.s8 %v9396
          %v9398 = vperm.slane %v9394, %v9397
          %v9399 = vrot.slane %v6761, 4
          %v9400 = vsel %vm4474, %v9399, %v6759
          %v9402 = vunpack.c.l.s4 1983009808
          %v9403 = vunpack.c.0.s8 %v9402
          %v9404 = vperm.slane %v9400, %v9403
          %v9405 = vrot.slane %v6762, 4
          %v9406 = vsel %vm4474, %v9405, %v6760
          %v9408 = vunpack.c.l.s4 1983009808
          %v9409 = vunpack.c.0.s8 %v9408
          %v9410 = vperm.slane %v9406, %v9409
          %v9411 = vrot.slane %v9398, 4
          %v9412 = vsel %vm4474, %v9411, %v9392
          %v9413 = vrot.slane %v9392, 4
          %v9414 = vsel %vm4474, %v9398, %v9413
          %v9416 = vunpack.c.l.s4 1934713408
          %v9417 = vunpack.c.0.s8 %v9416
          %v9418 = vperm.slane %v9412, %v9417
          %v9420 = vunpack.c.l.s4 1934713408
          %v9421 = vunpack.c.0.s8 %v9420
          %v9422 = vperm.slane %v9414, %v9421
          %v9423 = vrot.slane %v9410, 4
          %v9424 = vsel %vm4474, %v9423, %v9404
          %v9425 = vrot.slane %v9404, 4
          %v9426 = vsel %vm4474, %v9410, %v9425
          %v9428 = vunpack.c.l.s4 1934713408
          %v9429 = vunpack.c.0.s8 %v9428
          %v9430 = vperm.slane %v9424, %v9429
          %v9432 = vunpack.c.l.s4 1934713408
          %v9433 = vunpack.c.0.s8 %v9432
          %v9434 = vperm.slane %v9426, %v9433
          %v9435 = vrot.slane %v9430, 4
          %v9436 = vsel %vm4474, %v9435, %v9418
          %v9437 = vrot.slane %v9418, 4
          %v9438 = vsel %vm4474, %v9430, %v9437
          %v9439 = vrot.slane %v9434, 4
          %v9440 = vsel %vm4474, %v9439, %v9422
          %v9441 = vrot.slane %v9422, 4
          %v9442 = vsel %vm4474, %v9434, %v9441
          %v9443 = vrot.slane %v6765, 4
          %v9444 = vsel %vm4474, %v9443, %v6763
          %v9446 = vunpack.c.l.s4 1983009808
          %v9447 = vunpack.c.0.s8 %v9446
          %v9448 = vperm.slane %v9444, %v9447
          %v9449 = vrot.slane %v6766, 4
          %v9450 = vsel %vm4474, %v9449, %v6764
          %v9452 = vunpack.c.l.s4 1983009808
          %v9453 = vunpack.c.0.s8 %v9452
          %v9454 = vperm.slane %v9450, %v9453
          %v9455 = vrot.slane %v6769, 4
          %v9456 = vsel %vm4474, %v9455, %v6767
          %v9458 = vunpack.c.l.s4 1983009808
          %v9459 = vunpack.c.0.s8 %v9458
          %v9460 = vperm.slane %v9456, %v9459
          %v9461 = vrot.slane %v6770, 4
          %v9462 = vsel %vm4474, %v9461, %v6768
          %v9464 = vunpack.c.l.s4 1983009808
          %v9465 = vunpack.c.0.s8 %v9464
          %v9466 = vperm.slane %v9462, %v9465
          %v9467 = vrot.slane %v9454, 4
          %v9468 = vsel %vm4474, %v9467, %v9448
          %v9469 = vrot.slane %v9448, 4
          %v9470 = vsel %vm4474, %v9454, %v9469
          %v9472 = vunpack.c.l.s4 1934713408
          %v9473 = vunpack.c.0.s8 %v9472
          %v9474 = vperm.slane %v9468, %v9473
          %v9476 = vunpack.c.l.s4 1934713408
          %v9477 = vunpack.c.0.s8 %v9476
          %v9478 = vperm.slane %v9470, %v9477
          %v9479 = vrot.slane %v9466, 4
          %v9480 = vsel %vm4474, %v9479, %v9460
          %v9481 = vrot.slane %v9460, 4
          %v9482 = vsel %vm4474, %v9466, %v9481
          %v9484 = vunpack.c.l.s4 1934713408
          %v9485 = vunpack.c.0.s8 %v9484
          %v9486 = vperm.slane %v9480, %v9485
          %v9488 = vunpack.c.l.s4 1934713408
          %v9489 = vunpack.c.0.s8 %v9488
          %v9490 = vperm.slane %v9482, %v9489
          %v9491 = vrot.slane %v9486, 4
          %v9492 = vsel %vm4474, %v9491, %v9474
          %v9493 = vrot.slane %v9474, 4
          %v9494 = vsel %vm4474, %v9486, %v9493
          %v9495 = vrot.slane %v9490, 4
          %v9496 = vsel %vm4474, %v9495, %v9478
          %v9497 = vrot.slane %v9478, 4
          %v9498 = vsel %vm4474, %v9490, %v9497
          %9501 = vrot.lane.b32.xlu0 %v9438, 16
          %v9502 = vpop.permute.xlu0 %9501
          %9503 = vrot.lane.b32.xlu0 %v9494, 16
          %v9504 = vpop.permute.xlu0 %9503
          %9509 = vrot.lane.b32.xlu0 %v9440, 32
          %v9510 = vpop.permute.xlu0 %9509
          %9511 = vrot.lane.b32.xlu0 %v9496, 32
          %v9512 = vpop.permute.xlu0 %9511
          %9517 = vrot.lane.b32.xlu0 %v9442, 48
          %v9518 = vpop.permute.xlu0 %9517
          %9519 = vrot.lane.b32.xlu0 %v9498, 48
          %v9520 = vpop.permute.xlu0 %9519
          %v9523 = vsel %vm4570, %v9436, %v9502
          %v9524 = vsel %vm4570, %v9492, %v9504
          %v9525 = vsel %vm4574, %v9523, %v9510
          %v9526 = vsel %vm4574, %v9524, %v9512
          %v9527 = vsel %vm4578, %v9525, %v9518
          %v9528 = vsel %vm4578, %v9526, %v9520
          %9531 = vrot.lane.b32.xlu0 %v8767, 64
          %v9532 = vpop.permute.xlu0 %9531
          %9533 = vrot.lane.b32.xlu0 %v8768, 64
          %v9534 = vpop.permute.xlu0 %9533
          %9539 = vrot.lane.b32.xlu0 %v8973, 96
          %v9540 = vpop.permute.xlu0 %9539
          %9541 = vrot.lane.b32.xlu0 %v8974, 96
          %v9542 = vpop.permute.xlu0 %9541
          %9547 = vrot.lane.b32.xlu0 %v9385, 32
          %v9548 = vpop.permute.xlu0 %9547
          %9549 = vrot.lane.b32.xlu0 %v9386, 32
          %v9550 = vpop.permute.xlu0 %9549
          %9555 = vrot.lane.b32.xlu0 %v9527, 64
          %v9556 = vpop.permute.xlu0 %9555
          %9557 = vrot.lane.b32.xlu0 %v9528, 64
          %v9558 = vpop.permute.xlu0 %9557
          %v9561 = vsel %vm4582, %v6545, %v9532
          %v9562 = vsel %vm4582, %v6546, %v9534
          %v9563 = vsel %vm4590, %v9561, %v9540
          %v9564 = vsel %vm4590, %v9562, %v9542
          %v9565 = vsel %vm4574, %v9179, %v9548
          %v9566 = vsel %vm4574, %v9180, %v9550
          %v9567 = vsel %vm4582, %v9565, %v9556
          %v9568 = vsel %vm4582, %v9566, %v9558
          %v9569 = vpack.c.bf16 %v9564, %v9563
          %v9570 = vpack.c.bf16 %v9568, %v9567
          %v9571 = vld [vmem:[%s9] sm:$0xf]
          %v9572 = vld [vmem:[%s9 + $0x4] sm:$0xf]
          %v9573 = vld [vmem:[%s9 + $0x8] sm:$0xf]
          %v9574 = vld [vmem:[%s9 + $0xc] sm:$0xf]
          %v9575 = vld [vmem:[%s9 + $0x10] sm:$0xf]
          %v9576 = vld [vmem:[%s9 + $0x14] sm:$0xf]
          %v9577 = vld [vmem:[%s9 + $0x18] sm:$0xf]
          %v9578 = vld [vmem:[%s9 + $0x1c] sm:$0xf]
          %v9579 = vld [vmem:[%s9 + $0x20] sm:$0xf]
          %v9580 = vld [vmem:[%s9 + $0x24] sm:$0xf]
          %v9581 = vld [vmem:[%s9 + $0x28] sm:$0xf]
          %v9582 = vld [vmem:[%s9 + $0x2c] sm:$0xf]
          %v9583 = vld [vmem:[%s9 + $0x30] sm:$0xf]
          %v9584 = vld [vmem:[%s9 + $0x34] sm:$0xf]
          %v9585 = vld [vmem:[%s9 + $0x38] sm:$0xf]
          %v9586 = vld [vmem:[%s9 + $0x3c] sm:$0xf]
          %v9587 = vld [vmem:[%s9 + $0x40] sm:$0xf]
          %v9588 = vld [vmem:[%s9 + $0x44] sm:$0xf]
          %v9589 = vld [vmem:[%s9 + $0x48] sm:$0xf]
          %v9590 = vld [vmem:[%s9 + $0x4c] sm:$0xf]
          %v9591 = vld [vmem:[%s9 + $0x50] sm:$0xf]
          %v9592 = vld [vmem:[%s9 + $0x54] sm:$0xf]
          %v9593 = vld [vmem:[%s9 + $0x58] sm:$0xf]
          %v9594 = vld [vmem:[%s9 + $0x5c] sm:$0xf]
          %v9595 = vld [vmem:[%s9 + $0x60] sm:$0xf]
          %v9596 = vld [vmem:[%s9 + $0x64] sm:$0xf]
          %v9597 = vld [vmem:[%s9 + $0x68] sm:$0xf]
          %v9598 = vld [vmem:[%s9 + $0x6c] sm:$0xf]
          %v9599 = vld [vmem:[%s9 + $0x70] sm:$0xf]
          %v9600 = vld [vmem:[%s9 + $0x74] sm:$0xf]
          %v9601 = vld [vmem:[%s9 + $0x78] sm:$0xf]
          %v9602 = vld [vmem:[%s9 + $0x7c] sm:$0xf]
          %v9603 = vld [vmem:[%s10] sm:$0x1]
          %v9605 = vperm.slane %v9603, 0
          %v9639 = vunpack.c.l.b16 %v9571
          %v9640 = vunpack.c.l.b16 %v9572
          %v9641 = vunpack.c.l.b16 %v9573
          %v9642 = vunpack.c.l.b16 %v9574
          %v9643 = vunpack.c.l.b16 %v9575
          %v9644 = vunpack.c.l.b16 %v9576
          %v9645 = vunpack.c.l.b16 %v9577
          %v9646 = vunpack.c.l.b16 %v9578
          %v9647 = vunpack.c.l.b16 %v9579
          %v9648 = vunpack.c.l.b16 %v9580
          %v9649 = vunpack.c.l.b16 %v9581
          %v9650 = vunpack.c.l.b16 %v9582
          %v9651 = vunpack.c.l.b16 %v9583
          %v9652 = vunpack.c.l.b16 %v9584
          %v9653 = vunpack.c.l.b16 %v9585
          %v9654 = vunpack.c.l.b16 %v9586
          %v9655 = vunpack.c.l.b16 %v9587
          %v9656 = vunpack.c.l.b16 %v9588
          %v9657 = vunpack.c.l.b16 %v9589
          %v9658 = vunpack.c.l.b16 %v9590
          %v9659 = vunpack.c.l.b16 %v9591
          %v9660 = vunpack.c.l.b16 %v9592
          %v9661 = vunpack.c.l.b16 %v9593
          %v9662 = vunpack.c.l.b16 %v9594
          %v9663 = vunpack.c.l.b16 %v9595
          %v9664 = vunpack.c.l.b16 %v9596
          %v9665 = vunpack.c.l.b16 %v9597
          %v9666 = vunpack.c.l.b16 %v9598
          %v9667 = vunpack.c.l.b16 %v9599
          %v9668 = vunpack.c.l.b16 %v9600
          %v9669 = vunpack.c.l.b16 %v9601
          %v9670 = vunpack.c.l.b16 %v9602
          %v9671 = vpack.c.b16 %v9640, %v9639
          %v9672 = vpack.c.b16 %v9642, %v9641
          %v9673 = vpack.c.b16 %v9644, %v9643
          %v9674 = vpack.c.b16 %v9646, %v9645
          %v9675 = vpack.c.b16 %v9648, %v9647
          %v9676 = vpack.c.b16 %v9650, %v9649
          %v9677 = vpack.c.b16 %v9652, %v9651
          %v9678 = vpack.c.b16 %v9654, %v9653
          %v9679 = vpack.c.b16 %v9656, %v9655
          %v9680 = vpack.c.b16 %v9658, %v9657
          %v9681 = vpack.c.b16 %v9660, %v9659
          %v9682 = vpack.c.b16 %v9662, %v9661
          %v9683 = vpack.c.b16 %v9664, %v9663
          %v9684 = vpack.c.b16 %v9666, %v9665
          %v9685 = vpack.c.b16 %v9668, %v9667
          %v9686 = vpack.c.b16 %v9670, %v9669
          %9703 = vmatpush.bf16.msra.mxu0 %v9678
          %9704 = vmatpush.bf16.msra.mxu0 %v9677
          %9705 = vmatpush.bf16.msra.mxu0 %v9676
          %9706 = vmatpush.bf16.msra.mxu0 %v9675
          %9707 = vmatpush.bf16.msra.mxu0 %v9674
          %9708 = vmatpush.bf16.msra.mxu0 %v9673
          %9709 = vmatpush.bf16.msra.mxu0 %v9672
          %9710 = vmatpush.bf16.msra.mxu0 %v9671
          %9711 = vmatmul.bf16.gmra.mxu0 %v9569
          %v9712 = vpop.f32.mrf.mxu0
          %v9713 = vadd.f32 %v9605, %v9712
          %v9714 = vpop.f32.mrf.mxu0
          %v9715 = vadd.f32 %v9605, %v9714
          %9716 = vdwg.mxu0
          %9717 = vmatpush.bf16.msra.mxu0 %v9686
          %9718 = vmatpush.bf16.msra.mxu0 %v9685
          %9719 = vmatpush.bf16.msra.mxu0 %v9684
          %9720 = vmatpush.bf16.msra.mxu0 %v9683
          %9721 = vmatpush.bf16.msra.mxu0 %v9682
          %9722 = vmatpush.bf16.msra.mxu0 %v9681
          %9723 = vmatpush.bf16.msra.mxu0 %v9680
          %9724 = vmatpush.bf16.msra.mxu0 %v9679
          %9725 = vmatmul.bf16.gmra.mxu0 %v9570
          %v9726 = vpop.f32.mrf.mxu0
          %v9727 = vadd.f32 %v9713, %v9726
          %v9728 = vpop.f32.mrf.mxu0
          %v9729 = vadd.f32 %v9715, %v9728
          %9730 = vdwg.mxu0
          %v9731 = vadd.f32 %v6219, %v9727
          %v9732 = vadd.f32 %v6220, %v9729
          %v9733 = vld [vmem:[%s11] sm:$0x1]
          %v9734 = vld [vmem:[%s12] sm:$0x1]
          %v9735 = vsel %vm4574, %v9731, 0.0
          %9736 = vadd.xlane.f32.xlu0 %v9735
          %v9737 = vpop.xlane.xlu0 %9736
          %v9738 = vsel %vm4574, %v9732, 0.0
          %9739 = vadd.xlane.f32.xlu0 %v9738
          %v9740 = vpop.xlane.xlu0 %9739
          %v9741 = vrcp.pop 32.0
          %v9742 = vmul.f32 32.0, %v9741
          %v9743 = vsub.f32 1.0, %v9742
          %v9744 = vmul.f32 %v9741, %v9743
          %v9745 = vadd.f32 %v9741, %v9744
          %vm9746 = vweird.f32 %v9741
          %v9747 = vsel %vm9746, %v9741, %v9745
          %v9748 = vmul.f32 %v9737, %v9747
          %v9749 = vmul.f32 %v9740, %v9747
          %v9750 = vsub.f32 %v9731, %v9748
          %v9751 = vsub.f32 %v9732, %v9749
          %v9752 = vmul.f32 %v9750, %v9750
          %v9753 = vmul.f32 %v9751, %v9751
          %v9754 = vsel %vm4574, %v9752, 0.0
          %9755 = vadd.xlane.f32.xlu0 %v9754
          %v9756 = vpop.xlane.xlu0 %9755
          %v9757 = vsel %vm4574, %v9753, 0.0
          %9758 = vadd.xlane.f32.xlu0 %v9757
          %v9759 = vpop.xlane.xlu0 %9758
          %v9760 = vmul.f32 %v9756, %v9747
          %v9761 = vmul.f32 %v9759, %v9747
          %v9762 = vadd.f32 %v9760, 1e-05
          %v9763 = vadd.f32 %v9761, 1e-05
          %v9764 = vrsqrt.pop %v9762
          %v9765 = vmul.f32 %v9764, %v9762
          %v9766 = vmul.f32 %v9765, %v9764
          %v9767 = vmul.f32 0.5, %v9766
          %v9768 = vsub.f32 1.5, %v9767
          %v9769 = vmul.f32 %v9764, %v9768
          %vm9770 = vweird.f32 %v9762
          %vm9771 = vweird.f32 %v9764
          %vm9772 = vmor %vm9770, %vm9771
          %v9773 = vsel %vm9772, %v9764, %v9769
          %v9774 = vrsqrt.pop %v9763
          %v9775 = vmul.f32 %v9774, %v9763
          %v9776 = vmul.f32 %v9775, %v9774
          %v9777 = vmul.f32 0.5, %v9776
          %v9778 = vsub.f32 1.5, %v9777
          %v9779 = vmul.f32 %v9774, %v9778
          %vm9780 = vweird.f32 %v9763
          %vm9781 = vweird.f32 %v9774
          %vm9782 = vmor %vm9780, %vm9781
          %v9783 = vsel %vm9782, %v9774, %v9779
          %v9784 = vmul.f32 %v9750, %v9773
          %v9785 = vmul.f32 %v9751, %v9783
          %v9787 = vperm.slane %v9733, 0
          %v9789 = vmul.f32 %v9784, %v9787
          %v9790 = vmul.f32 %v9785, %v9787
          %v9792 = vperm.slane %v9734, 0
          %v9794 = vadd.f32 %v9789, %v9792
          %v9795 = vadd.f32 %v9790, %v9792
          %v9796 = vpack.c.bf16 %v9795, %v9794
          %v9797 = vld [vmem:[%s13] sm:$0xf]
          %v9798 = vld [vmem:[%s13 + $0x4] sm:$0xf]
          %v9799 = vld [vmem:[%s13 + $0x8] sm:$0xf]
          %v9800 = vld [vmem:[%s13 + $0xc] sm:$0xf]
          %v9801 = vld [vmem:[%s14] sm:$0x1]
          %v9803 = vperm.slane %v9801, 0
          %v9809 = vunpack.c.l.b16 %v9797
          %v9810 = vunpack.c.l.b16 %v9798
          %v9811 = vunpack.c.l.b16 %v9799
          %v9812 = vunpack.c.l.b16 %v9800
          %v9813 = vpack.c.b16 %v9810, %v9809
          %v9814 = vpack.c.b16 %v9812, %v9811
          %v9818 = vsel %vm4574, %v9796, 0
          %9820 = vmatpush.bf16.msra.mxu0 0
          %9821 = vmatpush.bf16.msra.mxu0 0
          %9822 = vmatpush.bf16.msra.mxu0 0
          %9823 = vmatpush.bf16.msra.mxu0 0
          %9824 = vmatpush.bf16.msra.mxu0 0
          %9825 = vmatpush.bf16.msra.mxu0 0
          %9826 = vmatpush.bf16.msra.mxu0 %v9814
          %9827 = vmatpush.bf16.msra.mxu0 %v9813
          %9828 = vmatmul.bf16.gmra.mxu0 %v9818
          %v9829 = vpop.f32.mrf.mxu0
          %v9830 = vadd.f32 %v9803, %v9829
          %v9831 = vpop.f32.mrf.mxu0
          %v9832 = vadd.f32 %v9803, %v9831
          %9833 = vdwg.mxu0
          %v9834 = vmax.f32 %v9830, 0.0
          %v9835 = vmax.f32 %v9832, 0.0
          %v9836 = vpack.c.bf16 %v9835, %v9834
          %s9837 = scalar_lea.vmem %s13, 16
          %v9838 = vld [vmem:[%s9837] sm:$0xf]
          %v9839 = vld [vmem:[%s9837 + $0x4] sm:$0xf]
          %v9840 = vld [vmem:[%s9837 + $0x8] sm:$0xf]
          %v9841 = vld [vmem:[%s9837 + $0xc] sm:$0xf]
          %s9842 = scalar_lea.vmem %s14, 1
          %v9843 = vld [vmem:[%s9842] sm:$0x1]
          %v9845 = vperm.slane %v9843, 0
          %v9851 = vunpack.c.l.b16 %v9838
          %v9852 = vunpack.c.l.b16 %v9839
          %v9853 = vunpack.c.l.b16 %v9840
          %v9854 = vunpack.c.l.b16 %v9841
          %v9855 = vpack.c.b16 %v9852, %v9851
          %v9856 = vpack.c.b16 %v9854, %v9853
          %v9860 = vsel %vm4574, %v9836, 0
          %9862 = vmatpush.bf16.msra.mxu0 0
          %9863 = vmatpush.bf16.msra.mxu0 0
          %9864 = vmatpush.bf16.msra.mxu0 0
          %9865 = vmatpush.bf16.msra.mxu0 0
          %9866 = vmatpush.bf16.msra.mxu0 0
          %9867 = vmatpush.bf16.msra.mxu0 0
          %9868 = vmatpush.bf16.msra.mxu0 %v9856
          %9869 = vmatpush.bf16.msra.mxu0 %v9855
          %9870 = vmatmul.bf16.gmra.mxu0 %v9860
          %v9871 = vpop.f32.mrf.mxu0
          %v9872 = vadd.f32 %v9845, %v9871
          %v9873 = vpop.f32.mrf.mxu0
          %v9874 = vadd.f32 %v9845, %v9873
          %9875 = vdwg.mxu0
          %v9876 = vmax.f32 %v9872, 0.0
          %v9877 = vmax.f32 %v9874, 0.0
          %v9878 = vpack.c.bf16 %v9877, %v9876
          %s9879 = scalar_lea.vmem %s13, 32
          %v9880 = vld [vmem:[%s9879] sm:$0xf]
          %v9881 = vld [vmem:[%s9879 + $0x4] sm:$0xf]
          %v9882 = vld [vmem:[%s9879 + $0x8] sm:$0xf]
          %v9883 = vld [vmem:[%s9879 + $0xc] sm:$0xf]
          %s9884 = scalar_lea.vmem %s14, 2
          %v9885 = vld [vmem:[%s9884] sm:$0x1]
          %v9887 = vperm.slane %v9885, 0
          %v9893 = vunpack.c.l.b16 %v9880
          %v9894 = vunpack.c.l.b16 %v9881
          %v9895 = vunpack.c.l.b16 %v9882
          %v9896 = vunpack.c.l.b16 %v9883
          %v9897 = vpack.c.b16 %v9894, %v9893
          %v9898 = vpack.c.b16 %v9896, %v9895
          %v9902 = vsel %vm4574, %v9878, 0
          %9904 = vmatpush.bf16.msra.mxu0 0
          %9905 = vmatpush.bf16.msra.mxu0 0
          %9906 = vmatpush.bf16.msra.mxu0 0
          %9907 = vmatpush.bf16.msra.mxu0 0
          %9908 = vmatpush.bf16.msra.mxu0 0
          %9909 = vmatpush.bf16.msra.mxu0 0
          %9910 = vmatpush.bf16.msra.mxu0 %v9898
          %9911 = vmatpush.bf16.msra.mxu0 %v9897
          %9912 = vmatmul.bf16.gmra.mxu0 %v9902
          %v9913 = vpop.f32.mrf.mxu0
          %v9914 = vadd.f32 %v9887, %v9913
          %v9915 = vpop.f32.mrf.mxu0
          %v9916 = vadd.f32 %v9887, %v9915
          %9917 = vdwg.mxu0
          %v9918 = vadd.f32 %v9794, %v9914
          %v9919 = vadd.f32 %v9795, %v9916
          %v9920 = vld [vmem:[%s15] sm:$0x1]
          %v9921 = vld [vmem:[%s16] sm:$0x1]
          %v9922 = vsel %vm4574, %v9918, 0.0
          %9923 = vadd.xlane.f32.xlu0 %v9922
          %v9924 = vpop.xlane.xlu0 %9923
          %v9925 = vsel %vm4574, %v9919, 0.0
          %9926 = vadd.xlane.f32.xlu0 %v9925
          %v9927 = vpop.xlane.xlu0 %9926
          %v9928 = vmul.f32 %v9924, %v9747
          %v9929 = vmul.f32 %v9927, %v9747
          %v9930 = vsub.f32 %v9918, %v9928
          %v9931 = vsub.f32 %v9919, %v9929
          %v9932 = vmul.f32 %v9930, %v9930
          %v9933 = vmul.f32 %v9931, %v9931
          %v9934 = vsel %vm4574, %v9932, 0.0
          %9935 = vadd.xlane.f32.xlu0 %v9934
          %v9936 = vpop.xlane.xlu0 %9935
          %v9937 = vsel %vm4574, %v9933, 0.0
          %9938 = vadd.xlane.f32.xlu0 %v9937
          %v9939 = vpop.xlane.xlu0 %9938
          %v9940 = vmul.f32 %v9936, %v9747
          %v9941 = vmul.f32 %v9939, %v9747
          %v9942 = vadd.f32 %v9940, 1e-05
          %v9943 = vadd.f32 %v9941, 1e-05
          %v9944 = vrsqrt.pop %v9942
          %v9945 = vmul.f32 %v9944, %v9942
          %v9946 = vmul.f32 %v9945, %v9944
          %v9947 = vmul.f32 0.5, %v9946
          %v9948 = vsub.f32 1.5, %v9947
          %v9949 = vmul.f32 %v9944, %v9948
          %vm9950 = vweird.f32 %v9942
          %vm9951 = vweird.f32 %v9944
          %vm9952 = vmor %vm9950, %vm9951
          %v9953 = vsel %vm9952, %v9944, %v9949
          %v9954 = vrsqrt.pop %v9943
          %v9955 = vmul.f32 %v9954, %v9943
          %v9956 = vmul.f32 %v9955, %v9954
          %v9957 = vmul.f32 0.5, %v9956
          %v9958 = vsub.f32 1.5, %v9957
          %v9959 = vmul.f32 %v9954, %v9958
          %vm9960 = vweird.f32 %v9943
          %vm9961 = vweird.f32 %v9954
          %vm9962 = vmor %vm9960, %vm9961
          %v9963 = vsel %vm9962, %v9954, %v9959
          %v9964 = vmul.f32 %v9930, %v9953
          %v9965 = vmul.f32 %v9931, %v9963
          %v9967 = vperm.slane %v9920, 0
          %v9969 = vmul.f32 %v9964, %v9967
          %v9970 = vmul.f32 %v9965, %v9967
          %v9972 = vperm.slane %v9921, 0
          %v9974 = vadd.f32 %v9969, %v9972
          %v9975 = vadd.f32 %v9970, %v9972
          %v9976 = vpack.c.bf16 %v9975, %v9974
          %v9977 = vld [vmem:[%s17] sm:$0xf]
          %v9978 = vld [vmem:[%s17 + $0x4] sm:$0xf]
          %v9979 = vld [vmem:[%s17 + $0x8] sm:$0xf]
          %v9980 = vld [vmem:[%s17 + $0xc] sm:$0xf]
          %v9981 = vld [vmem:[%s18] sm:$0x1]
          %v9983 = vperm.slane %v9981, 0
          %v9989 = vunpack.c.l.b16 %v9977
          %v9990 = vunpack.c.l.b16 %v9978
          %v9991 = vunpack.c.l.b16 %v9979
          %v9992 = vunpack.c.l.b16 %v9980
          %v9993 = vpack.c.b16 %v9990, %v9989
          %v9994 = vpack.c.b16 %v9992, %v9991
          %v9998 = vsel %vm4574, %v9976, 0
          %10000 = vmatpush.bf16.msra.mxu0 0
          %10001 = vmatpush.bf16.msra.mxu0 0
          %10002 = vmatpush.bf16.msra.mxu0 0
          %10003 = vmatpush.bf16.msra.mxu0 0
          %10004 = vmatpush.bf16.msra.mxu0 0
          %10005 = vmatpush.bf16.msra.mxu0 0
          %10006 = vmatpush.bf16.msra.mxu0 %v9994
          %10007 = vmatpush.bf16.msra.mxu0 %v9993
          %10008 = vmatmul.bf16.gmra.mxu0 %v9998
          %v10009 = vpop.f32.mrf.mxu0
          %v10010 = vadd.f32 %v9983, %v10009
          %v10011 = vpop.f32.mrf.mxu0
          %v10012 = vadd.f32 %v9983, %v10011
          %10013 = vdwg.mxu0
          %10016 = vrot.lane.b32.xlu0 %v10010, 32
          %v10017 = vpop.permute.xlu0 %10016
          %10018 = vrot.lane.b32.xlu0 %v10012, 32
          %v10019 = vpop.permute.xlu0 %10018
          %v10022 = vsel %vm4574, %v9974, %v10017
          %v10023 = vsel %vm4574, %v9975, %v10019
          %10024 = vst [vmem:[%s801] sm:$0xff] %v10022
          %10025 = vst [vmem:[%s801 + $0x8] sm:$0xff] %v10023
        $region145: #{structure_net_forward.2} parent=132 // pred_fallthru
          _
        %p10026 = scmp.lt.s32.totalorder %s34, 1
        %s10027 = scalar_select %p10026, %s34, 1
        %s10028 = smul.addr %s10027, 2
        %s10029 = smul.addr %s10028, 8
        %s10030 = scalar_lea.vmem %s19, %s10029
        // Predicated region
        $region146: #{structure_net_forward.2} parent=132 // pred_check
          %p10031 = pneg %p486
        $region147: #{structure_net_forward.2} parent=132 // pred_check_branch
          %10033 = sbr.rel (%p10031) target = $region149
        $region148: #{structure_net_forward.2} parent=132 // pred_region
          _
        $region149: #{structure_net_forward.2} parent=132 // pred_fallthru
          _
      $region133: #{structure_net_forward.2} parent=5 // pred_fallthru
        _
      %p10034 = scmp.le.s32.totalorder 2, %s25
      // Predicated region
      $region150: #{structure_net_forward.2} parent=5 // pred_check
        %p10035 = pneg %p10034
      $region151: #{structure_net_forward.2} parent=5 // pred_check_branch
        %10037 = sbr.rel (%p10035) target = $region153
      $region152: #{structure_net_forward.2} parent=5 // pred_region
        %s10038 = ssub.s32 %s25, 2
        // Predicated region
        $region154: #{structure_net_forward.2} parent=152 // pred_check
          %p10039 = pneg %p492
        $region155: #{structure_net_forward.2} parent=152 // pred_check_branch
          %10041 = sbr.rel (%p10039) target = $region157
        $region156: #{structure_net_forward.2} parent=152 // pred_region
          %p10042 = scmp.lt.s32.totalorder %s36, 1
          %s10043 = scalar_select %p10042, %s36, 1
          %s10044 = smul.addr %s10043, 2
          %s10045 = smul.addr %s10044, 8
          %s10046 = scalar_lea.vmem %s19, %s10045
        $region157: #{structure_net_forward.2} parent=152 // pred_fallthru
          _
      $region153: #{structure_net_forward.2} parent=5 // pred_fallthru
        _
    $region6: #{structure_net_forward.2} parent=1 // loop_footer
      %s29 = sadd.s32 1, %s25
    $region7: #{structure_net_forward.2} parent=1 // loop_footer_branch
      %24 = sbr.rel target = $region3
    $region8: #{structure_net_forward.2} parent=1 // loop_exit
      _

</llo_original>
